<compile_context>
chip_gen: v6e
topology: v6e:2x2x1
jax: 0.10.0
libtpu: 0.0.40
codegen_flags: <defaults>
</compile_context>

<pallas_src>
import jax
import jax.numpy as jnp
import numpy as np
from jax.experimental import pallas as pl
from jax.experimental.pallas import tpu as pltpu


TB = 8   # images per grid step (review sweet spot 8-16; keeps grid >= 2 for B >= 16)


# ------------------------------ fused kernel -------------------------------

def _fused_net_kernel(x_ref, w1_ref, b1_ref, s1_ref, p1_ref,
                      w2_ref, b2_ref, s2_ref, p2_ref,
                      wf1_ref, bf1_ref, s3_ref,
                      wf2_ref, bf2_ref, wf3_ref, bf3_ref, out_ref):
    f32 = jnp.float32
    bf16 = jnp.bfloat16

    # Input block: TB images stacked along rows.  Row r = t*32 + h,
    # col = w*4 + c (c=3 is a zero pad slot), bf16, lane-dense 128 cols.
    x2 = x_ref[...]                                            # (TB*32, 128)

    # ---- conv1: 3 -> 6 (padded to 8) channels, 32x32 -> 28x28 ---------------
    # Per kh, the per-image row shift x[t, h+kh] is an exact 0/1 block-diagonal
    # selection matmul (s1[kh]); the kw/cin contraction lives in the
    # block-Toeplitz weight w1[kh].  First iteration peeled (no zero init).
    acc1 = None
    for kh in range(5):
        xs = jnp.dot(s1_ref[kh], x2,
                     preferred_element_type=f32).astype(bf16)        # (TB*28, 128)
        part = jnp.dot(xs, w1_ref[kh], preferred_element_type=f32)   # (TB*28, 224)
        acc1 = part if acc1 is None else acc1 + part
    a1 = jnp.maximum(acc1 + b1_ref[...], 0.0)                 # bias + ReLU (f32 VPU)

    # ---- maxpool 2x2 stride 2: 28x28 -> 14x14 -------------------------------
    # Column-pair max on the VPU (lane shift); the 2h / 2h+1 row picks are
    # selection matmuls followed by a max.  Even-COLUMN selection is folded
    # into w2 (zero weight rows for odd column groups).
    mc = jnp.maximum(a1[:, :-8], a1[:, 8:]).astype(bf16)       # (TB*28, 216)
    pooled1 = jnp.maximum(
        jnp.dot(p1_ref[0], mc, preferred_element_type=f32),
        jnp.dot(p1_ref[1], mc, preferred_element_type=f32),
    ).astype(bf16)                                             # (TB*14, 216)

    # ---- conv2: 6 -> 16 channels, 14x14 -> 10x10 ----------------------------
    acc2 = None
    for kh in range(5):
        ps = jnp.dot(s2_ref[kh], pooled1,
                     preferred_element_type=f32).astype(bf16)        # (TB*10, 216)
        part = jnp.dot(ps, w2_ref[kh], preferred_element_type=f32)   # (TB*10, 160)
        acc2 = part if acc2 is None else acc2 + part
    a2 = jnp.maximum(acc2 + b2_ref[...], 0.0)

    # ---- maxpool 2x2 stride 2: 10x10 -> 5x5 ---------------------------------
    mc2 = jnp.maximum(a2[:, :-16], a2[:, 16:]).astype(bf16)    # (TB*10, 144)
    pooled2 = jnp.maximum(
        jnp.dot(p2_ref[0], mc2, preferred_element_type=f32),
        jnp.dot(p2_ref[1], mc2, preferred_element_type=f32),
    ).astype(bf16)                                             # (TB*5, 144)

    # ---- fc1 (400 -> 120, padded to 128): torch-flatten order is folded into
    # the per-row weight blocks; the per-image row gather is a selection matmul.
    acc3 = None
    for h in range(5):
        fs = jnp.dot(s3_ref[h], pooled2,
                     preferred_element_type=f32).astype(bf16)        # (TB, 144)
        part = jnp.dot(fs, wf1_ref[h], preferred_element_type=f32)   # (TB, 128)
        acc3 = part if acc3 is None else acc3 + part
    h1 = jnp.maximum(acc3 + bf1_ref[...], 0.0)                 # (TB, 128)

    # ---- fc2 (120 -> 84, padded to 128) -------------------------------------
    h2 = jnp.maximum(
        jnp.dot(h1.astype(bf16), wf2_ref[...], preferred_element_type=f32)
        + bf2_ref[...], 0.0)

    # ---- fc3 (84 -> 10, padded to 128): lane-dense (TB, 128) store ----------
    logits = (jnp.dot(h2.astype(bf16), wf3_ref[...], preferred_element_type=f32)
              + bf3_ref[...])
    out_ref[...] = logits.astype(out_ref.dtype)


# --------------------------- wrapper / pallas_call --------------------------

def _rep_spec(shape):
    """Whole-array VMEM block, same block for every grid step (stays resident)."""
    rank = len(shape)

    def index_map(s):
        return (0,) * rank

    return pl.BlockSpec(shape, index_map)


def net_forward(x_nchw, pp):
    """Forward pass. x_nchw: (B, 3, 32, 32) float32 (PyTorch layout)."""
    B = x_nchw.shape[0]
    assert x_nchw.shape[1:] == (3, 32, 32)
    B_pad = ((B + TB - 1) // TB) * TB

    # NCHW -> channel-minor slab; pad channel slot 3->4 (lane-dense 128 cols),
    # pad batch to a multiple of TB, cast to bf16, stack images along rows.
    x = jnp.transpose(x_nchw, (0, 2, 3, 1))                    # (B, 32, 32, 3)
    x = jnp.pad(x, ((0, B_pad - B), (0, 0), (0, 0), (0, 1)))   # (B_pad, 32, 32, 4)
    x2d = x.astype(jnp.bfloat16).reshape(B_pad * 32, 128)      # row = b*32 + h

    out = pl.pallas_call(
        _fused_net_kernel,
        out_shape=jax.ShapeDtypeStruct((B_pad, 128), jnp.float32),
        grid_spec=pltpu.PrefetchScalarGridSpec(
            num_scalar_prefetch=0,
            grid=(B_pad // TB,),
            in_specs=[
                pl.BlockSpec((TB * 32, 128), lambda s: (s, 0)),  # TB-image block
                _rep_spec((5, 128, 224)),          # conv1 block-Toeplitz (bf16)
                _rep_spec((1, 224)),               # conv1 bias row (f32)
                _rep_spec((5, TB * 28, TB * 32)),  # conv1 kh row-shift selects
                _rep_spec((2, TB * 14, TB * 28)),  # pool1 row-pick selects
                _rep_spec((5, 216, 160)),          # conv2 block-Toeplitz (bf16)
                _rep_spec((1, 160)),               # conv2 bias row (f32)
                _rep_spec((5, TB * 10, TB * 14)),  # conv2 kh row-shift selects
                _rep_spec((2, TB * 5, TB * 10)),   # pool2 row-pick selects
                _rep_spec((5, 144, 128)),          # fc1 weights per pooled row (bf16)
                _rep_spec((1, 128)),               # fc1 bias
                _rep_spec((5, TB, TB * 5)),        # fc1 row-gather selects
                _rep_spec((128, 128)),             # fc2 weights (bf16)
                _rep_spec((1, 128)),               # fc2 bias
                _rep_spec((128, 128)),             # fc3 weights (bf16)
                _rep_spec((1, 128)),               # fc3 bias
            ],
            out_specs=pl.BlockSpec((TB, 128), lambda s: (s, 0)),
        ),
        compiler_params=pltpu.CompilerParams(
            dimension_semantics=("parallel",)),    # image blocks shard over TCs
    )(x2d, pp["w1t"], pp["b1"], pp["s1"], pp["p1"], pp["w2t"], pp["b2"],
      pp["s2"], pp["p2"], pp["wf1"], pp["bf1"], pp["s3"], pp["wf2"], pp["bf2"],
      pp["wf3"], pp["bf3"])
    return out[:B, :10]


# --------------------------- one-time weight prep ---------------------------

def _block_diag_select(tb, rows_out, rows_in, offsets, stride):
    """Stack of exact 0/1 row-selection matrices, block-diagonal over images.

    mats[n, t*rows_out + i, t*rows_in + stride*i + offsets[n]] = 1
    """
    mats = np.zeros((len(offsets), tb * rows_out, tb * rows_in), np.float32)
    for n, off in enumerate(offsets):
        for t in range(tb):
            for i in range(rows_out):
                mats[n, t * rows_out + i, t * rows_in + stride * i + off] = 1.0
    return jnp.asarray(mats, dtype=jnp.bfloat16)


def prepare_params(p, tb=TB):
    """Torch-layout params -> kernel layouts (block-Toeplitz convs, padded fcs,
    block-diagonal row-selection matrices for the batched row-stacked layout)."""
    bf16 = jnp.bfloat16

    def conv_toeplitz(w_oihw, n_in_pos, n_out_pos, cin_slots, cout_slots, in_width):
        # T[kh, w*cin_slots + ci, wo*cout_slots + co] = w[co, ci, kh, w - wo]
        cout, cin, k, _ = w_oihw.shape
        wt = jnp.transpose(w_oihw, (2, 3, 1, 0)).astype(jnp.float32)  # (kh,kw,ci,co)
        wt = jnp.pad(wt, ((0, 0), (0, 0),
                          (0, cin_slots - cin), (0, cout_slots - cout)))
        t = jnp.zeros((k, n_in_pos, cin_slots, n_out_pos, cout_slots), jnp.float32)
        for kw in range(k):
            d = jnp.eye(n_in_pos, n_out_pos, k=-kw, dtype=jnp.float32)
            t = t + jnp.einsum('wW,hcd->hwcWd', d, wt[:, kw])
        t = t.reshape(k, n_in_pos * cin_slots, n_out_pos * cout_slots)
        return t[:, :in_width, :].astype(bf16)

    # conv1: input cols = w*4+ci (128 wide, ci=3 is a zero pad slot);
    #        output cols = wo*8+co.
    w1t = conv_toeplitz(p["conv1_w"], 32, 28, 4, 8, 128)       # (5, 128, 224)
    # conv2: input cols = 16*wp+ci on the pooled slab (216 wide; odd-wp and
    # pad-channel rows get zero weights -> pool column selection folded in).
    w2t = conv_toeplitz(p["conv2_w"], 14, 10, 16, 16, 216)     # (5, 216, 160)

    # fc1: torch flatten order is (c, h, w); pooled2 columns are 32*wp + c.
    wf1 = p["fc1_w"].reshape(16, 5, 5, 120)                    # (c, h, w, o)
    wf1 = jnp.transpose(wf1, (1, 2, 0, 3))                     # (h, w, c, o)
    wf1 = jnp.pad(wf1, ((0, 0), (0, 0), (0, 16), (0, 8)))      # (5, 5, 32, 128)
    wf1 = wf1.reshape(5, 160, 128)[:, :144, :].astype(bf16)    # (5, 144, 128)

    wf2 = jnp.pad(p["fc2_w"], ((0, 8), (0, 44))).astype(bf16)      # (128, 128)
    wf3 = jnp.pad(p["fc3_w"], ((0, 44), (0, 118))).astype(bf16)    # (128, 128)

    b1 = jnp.tile(jnp.pad(p["conv1_b"], (0, 2)), 28).reshape(1, 224)
    b2 = jnp.tile(p["conv2_b"], 10).reshape(1, 160)
    bf1 = jnp.pad(p["fc1_b"], (0, 8)).reshape(1, 128)
    bf2 = jnp.pad(p["fc2_b"], (0, 44)).reshape(1, 128)
    bf3 = jnp.pad(p["fc3_b"], (0, 118)).reshape(1, 128)

    # Block-diagonal 0/1 row selections for the row-stacked batched layout:
    #   s1/s2/s3: per-kh (per-h) image-local row shifts for conv1/conv2/fc1;
    #   p1/p2  : the 2h and 2h+1 row picks of the two 2x2 max-pools.
    s1 = _block_diag_select(tb, 28, 32, tuple(range(5)), 1)    # (5, tb*28, tb*32)
    p1 = _block_diag_select(tb, 14, 28, (0, 1), 2)             # (2, tb*14, tb*28)
    s2 = _block_diag_select(tb, 10, 14, tuple(range(5)), 1)    # (5, tb*10, tb*14)
    p2 = _block_diag_select(tb, 5, 10, (0, 1), 2)              # (2, tb*5,  tb*10)
    s3 = _block_diag_select(tb, 1, 5, tuple(range(5)), 1)      # (5, tb,    tb*5)

    return {"w1t": w1t, "b1": b1, "s1": s1, "p1": p1, "w2t": w2t, "b2": b2,
            "s2": s2, "p2": p2, "wf1": wf1, "bf1": bf1, "s3": s3, "wf2": wf2,
            "bf2": bf2, "wf3": wf3, "bf3": bf3}


# ------------------------- pure-JAX reference (check) ----------------------

def net_reference(x, p):
    def conv(y, w, b):
        dn = jax.lax.conv_dimension_numbers(y.shape, w.shape,
                                            ("NCHW", "OIHW", "NCHW"))
        y = jax.lax.conv_general_dilated(y, w, (1, 1), "VALID",
                                         dimension_numbers=dn)
        return jax.nn.relu(y + b[None, :, None, None])

    def pool(y):
        return jax.lax.reduce_window(y, -jnp.inf, jax.lax.max,
                                     (1, 1, 2, 2), (1, 1, 2, 2), "VALID")

    y = pool(conv(x, p["conv1_w"], p["conv1_b"]))
    y = pool(conv(y, p["conv2_w"], p["conv2_b"]))
    y = y.reshape(y.shape[0], -1)
    y = jax.nn.relu(y @ p["fc1_w"] + p["fc1_b"])
    y = jax.nn.relu(y @ p["fc2_w"] + p["fc2_b"])
    return y @ p["fc3_w"] + p["fc3_b"]


# ------------------------------ param init ---------------------------------

def init_params(key):
    def uniform(k, shape, fan_in):
        bound = 1.0 / np.sqrt(fan_in)
        return jax.random.uniform(k, shape, jnp.float32, -bound, bound)

    ks = jax.random.split(key, 10)
    return {
        "conv1_w": uniform(ks[0], (6, 3, 5, 5), 3 * 5 * 5),
        "conv1_b": uniform(ks[1], (6,), 3 * 5 * 5),
        "conv2_w": uniform(ks[2], (16, 6, 5, 5), 6 * 5 * 5),
        "conv2_b": uniform(ks[3], (16,), 6 * 5 * 5),
        "fc1_w": uniform(ks[4], (400, 120), 400),   # (in, out) = torch W.T
        "fc1_b": uniform(ks[5], (120,), 400),
        "fc2_w": uniform(ks[6], (120, 84), 120),
        "fc2_b": uniform(ks[7], (84,), 120),
        "fc3_w": uniform(ks[8], (84, 10), 84),
        "fc3_b": uniform(ks[9], (10,), 84),
    }


if __name__ == "__main__":
    key = jax.random.PRNGKey(0)
    pkey, xkey = jax.random.split(key)
    params = init_params(pkey)
    # CIFAR-10 sized input (fc1 in_features = 16*5*5 implies 3x32x32).
    # B=12 exercises both the batch-tail padding (12 -> 16) and a 2-step grid.
    x = jax.random.normal(xkey, (12, 3, 32, 32), jnp.float32)

    prepped = prepare_params(params)          # one-time weight layout prep
    fwd = jax.jit(net_forward)
    out = jax.block_until_ready(fwd(x, prepped))

    ref = jax.block_until_ready(net_reference(x, params))
    assert out.shape == (12, 10) and out.dtype == jnp.float32
    np.testing.assert_allclose(np.asarray(out), np.asarray(ref),
                               rtol=2e-2, atol=2e-2)
    print("KERNEL_OK")
</pallas_src>

<mosaic_0001>
module attributes {stable_mosaic.version = 11 : i64} {
  func.func @_fused_net_kernel(%arg0: i32, %arg1: memref<256x128xbf16, #tpu.memory_space<vmem>>, %arg2: memref<5x128x224xbf16, #tpu.memory_space<vmem>>, %arg3: memref<1x224xf32, #tpu.memory_space<vmem>>, %arg4: memref<5x224x256xbf16, #tpu.memory_space<vmem>>, %arg5: memref<2x112x224xbf16, #tpu.memory_space<vmem>>, %arg6: memref<5x216x160xbf16, #tpu.memory_space<vmem>>, %arg7: memref<1x160xf32, #tpu.memory_space<vmem>>, %arg8: memref<5x80x112xbf16, #tpu.memory_space<vmem>>, %arg9: memref<2x40x80xbf16, #tpu.memory_space<vmem>>, %arg10: memref<5x144x128xbf16, #tpu.memory_space<vmem>>, %arg11: memref<1x128xf32, #tpu.memory_space<vmem>>, %arg12: memref<5x8x40xbf16, #tpu.memory_space<vmem>>, %arg13: memref<128x128xbf16, #tpu.memory_space<vmem>>, %arg14: memref<1x128xf32, #tpu.memory_space<vmem>>, %arg15: memref<128x128xbf16, #tpu.memory_space<vmem>>, %arg16: memref<1x128xf32, #tpu.memory_space<vmem>>, %arg17: memref<8x128xf32, #tpu.memory_space<vmem>>) attributes {dimension_semantics = [#tpu.dimension_semantics<parallel>], iteration_bounds = array<i64: 2>, scalar_prefetch = 0 : i64, scratch_operands = 0 : i64, tpu.core_type = #tpu.core_type<tc>, window_params = [{transform_indices = @transform_0, window_bounds = array<i64: 256, 128>}, {pipeline_mode = #tpu.pipeline_mode<synchronous>, transform_indices = @transform_1, window_bounds = array<i64: 5, 128, 224>}, {pipeline_mode = #tpu.pipeline_mode<synchronous>, transform_indices = @transform_2, window_bounds = array<i64: 1, 224>}, {pipeline_mode = #tpu.pipeline_mode<synchronous>, transform_indices = @transform_3, window_bounds = array<i64: 5, 224, 256>}, {pipeline_mode = #tpu.pipeline_mode<synchronous>, transform_indices = @transform_4, window_bounds = array<i64: 2, 112, 224>}, {pipeline_mode = #tpu.pipeline_mode<synchronous>, transform_indices = @transform_5, window_bounds = array<i64: 5, 216, 160>}, {pipeline_mode = #tpu.pipeline_mode<synchronous>, transform_indices = @transform_6, window_bounds = array<i64: 1, 160>}, {pipeline_mode = #tpu.pipeline_mode<synchronous>, transform_indices = @transform_7, window_bounds = array<i64: 5, 80, 112>}, {pipeline_mode = #tpu.pipeline_mode<synchronous>, transform_indices = @transform_8, window_bounds = array<i64: 2, 40, 80>}, {pipeline_mode = #tpu.pipeline_mode<synchronous>, transform_indices = @transform_9, window_bounds = array<i64: 5, 144, 128>}, {pipeline_mode = #tpu.pipeline_mode<synchronous>, transform_indices = @transform_10, window_bounds = array<i64: 1, 128>}, {pipeline_mode = #tpu.pipeline_mode<synchronous>, transform_indices = @transform_11, window_bounds = array<i64: 5, 8, 40>}, {pipeline_mode = #tpu.pipeline_mode<synchronous>, transform_indices = @transform_12, window_bounds = array<i64: 128, 128>}, {pipeline_mode = #tpu.pipeline_mode<synchronous>, transform_indices = @transform_13, window_bounds = array<i64: 1, 128>}, {pipeline_mode = #tpu.pipeline_mode<synchronous>, transform_indices = @transform_14, window_bounds = array<i64: 128, 128>}, {pipeline_mode = #tpu.pipeline_mode<synchronous>, transform_indices = @transform_15, window_bounds = array<i64: 1, 128>}, {transform_indices = @transform_16, window_bounds = array<i64: 8, 128>}]} {
    %c0 = arith.constant 0 : index
    %c0_0 = arith.constant 0 : index
    %0 = vector.load %arg1[%c0, %c0_0] : memref<256x128xbf16, #tpu.memory_space<vmem>>, vector<256x128xbf16>
    %c0_1 = arith.constant 0 : index
    %c0_2 = arith.constant 0 : index
    %c0_3 = arith.constant 0 : index
    %1 = vector.load %arg4[%c0_1, %c0_2, %c0_3] : memref<5x224x256xbf16, #tpu.memory_space<vmem>>, vector<1x224x256xbf16>
    %2 = vector.shape_cast %1 : vector<1x224x256xbf16> to vector<224x256xbf16>
    %cst = arith.constant dense<0.000000e+00> : vector<224x128xf32>
    %3 = tpu.matmul %2, %0, %cst {dimension_numbers = #tpu.dot_dimension_numbers<[1], [0], [0], [1], [0, 0, 1, 1], [], []>} : vector<224x256xbf16>, vector<256x128xbf16>, vector<224x128xf32> -> vector<224x128xf32>
    %4 = arith.truncf %3 : vector<224x128xf32> to vector<224x128xbf16>
    %c0_4 = arith.constant 0 : index
    %c0_5 = arith.constant 0 : index
    %c0_6 = arith.constant 0 : index
    %5 = vector.load %arg2[%c0_4, %c0_5, %c0_6] : memref<5x128x224xbf16, #tpu.memory_space<vmem>>, vector<1x128x224xbf16>
    %6 = vector.shape_cast %5 : vector<1x128x224xbf16> to vector<128x224xbf16>
    %cst_7 = arith.constant dense<0.000000e+00> : vector<224x224xf32>
    %7 = tpu.matmul %4, %6, %cst_7 {dimension_numbers = #tpu.dot_dimension_numbers<[1], [0], [0], [1], [0, 0, 1, 1], [], []>} : vector<224x128xbf16>, vector<128x224xbf16>, vector<224x224xf32> -> vector<224x224xf32>
    %c1 = arith.constant 1 : index
    %c0_8 = arith.constant 0 : index
    %c0_9 = arith.constant 0 : index
    %8 = vector.load %arg4[%c1, %c0_8, %c0_9] : memref<5x224x256xbf16, #tpu.memory_space<vmem>>, vector<1x224x256xbf16>
    %9 = vector.shape_cast %8 : vector<1x224x256xbf16> to vector<224x256xbf16>
    %cst_10 = arith.constant dense<0.000000e+00> : vector<224x128xf32>
    %10 = tpu.matmul %9, %0, %cst_10 {dimension_numbers = #tpu.dot_dimension_numbers<[1], [0], [0], [1], [0, 0, 1, 1], [], []>} : vector<224x256xbf16>, vector<256x128xbf16>, vector<224x128xf32> -> vector<224x128xf32>
    %11 = arith.truncf %10 : vector<224x128xf32> to vector<224x128xbf16>
    %c1_11 = arith.constant 1 : index
    %c0_12 = arith.constant 0 : index
    %c0_13 = arith.constant 0 : index
    %12 = vector.load %arg2[%c1_11, %c0_12, %c0_13] : memref<5x128x224xbf16, #tpu.memory_space<vmem>>, vector<1x128x224xbf16>
    %13 = vector.shape_cast %12 : vector<1x128x224xbf16> to vector<128x224xbf16>
    %cst_14 = arith.constant dense<0.000000e+00> : vector<224x224xf32>
    %14 = tpu.matmul %11, %13, %cst_14 {dimension_numbers = #tpu.dot_dimension_numbers<[1], [0], [0], [1], [0, 0, 1, 1], [], []>} : vector<224x128xbf16>, vector<128x224xbf16>, vector<224x224xf32> -> vector<224x224xf32>
    %15 = arith.addf %7, %14 : vector<224x224xf32>
    %c2 = arith.constant 2 : index
    %c0_15 = arith.constant 0 : index
    %c0_16 = arith.constant 0 : index
    %16 = vector.load %arg4[%c2, %c0_15, %c0_16] : memref<5x224x256xbf16, #tpu.memory_space<vmem>>, vector<1x224x256xbf16>
    %17 = vector.shape_cast %16 : vector<1x224x256xbf16> to vector<224x256xbf16>
    %cst_17 = arith.constant dense<0.000000e+00> : vector<224x128xf32>
    %18 = tpu.matmul %17, %0, %cst_17 {dimension_numbers = #tpu.dot_dimension_numbers<[1], [0], [0], [1], [0, 0, 1, 1], [], []>} : vector<224x256xbf16>, vector<256x128xbf16>, vector<224x128xf32> -> vector<224x128xf32>
    %19 = arith.truncf %18 : vector<224x128xf32> to vector<224x128xbf16>
    %c2_18 = arith.constant 2 : index
    %c0_19 = arith.constant 0 : index
    %c0_20 = arith.constant 0 : index
    %20 = vector.load %arg2[%c2_18, %c0_19, %c0_20] : memref<5x128x224xbf16, #tpu.memory_space<vmem>>, vector<1x128x224xbf16>
    %21 = vector.shape_cast %20 : vector<1x128x224xbf16> to vector<128x224xbf16>
    %cst_21 = arith.constant dense<0.000000e+00> : vector<224x224xf32>
    %22 = tpu.matmul %19, %21, %cst_21 {dimension_numbers = #tpu.dot_dimension_numbers<[1], [0], [0], [1], [0, 0, 1, 1], [], []>} : vector<224x128xbf16>, vector<128x224xbf16>, vector<224x224xf32> -> vector<224x224xf32>
    %23 = arith.addf %15, %22 : vector<224x224xf32>
    %c3 = arith.constant 3 : index
    %c0_22 = arith.constant 0 : index
    %c0_23 = arith.constant 0 : index
    %24 = vector.load %arg4[%c3, %c0_22, %c0_23] : memref<5x224x256xbf16, #tpu.memory_space<vmem>>, vector<1x224x256xbf16>
    %25 = vector.shape_cast %24 : vector<1x224x256xbf16> to vector<224x256xbf16>
    %cst_24 = arith.constant dense<0.000000e+00> : vector<224x128xf32>
    %26 = tpu.matmul %25, %0, %cst_24 {dimension_numbers = #tpu.dot_dimension_numbers<[1], [0], [0], [1], [0, 0, 1, 1], [], []>} : vector<224x256xbf16>, vector<256x128xbf16>, vector<224x128xf32> -> vector<224x128xf32>
    %27 = arith.truncf %26 : vector<224x128xf32> to vector<224x128xbf16>
    %c3_25 = arith.constant 3 : index
    %c0_26 = arith.constant 0 : index
    %c0_27 = arith.constant 0 : index
    %28 = vector.load %arg2[%c3_25, %c0_26, %c0_27] : memref<5x128x224xbf16, #tpu.memory_space<vmem>>, vector<1x128x224xbf16>
    %29 = vector.shape_cast %28 : vector<1x128x224xbf16> to vector<128x224xbf16>
    %cst_28 = arith.constant dense<0.000000e+00> : vector<224x224xf32>
    %30 = tpu.matmul %27, %29, %cst_28 {dimension_numbers = #tpu.dot_dimension_numbers<[1], [0], [0], [1], [0, 0, 1, 1], [], []>} : vector<224x128xbf16>, vector<128x224xbf16>, vector<224x224xf32> -> vector<224x224xf32>
    %31 = arith.addf %23, %30 : vector<224x224xf32>
    %c4 = arith.constant 4 : index
    %c0_29 = arith.constant 0 : index
    %c0_30 = arith.constant 0 : index
    %32 = vector.load %arg4[%c4, %c0_29, %c0_30] : memref<5x224x256xbf16, #tpu.memory_space<vmem>>, vector<1x224x256xbf16>
    %33 = vector.shape_cast %32 : vector<1x224x256xbf16> to vector<224x256xbf16>
    %cst_31 = arith.constant dense<0.000000e+00> : vector<224x128xf32>
    %34 = tpu.matmul %33, %0, %cst_31 {dimension_numbers = #tpu.dot_dimension_numbers<[1], [0], [0], [1], [0, 0, 1, 1], [], []>} : vector<224x256xbf16>, vector<256x128xbf16>, vector<224x128xf32> -> vector<224x128xf32>
    %35 = arith.truncf %34 : vector<224x128xf32> to vector<224x128xbf16>
    %c4_32 = arith.constant 4 : index
    %c0_33 = arith.constant 0 : index
    %c0_34 = arith.constant 0 : index
    %36 = vector.load %arg2[%c4_32, %c0_33, %c0_34] : memref<5x128x224xbf16, #tpu.memory_space<vmem>>, vector<1x128x224xbf16>
    %37 = vector.shape_cast %36 : vector<1x128x224xbf16> to vector<128x224xbf16>
    %cst_35 = arith.constant dense<0.000000e+00> : vector<224x224xf32>
    %38 = tpu.matmul %35, %37, %cst_35 {dimension_numbers = #tpu.dot_dimension_numbers<[1], [0], [0], [1], [0, 0, 1, 1], [], []>} : vector<224x128xbf16>, vector<128x224xbf16>, vector<224x224xf32> -> vector<224x224xf32>
    %39 = arith.addf %31, %38 : vector<224x224xf32>
    %c0_36 = arith.constant 0 : index
    %c0_37 = arith.constant 0 : index
    %40 = vector.load %arg3[%c0_36, %c0_37] : memref<1x224xf32, #tpu.memory_space<vmem>>, vector<1x224xf32>
    %41 = vector.broadcast %40 : vector<1x224xf32> to vector<224x224xf32>
    %42 = arith.addf %39, %41 : vector<224x224xf32>
    %cst_38 = arith.constant 0.000000e+00 : f32
    %43 = vector.broadcast %cst_38 : f32 to vector<224x224xf32>
    %44 = arith.maximumf %42, %43 : vector<224x224xf32>
    %45 = vector.extract_strided_slice %44 {offsets = [0, 0], sizes = [224, 216], strides = [1, 1]} : vector<224x224xf32> to vector<224x216xf32>
    %46 = vector.extract_strided_slice %44 {offsets = [0, 8], sizes = [224, 216], strides = [1, 1]} : vector<224x224xf32> to vector<224x216xf32>
    %47 = arith.maximumf %45, %46 : vector<224x216xf32>
    %48 = arith.truncf %47 : vector<224x216xf32> to vector<224x216xbf16>
    %c0_39 = arith.constant 0 : index
    %c0_40 = arith.constant 0 : index
    %c0_41 = arith.constant 0 : index
    %49 = vector.load %arg5[%c0_39, %c0_40, %c0_41] : memref<2x112x224xbf16, #tpu.memory_space<vmem>>, vector<1x112x224xbf16>
    %50 = vector.shape_cast %49 : vector<1x112x224xbf16> to vector<112x224xbf16>
    %cst_42 = arith.constant dense<0.000000e+00> : vector<112x216xf32>
    %51 = tpu.matmul %50, %48, %cst_42 {dimension_numbers = #tpu.dot_dimension_numbers<[1], [0], [0], [1], [0, 0, 1, 1], [], []>} : vector<112x224xbf16>, vector<224x216xbf16>, vector<112x216xf32> -> vector<112x216xf32>
    %c1_43 = arith.constant 1 : index
    %c0_44 = arith.constant 0 : index
    %c0_45 = arith.constant 0 : index
    %52 = vector.load %arg5[%c1_43, %c0_44, %c0_45] : memref<2x112x224xbf16, #tpu.memory_space<vmem>>, vector<1x112x224xbf16>
    %53 = vector.shape_cast %52 : vector<1x112x224xbf16> to vector<112x224xbf16>
    %cst_46 = arith.constant dense<0.000000e+00> : vector<112x216xf32>
    %54 = tpu.matmul %53, %48, %cst_46 {dimension_numbers = #tpu.dot_dimension_numbers<[1], [0], [0], [1], [0, 0, 1, 1], [], []>} : vector<112x224xbf16>, vector<224x216xbf16>, vector<112x216xf32> -> vector<112x216xf32>
    %55 = arith.maximumf %51, %54 : vector<112x216xf32>
    %56 = arith.truncf %55 : vector<112x216xf32> to vector<112x216xbf16>
    %c0_47 = arith.constant 0 : index
    %c0_48 = arith.constant 0 : index
    %c0_49 = arith.constant 0 : index
    %57 = vector.load %arg8[%c0_47, %c0_48, %c0_49] : memref<5x80x112xbf16, #tpu.memory_space<vmem>>, vector<1x80x112xbf16>
    %58 = vector.shape_cast %57 : vector<1x80x112xbf16> to vector<80x112xbf16>
    %cst_50 = arith.constant dense<0.000000e+00> : vector<80x216xf32>
    %59 = tpu.matmul %58, %56, %cst_50 {dimension_numbers = #tpu.dot_dimension_numbers<[1], [0], [0], [1], [0, 0, 1, 1], [], []>} : vector<80x112xbf16>, vector<112x216xbf16>, vector<80x216xf32> -> vector<80x216xf32>
    %60 = arith.truncf %59 : vector<80x216xf32> to vector<80x216xbf16>
    %c0_51 = arith.constant 0 : index
    %c0_52 = arith.constant 0 : index
    %c0_53 = arith.constant 0 : index
    %61 = vector.load %arg6[%c0_51, %c0_52, %c0_53] : memref<5x216x160xbf16, #tpu.memory_space<vmem>>, vector<1x216x160xbf16>
    %62 = vector.shape_cast %61 : vector<1x216x160xbf16> to vector<216x160xbf16>
    %cst_54 = arith.constant dense<0.000000e+00> : vector<80x160xf32>
    %63 = tpu.matmul %60, %62, %cst_54 {dimension_numbers = #tpu.dot_dimension_numbers<[1], [0], [0], [1], [0, 0, 1, 1], [], []>} : vector<80x216xbf16>, vector<216x160xbf16>, vector<80x160xf32> -> vector<80x160xf32>
    %c1_55 = arith.constant 1 : index
    %c0_56 = arith.constant 0 : index
    %c0_57 = arith.constant 0 : index
    %64 = vector.load %arg8[%c1_55, %c0_56, %c0_57] : memref<5x80x112xbf16, #tpu.memory_space<vmem>>, vector<1x80x112xbf16>
    %65 = vector.shape_cast %64 : vector<1x80x112xbf16> to vector<80x112xbf16>
    %cst_58 = arith.constant dense<0.000000e+00> : vector<80x216xf32>
    %66 = tpu.matmul %65, %56, %cst_58 {dimension_numbers = #tpu.dot_dimension_numbers<[1], [0], [0], [1], [0, 0, 1, 1], [], []>} : vector<80x112xbf16>, vector<112x216xbf16>, vector<80x216xf32> -> vector<80x216xf32>
    %67 = arith.truncf %66 : vector<80x216xf32> to vector<80x216xbf16>
    %c1_59 = arith.constant 1 : index
    %c0_60 = arith.constant 0 : index
    %c0_61 = arith.constant 0 : index
    %68 = vector.load %arg6[%c1_59, %c0_60, %c0_61] : memref<5x216x160xbf16, #tpu.memory_space<vmem>>, vector<1x216x160xbf16>
    %69 = vector.shape_cast %68 : vector<1x216x160xbf16> to vector<216x160xbf16>
    %cst_62 = arith.constant dense<0.000000e+00> : vector<80x160xf32>
    %70 = tpu.matmul %67, %69, %cst_62 {dimension_numbers = #tpu.dot_dimension_numbers<[1], [0], [0], [1], [0, 0, 1, 1], [], []>} : vector<80x216xbf16>, vector<216x160xbf16>, vector<80x160xf32> -> vector<80x160xf32>
    %71 = arith.addf %63, %70 : vector<80x160xf32>
    %c2_63 = arith.constant 2 : index
    %c0_64 = arith.constant 0 : index
    %c0_65 = arith.constant 0 : index
    %72 = vector.load %arg8[%c2_63, %c0_64, %c0_65] : memref<5x80x112xbf16, #tpu.memory_space<vmem>>, vector<1x80x112xbf16>
    %73 = vector.shape_cast %72 : vector<1x80x112xbf16> to vector<80x112xbf16>
    %cst_66 = arith.constant dense<0.000000e+00> : vector<80x216xf32>
    %74 = tpu.matmul %73, %56, %cst_66 {dimension_numbers = #tpu.dot_dimension_numbers<[1], [0], [0], [1], [0, 0, 1, 1], [], []>} : vector<80x112xbf16>, vector<112x216xbf16>, vector<80x216xf32> -> vector<80x216xf32>
    %75 = arith.truncf %74 : vector<80x216xf32> to vector<80x216xbf16>
    %c2_67 = arith.constant 2 : index
    %c0_68 = arith.constant 0 : index
    %c0_69 = arith.constant 0 : index
    %76 = vector.load %arg6[%c2_67, %c0_68, %c0_69] : memref<5x216x160xbf16, #tpu.memory_space<vmem>>, vector<1x216x160xbf16>
    %77 = vector.shape_cast %76 : vector<1x216x160xbf16> to vector<216x160xbf16>
    %cst_70 = arith.constant dense<0.000000e+00> : vector<80x160xf32>
    %78 = tpu.matmul %75, %77, %cst_70 {dimension_numbers = #tpu.dot_dimension_numbers<[1], [0], [0], [1], [0, 0, 1, 1], [], []>} : vector<80x216xbf16>, vector<216x160xbf16>, vector<80x160xf32> -> vector<80x160xf32>
    %79 = arith.addf %71, %78 : vector<80x160xf32>
    %c3_71 = arith.constant 3 : index
    %c0_72 = arith.constant 0 : index
    %c0_73 = arith.constant 0 : index
    %80 = vector.load %arg8[%c3_71, %c0_72, %c0_73] : memref<5x80x112xbf16, #tpu.memory_space<vmem>>, vector<1x80x112xbf16>
    %81 = vector.shape_cast %80 : vector<1x80x112xbf16> to vector<80x112xbf16>
    %cst_74 = arith.constant dense<0.000000e+00> : vector<80x216xf32>
    %82 = tpu.matmul %81, %56, %cst_74 {dimension_numbers = #tpu.dot_dimension_numbers<[1], [0], [0], [1], [0, 0, 1, 1], [], []>} : vector<80x112xbf16>, vector<112x216xbf16>, vector<80x216xf32> -> vector<80x216xf32>
    %83 = arith.truncf %82 : vector<80x216xf32> to vector<80x216xbf16>
    %c3_75 = arith.constant 3 : index
    %c0_76 = arith.constant 0 : index
    %c0_77 = arith.constant 0 : index
    %84 = vector.load %arg6[%c3_75, %c0_76, %c0_77] : memref<5x216x160xbf16, #tpu.memory_space<vmem>>, vector<1x216x160xbf16>
    %85 = vector.shape_cast %84 : vector<1x216x160xbf16> to vector<216x160xbf16>
    %cst_78 = arith.constant dense<0.000000e+00> : vector<80x160xf32>
    %86 = tpu.matmul %83, %85, %cst_78 {dimension_numbers = #tpu.dot_dimension_numbers<[1], [0], [0], [1], [0, 0, 1, 1], [], []>} : vector<80x216xbf16>, vector<216x160xbf16>, vector<80x160xf32> -> vector<80x160xf32>
    %87 = arith.addf %79, %86 : vector<80x160xf32>
    %c4_79 = arith.constant 4 : index
    %c0_80 = arith.constant 0 : index
    %c0_81 = arith.constant 0 : index
    %88 = vector.load %arg8[%c4_79, %c0_80, %c0_81] : memref<5x80x112xbf16, #tpu.memory_space<vmem>>, vector<1x80x112xbf16>
    %89 = vector.shape_cast %88 : vector<1x80x112xbf16> to vector<80x112xbf16>
    %cst_82 = arith.constant dense<0.000000e+00> : vector<80x216xf32>
    %90 = tpu.matmul %89, %56, %cst_82 {dimension_numbers = #tpu.dot_dimension_numbers<[1], [0], [0], [1], [0, 0, 1, 1], [], []>} : vector<80x112xbf16>, vector<112x216xbf16>, vector<80x216xf32> -> vector<80x216xf32>
    %91 = arith.truncf %90 : vector<80x216xf32> to vector<80x216xbf16>
    %c4_83 = arith.constant 4 : index
    %c0_84 = arith.constant 0 : index
    %c0_85 = arith.constant 0 : index
    %92 = vector.load %arg6[%c4_83, %c0_84, %c0_85] : memref<5x216x160xbf16, #tpu.memory_space<vmem>>, vector<1x216x160xbf16>
    %93 = vector.shape_cast %92 : vector<1x216x160xbf16> to vector<216x160xbf16>
    %cst_86 = arith.constant dense<0.000000e+00> : vector<80x160xf32>
    %94 = tpu.matmul %91, %93, %cst_86 {dimension_numbers = #tpu.dot_dimension_numbers<[1], [0], [0], [1], [0, 0, 1, 1], [], []>} : vector<80x216xbf16>, vector<216x160xbf16>, vector<80x160xf32> -> vector<80x160xf32>
    %95 = arith.addf %87, %94 : vector<80x160xf32>
    %c0_87 = arith.constant 0 : index
    %c0_88 = arith.constant 0 : index
    %96 = vector.load %arg7[%c0_87, %c0_88] : memref<1x160xf32, #tpu.memory_space<vmem>>, vector<1x160xf32>
    %97 = vector.broadcast %96 : vector<1x160xf32> to vector<80x160xf32>
    %98 = arith.addf %95, %97 : vector<80x160xf32>
    %cst_89 = arith.constant 0.000000e+00 : f32
    %99 = vector.broadcast %cst_89 : f32 to vector<80x160xf32>
    %100 = arith.maximumf %98, %99 : vector<80x160xf32>
    %101 = vector.extract_strided_slice %100 {offsets = [0, 0], sizes = [80, 144], strides = [1, 1]} : vector<80x160xf32> to vector<80x144xf32>
    %102 = vector.extract_strided_slice %100 {offsets = [0, 16], sizes = [80, 144], strides = [1, 1]} : vector<80x160xf32> to vector<80x144xf32>
    %103 = arith.maximumf %101, %102 : vector<80x144xf32>
    %104 = arith.truncf %103 : vector<80x144xf32> to vector<80x144xbf16>
    %c0_90 = arith.constant 0 : index
    %c0_91 = arith.constant 0 : index
    %c0_92 = arith.constant 0 : index
    %105 = vector.load %arg9[%c0_90, %c0_91, %c0_92] : memref<2x40x80xbf16, #tpu.memory_space<vmem>>, vector<1x40x80xbf16>
    %106 = vector.shape_cast %105 : vector<1x40x80xbf16> to vector<40x80xbf16>
    %cst_93 = arith.constant dense<0.000000e+00> : vector<40x144xf32>
    %107 = tpu.matmul %106, %104, %cst_93 {dimension_numbers = #tpu.dot_dimension_numbers<[1], [0], [0], [1], [0, 0, 1, 1], [], []>} : vector<40x80xbf16>, vector<80x144xbf16>, vector<40x144xf32> -> vector<40x144xf32>
    %c1_94 = arith.constant 1 : index
    %c0_95 = arith.constant 0 : index
    %c0_96 = arith.constant 0 : index
    %108 = vector.load %arg9[%c1_94, %c0_95, %c0_96] : memref<2x40x80xbf16, #tpu.memory_space<vmem>>, vector<1x40x80xbf16>
    %109 = vector.shape_cast %108 : vector<1x40x80xbf16> to vector<40x80xbf16>
    %cst_97 = arith.constant dense<0.000000e+00> : vector<40x144xf32>
    %110 = tpu.matmul %109, %104, %cst_97 {dimension_numbers = #tpu.dot_dimension_numbers<[1], [0], [0], [1], [0, 0, 1, 1], [], []>} : vector<40x80xbf16>, vector<80x144xbf16>, vector<40x144xf32> -> vector<40x144xf32>
    %111 = arith.maximumf %107, %110 : vector<40x144xf32>
    %112 = arith.truncf %111 : vector<40x144xf32> to vector<40x144xbf16>
    %c0_98 = arith.constant 0 : index
    %c0_99 = arith.constant 0 : index
    %c0_100 = arith.constant 0 : index
    %113 = vector.load %arg12[%c0_98, %c0_99, %c0_100] : memref<5x8x40xbf16, #tpu.memory_space<vmem>>, vector<1x8x40xbf16>
    %114 = vector.shape_cast %113 : vector<1x8x40xbf16> to vector<8x40xbf16>
    %cst_101 = arith.constant dense<0.000000e+00> : vector<8x144xf32>
    %115 = tpu.matmul %114, %112, %cst_101 {dimension_numbers = #tpu.dot_dimension_numbers<[1], [0], [0], [1], [0, 0, 1, 1], [], []>} : vector<8x40xbf16>, vector<40x144xbf16>, vector<8x144xf32> -> vector<8x144xf32>
    %116 = arith.truncf %115 : vector<8x144xf32> to vector<8x144xbf16>
    %c0_102 = arith.constant 0 : index
    %c0_103 = arith.constant 0 : index
    %c0_104 = arith.constant 0 : index
    %117 = vector.load %arg10[%c0_102, %c0_103, %c0_104] : memref<5x144x128xbf16, #tpu.memory_space<vmem>>, vector<1x144x128xbf16>
    %118 = vector.shape_cast %117 : vector<1x144x128xbf16> to vector<144x128xbf16>
    %cst_105 = arith.constant dense<0.000000e+00> : vector<8x128xf32>
    %119 = tpu.matmul %116, %118, %cst_105 {dimension_numbers = #tpu.dot_dimension_numbers<[1], [0], [0], [1], [0, 0, 1, 1], [], []>} : vector<8x144xbf16>, vector<144x128xbf16>, vector<8x128xf32> -> vector<8x128xf32>
    %c1_106 = arith.constant 1 : index
    %c0_107 = arith.constant 0 : index
    %c0_108 = arith.constant 0 : index
    %120 = vector.load %arg12[%c1_106, %c0_107, %c0_108] : memref<5x8x40xbf16, #tpu.memory_space<vmem>>, vector<1x8x40xbf16>
    %121 = vector.shape_cast %120 : vector<1x8x40xbf16> to vector<8x40xbf16>
    %cst_109 = arith.constant dense<0.000000e+00> : vector<8x144xf32>
    %122 = tpu.matmul %121, %112, %cst_109 {dimension_numbers = #tpu.dot_dimension_numbers<[1], [0], [0], [1], [0, 0, 1, 1], [], []>} : vector<8x40xbf16>, vector<40x144xbf16>, vector<8x144xf32> -> vector<8x144xf32>
    %123 = arith.truncf %122 : vector<8x144xf32> to vector<8x144xbf16>
    %c1_110 = arith.constant 1 : index
    %c0_111 = arith.constant 0 : index
    %c0_112 = arith.constant 0 : index
    %124 = vector.load %arg10[%c1_110, %c0_111, %c0_112] : memref<5x144x128xbf16, #tpu.memory_space<vmem>>, vector<1x144x128xbf16>
    %125 = vector.shape_cast %124 : vector<1x144x128xbf16> to vector<144x128xbf16>
    %cst_113 = arith.constant dense<0.000000e+00> : vector<8x128xf32>
    %126 = tpu.matmul %123, %125, %cst_113 {dimension_numbers = #tpu.dot_dimension_numbers<[1], [0], [0], [1], [0, 0, 1, 1], [], []>} : vector<8x144xbf16>, vector<144x128xbf16>, vector<8x128xf32> -> vector<8x128xf32>
    %127 = arith.addf %119, %126 : vector<8x128xf32>
    %c2_114 = arith.constant 2 : index
    %c0_115 = arith.constant 0 : index
    %c0_116 = arith.constant 0 : index
    %128 = vector.load %arg12[%c2_114, %c0_115, %c0_116] : memref<5x8x40xbf16, #tpu.memory_space<vmem>>, vector<1x8x40xbf16>
    %129 = vector.shape_cast %128 : vector<1x8x40xbf16> to vector<8x40xbf16>
    %cst_117 = arith.constant dense<0.000000e+00> : vector<8x144xf32>
    %130 = tpu.matmul %129, %112, %cst_117 {dimension_numbers = #tpu.dot_dimension_numbers<[1], [0], [0], [1], [0, 0, 1, 1], [], []>} : vector<8x40xbf16>, vector<40x144xbf16>, vector<8x144xf32> -> vector<8x144xf32>
    %131 = arith.truncf %130 : vector<8x144xf32> to vector<8x144xbf16>
    %c2_118 = arith.constant 2 : index
    %c0_119 = arith.constant 0 : index
    %c0_120 = arith.constant 0 : index
    %132 = vector.load %arg10[%c2_118, %c0_119, %c0_120] : memref<5x144x128xbf16, #tpu.memory_space<vmem>>, vector<1x144x128xbf16>
    %133 = vector.shape_cast %132 : vector<1x144x128xbf16> to vector<144x128xbf16>
    %cst_121 = arith.constant dense<0.000000e+00> : vector<8x128xf32>
    %134 = tpu.matmul %131, %133, %cst_121 {dimension_numbers = #tpu.dot_dimension_numbers<[1], [0], [0], [1], [0, 0, 1, 1], [], []>} : vector<8x144xbf16>, vector<144x128xbf16>, vector<8x128xf32> -> vector<8x128xf32>
    %135 = arith.addf %127, %134 : vector<8x128xf32>
    %c3_122 = arith.constant 3 : index
    %c0_123 = arith.constant 0 : index
    %c0_124 = arith.constant 0 : index
    %136 = vector.load %arg12[%c3_122, %c0_123, %c0_124] : memref<5x8x40xbf16, #tpu.memory_space<vmem>>, vector<1x8x40xbf16>
    %137 = vector.shape_cast %136 : vector<1x8x40xbf16> to vector<8x40xbf16>
    %cst_125 = arith.constant dense<0.000000e+00> : vector<8x144xf32>
    %138 = tpu.matmul %137, %112, %cst_125 {dimension_numbers = #tpu.dot_dimension_numbers<[1], [0], [0], [1], [0, 0, 1, 1], [], []>} : vector<8x40xbf16>, vector<40x144xbf16>, vector<8x144xf32> -> vector<8x144xf32>
    %139 = arith.truncf %138 : vector<8x144xf32> to vector<8x144xbf16>
    %c3_126 = arith.constant 3 : index
    %c0_127 = arith.constant 0 : index
    %c0_128 = arith.constant 0 : index
    %140 = vector.load %arg10[%c3_126, %c0_127, %c0_128] : memref<5x144x128xbf16, #tpu.memory_space<vmem>>, vector<1x144x128xbf16>
    %141 = vector.shape_cast %140 : vector<1x144x128xbf16> to vector<144x128xbf16>
    %cst_129 = arith.constant dense<0.000000e+00> : vector<8x128xf32>
    %142 = tpu.matmul %139, %141, %cst_129 {dimension_numbers = #tpu.dot_dimension_numbers<[1], [0], [0], [1], [0, 0, 1, 1], [], []>} : vector<8x144xbf16>, vector<144x128xbf16>, vector<8x128xf32> -> vector<8x128xf32>
    %143 = arith.addf %135, %142 : vector<8x128xf32>
    %c4_130 = arith.constant 4 : index
    %c0_131 = arith.constant 0 : index
    %c0_132 = arith.constant 0 : index
    %144 = vector.load %arg12[%c4_130, %c0_131, %c0_132] : memref<5x8x40xbf16, #tpu.memory_space<vmem>>, vector<1x8x40xbf16>
    %145 = vector.shape_cast %144 : vector<1x8x40xbf16> to vector<8x40xbf16>
    %cst_133 = arith.constant dense<0.000000e+00> : vector<8x144xf32>
    %146 = tpu.matmul %145, %112, %cst_133 {dimension_numbers = #tpu.dot_dimension_numbers<[1], [0], [0], [1], [0, 0, 1, 1], [], []>} : vector<8x40xbf16>, vector<40x144xbf16>, vector<8x144xf32> -> vector<8x144xf32>
    %147 = arith.truncf %146 : vector<8x144xf32> to vector<8x144xbf16>
    %c4_134 = arith.constant 4 : index
    %c0_135 = arith.constant 0 : index
    %c0_136 = arith.constant 0 : index
    %148 = vector.load %arg10[%c4_134, %c0_135, %c0_136] : memref<5x144x128xbf16, #tpu.memory_space<vmem>>, vector<1x144x128xbf16>
    %149 = vector.shape_cast %148 : vector<1x144x128xbf16> to vector<144x128xbf16>
    %cst_137 = arith.constant dense<0.000000e+00> : vector<8x128xf32>
    %150 = tpu.matmul %147, %149, %cst_137 {dimension_numbers = #tpu.dot_dimension_numbers<[1], [0], [0], [1], [0, 0, 1, 1], [], []>} : vector<8x144xbf16>, vector<144x128xbf16>, vector<8x128xf32> -> vector<8x128xf32>
    %151 = arith.addf %143, %150 : vector<8x128xf32>
    %c0_138 = arith.constant 0 : index
    %c0_139 = arith.constant 0 : index
    %152 = vector.load %arg11[%c0_138, %c0_139] : memref<1x128xf32, #tpu.memory_space<vmem>>, vector<1x128xf32>
    %153 = vector.broadcast %152 : vector<1x128xf32> to vector<8x128xf32>
    %154 = arith.addf %151, %153 : vector<8x128xf32>
    %cst_140 = arith.constant 0.000000e+00 : f32
    %155 = vector.broadcast %cst_140 : f32 to vector<8x128xf32>
    %156 = arith.maximumf %154, %155 : vector<8x128xf32>
    %157 = arith.truncf %156 : vector<8x128xf32> to vector<8x128xbf16>
    %c0_141 = arith.constant 0 : index
    %c0_142 = arith.constant 0 : index
    %158 = vector.load %arg13[%c0_141, %c0_142] : memref<128x128xbf16, #tpu.memory_space<vmem>>, vector<128x128xbf16>
    %cst_143 = arith.constant dense<0.000000e+00> : vector<8x128xf32>
    %159 = tpu.matmul %157, %158, %cst_143 {dimension_numbers = #tpu.dot_dimension_numbers<[1], [0], [0], [1], [0, 0, 1, 1], [], []>} : vector<8x128xbf16>, vector<128x128xbf16>, vector<8x128xf32> -> vector<8x128xf32>
    %c0_144 = arith.constant 0 : index
    %c0_145 = arith.constant 0 : index
    %160 = vector.load %arg14[%c0_144, %c0_145] : memref<1x128xf32, #tpu.memory_space<vmem>>, vector<1x128xf32>
    %161 = vector.broadcast %160 : vector<1x128xf32> to vector<8x128xf32>
    %162 = arith.addf %159, %161 : vector<8x128xf32>
    %cst_146 = arith.constant 0.000000e+00 : f32
    %163 = vector.broadcast %cst_146 : f32 to vector<8x128xf32>
    %164 = arith.maximumf %162, %163 : vector<8x128xf32>
    %165 = arith.truncf %164 : vector<8x128xf32> to vector<8x128xbf16>
    %c0_147 = arith.constant 0 : index
    %c0_148 = arith.constant 0 : index
    %166 = vector.load %arg15[%c0_147, %c0_148] : memref<128x128xbf16, #tpu.memory_space<vmem>>, vector<128x128xbf16>
    %cst_149 = arith.constant dense<0.000000e+00> : vector<8x128xf32>
    %167 = tpu.matmul %165, %166, %cst_149 {dimension_numbers = #tpu.dot_dimension_numbers<[1], [0], [0], [1], [0, 0, 1, 1], [], []>} : vector<8x128xbf16>, vector<128x128xbf16>, vector<8x128xf32> -> vector<8x128xf32>
    %c0_150 = arith.constant 0 : index
    %c0_151 = arith.constant 0 : index
    %168 = vector.load %arg16[%c0_150, %c0_151] : memref<1x128xf32, #tpu.memory_space<vmem>>, vector<1x128xf32>
    %169 = vector.broadcast %168 : vector<1x128xf32> to vector<8x128xf32>
    %170 = arith.addf %167, %169 : vector<8x128xf32>
    %c0_152 = arith.constant 0 : index
    %c0_153 = arith.constant 0 : index
    %171 = vector.load %arg17[%c0_152, %c0_153] : memref<8x128xf32, #tpu.memory_space<vmem>>, vector<8x128xf32>
    tpu.vector_store %arg17[%c0_152, %c0_153], %170 {strides = array<i32>} : memref<8x128xf32, #tpu.memory_space<vmem>>, vector<8x128xf32>,
    return
  }
  func.func @transform_0(%arg0: i32) -> (i32, i32) {
    %c0_i32 = arith.constant 0 : i32
    %c0_i32_0 = arith.constant 0 : i32
    return %arg0, %c0_i32 : i32, i32
  }
  func.func @transform_1(%arg0: i32) -> (i32, i32, i32) {
    %c0_i32 = arith.constant 0 : i32
    %c0_i32_0 = arith.constant 0 : i32
    %c0_i32_1 = arith.constant 0 : i32
    %c0_i32_2 = arith.constant 0 : i32
    return %c0_i32, %c0_i32_0, %c0_i32_1 : i32, i32, i32
  }
  func.func @transform_2(%arg0: i32) -> (i32, i32) {
    %c0_i32 = arith.constant 0 : i32
    %c0_i32_0 = arith.constant 0 : i32
    %c0_i32_1 = arith.constant 0 : i32
    return %c0_i32, %c0_i32_0 : i32, i32
  }
  func.func @transform_3(%arg0: i32) -> (i32, i32, i32) {
    %c0_i32 = arith.constant 0 : i32
    %c0_i32_0 = arith.constant 0 : i32
    %c0_i32_1 = arith.constant 0 : i32
    %c0_i32_2 = arith.constant 0 : i32
    return %c0_i32, %c0_i32_0, %c0_i32_1 : i32, i32, i32
  }
  func.func @transform_4(%arg0: i32) -> (i32, i32, i32) {
    %c0_i32 = arith.constant 0 : i32
    %c0_i32_0 = arith.constant 0 : i32
    %c0_i32_1 = arith.constant 0 : i32
    %c0_i32_2 = arith.constant 0 : i32
    return %c0_i32, %c0_i32_0, %c0_i32_1 : i32, i32, i32
  }
  func.func @transform_5(%arg0: i32) -> (i32, i32, i32) {
    %c0_i32 = arith.constant 0 : i32
    %c0_i32_0 = arith.constant 0 : i32
    %c0_i32_1 = arith.constant 0 : i32
    %c0_i32_2 = arith.constant 0 : i32
    return %c0_i32, %c0_i32_0, %c0_i32_1 : i32, i32, i32
  }
  func.func @transform_6(%arg0: i32) -> (i32, i32) {
    %c0_i32 = arith.constant 0 : i32
    %c0_i32_0 = arith.constant 0 : i32
    %c0_i32_1 = arith.constant 0 : i32
    return %c0_i32, %c0_i32_0 : i32, i32
  }
  func.func @transform_7(%arg0: i32) -> (i32, i32, i32) {
    %c0_i32 = arith.constant 0 : i32
    %c0_i32_0 = arith.constant 0 : i32
    %c0_i32_1 = arith.constant 0 : i32
    %c0_i32_2 = arith.constant 0 : i32
    return %c0_i32, %c0_i32_0, %c0_i32_1 : i32, i32, i32
  }
  func.func @transform_8(%arg0: i32) -> (i32, i32, i32) {
    %c0_i32 = arith.constant 0 : i32
    %c0_i32_0 = arith.constant 0 : i32
    %c0_i32_1 = arith.constant 0 : i32
    %c0_i32_2 = arith.constant 0 : i32
    return %c0_i32, %c0_i32_0, %c0_i32_1 : i32, i32, i32
  }
  func.func @transform_9(%arg0: i32) -> (i32, i32, i32) {
    %c0_i32 = arith.constant 0 : i32
    %c0_i32_0 = arith.constant 0 : i32
    %c0_i32_1 = arith.constant 0 : i32
    %c0_i32_2 = arith.constant 0 : i32
    return %c0_i32, %c0_i32_0, %c0_i32_1 : i32, i32, i32
  }
  func.func @transform_10(%arg0: i32) -> (i32, i32) {
    %c0_i32 = arith.constant 0 : i32
    %c0_i32_0 = arith.constant 0 : i32
    %c0_i32_1 = arith.constant 0 : i32
    return %c0_i32, %c0_i32_0 : i32, i32
  }
  func.func @transform_11(%arg0: i32) -> (i32, i32, i32) {
    %c0_i32 = arith.constant 0 : i32
    %c0_i32_0 = arith.constant 0 : i32
    %c0_i32_1 = arith.constant 0 : i32
    %c0_i32_2 = arith.constant 0 : i32
    return %c0_i32, %c0_i32_0, %c0_i32_1 : i32, i32, i32
  }
  func.func @transform_12(%arg0: i32) -> (i32, i32) {
    %c0_i32 = arith.constant 0 : i32
    %c0_i32_0 = arith.constant 0 : i32
    %c0_i32_1 = arith.constant 0 : i32
    return %c0_i32, %c0_i32_0 : i32, i32
  }
  func.func @transform_13(%arg0: i32) -> (i32, i32) {
    %c0_i32 = arith.constant 0 : i32
    %c0_i32_0 = arith.constant 0 : i32
    %c0_i32_1 = arith.constant 0 : i32
    return %c0_i32, %c0_i32_0 : i32, i32
  }
  func.func @transform_14(%arg0: i32) -> (i32, i32) {
    %c0_i32 = arith.constant 0 : i32
    %c0_i32_0 = arith.constant 0 : i32
    %c0_i32_1 = arith.constant 0 : i32
    return %c0_i32, %c0_i32_0 : i32, i32
  }
  func.func @transform_15(%arg0: i32) -> (i32, i32) {
    %c0_i32 = arith.constant 0 : i32
    %c0_i32_0 = arith.constant 0 : i32
    %c0_i32_1 = arith.constant 0 : i32
    return %c0_i32, %c0_i32_0 : i32, i32
  }
  func.func @transform_16(%arg0: i32) -> (i32, i32) {
    %c0_i32 = arith.constant 0 : i32
    %c0_i32_0 = arith.constant 0 : i32
    return %arg0, %c0_i32 : i32, i32
  }
}

</mosaic_0001>

<llo_original>
// kernel: net_forward.1
$region0: #{net_forward.1}
  #allocation0 [shape = 'u32[]', space=smem, size = 0x4, offset = 0x4, fixed_abs, tag = 'smem constant byte address 0x4 - core index']
  #allocation1 [shape = 'u32[144,128]{1,0:T(1,128)}', space=vmem, size = 0x12000, scoped, tag = 'internal scratch']
  %s0 = inlined_call_operand.vmem [shape: bf16[512,128], index: 0, kind: input, shape index: {}]
  %s1 = inlined_call_operand.vmem [shape: bf16[5,128,224], index: 1, kind: input, shape index: {}]
  %s2 = inlined_call_operand.vmem [shape: f32[1,224], index: 2, kind: input, shape index: {}]
  %s3 = inlined_call_operand.vmem [shape: bf16[5,224,256], index: 3, kind: input, shape index: {}]
  %s4 = inlined_call_operand.vmem [shape: bf16[2,112,224], index: 4, kind: input, shape index: {}]
  %s5 = inlined_call_operand.vmem [shape: bf16[5,216,160], index: 5, kind: input, shape index: {}]
  %s6 = inlined_call_operand.vmem [shape: f32[1,160], index: 6, kind: input, shape index: {}]
  %s7 = inlined_call_operand.vmem [shape: bf16[5,80,112], index: 7, kind: input, shape index: {}]
  %s8 = inlined_call_operand.vmem [shape: bf16[2,40,80], index: 8, kind: input, shape index: {}]
  %s9 = inlined_call_operand.vmem [shape: bf16[5,144,128], index: 9, kind: input, shape index: {}]
  %s10 = inlined_call_operand.vmem [shape: f32[1,128], index: 10, kind: input, shape index: {}]
  %s11 = inlined_call_operand.vmem [shape: bf16[5,8,40], index: 11, kind: input, shape index: {}]
  %s12 = inlined_call_operand.vmem [shape: bf16[128,128], index: 12, kind: input, shape index: {}]
  %s13 = inlined_call_operand.vmem [shape: f32[1,128], index: 13, kind: input, shape index: {}]
  %s14 = inlined_call_operand.vmem [shape: bf16[128,128], index: 14, kind: input, shape index: {}]
  %s15 = inlined_call_operand.vmem [shape: f32[1,128], index: 15, kind: input, shape index: {}]
  %s16 = inlined_call_operand.hbm [shape: f32[16,128], index: 16, kind: output, shape index: {}]
  %s17 = sld [smem:[#allocation0]]
  $region97: #{net_forward.1} parent=0
    _
  %s19 = ssub.s32 1, %s17
  %s20 = scalar_select 0, %s19, %s17
  $region1: #{net_forward.1} parent=0
    #allocation2 [shape = 'u8[8192]{0}', space=vmem, size = 0x2000, scoped, tag = 'output window, operand 0']
    #allocation3 [shape = 's32[2]{0}', space=sflag, size = 0x8, scoped, tag = 'scoped memory for net_forward.1']
    %21 = vsyncpa [#allocation3], 0
    %s22 = scalar_lea.sflag [#allocation3], 1
    %23 = vsyncpa %s22, 0
    loop: start=0, step=1, limit=4
    $region2: #{net_forward.1} parent=1 // loop_pre_header
      _
    $region3: #{net_forward.1} parent=1 // loop_header
      %s25 = sphi 0, %s29
      %p26 = scmp.ge.s32.totalorder %s25, 4
      %s35 = sphi 0, %s37
      %s38 = sphi 0, %s35
      %s39 = sphi 0, %s38
      %s55 = sphi 0, %s39
      %s59 = sphi 0, %s59
      %s61 = sphi 0, %s59
      %s62 = sphi 0, %s61
      %s76 = sphi 0, %s62
      %s80 = sphi 0, %s80
      %s82 = sphi 0, %s80
      %s83 = sphi 0, %s82
      %s97 = sphi 0, %s83
      %s101 = sphi 0, %s101
      %s103 = sphi 0, %s101
      %s104 = sphi 0, %s103
      %s118 = sphi 0, %s104
      %s122 = sphi 0, %s122
      %s124 = sphi 0, %s122
      %s125 = sphi 0, %s124
      %s139 = sphi 0, %s125
      %s143 = sphi 0, %s143
      %s145 = sphi 0, %s143
      %s146 = sphi 0, %s145
      %s160 = sphi 0, %s146
      %s164 = sphi 0, %s164
      %s166 = sphi 0, %s164
      %s167 = sphi 0, %s166
      %s181 = sphi 0, %s167
      %s185 = sphi 0, %s185
      %s187 = sphi 0, %s185
      %s188 = sphi 0, %s187
      %s202 = sphi 0, %s188
      %s206 = sphi 0, %s206
      %s208 = sphi 0, %s206
      %s209 = sphi 0, %s208
      %s223 = sphi 0, %s209
      %s227 = sphi 0, %s227
      %s229 = sphi 0, %s227
      %s230 = sphi 0, %s229
      %s244 = sphi 0, %s230
      %s248 = sphi 0, %s248
      %s250 = sphi 0, %s248
      %s251 = sphi 0, %s250
      %s265 = sphi 0, %s251
      %s269 = sphi 0, %s269
      %s271 = sphi 0, %s269
      %s272 = sphi 0, %s271
      %s286 = sphi 0, %s272
      %s290 = sphi 0, %s290
      %s292 = sphi 0, %s290
      %s293 = sphi 0, %s292
      %s307 = sphi 0, %s293
      %s311 = sphi 0, %s311
      %s313 = sphi 0, %s311
      %s314 = sphi 0, %s313
      %s328 = sphi 0, %s314
      %s332 = sphi 0, %s332
      %s334 = sphi 0, %s332
      %s335 = sphi 0, %s334
      %s349 = sphi 0, %s335
      %s353 = sphi 0, %s353
      %s355 = sphi 0, %s353
      %s356 = sphi 0, %s355
      %s370 = sphi 0, %s356
      %s376 = sphi 0, %s378
      %s379 = sphi 0, %s376
      %s380 = sphi 0, %s379
      %s396 = sphi 0, %s380
    $region4: #{net_forward.1} parent=1 // loop_header_branch
      %28 = sbr.rel (%p26) target = $region8
    $region5: #{net_forward.1} parent=1 // loop_body
      %s30 = ssub.s32 %s25, 1
      %s31 = ssub.s32 %s25, 2
      %s32 = sadd.s32 %s25, 1
      %s33 = ssub.s32 %s25, %s32
      %p34 = scmp.eq.s32.totalorder %s33, 0
      %s36 = sadd.s32 %s35, 1
      %s37 = scalar_select %p34, %s35, %s36
      %p40 = pneg %p34
      %p41 = scmp.eq.s32.totalorder %s25, 1
      %p42 = por %p40, %p41
      %p43 = scmp.ne.s32.totalorder %s35, %s38
      %p44 = scmp.eq.s32.totalorder %s25, 0
      %p45 = por %p43, %p44
      %p46 = scmp.ne.s32.totalorder %s35, %s38
      %p47 = scmp.eq.s32.totalorder %s30, 1
      %p48 = por %p46, %p47
      %p49 = scmp.ne.s32.totalorder %s38, %s39
      %p50 = scmp.eq.s32.totalorder %s30, 0
      %p51 = por %p49, %p50
      %p52 = scmp.ne.s32.totalorder %s38, %s39
      %p53 = scmp.eq.s32.totalorder %s31, 1
      %p54 = por %p52, %p53
      %p56 = scmp.ne.s32.totalorder %s39, %s55
      %p57 = scmp.eq.s32.totalorder %s31, 0
      %p58 = por %p56, %p57
      %s60 = sadd.s32 %s59, 1
      %p63 = scmp.eq.s32.totalorder %s25, 1
      %p64 = scmp.ne.s32.totalorder %s59, %s61
      %p65 = scmp.eq.s32.totalorder %s25, 0
      %p66 = por %p64, %p65
      %p67 = scmp.ne.s32.totalorder %s59, %s61
      %p68 = scmp.eq.s32.totalorder %s30, 1
      %p69 = por %p67, %p68
      %p70 = scmp.ne.s32.totalorder %s61, %s62
      %p71 = scmp.eq.s32.totalorder %s30, 0
      %p72 = por %p70, %p71
      %p73 = scmp.ne.s32.totalorder %s61, %s62
      %p74 = scmp.eq.s32.totalorder %s31, 1
      %p75 = por %p73, %p74
      %p77 = scmp.ne.s32.totalorder %s62, %s76
      %p78 = scmp.eq.s32.totalorder %s31, 0
      %p79 = por %p77, %p78
      %s81 = sadd.s32 %s80, 1
      %p84 = scmp.eq.s32.totalorder %s25, 1
      %p85 = scmp.ne.s32.totalorder %s80, %s82
      %p86 = scmp.eq.s32.totalorder %s25, 0
      %p87 = por %p85, %p86
      %p88 = scmp.ne.s32.totalorder %s80, %s82
      %p89 = scmp.eq.s32.totalorder %s30, 1
      %p90 = por %p88, %p89
      %p91 = scmp.ne.s32.totalorder %s82, %s83
      %p92 = scmp.eq.s32.totalorder %s30, 0
      %p93 = por %p91, %p92
      %p94 = scmp.ne.s32.totalorder %s82, %s83
      %p95 = scmp.eq.s32.totalorder %s31, 1
      %p96 = por %p94, %p95
      %p98 = scmp.ne.s32.totalorder %s83, %s97
      %p99 = scmp.eq.s32.totalorder %s31, 0
      %p100 = por %p98, %p99
      %s102 = sadd.s32 %s101, 1
      %p105 = scmp.eq.s32.totalorder %s25, 1
      %p106 = scmp.ne.s32.totalorder %s101, %s103
      %p107 = scmp.eq.s32.totalorder %s25, 0
      %p108 = por %p106, %p107
      %p109 = scmp.ne.s32.totalorder %s101, %s103
      %p110 = scmp.eq.s32.totalorder %s30, 1
      %p111 = por %p109, %p110
      %p112 = scmp.ne.s32.totalorder %s103, %s104
      %p113 = scmp.eq.s32.totalorder %s30, 0
      %p114 = por %p112, %p113
      %p115 = scmp.ne.s32.totalorder %s103, %s104
      %p116 = scmp.eq.s32.totalorder %s31, 1
      %p117 = por %p115, %p116
      %p119 = scmp.ne.s32.totalorder %s104, %s118
      %p120 = scmp.eq.s32.totalorder %s31, 0
      %p121 = por %p119, %p120
      %s123 = sadd.s32 %s122, 1
      %p126 = scmp.eq.s32.totalorder %s25, 1
      %p127 = scmp.ne.s32.totalorder %s122, %s124
      %p128 = scmp.eq.s32.totalorder %s25, 0
      %p129 = por %p127, %p128
      %p130 = scmp.ne.s32.totalorder %s122, %s124
      %p131 = scmp.eq.s32.totalorder %s30, 1
      %p132 = por %p130, %p131
      %p133 = scmp.ne.s32.totalorder %s124, %s125
      %p134 = scmp.eq.s32.totalorder %s30, 0
      %p135 = por %p133, %p134
      %p136 = scmp.ne.s32.totalorder %s124, %s125
      %p137 = scmp.eq.s32.totalorder %s31, 1
      %p138 = por %p136, %p137
      %p140 = scmp.ne.s32.totalorder %s125, %s139
      %p141 = scmp.eq.s32.totalorder %s31, 0
      %p142 = por %p140, %p141
      %s144 = sadd.s32 %s143, 1
      %p147 = scmp.eq.s32.totalorder %s25, 1
      %p148 = scmp.ne.s32.totalorder %s143, %s145
      %p149 = scmp.eq.s32.totalorder %s25, 0
      %p150 = por %p148, %p149
      %p151 = scmp.ne.s32.totalorder %s143, %s145
      %p152 = scmp.eq.s32.totalorder %s30, 1
      %p153 = por %p151, %p152
      %p154 = scmp.ne.s32.totalorder %s145, %s146
      %p155 = scmp.eq.s32.totalorder %s30, 0
      %p156 = por %p154, %p155
      %p157 = scmp.ne.s32.totalorder %s145, %s146
      %p158 = scmp.eq.s32.totalorder %s31, 1
      %p159 = por %p157, %p158
      %p161 = scmp.ne.s32.totalorder %s146, %s160
      %p162 = scmp.eq.s32.totalorder %s31, 0
      %p163 = por %p161, %p162
      %s165 = sadd.s32 %s164, 1
      %p168 = scmp.eq.s32.totalorder %s25, 1
      %p169 = scmp.ne.s32.totalorder %s164, %s166
      %p170 = scmp.eq.s32.totalorder %s25, 0
      %p171 = por %p169, %p170
      %p172 = scmp.ne.s32.totalorder %s164, %s166
      %p173 = scmp.eq.s32.totalorder %s30, 1
      %p174 = por %p172, %p173
      %p175 = scmp.ne.s32.totalorder %s166, %s167
      %p176 = scmp.eq.s32.totalorder %s30, 0
      %p177 = por %p175, %p176
      %p178 = scmp.ne.s32.totalorder %s166, %s167
      %p179 = scmp.eq.s32.totalorder %s31, 1
      %p180 = por %p178, %p179
      %p182 = scmp.ne.s32.totalorder %s167, %s181
      %p183 = scmp.eq.s32.totalorder %s31, 0
      %p184 = por %p182, %p183
      %s186 = sadd.s32 %s185, 1
      %p189 = scmp.eq.s32.totalorder %s25, 1
      %p190 = scmp.ne.s32.totalorder %s185, %s187
      %p191 = scmp.eq.s32.totalorder %s25, 0
      %p192 = por %p190, %p191
      %p193 = scmp.ne.s32.totalorder %s185, %s187
      %p194 = scmp.eq.s32.totalorder %s30, 1
      %p195 = por %p193, %p194
      %p196 = scmp.ne.s32.totalorder %s187, %s188
      %p197 = scmp.eq.s32.totalorder %s30, 0
      %p198 = por %p196, %p197
      %p199 = scmp.ne.s32.totalorder %s187, %s188
      %p200 = scmp.eq.s32.totalorder %s31, 1
      %p201 = por %p199, %p200
      %p203 = scmp.ne.s32.totalorder %s188, %s202
      %p204 = scmp.eq.s32.totalorder %s31, 0
      %p205 = por %p203, %p204
      %s207 = sadd.s32 %s206, 1
      %p210 = scmp.eq.s32.totalorder %s25, 1
      %p211 = scmp.ne.s32.totalorder %s206, %s208
      %p212 = scmp.eq.s32.totalorder %s25, 0
      %p213 = por %p211, %p212
      %p214 = scmp.ne.s32.totalorder %s206, %s208
      %p215 = scmp.eq.s32.totalorder %s30, 1
      %p216 = por %p214, %p215
      %p217 = scmp.ne.s32.totalorder %s208, %s209
      %p218 = scmp.eq.s32.totalorder %s30, 0
      %p219 = por %p217, %p218
      %p220 = scmp.ne.s32.totalorder %s208, %s209
      %p221 = scmp.eq.s32.totalorder %s31, 1
      %p222 = por %p220, %p221
      %p224 = scmp.ne.s32.totalorder %s209, %s223
      %p225 = scmp.eq.s32.totalorder %s31, 0
      %p226 = por %p224, %p225
      %s228 = sadd.s32 %s227, 1
      %p231 = scmp.eq.s32.totalorder %s25, 1
      %p232 = scmp.ne.s32.totalorder %s227, %s229
      %p233 = scmp.eq.s32.totalorder %s25, 0
      %p234 = por %p232, %p233
      %p235 = scmp.ne.s32.totalorder %s227, %s229
      %p236 = scmp.eq.s32.totalorder %s30, 1
      %p237 = por %p235, %p236
      %p238 = scmp.ne.s32.totalorder %s229, %s230
      %p239 = scmp.eq.s32.totalorder %s30, 0
      %p240 = por %p238, %p239
      %p241 = scmp.ne.s32.totalorder %s229, %s230
      %p242 = scmp.eq.s32.totalorder %s31, 1
      %p243 = por %p241, %p242
      %p245 = scmp.ne.s32.totalorder %s230, %s244
      %p246 = scmp.eq.s32.totalorder %s31, 0
      %p247 = por %p245, %p246
      %s249 = sadd.s32 %s248, 1
      %p252 = scmp.eq.s32.totalorder %s25, 1
      %p253 = scmp.ne.s32.totalorder %s248, %s250
      %p254 = scmp.eq.s32.totalorder %s25, 0
      %p255 = por %p253, %p254
      %p256 = scmp.ne.s32.totalorder %s248, %s250
      %p257 = scmp.eq.s32.totalorder %s30, 1
      %p258 = por %p256, %p257
      %p259 = scmp.ne.s32.totalorder %s250, %s251
      %p260 = scmp.eq.s32.totalorder %s30, 0
      %p261 = por %p259, %p260
      %p262 = scmp.ne.s32.totalorder %s250, %s251
      %p263 = scmp.eq.s32.totalorder %s31, 1
      %p264 = por %p262, %p263
      %p266 = scmp.ne.s32.totalorder %s251, %s265
      %p267 = scmp.eq.s32.totalorder %s31, 0
      %p268 = por %p266, %p267
      %s270 = sadd.s32 %s269, 1
      %p273 = scmp.eq.s32.totalorder %s25, 1
      %p274 = scmp.ne.s32.totalorder %s269, %s271
      %p275 = scmp.eq.s32.totalorder %s25, 0
      %p276 = por %p274, %p275
      %p277 = scmp.ne.s32.totalorder %s269, %s271
      %p278 = scmp.eq.s32.totalorder %s30, 1
      %p279 = por %p277, %p278
      %p280 = scmp.ne.s32.totalorder %s271, %s272
      %p281 = scmp.eq.s32.totalorder %s30, 0
      %p282 = por %p280, %p281
      %p283 = scmp.ne.s32.totalorder %s271, %s272
      %p284 = scmp.eq.s32.totalorder %s31, 1
      %p285 = por %p283, %p284
      %p287 = scmp.ne.s32.totalorder %s272, %s286
      %p288 = scmp.eq.s32.totalorder %s31, 0
      %p289 = por %p287, %p288
      %s291 = sadd.s32 %s290, 1
      %p294 = scmp.eq.s32.totalorder %s25, 1
      %p295 = scmp.ne.s32.totalorder %s290, %s292
      %p296 = scmp.eq.s32.totalorder %s25, 0
      %p297 = por %p295, %p296
      %p298 = scmp.ne.s32.totalorder %s290, %s292
      %p299 = scmp.eq.s32.totalorder %s30, 1
      %p300 = por %p298, %p299
      %p301 = scmp.ne.s32.totalorder %s292, %s293
      %p302 = scmp.eq.s32.totalorder %s30, 0
      %p303 = por %p301, %p302
      %p304 = scmp.ne.s32.totalorder %s292, %s293
      %p305 = scmp.eq.s32.totalorder %s31, 1
      %p306 = por %p304, %p305
      %p308 = scmp.ne.s32.totalorder %s293, %s307
      %p309 = scmp.eq.s32.totalorder %s31, 0
      %p310 = por %p308, %p309
      %s312 = sadd.s32 %s311, 1
      %p315 = scmp.eq.s32.totalorder %s25, 1
      %p316 = scmp.ne.s32.totalorder %s311, %s313
      %p317 = scmp.eq.s32.totalorder %s25, 0
      %p318 = por %p316, %p317
      %p319 = scmp.ne.s32.totalorder %s311, %s313
      %p320 = scmp.eq.s32.totalorder %s30, 1
      %p321 = por %p319, %p320
      %p322 = scmp.ne.s32.totalorder %s313, %s314
      %p323 = scmp.eq.s32.totalorder %s30, 0
      %p324 = por %p322, %p323
      %p325 = scmp.ne.s32.totalorder %s313, %s314
      %p326 = scmp.eq.s32.totalorder %s31, 1
      %p327 = por %p325, %p326
      %p329 = scmp.ne.s32.totalorder %s314, %s328
      %p330 = scmp.eq.s32.totalorder %s31, 0
      %p331 = por %p329, %p330
      %s333 = sadd.s32 %s332, 1
      %p336 = scmp.eq.s32.totalorder %s25, 1
      %p337 = scmp.ne.s32.totalorder %s332, %s334
      %p338 = scmp.eq.s32.totalorder %s25, 0
      %p339 = por %p337, %p338
      %p340 = scmp.ne.s32.totalorder %s332, %s334
      %p341 = scmp.eq.s32.totalorder %s30, 1
      %p342 = por %p340, %p341
      %p343 = scmp.ne.s32.totalorder %s334, %s335
      %p344 = scmp.eq.s32.totalorder %s30, 0
      %p345 = por %p343, %p344
      %p346 = scmp.ne.s32.totalorder %s334, %s335
      %p347 = scmp.eq.s32.totalorder %s31, 1
      %p348 = por %p346, %p347
      %p350 = scmp.ne.s32.totalorder %s335, %s349
      %p351 = scmp.eq.s32.totalorder %s31, 0
      %p352 = por %p350, %p351
      %s354 = sadd.s32 %s353, 1
      %p357 = scmp.eq.s32.totalorder %s25, 1
      %p358 = scmp.ne.s32.totalorder %s353, %s355
      %p359 = scmp.eq.s32.totalorder %s25, 0
      %p360 = por %p358, %p359
      %p361 = scmp.ne.s32.totalorder %s353, %s355
      %p362 = scmp.eq.s32.totalorder %s30, 1
      %p363 = por %p361, %p362
      %p364 = scmp.ne.s32.totalorder %s355, %s356
      %p365 = scmp.eq.s32.totalorder %s30, 0
      %p366 = por %p364, %p365
      %p367 = scmp.ne.s32.totalorder %s355, %s356
      %p368 = scmp.eq.s32.totalorder %s31, 1
      %p369 = por %p367, %p368
      %p371 = scmp.ne.s32.totalorder %s356, %s370
      %p372 = scmp.eq.s32.totalorder %s31, 0
      %p373 = por %p371, %p372
      %s374 = ssub.s32 %s25, %s32
      %p375 = scmp.eq.s32.totalorder %s374, 0
      %s377 = sadd.s32 %s376, 1
      %s378 = scalar_select %p375, %s376, %s377
      %p381 = pneg %p375
      %p382 = scmp.eq.s32.totalorder %s25, 1
      %p383 = por %p381, %p382
      %p384 = scmp.ne.s32.totalorder %s376, %s379
      %p385 = scmp.eq.s32.totalorder %s25, 0
      %p386 = por %p384, %p385
      %p387 = scmp.ne.s32.totalorder %s376, %s379
      %p388 = scmp.eq.s32.totalorder %s30, 1
      %p389 = por %p387, %p388
      %p390 = scmp.ne.s32.totalorder %s379, %s380
      %p391 = scmp.eq.s32.totalorder %s30, 0
      %p392 = por %p390, %p391
      %p393 = scmp.ne.s32.totalorder %s379, %s380
      %p394 = scmp.eq.s32.totalorder %s31, 1
      %p395 = por %p393, %p394
      %p397 = scmp.ne.s32.totalorder %s380, %s396
      %p398 = scmp.eq.s32.totalorder %s31, 0
      %p399 = por %p397, %p398
      %p400 = scmp.le.s32.totalorder 1, %s25
      %p401 = scmp.lt.s32.totalorder %s25, 3
      %p402 = pnand %p400, %p401
      %p403 = pneg %p402
      // Predicated region
      $region9: #{net_forward.1} parent=5 // pred_check
        _
      $region10: #{net_forward.1} parent=5 // pred_check_branch
        %405 = sbr.rel (%p402) target = $region12
      $region11: #{net_forward.1} parent=5 // pred_region
        %s406 = ssub.s32 %s25, 1
        // Predicated region
        $region13: #{net_forward.1} parent=11 // pred_check
          %p407 = pneg %p72
        $region14: #{net_forward.1} parent=11 // pred_check_branch
          %409 = sbr.rel (%p407) target = $region16
        $region15: #{net_forward.1} parent=11 // pred_region
          _
        $region16: #{net_forward.1} parent=11 // pred_fallthru
          _
        // Predicated region
        $region17: #{net_forward.1} parent=11 // pred_check
          %p410 = pneg %p93
        $region18: #{net_forward.1} parent=11 // pred_check_branch
          %412 = sbr.rel (%p410) target = $region20
        $region19: #{net_forward.1} parent=11 // pred_region
          _
        $region20: #{net_forward.1} parent=11 // pred_fallthru
          _
        // Predicated region
        $region21: #{net_forward.1} parent=11 // pred_check
          %p413 = pneg %p114
        $region22: #{net_forward.1} parent=11 // pred_check_branch
          %415 = sbr.rel (%p413) target = $region24
        $region23: #{net_forward.1} parent=11 // pred_region
          _
        $region24: #{net_forward.1} parent=11 // pred_fallthru
          _
        // Predicated region
        $region25: #{net_forward.1} parent=11 // pred_check
          %p416 = pneg %p135
        $region26: #{net_forward.1} parent=11 // pred_check_branch
          %418 = sbr.rel (%p416) target = $region28
        $region27: #{net_forward.1} parent=11 // pred_region
          _
        $region28: #{net_forward.1} parent=11 // pred_fallthru
          _
        // Predicated region
        $region29: #{net_forward.1} parent=11 // pred_check
          %p419 = pneg %p156
        $region30: #{net_forward.1} parent=11 // pred_check_branch
          %421 = sbr.rel (%p419) target = $region32
        $region31: #{net_forward.1} parent=11 // pred_region
          _
        $region32: #{net_forward.1} parent=11 // pred_fallthru
          _
        // Predicated region
        $region33: #{net_forward.1} parent=11 // pred_check
          %p422 = pneg %p177
        $region34: #{net_forward.1} parent=11 // pred_check_branch
          %424 = sbr.rel (%p422) target = $region36
        $region35: #{net_forward.1} parent=11 // pred_region
          _
        $region36: #{net_forward.1} parent=11 // pred_fallthru
          _
        // Predicated region
        $region37: #{net_forward.1} parent=11 // pred_check
          %p425 = pneg %p198
        $region38: #{net_forward.1} parent=11 // pred_check_branch
          %427 = sbr.rel (%p425) target = $region40
        $region39: #{net_forward.1} parent=11 // pred_region
          _
        $region40: #{net_forward.1} parent=11 // pred_fallthru
          _
        // Predicated region
        $region41: #{net_forward.1} parent=11 // pred_check
          %p428 = pneg %p219
        $region42: #{net_forward.1} parent=11 // pred_check_branch
          %430 = sbr.rel (%p428) target = $region44
        $region43: #{net_forward.1} parent=11 // pred_region
          _
        $region44: #{net_forward.1} parent=11 // pred_fallthru
          _
        // Predicated region
        $region45: #{net_forward.1} parent=11 // pred_check
          %p431 = pneg %p240
        $region46: #{net_forward.1} parent=11 // pred_check_branch
          %433 = sbr.rel (%p431) target = $region48
        $region47: #{net_forward.1} parent=11 // pred_region
          _
        $region48: #{net_forward.1} parent=11 // pred_fallthru
          _
        // Predicated region
        $region49: #{net_forward.1} parent=11 // pred_check
          %p434 = pneg %p261
        $region50: #{net_forward.1} parent=11 // pred_check_branch
          %436 = sbr.rel (%p434) target = $region52
        $region51: #{net_forward.1} parent=11 // pred_region
          _
        $region52: #{net_forward.1} parent=11 // pred_fallthru
          _
        // Predicated region
        $region53: #{net_forward.1} parent=11 // pred_check
          %p437 = pneg %p282
        $region54: #{net_forward.1} parent=11 // pred_check_branch
          %439 = sbr.rel (%p437) target = $region56
        $region55: #{net_forward.1} parent=11 // pred_region
          _
        $region56: #{net_forward.1} parent=11 // pred_fallthru
          _
        // Predicated region
        $region57: #{net_forward.1} parent=11 // pred_check
          %p440 = pneg %p303
        $region58: #{net_forward.1} parent=11 // pred_check_branch
          %442 = sbr.rel (%p440) target = $region60
        $region59: #{net_forward.1} parent=11 // pred_region
          _
        $region60: #{net_forward.1} parent=11 // pred_fallthru
          _
        // Predicated region
        $region61: #{net_forward.1} parent=11 // pred_check
          %p443 = pneg %p324
        $region62: #{net_forward.1} parent=11 // pred_check_branch
          %445 = sbr.rel (%p443) target = $region64
        $region63: #{net_forward.1} parent=11 // pred_region
          _
        $region64: #{net_forward.1} parent=11 // pred_fallthru
          _
        // Predicated region
        $region65: #{net_forward.1} parent=11 // pred_check
          %p446 = pneg %p345
        $region66: #{net_forward.1} parent=11 // pred_check_branch
          %448 = sbr.rel (%p446) target = $region68
        $region67: #{net_forward.1} parent=11 // pred_region
          _
        $region68: #{net_forward.1} parent=11 // pred_fallthru
          _
        // Predicated region
        $region69: #{net_forward.1} parent=11 // pred_check
          %p449 = pneg %p366
        $region70: #{net_forward.1} parent=11 // pred_check_branch
          %451 = sbr.rel (%p449) target = $region72
        $region71: #{net_forward.1} parent=11 // pred_region
          _
        $region72: #{net_forward.1} parent=11 // pred_fallthru
          _
      $region12: #{net_forward.1} parent=5 // pred_fallthru
        _
      %p452 = scmp.lt.s32.totalorder %s25, 2
      // Predicated region
      $region73: #{net_forward.1} parent=5 // pred_check
        %p453 = pneg %p452
      $region74: #{net_forward.1} parent=5 // pred_check_branch
        %455 = sbr.rel (%p453) target = $region76
      $region75: #{net_forward.1} parent=5 // pred_region
        // Predicated region
        $region77: #{net_forward.1} parent=75 // pred_check
          %p456 = pneg %p45
        $region78: #{net_forward.1} parent=75 // pred_check_branch
          %458 = sbr.rel (%p456) target = $region80
        $region79: #{net_forward.1} parent=75 // pred_region
          %s459 = smul.u32 32, %s25
          %p460 = scmp.lt.s32.totalorder %s459, 63
          %s461 = scalar_select %p460, %s459, 63
          %s462 = smul.addr %s461, 4
          %s463 = scalar_lea.vmem %s0, %s462
          %s464 = smul.u32 32, %s25
        $region80: #{net_forward.1} parent=75 // pred_fallthru
          _
      $region76: #{net_forward.1} parent=5 // pred_fallthru
        _
      %p465 = scmp.le.s32.totalorder 1, %s25
      %p466 = scmp.lt.s32.totalorder %s25, 3
      %p467 = pnand %p465, %p466
      %p468 = pneg %p467
      // Predicated region
      $region81: #{net_forward.1} parent=5 // pred_check
        _
      $region82: #{net_forward.1} parent=5 // pred_check_branch
        %470 = sbr.rel (%p467) target = $region84
      $region83: #{net_forward.1} parent=5 // pred_region
        %s471 = ssub.s32 %s25, 1
        %s472 = smul.u32 32, %s30
        %p473 = scmp.lt.s32.totalorder %s472, 63
        %s474 = scalar_select %p473, %s472, 63
        %s475 = smul.addr %s474, 4
        %s476 = scalar_lea.vmem %s0, %s475
        %p477 = pneg %p51
        %p478 = pneg %p48
        %p479 = pneg %p72
        %p480 = pneg %p69
        %p481 = pneg %p93
        %p482 = pneg %p90
        %p483 = pneg %p114
        %p484 = pneg %p111
        %p485 = pneg %p135
        %p486 = pneg %p132
        %p487 = pneg %p156
        %p488 = pneg %p153
        %p489 = pneg %p177
        %p490 = pneg %p174
        %p491 = pneg %p198
        %p492 = pneg %p195
        %p493 = pneg %p219
        %p494 = pneg %p216
        %p495 = pneg %p240
        %p496 = pneg %p237
        %p497 = pneg %p261
        %p498 = pneg %p258
        %p499 = pneg %p282
        %p500 = pneg %p279
        %p501 = pneg %p303
        %p502 = pneg %p300
        %p503 = pneg %p324
        %p504 = pneg %p321
        %p505 = pneg %p345
        %p506 = pneg %p342
        %p507 = pneg %p366
        %p508 = pneg %p363
        %p509 = pneg %p392
        %p510 = pneg %p389
        %s511 = sand.u32 %s379, 1
        %s512 = scalar_lea.sflag [#allocation3], %s511
        %s513 = sand.u32 %s379, 1
        %s514 = smul.addr %s513, 8
        %s515 = scalar_lea.vmem [#allocation2], %s514
        %s516 = smul.u32 32, %s30
        %p517 = scmp.lt.s32.totalorder %s516, 63
        %s518 = scalar_select %p517, %s516, 63
        %s519 = smul.addr %s518, 4
        %s520 = scalar_lea.vmem %s0, %s519
        %s521 = smul.u32 32, %s30
        %v523 = vld [vmem:[%s520] sm:$0xf]
        %v524 = vld [vmem:[%s520 + $0x4] sm:$0xf]
        %v525 = vld [vmem:[%s520 + $0x8] sm:$0xf]
        %v526 = vld [vmem:[%s520 + $0xc] sm:$0xf]
        %v527 = vld [vmem:[%s520 + $0x10] sm:$0xf]
        %v528 = vld [vmem:[%s520 + $0x14] sm:$0xf]
        %v529 = vld [vmem:[%s520 + $0x18] sm:$0xf]
        %v530 = vld [vmem:[%s520 + $0x1c] sm:$0xf]
        %v531 = vld [vmem:[%s520 + $0x20] sm:$0xf]
        %v532 = vld [vmem:[%s520 + $0x24] sm:$0xf]
        %v533 = vld [vmem:[%s520 + $0x28] sm:$0xf]
        %v534 = vld [vmem:[%s520 + $0x2c] sm:$0xf]
        %v535 = vld [vmem:[%s520 + $0x30] sm:$0xf]
        %v536 = vld [vmem:[%s520 + $0x34] sm:$0xf]
        %v537 = vld [vmem:[%s520 + $0x38] sm:$0xf]
        %v538 = vld [vmem:[%s520 + $0x3c] sm:$0xf]
        %v539 = vld [vmem:[%s520 + $0x40] sm:$0xf]
        %v540 = vld [vmem:[%s520 + $0x44] sm:$0xf]
        %v541 = vld [vmem:[%s520 + $0x48] sm:$0xf]
        %v542 = vld [vmem:[%s520 + $0x4c] sm:$0xf]
        %v543 = vld [vmem:[%s520 + $0x50] sm:$0xf]
        %v544 = vld [vmem:[%s520 + $0x54] sm:$0xf]
        %v545 = vld [vmem:[%s520 + $0x58] sm:$0xf]
        %v546 = vld [vmem:[%s520 + $0x5c] sm:$0xf]
        %v547 = vld [vmem:[%s520 + $0x60] sm:$0xf]
        %v548 = vld [vmem:[%s520 + $0x64] sm:$0xf]
        %v549 = vld [vmem:[%s520 + $0x68] sm:$0xf]
        %v550 = vld [vmem:[%s520 + $0x6c] sm:$0xf]
        %v551 = vld [vmem:[%s520 + $0x70] sm:$0xf]
        %v552 = vld [vmem:[%s520 + $0x74] sm:$0xf]
        %v553 = vld [vmem:[%s520 + $0x78] sm:$0xf]
        %v554 = vld [vmem:[%s520 + $0x7c] sm:$0xf]
        %v555 = vld [vmem:[%s3] sm:$0xff]
        %v556 = vld [vmem:[%s3 + $0x8] sm:$0xff]
        %v557 = vld [vmem:[%s3 + $0x10] sm:$0xff]
        %v558 = vld [vmem:[%s3 + $0x18] sm:$0xff]
        %v559 = vld [vmem:[%s3 + $0x20] sm:$0xff]
        %v560 = vld [vmem:[%s3 + $0x28] sm:$0xff]
        %v561 = vld [vmem:[%s3 + $0x30] sm:$0xff]
        %v562 = vld [vmem:[%s3 + $0x38] sm:$0xff]
        %v563 = vld [vmem:[%s3 + $0x40] sm:$0xff]
        %v564 = vld [vmem:[%s3 + $0x48] sm:$0xff]
        %v565 = vld [vmem:[%s3 + $0x50] sm:$0xff]
        %v566 = vld [vmem:[%s3 + $0x58] sm:$0xff]
        %v567 = vld [vmem:[%s3 + $0x60] sm:$0xff]
        %v568 = vld [vmem:[%s3 + $0x68] sm:$0xff]
        %v569 = vld [vmem:[%s3 + $0x70] sm:$0xff]
        %v570 = vld [vmem:[%s3 + $0x78] sm:$0xff]
        %v571 = vld [vmem:[%s3 + $0x80] sm:$0xff]
        %v572 = vld [vmem:[%s3 + $0x88] sm:$0xff]
        %v573 = vld [vmem:[%s3 + $0x90] sm:$0xff]
        %v574 = vld [vmem:[%s3 + $0x98] sm:$0xff]
        %v575 = vld [vmem:[%s3 + $0xa0] sm:$0xff]
        %v576 = vld [vmem:[%s3 + $0xa8] sm:$0xff]
        %v577 = vld [vmem:[%s3 + $0xb0] sm:$0xff]
        %v578 = vld [vmem:[%s3 + $0xb8] sm:$0xff]
        %v579 = vld [vmem:[%s3 + $0xc0] sm:$0xff]
        %v580 = vld [vmem:[%s3 + $0xc8] sm:$0xff]
        %v581 = vld [vmem:[%s3 + $0xd0] sm:$0xff]
        %v582 = vld [vmem:[%s3 + $0xd8] sm:$0xff]
        %v611 = vunpack.c.l.b16 %v555
        %v612 = vunpack.c.h.b16 %v555
        %v613 = vunpack.c.l.b16 %v556
        %v614 = vunpack.c.h.b16 %v556
        %v615 = vunpack.c.l.b16 %v557
        %v616 = vunpack.c.h.b16 %v557
        %v617 = vunpack.c.l.b16 %v558
        %v618 = vunpack.c.h.b16 %v558
        %v619 = vunpack.c.l.b16 %v559
        %v620 = vunpack.c.h.b16 %v559
        %v621 = vunpack.c.l.b16 %v560
        %v622 = vunpack.c.h.b16 %v560
        %v623 = vunpack.c.l.b16 %v561
        %v624 = vunpack.c.h.b16 %v561
        %v625 = vunpack.c.l.b16 %v562
        %v626 = vunpack.c.h.b16 %v562
        %v627 = vunpack.c.l.b16 %v563
        %v628 = vunpack.c.h.b16 %v563
        %v629 = vunpack.c.l.b16 %v564
        %v630 = vunpack.c.h.b16 %v564
        %v631 = vunpack.c.l.b16 %v565
        %v632 = vunpack.c.h.b16 %v565
        %v633 = vunpack.c.l.b16 %v566
        %v634 = vunpack.c.h.b16 %v566
        %v635 = vunpack.c.l.b16 %v567
        %v636 = vunpack.c.h.b16 %v567
        %v637 = vunpack.c.l.b16 %v568
        %v638 = vunpack.c.h.b16 %v568
        %v639 = vunpack.c.l.b16 %v569
        %v640 = vunpack.c.h.b16 %v569
        %v641 = vunpack.c.l.b16 %v570
        %v642 = vunpack.c.h.b16 %v570
        %v643 = vunpack.c.l.b16 %v571
        %v644 = vunpack.c.h.b16 %v571
        %v645 = vunpack.c.l.b16 %v572
        %v646 = vunpack.c.h.b16 %v572
        %v647 = vunpack.c.l.b16 %v573
        %v648 = vunpack.c.h.b16 %v573
        %v649 = vunpack.c.l.b16 %v574
        %v650 = vunpack.c.h.b16 %v574
        %v651 = vunpack.c.l.b16 %v575
        %v652 = vunpack.c.h.b16 %v575
        %v653 = vunpack.c.l.b16 %v576
        %v654 = vunpack.c.h.b16 %v576
        %v655 = vunpack.c.l.b16 %v577
        %v656 = vunpack.c.h.b16 %v577
        %v657 = vunpack.c.l.b16 %v578
        %v658 = vunpack.c.h.b16 %v578
        %v659 = vunpack.c.l.b16 %v579
        %v660 = vunpack.c.h.b16 %v579
        %v661 = vunpack.c.l.b16 %v580
        %v662 = vunpack.c.h.b16 %v580
        %v663 = vunpack.c.l.b16 %v581
        %v664 = vunpack.c.h.b16 %v581
        %v665 = vunpack.c.l.b16 %v582
        %v666 = vunpack.c.h.b16 %v582
        %v667 = vpack.c.b16 %v613, %v611
        %v668 = vpack.c.b16 %v614, %v612
        %v669 = vpack.c.b16 %v617, %v615
        %v670 = vpack.c.b16 %v618, %v616
        %v671 = vpack.c.b16 %v621, %v619
        %v672 = vpack.c.b16 %v622, %v620
        %v673 = vpack.c.b16 %v625, %v623
        %v674 = vpack.c.b16 %v626, %v624
        %v675 = vpack.c.b16 %v629, %v627
        %v676 = vpack.c.b16 %v630, %v628
        %v677 = vpack.c.b16 %v633, %v631
        %v678 = vpack.c.b16 %v634, %v632
        %v679 = vpack.c.b16 %v637, %v635
        %v680 = vpack.c.b16 %v638, %v636
        %v681 = vpack.c.b16 %v641, %v639
        %v682 = vpack.c.b16 %v642, %v640
        %v683 = vpack.c.b16 %v645, %v643
        %v684 = vpack.c.b16 %v646, %v644
        %v685 = vpack.c.b16 %v649, %v647
        %v686 = vpack.c.b16 %v650, %v648
        %v687 = vpack.c.b16 %v653, %v651
        %v688 = vpack.c.b16 %v654, %v652
        %v689 = vpack.c.b16 %v657, %v655
        %v690 = vpack.c.b16 %v658, %v656
        %v691 = vpack.c.b16 %v661, %v659
        %v692 = vpack.c.b16 %v662, %v660
        %v693 = vpack.c.b16 %v665, %v663
        %v694 = vpack.c.b16 %v666, %v664
        %v755 = vunpack.c.l.b16 %v523
        %v756 = vunpack.c.l.b16 %v524
        %v757 = vunpack.c.l.b16 %v525
        %v758 = vunpack.c.l.b16 %v526
        %v759 = vunpack.c.l.b16 %v527
        %v760 = vunpack.c.l.b16 %v528
        %v761 = vunpack.c.l.b16 %v529
        %v762 = vunpack.c.l.b16 %v530
        %v763 = vunpack.c.l.b16 %v531
        %v764 = vunpack.c.l.b16 %v532
        %v765 = vunpack.c.l.b16 %v533
        %v766 = vunpack.c.l.b16 %v534
        %v767 = vunpack.c.l.b16 %v535
        %v768 = vunpack.c.l.b16 %v536
        %v769 = vunpack.c.l.b16 %v537
        %v770 = vunpack.c.l.b16 %v538
        %v771 = vunpack.c.l.b16 %v539
        %v772 = vunpack.c.l.b16 %v540
        %v773 = vunpack.c.l.b16 %v541
        %v774 = vunpack.c.l.b16 %v542
        %v775 = vunpack.c.l.b16 %v543
        %v776 = vunpack.c.l.b16 %v544
        %v777 = vunpack.c.l.b16 %v545
        %v778 = vunpack.c.l.b16 %v546
        %v779 = vunpack.c.l.b16 %v547
        %v780 = vunpack.c.l.b16 %v548
        %v781 = vunpack.c.l.b16 %v549
        %v782 = vunpack.c.l.b16 %v550
        %v783 = vunpack.c.l.b16 %v551
        %v784 = vunpack.c.l.b16 %v552
        %v785 = vunpack.c.l.b16 %v553
        %v786 = vunpack.c.l.b16 %v554
        %v787 = vpack.c.b16 %v756, %v755
        %v788 = vpack.c.b16 %v758, %v757
        %v789 = vpack.c.b16 %v760, %v759
        %v790 = vpack.c.b16 %v762, %v761
        %v791 = vpack.c.b16 %v764, %v763
        %v792 = vpack.c.b16 %v766, %v765
        %v793 = vpack.c.b16 %v768, %v767
        %v794 = vpack.c.b16 %v770, %v769
        %v795 = vpack.c.b16 %v772, %v771
        %v796 = vpack.c.b16 %v774, %v773
        %v797 = vpack.c.b16 %v776, %v775
        %v798 = vpack.c.b16 %v778, %v777
        %v799 = vpack.c.b16 %v780, %v779
        %v800 = vpack.c.b16 %v782, %v781
        %v801 = vpack.c.b16 %v784, %v783
        %v802 = vpack.c.b16 %v786, %v785
        %819 = vmatprep.subr.bf16.mxu0 0
        %820 = vmatpush1.bf16.msra.mxu0 %v794
        %821 = vmatprep.subr.bf16.mxu0 0
        %822 = vmatpush1.bf16.msra.mxu0 %v793
        %823 = vmatprep.subr.bf16.mxu0 0
        %824 = vmatpush1.bf16.msra.mxu0 %v792
        %825 = vmatprep.subr.bf16.mxu0 0
        %826 = vmatpush1.bf16.msra.mxu0 %v791
        %827 = vmatprep.subr.bf16.mxu0 0
        %828 = vmatpush1.bf16.msra.mxu0 %v790
        %829 = vmatprep.subr.bf16.mxu0 0
        %830 = vmatpush1.bf16.msra.mxu0 %v789
        %831 = vmatprep.subr.bf16.mxu0 0
        %832 = vmatpush1.bf16.msra.mxu0 %v788
        %833 = vmatprep.subr.bf16.mxu0 0
        %834 = vmatpush1.bf16.msra.mxu0 %v787
        %835 = vmatprep.subr.bf16.mxu0 0
        %836 = vmatpush2.bf16.msra.mxu0 %v802
        %837 = vmatprep.subr.bf16.mxu0 0
        %838 = vmatpush2.bf16.msra.mxu0 %v801
        %839 = vmatprep.subr.bf16.mxu0 0
        %840 = vmatpush2.bf16.msra.mxu0 %v800
        %841 = vmatprep.subr.bf16.mxu0 0
        %842 = vmatpush2.bf16.msra.mxu0 %v799
        %843 = vmatprep.subr.bf16.mxu0 0
        %844 = vmatpush2.bf16.msra.mxu0 %v798
        %845 = vmatprep.subr.bf16.mxu0 0
        %846 = vmatpush2.bf16.msra.mxu0 %v797
        %847 = vmatprep.subr.bf16.mxu0 0
        %848 = vmatpush2.bf16.msra.mxu0 %v796
        %849 = vmatprep.subr.bf16.mxu0 0
        %850 = vmatpush2.bf16.msra.mxu0 %v795
        %851 = vmatprep.mubr.bf16.mxu0 %v668
        %852 = vmatmul.mubr.bf16.gmra.mxu0 %v667
        %v853 = vpop.f32.mrf.mxu0
        %v854 = vadd.f32 0.0, %v853
        %v855 = vpop.f32.mrf.mxu0
        %v856 = vpop.f32.mrf.mxu0
        %v857 = vadd.f32 0.0, %v856
        %v858 = vpop.f32.mrf.mxu0
        %859 = vmatprep.mubr.bf16.mxu0 %v670
        %860 = vmatmul.mubr.bf16.gmra.mxu0 %v669
        %v861 = vpop.f32.mrf.mxu0
        %v862 = vadd.f32 0.0, %v861
        %v863 = vpop.f32.mrf.mxu0
        %v864 = vpop.f32.mrf.mxu0
        %v865 = vadd.f32 0.0, %v864
        %v866 = vpop.f32.mrf.mxu0
        %867 = vmatprep.mubr.bf16.mxu0 %v672
        %868 = vmatmul.mubr.bf16.gmra.mxu0 %v671
        %v869 = vpop.f32.mrf.mxu0
        %v870 = vadd.f32 0.0, %v869
        %v871 = vpop.f32.mrf.mxu0
        %v872 = vpop.f32.mrf.mxu0
        %v873 = vadd.f32 0.0, %v872
        %v874 = vpop.f32.mrf.mxu0
        %875 = vmatprep.mubr.bf16.mxu0 %v674
        %876 = vmatmul.mubr.bf16.gmra.mxu0 %v673
        %v877 = vpop.f32.mrf.mxu0
        %v878 = vadd.f32 0.0, %v877
        %v879 = vpop.f32.mrf.mxu0
        %v880 = vpop.f32.mrf.mxu0
        %v881 = vadd.f32 0.0, %v880
        %v882 = vpop.f32.mrf.mxu0
        %883 = vmatprep.mubr.bf16.mxu0 %v676
        %884 = vmatmul.mubr.bf16.gmra.mxu0 %v675
        %v885 = vpop.f32.mrf.mxu0
        %v886 = vadd.f32 0.0, %v885
        %v887 = vpop.f32.mrf.mxu0
        %v888 = vpop.f32.mrf.mxu0
        %v889 = vadd.f32 0.0, %v888
        %v890 = vpop.f32.mrf.mxu0
        %891 = vmatprep.mubr.bf16.mxu0 %v678
        %892 = vmatmul.mubr.bf16.gmra.mxu0 %v677
        %v893 = vpop.f32.mrf.mxu0
        %v894 = vadd.f32 0.0, %v893
        %v895 = vpop.f32.mrf.mxu0
        %v896 = vpop.f32.mrf.mxu0
        %v897 = vadd.f32 0.0, %v896
        %v898 = vpop.f32.mrf.mxu0
        %899 = vmatprep.mubr.bf16.mxu0 %v680
        %900 = vmatmul.mubr.bf16.gmra.mxu0 %v679
        %v901 = vpop.f32.mrf.mxu0
        %v902 = vadd.f32 0.0, %v901
        %v903 = vpop.f32.mrf.mxu0
        %v904 = vpop.f32.mrf.mxu0
        %v905 = vadd.f32 0.0, %v904
        %v906 = vpop.f32.mrf.mxu0
        %907 = vmatprep.mubr.bf16.mxu0 %v682
        %908 = vmatmul.mubr.bf16.gmra.mxu0 %v681
        %v909 = vpop.f32.mrf.mxu0
        %v910 = vadd.f32 0.0, %v909
        %v911 = vpop.f32.mrf.mxu0
        %v912 = vpop.f32.mrf.mxu0
        %v913 = vadd.f32 0.0, %v912
        %v914 = vpop.f32.mrf.mxu0
        %915 = vmatprep.mubr.bf16.mxu0 %v684
        %916 = vmatmul.mubr.bf16.gmra.mxu0 %v683
        %v917 = vpop.f32.mrf.mxu0
        %v918 = vadd.f32 0.0, %v917
        %v919 = vpop.f32.mrf.mxu0
        %v920 = vpop.f32.mrf.mxu0
        %v921 = vadd.f32 0.0, %v920
        %v922 = vpop.f32.mrf.mxu0
        %923 = vmatprep.mubr.bf16.mxu0 %v686
        %924 = vmatmul.mubr.bf16.gmra.mxu0 %v685
        %v925 = vpop.f32.mrf.mxu0
        %v926 = vadd.f32 0.0, %v925
        %v927 = vpop.f32.mrf.mxu0
        %v928 = vpop.f32.mrf.mxu0
        %v929 = vadd.f32 0.0, %v928
        %v930 = vpop.f32.mrf.mxu0
        %931 = vmatprep.mubr.bf16.mxu0 %v688
        %932 = vmatmul.mubr.bf16.gmra.mxu0 %v687
        %v933 = vpop.f32.mrf.mxu0
        %v934 = vadd.f32 0.0, %v933
        %v935 = vpop.f32.mrf.mxu0
        %v936 = vpop.f32.mrf.mxu0
        %v937 = vadd.f32 0.0, %v936
        %v938 = vpop.f32.mrf.mxu0
        %939 = vmatprep.mubr.bf16.mxu0 %v690
        %940 = vmatmul.mubr.bf16.gmra.mxu0 %v689
        %v941 = vpop.f32.mrf.mxu0
        %v942 = vadd.f32 0.0, %v941
        %v943 = vpop.f32.mrf.mxu0
        %v944 = vpop.f32.mrf.mxu0
        %v945 = vadd.f32 0.0, %v944
        %v946 = vpop.f32.mrf.mxu0
        %947 = vmatprep.mubr.bf16.mxu0 %v692
        %948 = vmatmul.mubr.bf16.gmra.mxu0 %v691
        %v949 = vpop.f32.mrf.mxu0
        %v950 = vadd.f32 0.0, %v949
        %v951 = vpop.f32.mrf.mxu0
        %v952 = vpop.f32.mrf.mxu0
        %v953 = vadd.f32 0.0, %v952
        %v954 = vpop.f32.mrf.mxu0
        %955 = vmatprep.mubr.bf16.mxu0 %v694
        %956 = vmatmul.mubr.bf16.gmra.mxu0 %v693
        %v957 = vpop.f32.mrf.mxu0
        %v958 = vadd.f32 0.0, %v957
        %v959 = vpop.f32.mrf.mxu0
        %v960 = vpop.f32.mrf.mxu0
        %v961 = vadd.f32 0.0, %v960
        %v962 = vpop.f32.mrf.mxu0
        %963 = vdwg.mxu0
        %v964 = vpack.c.bf16 %v857, %v854
        %v965 = vpack.c.bf16 %v865, %v862
        %v966 = vpack.c.bf16 %v873, %v870
        %v967 = vpack.c.bf16 %v881, %v878
        %v968 = vpack.c.bf16 %v889, %v886
        %v969 = vpack.c.bf16 %v897, %v894
        %v970 = vpack.c.bf16 %v905, %v902
        %v971 = vpack.c.bf16 %v913, %v910
        %v972 = vpack.c.bf16 %v921, %v918
        %v973 = vpack.c.bf16 %v929, %v926
        %v974 = vpack.c.bf16 %v937, %v934
        %v975 = vpack.c.bf16 %v945, %v942
        %v976 = vpack.c.bf16 %v953, %v950
        %v977 = vpack.c.bf16 %v961, %v958
        %v978 = vld [vmem:[%s1] sm:$0xff]
        %v979 = vld [vmem:[%s1 + $0x8] sm:$0xff]
        %v980 = vld [vmem:[%s1 + $0x10] sm:$0xff]
        %v981 = vld [vmem:[%s1 + $0x18] sm:$0xff]
        %v982 = vld [vmem:[%s1 + $0x20] sm:$0xff]
        %v983 = vld [vmem:[%s1 + $0x28] sm:$0xff]
        %v984 = vld [vmem:[%s1 + $0x30] sm:$0xff]
        %v985 = vld [vmem:[%s1 + $0x38] sm:$0xff]
        %v986 = vld [vmem:[%s1 + $0x40] sm:$0xff]
        %v987 = vld [vmem:[%s1 + $0x48] sm:$0xff]
        %v988 = vld [vmem:[%s1 + $0x50] sm:$0xff]
        %v989 = vld [vmem:[%s1 + $0x58] sm:$0xff]
        %v990 = vld [vmem:[%s1 + $0x60] sm:$0xff]
        %v991 = vld [vmem:[%s1 + $0x68] sm:$0xff]
        %v992 = vld [vmem:[%s1 + $0x70] sm:$0xff]
        %v993 = vld [vmem:[%s1 + $0x78] sm:$0xff]
        %s994 = scalar_lea.vmem %s3, 224
        %v995 = vld [vmem:[%s994] sm:$0xff]
        %v996 = vld [vmem:[%s994 + $0x8] sm:$0xff]
        %v997 = vld [vmem:[%s994 + $0x10] sm:$0xff]
        %v998 = vld [vmem:[%s994 + $0x18] sm:$0xff]
        %v999 = vld [vmem:[%s994 + $0x20] sm:$0xff]
        %v1000 = vld [vmem:[%s994 + $0x28] sm:$0xff]
        %v1001 = vld [vmem:[%s994 + $0x30] sm:$0xff]
        %v1002 = vld [vmem:[%s994 + $0x38] sm:$0xff]
        %v1003 = vld [vmem:[%s994 + $0x40] sm:$0xff]
        %v1004 = vld [vmem:[%s994 + $0x48] sm:$0xff]
        %v1005 = vld [vmem:[%s994 + $0x50] sm:$0xff]
        %v1006 = vld [vmem:[%s994 + $0x58] sm:$0xff]
        %v1007 = vld [vmem:[%s994 + $0x60] sm:$0xff]
        %v1008 = vld [vmem:[%s994 + $0x68] sm:$0xff]
        %v1009 = vld [vmem:[%s994 + $0x70] sm:$0xff]
        %v1010 = vld [vmem:[%s994 + $0x78] sm:$0xff]
        %v1011 = vld [vmem:[%s994 + $0x80] sm:$0xff]
        %v1012 = vld [vmem:[%s994 + $0x88] sm:$0xff]
        %v1013 = vld [vmem:[%s994 + $0x90] sm:$0xff]
        %v1014 = vld [vmem:[%s994 + $0x98] sm:$0xff]
        %v1015 = vld [vmem:[%s994 + $0xa0] sm:$0xff]
        %v1016 = vld [vmem:[%s994 + $0xa8] sm:$0xff]
        %v1017 = vld [vmem:[%s994 + $0xb0] sm:$0xff]
        %v1018 = vld [vmem:[%s994 + $0xb8] sm:$0xff]
        %v1019 = vld [vmem:[%s994 + $0xc0] sm:$0xff]
        %v1020 = vld [vmem:[%s994 + $0xc8] sm:$0xff]
        %v1021 = vld [vmem:[%s994 + $0xd0] sm:$0xff]
        %v1022 = vld [vmem:[%s994 + $0xd8] sm:$0xff]
        %v1051 = vunpack.c.l.b16 %v995
        %v1052 = vunpack.c.h.b16 %v995
        %v1053 = vunpack.c.l.b16 %v996
        %v1054 = vunpack.c.h.b16 %v996
        %v1055 = vunpack.c.l.b16 %v997
        %v1056 = vunpack.c.h.b16 %v997
        %v1057 = vunpack.c.l.b16 %v998
        %v1058 = vunpack.c.h.b16 %v998
        %v1059 = vunpack.c.l.b16 %v999
        %v1060 = vunpack.c.h.b16 %v999
        %v1061 = vunpack.c.l.b16 %v1000
        %v1062 = vunpack.c.h.b16 %v1000
        %v1063 = vunpack.c.l.b16 %v1001
        %v1064 = vunpack.c.h.b16 %v1001
        %v1065 = vunpack.c.l.b16 %v1002
        %v1066 = vunpack.c.h.b16 %v1002
        %v1067 = vunpack.c.l.b16 %v1003
        %v1068 = vunpack.c.h.b16 %v1003
        %v1069 = vunpack.c.l.b16 %v1004
        %v1070 = vunpack.c.h.b16 %v1004
        %v1071 = vunpack.c.l.b16 %v1005
        %v1072 = vunpack.c.h.b16 %v1005
        %v1073 = vunpack.c.l.b16 %v1006
        %v1074 = vunpack.c.h.b16 %v1006
        %v1075 = vunpack.c.l.b16 %v1007
        %v1076 = vunpack.c.h.b16 %v1007
        %v1077 = vunpack.c.l.b16 %v1008
        %v1078 = vunpack.c.h.b16 %v1008
        %v1079 = vunpack.c.l.b16 %v1009
        %v1080 = vunpack.c.h.b16 %v1009
        %v1081 = vunpack.c.l.b16 %v1010
        %v1082 = vunpack.c.h.b16 %v1010
        %v1083 = vunpack.c.l.b16 %v1011
        %v1084 = vunpack.c.h.b16 %v1011
        %v1085 = vunpack.c.l.b16 %v1012
        %v1086 = vunpack.c.h.b16 %v1012
        %v1087 = vunpack.c.l.b16 %v1013
        %v1088 = vunpack.c.h.b16 %v1013
        %v1089 = vunpack.c.l.b16 %v1014
        %v1090 = vunpack.c.h.b16 %v1014
        %v1091 = vunpack.c.l.b16 %v1015
        %v1092 = vunpack.c.h.b16 %v1015
        %v1093 = vunpack.c.l.b16 %v1016
        %v1094 = vunpack.c.h.b16 %v1016
        %v1095 = vunpack.c.l.b16 %v1017
        %v1096 = vunpack.c.h.b16 %v1017
        %v1097 = vunpack.c.l.b16 %v1018
        %v1098 = vunpack.c.h.b16 %v1018
        %v1099 = vunpack.c.l.b16 %v1019
        %v1100 = vunpack.c.h.b16 %v1019
        %v1101 = vunpack.c.l.b16 %v1020
        %v1102 = vunpack.c.h.b16 %v1020
        %v1103 = vunpack.c.l.b16 %v1021
        %v1104 = vunpack.c.h.b16 %v1021
        %v1105 = vunpack.c.l.b16 %v1022
        %v1106 = vunpack.c.h.b16 %v1022
        %v1107 = vpack.c.b16 %v1053, %v1051
        %v1108 = vpack.c.b16 %v1054, %v1052
        %v1109 = vpack.c.b16 %v1057, %v1055
        %v1110 = vpack.c.b16 %v1058, %v1056
        %v1111 = vpack.c.b16 %v1061, %v1059
        %v1112 = vpack.c.b16 %v1062, %v1060
        %v1113 = vpack.c.b16 %v1065, %v1063
        %v1114 = vpack.c.b16 %v1066, %v1064
        %v1115 = vpack.c.b16 %v1069, %v1067
        %v1116 = vpack.c.b16 %v1070, %v1068
        %v1117 = vpack.c.b16 %v1073, %v1071
        %v1118 = vpack.c.b16 %v1074, %v1072
        %v1119 = vpack.c.b16 %v1077, %v1075
        %v1120 = vpack.c.b16 %v1078, %v1076
        %v1121 = vpack.c.b16 %v1081, %v1079
        %v1122 = vpack.c.b16 %v1082, %v1080
        %v1123 = vpack.c.b16 %v1085, %v1083
        %v1124 = vpack.c.b16 %v1086, %v1084
        %v1125 = vpack.c.b16 %v1089, %v1087
        %v1126 = vpack.c.b16 %v1090, %v1088
        %v1127 = vpack.c.b16 %v1093, %v1091
        %v1128 = vpack.c.b16 %v1094, %v1092
        %v1129 = vpack.c.b16 %v1097, %v1095
        %v1130 = vpack.c.b16 %v1098, %v1096
        %v1131 = vpack.c.b16 %v1101, %v1099
        %v1132 = vpack.c.b16 %v1102, %v1100
        %v1133 = vpack.c.b16 %v1105, %v1103
        %v1134 = vpack.c.b16 %v1106, %v1104
        %1163 = vmatprep.subr.bf16.mxu0 0
        %1164 = vmatpush1.bf16.msra.mxu0 %v794
        %1165 = vmatprep.subr.bf16.mxu0 0
        %1166 = vmatpush1.bf16.msra.mxu0 %v793
        %1167 = vmatprep.subr.bf16.mxu0 0
        %1168 = vmatpush1.bf16.msra.mxu0 %v792
        %1169 = vmatprep.subr.bf16.mxu0 0
        %1170 = vmatpush1.bf16.msra.mxu0 %v791
        %1171 = vmatprep.subr.bf16.mxu0 0
        %1172 = vmatpush1.bf16.msra.mxu0 %v790
        %1173 = vmatprep.subr.bf16.mxu0 0
        %1174 = vmatpush1.bf16.msra.mxu0 %v789
        %1175 = vmatprep.subr.bf16.mxu0 0
        %1176 = vmatpush1.bf16.msra.mxu0 %v788
        %1177 = vmatprep.subr.bf16.mxu0 0
        %1178 = vmatpush1.bf16.msra.mxu0 %v787
        %1179 = vmatprep.subr.bf16.mxu0 0
        %1180 = vmatpush2.bf16.msra.mxu0 %v802
        %1181 = vmatprep.subr.bf16.mxu0 0
        %1182 = vmatpush2.bf16.msra.mxu0 %v801
        %1183 = vmatprep.subr.bf16.mxu0 0
        %1184 = vmatpush2.bf16.msra.mxu0 %v800
        %1185 = vmatprep.subr.bf16.mxu0 0
        %1186 = vmatpush2.bf16.msra.mxu0 %v799
        %1187 = vmatprep.subr.bf16.mxu0 0
        %1188 = vmatpush2.bf16.msra.mxu0 %v798
        %1189 = vmatprep.subr.bf16.mxu0 0
        %1190 = vmatpush2.bf16.msra.mxu0 %v797
        %1191 = vmatprep.subr.bf16.mxu0 0
        %1192 = vmatpush2.bf16.msra.mxu0 %v796
        %1193 = vmatprep.subr.bf16.mxu0 0
        %1194 = vmatpush2.bf16.msra.mxu0 %v795
        %1195 = vmatprep.mubr.bf16.mxu0 %v1108
        %1196 = vmatmul.mubr.bf16.gmra.mxu0 %v1107
        %v1197 = vpop.f32.mrf.mxu0
        %v1198 = vadd.f32 0.0, %v1197
        %v1199 = vpop.f32.mrf.mxu0
        %v1200 = vpop.f32.mrf.mxu0
        %v1201 = vadd.f32 0.0, %v1200
        %v1202 = vpop.f32.mrf.mxu0
        %1203 = vmatprep.mubr.bf16.mxu0 %v1110
        %1204 = vmatmul.mubr.bf16.gmra.mxu0 %v1109
        %v1205 = vpop.f32.mrf.mxu0
        %v1206 = vadd.f32 0.0, %v1205
        %v1207 = vpop.f32.mrf.mxu0
        %v1208 = vpop.f32.mrf.mxu0
        %v1209 = vadd.f32 0.0, %v1208
        %v1210 = vpop.f32.mrf.mxu0
        %1211 = vmatprep.mubr.bf16.mxu0 %v1112
        %1212 = vmatmul.mubr.bf16.gmra.mxu0 %v1111
        %v1213 = vpop.f32.mrf.mxu0
        %v1214 = vadd.f32 0.0, %v1213
        %v1215 = vpop.f32.mrf.mxu0
        %v1216 = vpop.f32.mrf.mxu0
        %v1217 = vadd.f32 0.0, %v1216
        %v1218 = vpop.f32.mrf.mxu0
        %1219 = vmatprep.mubr.bf16.mxu0 %v1114
        %1220 = vmatmul.mubr.bf16.gmra.mxu0 %v1113
        %v1221 = vpop.f32.mrf.mxu0
        %v1222 = vadd.f32 0.0, %v1221
        %v1223 = vpop.f32.mrf.mxu0
        %v1224 = vpop.f32.mrf.mxu0
        %v1225 = vadd.f32 0.0, %v1224
        %v1226 = vpop.f32.mrf.mxu0
        %1227 = vmatprep.mubr.bf16.mxu0 %v1116
        %1228 = vmatmul.mubr.bf16.gmra.mxu0 %v1115
        %v1229 = vpop.f32.mrf.mxu0
        %v1230 = vadd.f32 0.0, %v1229
        %v1231 = vpop.f32.mrf.mxu0
        %v1232 = vpop.f32.mrf.mxu0
        %v1233 = vadd.f32 0.0, %v1232
        %v1234 = vpop.f32.mrf.mxu0
        %1235 = vmatprep.mubr.bf16.mxu0 %v1118
        %1236 = vmatmul.mubr.bf16.gmra.mxu0 %v1117
        %v1237 = vpop.f32.mrf.mxu0
        %v1238 = vadd.f32 0.0, %v1237
        %v1239 = vpop.f32.mrf.mxu0
        %v1240 = vpop.f32.mrf.mxu0
        %v1241 = vadd.f32 0.0, %v1240
        %v1242 = vpop.f32.mrf.mxu0
        %1243 = vmatprep.mubr.bf16.mxu0 %v1120
        %1244 = vmatmul.mubr.bf16.gmra.mxu0 %v1119
        %v1245 = vpop.f32.mrf.mxu0
        %v1246 = vadd.f32 0.0, %v1245
        %v1247 = vpop.f32.mrf.mxu0
        %v1248 = vpop.f32.mrf.mxu0
        %v1249 = vadd.f32 0.0, %v1248
        %v1250 = vpop.f32.mrf.mxu0
        %1251 = vmatprep.mubr.bf16.mxu0 %v1122
        %1252 = vmatmul.mubr.bf16.gmra.mxu0 %v1121
        %v1253 = vpop.f32.mrf.mxu0
        %v1254 = vadd.f32 0.0, %v1253
        %v1255 = vpop.f32.mrf.mxu0
        %v1256 = vpop.f32.mrf.mxu0
        %v1257 = vadd.f32 0.0, %v1256
        %v1258 = vpop.f32.mrf.mxu0
        %1259 = vmatprep.mubr.bf16.mxu0 %v1124
        %1260 = vmatmul.mubr.bf16.gmra.mxu0 %v1123
        %v1261 = vpop.f32.mrf.mxu0
        %v1262 = vadd.f32 0.0, %v1261
        %v1263 = vpop.f32.mrf.mxu0
        %v1264 = vpop.f32.mrf.mxu0
        %v1265 = vadd.f32 0.0, %v1264
        %v1266 = vpop.f32.mrf.mxu0
        %1267 = vmatprep.mubr.bf16.mxu0 %v1126
        %1268 = vmatmul.mubr.bf16.gmra.mxu0 %v1125
        %v1269 = vpop.f32.mrf.mxu0
        %v1270 = vadd.f32 0.0, %v1269
        %v1271 = vpop.f32.mrf.mxu0
        %v1272 = vpop.f32.mrf.mxu0
        %v1273 = vadd.f32 0.0, %v1272
        %v1274 = vpop.f32.mrf.mxu0
        %1275 = vmatprep.mubr.bf16.mxu0 %v1128
        %1276 = vmatmul.mubr.bf16.gmra.mxu0 %v1127
        %v1277 = vpop.f32.mrf.mxu0
        %v1278 = vadd.f32 0.0, %v1277
        %v1279 = vpop.f32.mrf.mxu0
        %v1280 = vpop.f32.mrf.mxu0
        %v1281 = vadd.f32 0.0, %v1280
        %v1282 = vpop.f32.mrf.mxu0
        %1283 = vmatprep.mubr.bf16.mxu0 %v1130
        %1284 = vmatmul.mubr.bf16.gmra.mxu0 %v1129
        %v1285 = vpop.f32.mrf.mxu0
        %v1286 = vadd.f32 0.0, %v1285
        %v1287 = vpop.f32.mrf.mxu0
        %v1288 = vpop.f32.mrf.mxu0
        %v1289 = vadd.f32 0.0, %v1288
        %v1290 = vpop.f32.mrf.mxu0
        %1291 = vmatprep.mubr.bf16.mxu0 %v1132
        %1292 = vmatmul.mubr.bf16.gmra.mxu0 %v1131
        %v1293 = vpop.f32.mrf.mxu0
        %v1294 = vadd.f32 0.0, %v1293
        %v1295 = vpop.f32.mrf.mxu0
        %v1296 = vpop.f32.mrf.mxu0
        %v1297 = vadd.f32 0.0, %v1296
        %v1298 = vpop.f32.mrf.mxu0
        %1299 = vmatprep.mubr.bf16.mxu0 %v1134
        %1300 = vmatmul.mubr.bf16.gmra.mxu0 %v1133
        %v1301 = vpop.f32.mrf.mxu0
        %v1302 = vadd.f32 0.0, %v1301
        %v1303 = vpop.f32.mrf.mxu0
        %v1304 = vpop.f32.mrf.mxu0
        %v1305 = vadd.f32 0.0, %v1304
        %v1306 = vpop.f32.mrf.mxu0
        %1307 = vdwg.mxu0
        %v1308 = vpack.c.bf16 %v1201, %v1198
        %v1309 = vpack.c.bf16 %v1209, %v1206
        %v1310 = vpack.c.bf16 %v1217, %v1214
        %v1311 = vpack.c.bf16 %v1225, %v1222
        %v1312 = vpack.c.bf16 %v1233, %v1230
        %v1313 = vpack.c.bf16 %v1241, %v1238
        %v1314 = vpack.c.bf16 %v1249, %v1246
        %v1315 = vpack.c.bf16 %v1257, %v1254
        %v1316 = vpack.c.bf16 %v1265, %v1262
        %v1317 = vpack.c.bf16 %v1273, %v1270
        %v1318 = vpack.c.bf16 %v1281, %v1278
        %v1319 = vpack.c.bf16 %v1289, %v1286
        %v1320 = vpack.c.bf16 %v1297, %v1294
        %v1321 = vpack.c.bf16 %v1305, %v1302
        %s1322 = scalar_lea.vmem %s1, 128
        %v1323 = vld [vmem:[%s1322] sm:$0xff]
        %v1324 = vld [vmem:[%s1322 + $0x8] sm:$0xff]
        %v1325 = vld [vmem:[%s1322 + $0x10] sm:$0xff]
        %v1326 = vld [vmem:[%s1322 + $0x18] sm:$0xff]
        %v1327 = vld [vmem:[%s1322 + $0x20] sm:$0xff]
        %v1328 = vld [vmem:[%s1322 + $0x28] sm:$0xff]
        %v1329 = vld [vmem:[%s1322 + $0x30] sm:$0xff]
        %v1330 = vld [vmem:[%s1322 + $0x38] sm:$0xff]
        %v1331 = vld [vmem:[%s1322 + $0x40] sm:$0xff]
        %v1332 = vld [vmem:[%s1322 + $0x48] sm:$0xff]
        %v1333 = vld [vmem:[%s1322 + $0x50] sm:$0xff]
        %v1334 = vld [vmem:[%s1322 + $0x58] sm:$0xff]
        %v1335 = vld [vmem:[%s1322 + $0x60] sm:$0xff]
        %v1336 = vld [vmem:[%s1322 + $0x68] sm:$0xff]
        %v1337 = vld [vmem:[%s1322 + $0x70] sm:$0xff]
        %v1338 = vld [vmem:[%s1322 + $0x78] sm:$0xff]
        %v1355 = vunpack.c.l.b16 %v1323
        %v1356 = vunpack.c.h.b16 %v1323
        %v1357 = vunpack.c.l.b16 %v1324
        %v1358 = vunpack.c.h.b16 %v1324
        %v1359 = vunpack.c.l.b16 %v1325
        %v1360 = vunpack.c.h.b16 %v1325
        %v1361 = vunpack.c.l.b16 %v1326
        %v1362 = vunpack.c.h.b16 %v1326
        %v1363 = vunpack.c.l.b16 %v1327
        %v1364 = vunpack.c.h.b16 %v1327
        %v1365 = vunpack.c.l.b16 %v1328
        %v1366 = vunpack.c.h.b16 %v1328
        %v1367 = vunpack.c.l.b16 %v1329
        %v1368 = vunpack.c.h.b16 %v1329
        %v1369 = vunpack.c.l.b16 %v1330
        %v1370 = vunpack.c.h.b16 %v1330
        %v1371 = vunpack.c.l.b16 %v1331
        %v1372 = vunpack.c.h.b16 %v1331
        %v1373 = vunpack.c.l.b16 %v1332
        %v1374 = vunpack.c.h.b16 %v1332
        %v1375 = vunpack.c.l.b16 %v1333
        %v1376 = vunpack.c.h.b16 %v1333
        %v1377 = vunpack.c.l.b16 %v1334
        %v1378 = vunpack.c.h.b16 %v1334
        %v1379 = vunpack.c.l.b16 %v1335
        %v1380 = vunpack.c.h.b16 %v1335
        %v1381 = vunpack.c.l.b16 %v1336
        %v1382 = vunpack.c.h.b16 %v1336
        %v1383 = vunpack.c.l.b16 %v1337
        %v1384 = vunpack.c.h.b16 %v1337
        %v1385 = vunpack.c.l.b16 %v1338
        %v1386 = vunpack.c.h.b16 %v1338
        %v1387 = vpack.c.b16 %v1357, %v1355
        %v1388 = vpack.c.b16 %v1358, %v1356
        %v1389 = vpack.c.b16 %v1361, %v1359
        %v1390 = vpack.c.b16 %v1362, %v1360
        %v1391 = vpack.c.b16 %v1365, %v1363
        %v1392 = vpack.c.b16 %v1366, %v1364
        %v1393 = vpack.c.b16 %v1369, %v1367
        %v1394 = vpack.c.b16 %v1370, %v1368
        %v1395 = vpack.c.b16 %v1373, %v1371
        %v1396 = vpack.c.b16 %v1374, %v1372
        %v1397 = vpack.c.b16 %v1377, %v1375
        %v1398 = vpack.c.b16 %v1378, %v1376
        %v1399 = vpack.c.b16 %v1381, %v1379
        %v1400 = vpack.c.b16 %v1382, %v1380
        %v1401 = vpack.c.b16 %v1385, %v1383
        %v1402 = vpack.c.b16 %v1386, %v1384
        %1419 = vmatprep.subr.bf16.mxu0 %v1402
        %1420 = vmatpush1.bf16.msra.mxu0 %v1401
        %1421 = vmatprep.subr.bf16.mxu0 %v1400
        %1422 = vmatpush1.bf16.msra.mxu0 %v1399
        %1423 = vmatprep.subr.bf16.mxu0 %v1398
        %1424 = vmatpush1.bf16.msra.mxu0 %v1397
        %1425 = vmatprep.subr.bf16.mxu0 %v1396
        %1426 = vmatpush1.bf16.msra.mxu0 %v1395
        %1427 = vmatprep.subr.bf16.mxu0 %v1394
        %1428 = vmatpush1.bf16.msra.mxu0 %v1393
        %1429 = vmatprep.subr.bf16.mxu0 %v1392
        %1430 = vmatpush1.bf16.msra.mxu0 %v1391
        %1431 = vmatprep.subr.bf16.mxu0 %v1390
        %1432 = vmatpush1.bf16.msra.mxu0 %v1389
        %1433 = vmatprep.subr.bf16.mxu0 %v1388
        %1434 = vmatpush1.bf16.msra.mxu0 %v1387
        %1435 = vmatprep.subr.bf16.mxu0 0
        %1436 = vmatpush2.bf16.msra.mxu0 0
        %1437 = vmatprep.subr.bf16.mxu0 0
        %1438 = vmatpush2.bf16.msra.mxu0 0
        %1439 = vmatprep.subr.bf16.mxu0 0
        %1440 = vmatpush2.bf16.msra.mxu0 0
        %1441 = vmatprep.subr.bf16.mxu0 0
        %1442 = vmatpush2.bf16.msra.mxu0 0
        %1443 = vmatprep.subr.bf16.mxu0 0
        %1444 = vmatpush2.bf16.msra.mxu0 0
        %1445 = vmatprep.subr.bf16.mxu0 0
        %1446 = vmatpush2.bf16.msra.mxu0 0
        %1447 = vmatprep.subr.bf16.mxu0 0
        %1448 = vmatpush2.bf16.msra.mxu0 0
        %1449 = vmatprep.subr.bf16.mxu0 0
        %1450 = vmatpush2.bf16.msra.mxu0 0
        %1451 = vmatprep.mubr.bf16.mxu0 0
        %1452 = vmatmul.mubr.bf16.gmra.mxu0 %v1308
        %v1453 = vpop.f32.mrf.mxu0
        %v1454 = vadd.f32 0.0, %v1453
        %v1455 = vpop.f32.mrf.mxu0
        %v1456 = vadd.f32 0.0, %v1455
        %v1457 = vpop.f32.mrf.mxu0
        %v1458 = vadd.f32 0.0, %v1457
        %v1459 = vpop.f32.mrf.mxu0
        %v1460 = vadd.f32 0.0, %v1459
        %1461 = vmatprep.mubr.bf16.mxu0 0
        %1462 = vmatmul.mubr.bf16.gmra.mxu0 %v1309
        %v1463 = vpop.f32.mrf.mxu0
        %v1464 = vadd.f32 0.0, %v1463
        %v1465 = vpop.f32.mrf.mxu0
        %v1466 = vadd.f32 0.0, %v1465
        %v1467 = vpop.f32.mrf.mxu0
        %v1468 = vadd.f32 0.0, %v1467
        %v1469 = vpop.f32.mrf.mxu0
        %v1470 = vadd.f32 0.0, %v1469
        %1471 = vmatprep.mubr.bf16.mxu0 0
        %1472 = vmatmul.mubr.bf16.gmra.mxu0 %v1310
        %v1473 = vpop.f32.mrf.mxu0
        %v1474 = vadd.f32 0.0, %v1473
        %v1475 = vpop.f32.mrf.mxu0
        %v1476 = vadd.f32 0.0, %v1475
        %v1477 = vpop.f32.mrf.mxu0
        %v1478 = vadd.f32 0.0, %v1477
        %v1479 = vpop.f32.mrf.mxu0
        %v1480 = vadd.f32 0.0, %v1479
        %1481 = vmatprep.mubr.bf16.mxu0 0
        %1482 = vmatmul.mubr.bf16.gmra.mxu0 %v1311
        %v1483 = vpop.f32.mrf.mxu0
        %v1484 = vadd.f32 0.0, %v1483
        %v1485 = vpop.f32.mrf.mxu0
        %v1486 = vadd.f32 0.0, %v1485
        %v1487 = vpop.f32.mrf.mxu0
        %v1488 = vadd.f32 0.0, %v1487
        %v1489 = vpop.f32.mrf.mxu0
        %v1490 = vadd.f32 0.0, %v1489
        %1491 = vmatprep.mubr.bf16.mxu0 0
        %1492 = vmatmul.mubr.bf16.gmra.mxu0 %v1312
        %v1493 = vpop.f32.mrf.mxu0
        %v1494 = vadd.f32 0.0, %v1493
        %v1495 = vpop.f32.mrf.mxu0
        %v1496 = vadd.f32 0.0, %v1495
        %v1497 = vpop.f32.mrf.mxu0
        %v1498 = vadd.f32 0.0, %v1497
        %v1499 = vpop.f32.mrf.mxu0
        %v1500 = vadd.f32 0.0, %v1499
        %1501 = vmatprep.mubr.bf16.mxu0 0
        %1502 = vmatmul.mubr.bf16.gmra.mxu0 %v1313
        %v1503 = vpop.f32.mrf.mxu0
        %v1504 = vadd.f32 0.0, %v1503
        %v1505 = vpop.f32.mrf.mxu0
        %v1506 = vadd.f32 0.0, %v1505
        %v1507 = vpop.f32.mrf.mxu0
        %v1508 = vadd.f32 0.0, %v1507
        %v1509 = vpop.f32.mrf.mxu0
        %v1510 = vadd.f32 0.0, %v1509
        %1511 = vmatprep.mubr.bf16.mxu0 0
        %1512 = vmatmul.mubr.bf16.gmra.mxu0 %v1314
        %v1513 = vpop.f32.mrf.mxu0
        %v1514 = vadd.f32 0.0, %v1513
        %v1515 = vpop.f32.mrf.mxu0
        %v1516 = vadd.f32 0.0, %v1515
        %v1517 = vpop.f32.mrf.mxu0
        %v1518 = vadd.f32 0.0, %v1517
        %v1519 = vpop.f32.mrf.mxu0
        %v1520 = vadd.f32 0.0, %v1519
        %1521 = vmatprep.mubr.bf16.mxu0 0
        %1522 = vmatmul.mubr.bf16.gmra.mxu0 %v1315
        %v1523 = vpop.f32.mrf.mxu0
        %v1524 = vadd.f32 0.0, %v1523
        %v1525 = vpop.f32.mrf.mxu0
        %v1526 = vadd.f32 0.0, %v1525
        %v1527 = vpop.f32.mrf.mxu0
        %v1528 = vadd.f32 0.0, %v1527
        %v1529 = vpop.f32.mrf.mxu0
        %v1530 = vadd.f32 0.0, %v1529
        %1531 = vmatprep.mubr.bf16.mxu0 0
        %1532 = vmatmul.mubr.bf16.gmra.mxu0 %v1316
        %v1533 = vpop.f32.mrf.mxu0
        %v1534 = vadd.f32 0.0, %v1533
        %v1535 = vpop.f32.mrf.mxu0
        %v1536 = vadd.f32 0.0, %v1535
        %v1537 = vpop.f32.mrf.mxu0
        %v1538 = vadd.f32 0.0, %v1537
        %v1539 = vpop.f32.mrf.mxu0
        %v1540 = vadd.f32 0.0, %v1539
        %1541 = vmatprep.mubr.bf16.mxu0 0
        %1542 = vmatmul.mubr.bf16.gmra.mxu0 %v1317
        %v1543 = vpop.f32.mrf.mxu0
        %v1544 = vadd.f32 0.0, %v1543
        %v1545 = vpop.f32.mrf.mxu0
        %v1546 = vadd.f32 0.0, %v1545
        %v1547 = vpop.f32.mrf.mxu0
        %v1548 = vadd.f32 0.0, %v1547
        %v1549 = vpop.f32.mrf.mxu0
        %v1550 = vadd.f32 0.0, %v1549
        %1551 = vmatprep.mubr.bf16.mxu0 0
        %1552 = vmatmul.mubr.bf16.gmra.mxu0 %v1318
        %v1553 = vpop.f32.mrf.mxu0
        %v1554 = vadd.f32 0.0, %v1553
        %v1555 = vpop.f32.mrf.mxu0
        %v1556 = vadd.f32 0.0, %v1555
        %v1557 = vpop.f32.mrf.mxu0
        %v1558 = vadd.f32 0.0, %v1557
        %v1559 = vpop.f32.mrf.mxu0
        %v1560 = vadd.f32 0.0, %v1559
        %1561 = vmatprep.mubr.bf16.mxu0 0
        %1562 = vmatmul.mubr.bf16.gmra.mxu0 %v1319
        %v1563 = vpop.f32.mrf.mxu0
        %v1564 = vadd.f32 0.0, %v1563
        %v1565 = vpop.f32.mrf.mxu0
        %v1566 = vadd.f32 0.0, %v1565
        %v1567 = vpop.f32.mrf.mxu0
        %v1568 = vadd.f32 0.0, %v1567
        %v1569 = vpop.f32.mrf.mxu0
        %v1570 = vadd.f32 0.0, %v1569
        %1571 = vmatprep.mubr.bf16.mxu0 0
        %1572 = vmatmul.mubr.bf16.gmra.mxu0 %v1320
        %v1573 = vpop.f32.mrf.mxu0
        %v1574 = vadd.f32 0.0, %v1573
        %v1575 = vpop.f32.mrf.mxu0
        %v1576 = vadd.f32 0.0, %v1575
        %v1577 = vpop.f32.mrf.mxu0
        %v1578 = vadd.f32 0.0, %v1577
        %v1579 = vpop.f32.mrf.mxu0
        %v1580 = vadd.f32 0.0, %v1579
        %1581 = vmatprep.mubr.bf16.mxu0 0
        %1582 = vmatmul.mubr.bf16.gmra.mxu0 %v1321
        %v1583 = vpop.f32.mrf.mxu0
        %v1584 = vadd.f32 0.0, %v1583
        %v1585 = vpop.f32.mrf.mxu0
        %v1586 = vadd.f32 0.0, %v1585
        %v1587 = vpop.f32.mrf.mxu0
        %v1588 = vadd.f32 0.0, %v1587
        %v1589 = vpop.f32.mrf.mxu0
        %v1590 = vadd.f32 0.0, %v1589
        %1591 = vdwg.mxu0
        %v1608 = vunpack.c.l.b16 %v978
        %v1609 = vunpack.c.h.b16 %v978
        %v1610 = vunpack.c.l.b16 %v979
        %v1611 = vunpack.c.h.b16 %v979
        %v1612 = vunpack.c.l.b16 %v980
        %v1613 = vunpack.c.h.b16 %v980
        %v1614 = vunpack.c.l.b16 %v981
        %v1615 = vunpack.c.h.b16 %v981
        %v1616 = vunpack.c.l.b16 %v982
        %v1617 = vunpack.c.h.b16 %v982
        %v1618 = vunpack.c.l.b16 %v983
        %v1619 = vunpack.c.h.b16 %v983
        %v1620 = vunpack.c.l.b16 %v984
        %v1621 = vunpack.c.h.b16 %v984
        %v1622 = vunpack.c.l.b16 %v985
        %v1623 = vunpack.c.h.b16 %v985
        %v1624 = vunpack.c.l.b16 %v986
        %v1625 = vunpack.c.h.b16 %v986
        %v1626 = vunpack.c.l.b16 %v987
        %v1627 = vunpack.c.h.b16 %v987
        %v1628 = vunpack.c.l.b16 %v988
        %v1629 = vunpack.c.h.b16 %v988
        %v1630 = vunpack.c.l.b16 %v989
        %v1631 = vunpack.c.h.b16 %v989
        %v1632 = vunpack.c.l.b16 %v990
        %v1633 = vunpack.c.h.b16 %v990
        %v1634 = vunpack.c.l.b16 %v991
        %v1635 = vunpack.c.h.b16 %v991
        %v1636 = vunpack.c.l.b16 %v992
        %v1637 = vunpack.c.h.b16 %v992
        %v1638 = vunpack.c.l.b16 %v993
        %v1639 = vunpack.c.h.b16 %v993
        %v1640 = vpack.c.b16 %v1610, %v1608
        %v1641 = vpack.c.b16 %v1611, %v1609
        %v1642 = vpack.c.b16 %v1614, %v1612
        %v1643 = vpack.c.b16 %v1615, %v1613
        %v1644 = vpack.c.b16 %v1618, %v1616
        %v1645 = vpack.c.b16 %v1619, %v1617
        %v1646 = vpack.c.b16 %v1622, %v1620
        %v1647 = vpack.c.b16 %v1623, %v1621
        %v1648 = vpack.c.b16 %v1626, %v1624
        %v1649 = vpack.c.b16 %v1627, %v1625
        %v1650 = vpack.c.b16 %v1630, %v1628
        %v1651 = vpack.c.b16 %v1631, %v1629
        %v1652 = vpack.c.b16 %v1634, %v1632
        %v1653 = vpack.c.b16 %v1635, %v1633
        %v1654 = vpack.c.b16 %v1638, %v1636
        %v1655 = vpack.c.b16 %v1639, %v1637
        %1672 = vmatprep.subr.bf16.mxu0 %v1655
        %1673 = vmatpush1.bf16.msra.mxu0 %v1654
        %1674 = vmatprep.subr.bf16.mxu0 %v1653
        %1675 = vmatpush1.bf16.msra.mxu0 %v1652
        %1676 = vmatprep.subr.bf16.mxu0 %v1651
        %1677 = vmatpush1.bf16.msra.mxu0 %v1650
        %1678 = vmatprep.subr.bf16.mxu0 %v1649
        %1679 = vmatpush1.bf16.msra.mxu0 %v1648
        %1680 = vmatprep.subr.bf16.mxu0 %v1647
        %1681 = vmatpush1.bf16.msra.mxu0 %v1646
        %1682 = vmatprep.subr.bf16.mxu0 %v1645
        %1683 = vmatpush1.bf16.msra.mxu0 %v1644
        %1684 = vmatprep.subr.bf16.mxu0 %v1643
        %1685 = vmatpush1.bf16.msra.mxu0 %v1642
        %1686 = vmatprep.subr.bf16.mxu0 %v1641
        %1687 = vmatpush1.bf16.msra.mxu0 %v1640
        %1688 = vmatprep.subr.bf16.mxu0 0
        %1689 = vmatpush2.bf16.msra.mxu0 0
        %1690 = vmatprep.subr.bf16.mxu0 0
        %1691 = vmatpush2.bf16.msra.mxu0 0
        %1692 = vmatprep.subr.bf16.mxu0 0
        %1693 = vmatpush2.bf16.msra.mxu0 0
        %1694 = vmatprep.subr.bf16.mxu0 0
        %1695 = vmatpush2.bf16.msra.mxu0 0
        %1696 = vmatprep.subr.bf16.mxu0 0
        %1697 = vmatpush2.bf16.msra.mxu0 0
        %1698 = vmatprep.subr.bf16.mxu0 0
        %1699 = vmatpush2.bf16.msra.mxu0 0
        %1700 = vmatprep.subr.bf16.mxu0 0
        %1701 = vmatpush2.bf16.msra.mxu0 0
        %1702 = vmatprep.subr.bf16.mxu0 0
        %1703 = vmatpush2.bf16.msra.mxu0 0
        %1704 = vmatprep.mubr.bf16.mxu0 0
        %1705 = vmatmul.mubr.bf16.gmra.mxu0 %v964
        %v1706 = vpop.f32.mrf.mxu0
        %v1707 = vadd.f32 %v1454, %v1706
        %v1708 = vpop.f32.mrf.mxu0
        %v1709 = vadd.f32 %v1456, %v1708
        %v1710 = vpop.f32.mrf.mxu0
        %v1711 = vadd.f32 %v1458, %v1710
        %v1712 = vpop.f32.mrf.mxu0
        %v1713 = vadd.f32 %v1460, %v1712
        %1714 = vmatprep.mubr.bf16.mxu0 0
        %1715 = vmatmul.mubr.bf16.gmra.mxu0 %v965
        %v1716 = vpop.f32.mrf.mxu0
        %v1717 = vadd.f32 %v1464, %v1716
        %v1718 = vpop.f32.mrf.mxu0
        %v1719 = vadd.f32 %v1466, %v1718
        %v1720 = vpop.f32.mrf.mxu0
        %v1721 = vadd.f32 %v1468, %v1720
        %v1722 = vpop.f32.mrf.mxu0
        %v1723 = vadd.f32 %v1470, %v1722
        %1724 = vmatprep.mubr.bf16.mxu0 0
        %1725 = vmatmul.mubr.bf16.gmra.mxu0 %v966
        %v1726 = vpop.f32.mrf.mxu0
        %v1727 = vadd.f32 %v1474, %v1726
        %v1728 = vpop.f32.mrf.mxu0
        %v1729 = vadd.f32 %v1476, %v1728
        %v1730 = vpop.f32.mrf.mxu0
        %v1731 = vadd.f32 %v1478, %v1730
        %v1732 = vpop.f32.mrf.mxu0
        %v1733 = vadd.f32 %v1480, %v1732
        %1734 = vmatprep.mubr.bf16.mxu0 0
        %1735 = vmatmul.mubr.bf16.gmra.mxu0 %v967
        %v1736 = vpop.f32.mrf.mxu0
        %v1737 = vadd.f32 %v1484, %v1736
        %v1738 = vpop.f32.mrf.mxu0
        %v1739 = vadd.f32 %v1486, %v1738
        %v1740 = vpop.f32.mrf.mxu0
        %v1741 = vadd.f32 %v1488, %v1740
        %v1742 = vpop.f32.mrf.mxu0
        %v1743 = vadd.f32 %v1490, %v1742
        %1744 = vmatprep.mubr.bf16.mxu0 0
        %1745 = vmatmul.mubr.bf16.gmra.mxu0 %v968
        %v1746 = vpop.f32.mrf.mxu0
        %v1747 = vadd.f32 %v1494, %v1746
        %v1748 = vpop.f32.mrf.mxu0
        %v1749 = vadd.f32 %v1496, %v1748
        %v1750 = vpop.f32.mrf.mxu0
        %v1751 = vadd.f32 %v1498, %v1750
        %v1752 = vpop.f32.mrf.mxu0
        %v1753 = vadd.f32 %v1500, %v1752
        %1754 = vmatprep.mubr.bf16.mxu0 0
        %1755 = vmatmul.mubr.bf16.gmra.mxu0 %v969
        %v1756 = vpop.f32.mrf.mxu0
        %v1757 = vadd.f32 %v1504, %v1756
        %v1758 = vpop.f32.mrf.mxu0
        %v1759 = vadd.f32 %v1506, %v1758
        %v1760 = vpop.f32.mrf.mxu0
        %v1761 = vadd.f32 %v1508, %v1760
        %v1762 = vpop.f32.mrf.mxu0
        %v1763 = vadd.f32 %v1510, %v1762
        %1764 = vmatprep.mubr.bf16.mxu0 0
        %1765 = vmatmul.mubr.bf16.gmra.mxu0 %v970
        %v1766 = vpop.f32.mrf.mxu0
        %v1767 = vadd.f32 %v1514, %v1766
        %v1768 = vpop.f32.mrf.mxu0
        %v1769 = vadd.f32 %v1516, %v1768
        %v1770 = vpop.f32.mrf.mxu0
        %v1771 = vadd.f32 %v1518, %v1770
        %v1772 = vpop.f32.mrf.mxu0
        %v1773 = vadd.f32 %v1520, %v1772
        %1774 = vmatprep.mubr.bf16.mxu0 0
        %1775 = vmatmul.mubr.bf16.gmra.mxu0 %v971
        %v1776 = vpop.f32.mrf.mxu0
        %v1777 = vadd.f32 %v1524, %v1776
        %v1778 = vpop.f32.mrf.mxu0
        %v1779 = vadd.f32 %v1526, %v1778
        %v1780 = vpop.f32.mrf.mxu0
        %v1781 = vadd.f32 %v1528, %v1780
        %v1782 = vpop.f32.mrf.mxu0
        %v1783 = vadd.f32 %v1530, %v1782
        %1784 = vmatprep.mubr.bf16.mxu0 0
        %1785 = vmatmul.mubr.bf16.gmra.mxu0 %v972
        %v1786 = vpop.f32.mrf.mxu0
        %v1787 = vadd.f32 %v1534, %v1786
        %v1788 = vpop.f32.mrf.mxu0
        %v1789 = vadd.f32 %v1536, %v1788
        %v1790 = vpop.f32.mrf.mxu0
        %v1791 = vadd.f32 %v1538, %v1790
        %v1792 = vpop.f32.mrf.mxu0
        %v1793 = vadd.f32 %v1540, %v1792
        %1794 = vmatprep.mubr.bf16.mxu0 0
        %1795 = vmatmul.mubr.bf16.gmra.mxu0 %v973
        %v1796 = vpop.f32.mrf.mxu0
        %v1797 = vadd.f32 %v1544, %v1796
        %v1798 = vpop.f32.mrf.mxu0
        %v1799 = vadd.f32 %v1546, %v1798
        %v1800 = vpop.f32.mrf.mxu0
        %v1801 = vadd.f32 %v1548, %v1800
        %v1802 = vpop.f32.mrf.mxu0
        %v1803 = vadd.f32 %v1550, %v1802
        %1804 = vmatprep.mubr.bf16.mxu0 0
        %1805 = vmatmul.mubr.bf16.gmra.mxu0 %v974
        %v1806 = vpop.f32.mrf.mxu0
        %v1807 = vadd.f32 %v1554, %v1806
        %v1808 = vpop.f32.mrf.mxu0
        %v1809 = vadd.f32 %v1556, %v1808
        %v1810 = vpop.f32.mrf.mxu0
        %v1811 = vadd.f32 %v1558, %v1810
        %v1812 = vpop.f32.mrf.mxu0
        %v1813 = vadd.f32 %v1560, %v1812
        %1814 = vmatprep.mubr.bf16.mxu0 0
        %1815 = vmatmul.mubr.bf16.gmra.mxu0 %v975
        %v1816 = vpop.f32.mrf.mxu0
        %v1817 = vadd.f32 %v1564, %v1816
        %v1818 = vpop.f32.mrf.mxu0
        %v1819 = vadd.f32 %v1566, %v1818
        %v1820 = vpop.f32.mrf.mxu0
        %v1821 = vadd.f32 %v1568, %v1820
        %v1822 = vpop.f32.mrf.mxu0
        %v1823 = vadd.f32 %v1570, %v1822
        %1824 = vmatprep.mubr.bf16.mxu0 0
        %1825 = vmatmul.mubr.bf16.gmra.mxu0 %v976
        %v1826 = vpop.f32.mrf.mxu0
        %v1827 = vadd.f32 %v1574, %v1826
        %v1828 = vpop.f32.mrf.mxu0
        %v1829 = vadd.f32 %v1576, %v1828
        %v1830 = vpop.f32.mrf.mxu0
        %v1831 = vadd.f32 %v1578, %v1830
        %v1832 = vpop.f32.mrf.mxu0
        %v1833 = vadd.f32 %v1580, %v1832
        %1834 = vmatprep.mubr.bf16.mxu0 0
        %1835 = vmatmul.mubr.bf16.gmra.mxu0 %v977
        %v1836 = vpop.f32.mrf.mxu0
        %v1837 = vadd.f32 %v1584, %v1836
        %v1838 = vpop.f32.mrf.mxu0
        %v1839 = vadd.f32 %v1586, %v1838
        %v1840 = vpop.f32.mrf.mxu0
        %v1841 = vadd.f32 %v1588, %v1840
        %v1842 = vpop.f32.mrf.mxu0
        %v1843 = vadd.f32 %v1590, %v1842
        %1844 = vdwg.mxu0
        %s1845 = scalar_lea.vmem %s3, 448
        %v1846 = vld [vmem:[%s1845] sm:$0xff]
        %v1847 = vld [vmem:[%s1845 + $0x8] sm:$0xff]
        %v1848 = vld [vmem:[%s1845 + $0x10] sm:$0xff]
        %v1849 = vld [vmem:[%s1845 + $0x18] sm:$0xff]
        %v1850 = vld [vmem:[%s1845 + $0x20] sm:$0xff]
        %v1851 = vld [vmem:[%s1845 + $0x28] sm:$0xff]
        %v1852 = vld [vmem:[%s1845 + $0x30] sm:$0xff]
        %v1853 = vld [vmem:[%s1845 + $0x38] sm:$0xff]
        %v1854 = vld [vmem:[%s1845 + $0x40] sm:$0xff]
        %v1855 = vld [vmem:[%s1845 + $0x48] sm:$0xff]
        %v1856 = vld [vmem:[%s1845 + $0x50] sm:$0xff]
        %v1857 = vld [vmem:[%s1845 + $0x58] sm:$0xff]
        %v1858 = vld [vmem:[%s1845 + $0x60] sm:$0xff]
        %v1859 = vld [vmem:[%s1845 + $0x68] sm:$0xff]
        %v1860 = vld [vmem:[%s1845 + $0x70] sm:$0xff]
        %v1861 = vld [vmem:[%s1845 + $0x78] sm:$0xff]
        %v1862 = vld [vmem:[%s1845 + $0x80] sm:$0xff]
        %v1863 = vld [vmem:[%s1845 + $0x88] sm:$0xff]
        %v1864 = vld [vmem:[%s1845 + $0x90] sm:$0xff]
        %v1865 = vld [vmem:[%s1845 + $0x98] sm:$0xff]
        %v1866 = vld [vmem:[%s1845 + $0xa0] sm:$0xff]
        %v1867 = vld [vmem:[%s1845 + $0xa8] sm:$0xff]
        %v1868 = vld [vmem:[%s1845 + $0xb0] sm:$0xff]
        %v1869 = vld [vmem:[%s1845 + $0xb8] sm:$0xff]
        %v1870 = vld [vmem:[%s1845 + $0xc0] sm:$0xff]
        %v1871 = vld [vmem:[%s1845 + $0xc8] sm:$0xff]
        %v1872 = vld [vmem:[%s1845 + $0xd0] sm:$0xff]
        %v1873 = vld [vmem:[%s1845 + $0xd8] sm:$0xff]
        %v1902 = vunpack.c.l.b16 %v1846
        %v1903 = vunpack.c.h.b16 %v1846
        %v1904 = vunpack.c.l.b16 %v1847
        %v1905 = vunpack.c.h.b16 %v1847
        %v1906 = vunpack.c.l.b16 %v1848
        %v1907 = vunpack.c.h.b16 %v1848
        %v1908 = vunpack.c.l.b16 %v1849
        %v1909 = vunpack.c.h.b16 %v1849
        %v1910 = vunpack.c.l.b16 %v1850
        %v1911 = vunpack.c.h.b16 %v1850
        %v1912 = vunpack.c.l.b16 %v1851
        %v1913 = vunpack.c.h.b16 %v1851
        %v1914 = vunpack.c.l.b16 %v1852
        %v1915 = vunpack.c.h.b16 %v1852
        %v1916 = vunpack.c.l.b16 %v1853
        %v1917 = vunpack.c.h.b16 %v1853
        %v1918 = vunpack.c.l.b16 %v1854
        %v1919 = vunpack.c.h.b16 %v1854
        %v1920 = vunpack.c.l.b16 %v1855
        %v1921 = vunpack.c.h.b16 %v1855
        %v1922 = vunpack.c.l.b16 %v1856
        %v1923 = vunpack.c.h.b16 %v1856
        %v1924 = vunpack.c.l.b16 %v1857
        %v1925 = vunpack.c.h.b16 %v1857
        %v1926 = vunpack.c.l.b16 %v1858
        %v1927 = vunpack.c.h.b16 %v1858
        %v1928 = vunpack.c.l.b16 %v1859
        %v1929 = vunpack.c.h.b16 %v1859
        %v1930 = vunpack.c.l.b16 %v1860
        %v1931 = vunpack.c.h.b16 %v1860
        %v1932 = vunpack.c.l.b16 %v1861
        %v1933 = vunpack.c.h.b16 %v1861
        %v1934 = vunpack.c.l.b16 %v1862
        %v1935 = vunpack.c.h.b16 %v1862
        %v1936 = vunpack.c.l.b16 %v1863
        %v1937 = vunpack.c.h.b16 %v1863
        %v1938 = vunpack.c.l.b16 %v1864
        %v1939 = vunpack.c.h.b16 %v1864
        %v1940 = vunpack.c.l.b16 %v1865
        %v1941 = vunpack.c.h.b16 %v1865
        %v1942 = vunpack.c.l.b16 %v1866
        %v1943 = vunpack.c.h.b16 %v1866
        %v1944 = vunpack.c.l.b16 %v1867
        %v1945 = vunpack.c.h.b16 %v1867
        %v1946 = vunpack.c.l.b16 %v1868
        %v1947 = vunpack.c.h.b16 %v1868
        %v1948 = vunpack.c.l.b16 %v1869
        %v1949 = vunpack.c.h.b16 %v1869
        %v1950 = vunpack.c.l.b16 %v1870
        %v1951 = vunpack.c.h.b16 %v1870
        %v1952 = vunpack.c.l.b16 %v1871
        %v1953 = vunpack.c.h.b16 %v1871
        %v1954 = vunpack.c.l.b16 %v1872
        %v1955 = vunpack.c.h.b16 %v1872
        %v1956 = vunpack.c.l.b16 %v1873
        %v1957 = vunpack.c.h.b16 %v1873
        %v1958 = vpack.c.b16 %v1904, %v1902
        %v1959 = vpack.c.b16 %v1905, %v1903
        %v1960 = vpack.c.b16 %v1908, %v1906
        %v1961 = vpack.c.b16 %v1909, %v1907
        %v1962 = vpack.c.b16 %v1912, %v1910
        %v1963 = vpack.c.b16 %v1913, %v1911
        %v1964 = vpack.c.b16 %v1916, %v1914
        %v1965 = vpack.c.b16 %v1917, %v1915
        %v1966 = vpack.c.b16 %v1920, %v1918
        %v1967 = vpack.c.b16 %v1921, %v1919
        %v1968 = vpack.c.b16 %v1924, %v1922
        %v1969 = vpack.c.b16 %v1925, %v1923
        %v1970 = vpack.c.b16 %v1928, %v1926
        %v1971 = vpack.c.b16 %v1929, %v1927
        %v1972 = vpack.c.b16 %v1932, %v1930
        %v1973 = vpack.c.b16 %v1933, %v1931
        %v1974 = vpack.c.b16 %v1936, %v1934
        %v1975 = vpack.c.b16 %v1937, %v1935
        %v1976 = vpack.c.b16 %v1940, %v1938
        %v1977 = vpack.c.b16 %v1941, %v1939
        %v1978 = vpack.c.b16 %v1944, %v1942
        %v1979 = vpack.c.b16 %v1945, %v1943
        %v1980 = vpack.c.b16 %v1948, %v1946
        %v1981 = vpack.c.b16 %v1949, %v1947
        %v1982 = vpack.c.b16 %v1952, %v1950
        %v1983 = vpack.c.b16 %v1953, %v1951
        %v1984 = vpack.c.b16 %v1956, %v1954
        %v1985 = vpack.c.b16 %v1957, %v1955
        %2014 = vmatprep.subr.bf16.mxu0 0
        %2015 = vmatpush1.bf16.msra.mxu0 %v794
        %2016 = vmatprep.subr.bf16.mxu0 0
        %2017 = vmatpush1.bf16.msra.mxu0 %v793
        %2018 = vmatprep.subr.bf16.mxu0 0
        %2019 = vmatpush1.bf16.msra.mxu0 %v792
        %2020 = vmatprep.subr.bf16.mxu0 0
        %2021 = vmatpush1.bf16.msra.mxu0 %v791
        %2022 = vmatprep.subr.bf16.mxu0 0
        %2023 = vmatpush1.bf16.msra.mxu0 %v790
        %2024 = vmatprep.subr.bf16.mxu0 0
        %2025 = vmatpush1.bf16.msra.mxu0 %v789
        %2026 = vmatprep.subr.bf16.mxu0 0
        %2027 = vmatpush1.bf16.msra.mxu0 %v788
        %2028 = vmatprep.subr.bf16.mxu0 0
        %2029 = vmatpush1.bf16.msra.mxu0 %v787
        %2030 = vmatprep.subr.bf16.mxu0 0
        %2031 = vmatpush2.bf16.msra.mxu0 %v802
        %2032 = vmatprep.subr.bf16.mxu0 0
        %2033 = vmatpush2.bf16.msra.mxu0 %v801
        %2034 = vmatprep.subr.bf16.mxu0 0
        %2035 = vmatpush2.bf16.msra.mxu0 %v800
        %2036 = vmatprep.subr.bf16.mxu0 0
        %2037 = vmatpush2.bf16.msra.mxu0 %v799
        %2038 = vmatprep.subr.bf16.mxu0 0
        %2039 = vmatpush2.bf16.msra.mxu0 %v798
        %2040 = vmatprep.subr.bf16.mxu0 0
        %2041 = vmatpush2.bf16.msra.mxu0 %v797
        %2042 = vmatprep.subr.bf16.mxu0 0
        %2043 = vmatpush2.bf16.msra.mxu0 %v796
        %2044 = vmatprep.subr.bf16.mxu0 0
        %2045 = vmatpush2.bf16.msra.mxu0 %v795
        %2046 = vmatprep.mubr.bf16.mxu0 %v1959
        %2047 = vmatmul.mubr.bf16.gmra.mxu0 %v1958
        %v2048 = vpop.f32.mrf.mxu0
        %v2049 = vadd.f32 0.0, %v2048
        %v2050 = vpop.f32.mrf.mxu0
        %v2051 = vpop.f32.mrf.mxu0
        %v2052 = vadd.f32 0.0, %v2051
        %v2053 = vpop.f32.mrf.mxu0
        %2054 = vmatprep.mubr.bf16.mxu0 %v1961
        %2055 = vmatmul.mubr.bf16.gmra.mxu0 %v1960
        %v2056 = vpop.f32.mrf.mxu0
        %v2057 = vadd.f32 0.0, %v2056
        %v2058 = vpop.f32.mrf.mxu0
        %v2059 = vpop.f32.mrf.mxu0
        %v2060 = vadd.f32 0.0, %v2059
        %v2061 = vpop.f32.mrf.mxu0
        %2062 = vmatprep.mubr.bf16.mxu0 %v1963
        %2063 = vmatmul.mubr.bf16.gmra.mxu0 %v1962
        %v2064 = vpop.f32.mrf.mxu0
        %v2065 = vadd.f32 0.0, %v2064
        %v2066 = vpop.f32.mrf.mxu0
        %v2067 = vpop.f32.mrf.mxu0
        %v2068 = vadd.f32 0.0, %v2067
        %v2069 = vpop.f32.mrf.mxu0
        %2070 = vmatprep.mubr.bf16.mxu0 %v1965
        %2071 = vmatmul.mubr.bf16.gmra.mxu0 %v1964
        %v2072 = vpop.f32.mrf.mxu0
        %v2073 = vadd.f32 0.0, %v2072
        %v2074 = vpop.f32.mrf.mxu0
        %v2075 = vpop.f32.mrf.mxu0
        %v2076 = vadd.f32 0.0, %v2075
        %v2077 = vpop.f32.mrf.mxu0
        %2078 = vmatprep.mubr.bf16.mxu0 %v1967
        %2079 = vmatmul.mubr.bf16.gmra.mxu0 %v1966
        %v2080 = vpop.f32.mrf.mxu0
        %v2081 = vadd.f32 0.0, %v2080
        %v2082 = vpop.f32.mrf.mxu0
        %v2083 = vpop.f32.mrf.mxu0
        %v2084 = vadd.f32 0.0, %v2083
        %v2085 = vpop.f32.mrf.mxu0
        %2086 = vmatprep.mubr.bf16.mxu0 %v1969
        %2087 = vmatmul.mubr.bf16.gmra.mxu0 %v1968
        %v2088 = vpop.f32.mrf.mxu0
        %v2089 = vadd.f32 0.0, %v2088
        %v2090 = vpop.f32.mrf.mxu0
        %v2091 = vpop.f32.mrf.mxu0
        %v2092 = vadd.f32 0.0, %v2091
        %v2093 = vpop.f32.mrf.mxu0
        %2094 = vmatprep.mubr.bf16.mxu0 %v1971
        %2095 = vmatmul.mubr.bf16.gmra.mxu0 %v1970
        %v2096 = vpop.f32.mrf.mxu0
        %v2097 = vadd.f32 0.0, %v2096
        %v2098 = vpop.f32.mrf.mxu0
        %v2099 = vpop.f32.mrf.mxu0
        %v2100 = vadd.f32 0.0, %v2099
        %v2101 = vpop.f32.mrf.mxu0
        %2102 = vmatprep.mubr.bf16.mxu0 %v1973
        %2103 = vmatmul.mubr.bf16.gmra.mxu0 %v1972
        %v2104 = vpop.f32.mrf.mxu0
        %v2105 = vadd.f32 0.0, %v2104
        %v2106 = vpop.f32.mrf.mxu0
        %v2107 = vpop.f32.mrf.mxu0
        %v2108 = vadd.f32 0.0, %v2107
        %v2109 = vpop.f32.mrf.mxu0
        %2110 = vmatprep.mubr.bf16.mxu0 %v1975
        %2111 = vmatmul.mubr.bf16.gmra.mxu0 %v1974
        %v2112 = vpop.f32.mrf.mxu0
        %v2113 = vadd.f32 0.0, %v2112
        %v2114 = vpop.f32.mrf.mxu0
        %v2115 = vpop.f32.mrf.mxu0
        %v2116 = vadd.f32 0.0, %v2115
        %v2117 = vpop.f32.mrf.mxu0
        %2118 = vmatprep.mubr.bf16.mxu0 %v1977
        %2119 = vmatmul.mubr.bf16.gmra.mxu0 %v1976
        %v2120 = vpop.f32.mrf.mxu0
        %v2121 = vadd.f32 0.0, %v2120
        %v2122 = vpop.f32.mrf.mxu0
        %v2123 = vpop.f32.mrf.mxu0
        %v2124 = vadd.f32 0.0, %v2123
        %v2125 = vpop.f32.mrf.mxu0
        %2126 = vmatprep.mubr.bf16.mxu0 %v1979
        %2127 = vmatmul.mubr.bf16.gmra.mxu0 %v1978
        %v2128 = vpop.f32.mrf.mxu0
        %v2129 = vadd.f32 0.0, %v2128
        %v2130 = vpop.f32.mrf.mxu0
        %v2131 = vpop.f32.mrf.mxu0
        %v2132 = vadd.f32 0.0, %v2131
        %v2133 = vpop.f32.mrf.mxu0
        %2134 = vmatprep.mubr.bf16.mxu0 %v1981
        %2135 = vmatmul.mubr.bf16.gmra.mxu0 %v1980
        %v2136 = vpop.f32.mrf.mxu0
        %v2137 = vadd.f32 0.0, %v2136
        %v2138 = vpop.f32.mrf.mxu0
        %v2139 = vpop.f32.mrf.mxu0
        %v2140 = vadd.f32 0.0, %v2139
        %v2141 = vpop.f32.mrf.mxu0
        %2142 = vmatprep.mubr.bf16.mxu0 %v1983
        %2143 = vmatmul.mubr.bf16.gmra.mxu0 %v1982
        %v2144 = vpop.f32.mrf.mxu0
        %v2145 = vadd.f32 0.0, %v2144
        %v2146 = vpop.f32.mrf.mxu0
        %v2147 = vpop.f32.mrf.mxu0
        %v2148 = vadd.f32 0.0, %v2147
        %v2149 = vpop.f32.mrf.mxu0
        %2150 = vmatprep.mubr.bf16.mxu0 %v1985
        %2151 = vmatmul.mubr.bf16.gmra.mxu0 %v1984
        %v2152 = vpop.f32.mrf.mxu0
        %v2153 = vadd.f32 0.0, %v2152
        %v2154 = vpop.f32.mrf.mxu0
        %v2155 = vpop.f32.mrf.mxu0
        %v2156 = vadd.f32 0.0, %v2155
        %v2157 = vpop.f32.mrf.mxu0
        %2158 = vdwg.mxu0
        %v2159 = vpack.c.bf16 %v2052, %v2049
        %v2160 = vpack.c.bf16 %v2060, %v2057
        %v2161 = vpack.c.bf16 %v2068, %v2065
        %v2162 = vpack.c.bf16 %v2076, %v2073
        %v2163 = vpack.c.bf16 %v2084, %v2081
        %v2164 = vpack.c.bf16 %v2092, %v2089
        %v2165 = vpack.c.bf16 %v2100, %v2097
        %v2166 = vpack.c.bf16 %v2108, %v2105
        %v2167 = vpack.c.bf16 %v2116, %v2113
        %v2168 = vpack.c.bf16 %v2124, %v2121
        %v2169 = vpack.c.bf16 %v2132, %v2129
        %v2170 = vpack.c.bf16 %v2140, %v2137
        %v2171 = vpack.c.bf16 %v2148, %v2145
        %v2172 = vpack.c.bf16 %v2156, %v2153
        %s2173 = scalar_lea.vmem %s1, 256
        %v2174 = vld [vmem:[%s2173] sm:$0xff]
        %v2175 = vld [vmem:[%s2173 + $0x8] sm:$0xff]
        %v2176 = vld [vmem:[%s2173 + $0x10] sm:$0xff]
        %v2177 = vld [vmem:[%s2173 + $0x18] sm:$0xff]
        %v2178 = vld [vmem:[%s2173 + $0x20] sm:$0xff]
        %v2179 = vld [vmem:[%s2173 + $0x28] sm:$0xff]
        %v2180 = vld [vmem:[%s2173 + $0x30] sm:$0xff]
        %v2181 = vld [vmem:[%s2173 + $0x38] sm:$0xff]
        %v2182 = vld [vmem:[%s2173 + $0x40] sm:$0xff]
        %v2183 = vld [vmem:[%s2173 + $0x48] sm:$0xff]
        %v2184 = vld [vmem:[%s2173 + $0x50] sm:$0xff]
        %v2185 = vld [vmem:[%s2173 + $0x58] sm:$0xff]
        %v2186 = vld [vmem:[%s2173 + $0x60] sm:$0xff]
        %v2187 = vld [vmem:[%s2173 + $0x68] sm:$0xff]
        %v2188 = vld [vmem:[%s2173 + $0x70] sm:$0xff]
        %v2189 = vld [vmem:[%s2173 + $0x78] sm:$0xff]
        %v2206 = vunpack.c.l.b16 %v2174
        %v2207 = vunpack.c.h.b16 %v2174
        %v2208 = vunpack.c.l.b16 %v2175
        %v2209 = vunpack.c.h.b16 %v2175
        %v2210 = vunpack.c.l.b16 %v2176
        %v2211 = vunpack.c.h.b16 %v2176
        %v2212 = vunpack.c.l.b16 %v2177
        %v2213 = vunpack.c.h.b16 %v2177
        %v2214 = vunpack.c.l.b16 %v2178
        %v2215 = vunpack.c.h.b16 %v2178
        %v2216 = vunpack.c.l.b16 %v2179
        %v2217 = vunpack.c.h.b16 %v2179
        %v2218 = vunpack.c.l.b16 %v2180
        %v2219 = vunpack.c.h.b16 %v2180
        %v2220 = vunpack.c.l.b16 %v2181
        %v2221 = vunpack.c.h.b16 %v2181
        %v2222 = vunpack.c.l.b16 %v2182
        %v2223 = vunpack.c.h.b16 %v2182
        %v2224 = vunpack.c.l.b16 %v2183
        %v2225 = vunpack.c.h.b16 %v2183
        %v2226 = vunpack.c.l.b16 %v2184
        %v2227 = vunpack.c.h.b16 %v2184
        %v2228 = vunpack.c.l.b16 %v2185
        %v2229 = vunpack.c.h.b16 %v2185
        %v2230 = vunpack.c.l.b16 %v2186
        %v2231 = vunpack.c.h.b16 %v2186
        %v2232 = vunpack.c.l.b16 %v2187
        %v2233 = vunpack.c.h.b16 %v2187
        %v2234 = vunpack.c.l.b16 %v2188
        %v2235 = vunpack.c.h.b16 %v2188
        %v2236 = vunpack.c.l.b16 %v2189
        %v2237 = vunpack.c.h.b16 %v2189
        %v2238 = vpack.c.b16 %v2208, %v2206
        %v2239 = vpack.c.b16 %v2209, %v2207
        %v2240 = vpack.c.b16 %v2212, %v2210
        %v2241 = vpack.c.b16 %v2213, %v2211
        %v2242 = vpack.c.b16 %v2216, %v2214
        %v2243 = vpack.c.b16 %v2217, %v2215
        %v2244 = vpack.c.b16 %v2220, %v2218
        %v2245 = vpack.c.b16 %v2221, %v2219
        %v2246 = vpack.c.b16 %v2224, %v2222
        %v2247 = vpack.c.b16 %v2225, %v2223
        %v2248 = vpack.c.b16 %v2228, %v2226
        %v2249 = vpack.c.b16 %v2229, %v2227
        %v2250 = vpack.c.b16 %v2232, %v2230
        %v2251 = vpack.c.b16 %v2233, %v2231
        %v2252 = vpack.c.b16 %v2236, %v2234
        %v2253 = vpack.c.b16 %v2237, %v2235
        %2270 = vmatprep.subr.bf16.mxu0 %v2253
        %2271 = vmatpush1.bf16.msra.mxu0 %v2252
        %2272 = vmatprep.subr.bf16.mxu0 %v2251
        %2273 = vmatpush1.bf16.msra.mxu0 %v2250
        %2274 = vmatprep.subr.bf16.mxu0 %v2249
        %2275 = vmatpush1.bf16.msra.mxu0 %v2248
        %2276 = vmatprep.subr.bf16.mxu0 %v2247
        %2277 = vmatpush1.bf16.msra.mxu0 %v2246
        %2278 = vmatprep.subr.bf16.mxu0 %v2245
        %2279 = vmatpush1.bf16.msra.mxu0 %v2244
        %2280 = vmatprep.subr.bf16.mxu0 %v2243
        %2281 = vmatpush1.bf16.msra.mxu0 %v2242
        %2282 = vmatprep.subr.bf16.mxu0 %v2241
        %2283 = vmatpush1.bf16.msra.mxu0 %v2240
        %2284 = vmatprep.subr.bf16.mxu0 %v2239
        %2285 = vmatpush1.bf16.msra.mxu0 %v2238
        %2286 = vmatprep.subr.bf16.mxu0 0
        %2287 = vmatpush2.bf16.msra.mxu0 0
        %2288 = vmatprep.subr.bf16.mxu0 0
        %2289 = vmatpush2.bf16.msra.mxu0 0
        %2290 = vmatprep.subr.bf16.mxu0 0
        %2291 = vmatpush2.bf16.msra.mxu0 0
        %2292 = vmatprep.subr.bf16.mxu0 0
        %2293 = vmatpush2.bf16.msra.mxu0 0
        %2294 = vmatprep.subr.bf16.mxu0 0
        %2295 = vmatpush2.bf16.msra.mxu0 0
        %2296 = vmatprep.subr.bf16.mxu0 0
        %2297 = vmatpush2.bf16.msra.mxu0 0
        %2298 = vmatprep.subr.bf16.mxu0 0
        %2299 = vmatpush2.bf16.msra.mxu0 0
        %2300 = vmatprep.subr.bf16.mxu0 0
        %2301 = vmatpush2.bf16.msra.mxu0 0
        %2302 = vmatprep.mubr.bf16.mxu0 0
        %2303 = vmatmul.mubr.bf16.gmra.mxu0 %v2159
        %v2304 = vpop.f32.mrf.mxu0
        %v2305 = vadd.f32 0.0, %v2304
        %v2306 = vpop.f32.mrf.mxu0
        %v2307 = vadd.f32 0.0, %v2306
        %v2308 = vpop.f32.mrf.mxu0
        %v2309 = vadd.f32 0.0, %v2308
        %v2310 = vpop.f32.mrf.mxu0
        %v2311 = vadd.f32 0.0, %v2310
        %2312 = vmatprep.mubr.bf16.mxu0 0
        %2313 = vmatmul.mubr.bf16.gmra.mxu0 %v2160
        %v2314 = vpop.f32.mrf.mxu0
        %v2315 = vadd.f32 0.0, %v2314
        %v2316 = vpop.f32.mrf.mxu0
        %v2317 = vadd.f32 0.0, %v2316
        %v2318 = vpop.f32.mrf.mxu0
        %v2319 = vadd.f32 0.0, %v2318
        %v2320 = vpop.f32.mrf.mxu0
        %v2321 = vadd.f32 0.0, %v2320
        %2322 = vmatprep.mubr.bf16.mxu0 0
        %2323 = vmatmul.mubr.bf16.gmra.mxu0 %v2161
        %v2324 = vpop.f32.mrf.mxu0
        %v2325 = vadd.f32 0.0, %v2324
        %v2326 = vpop.f32.mrf.mxu0
        %v2327 = vadd.f32 0.0, %v2326
        %v2328 = vpop.f32.mrf.mxu0
        %v2329 = vadd.f32 0.0, %v2328
        %v2330 = vpop.f32.mrf.mxu0
        %v2331 = vadd.f32 0.0, %v2330
        %2332 = vmatprep.mubr.bf16.mxu0 0
        %2333 = vmatmul.mubr.bf16.gmra.mxu0 %v2162
        %v2334 = vpop.f32.mrf.mxu0
        %v2335 = vadd.f32 0.0, %v2334
        %v2336 = vpop.f32.mrf.mxu0
        %v2337 = vadd.f32 0.0, %v2336
        %v2338 = vpop.f32.mrf.mxu0
        %v2339 = vadd.f32 0.0, %v2338
        %v2340 = vpop.f32.mrf.mxu0
        %v2341 = vadd.f32 0.0, %v2340
        %2342 = vmatprep.mubr.bf16.mxu0 0
        %2343 = vmatmul.mubr.bf16.gmra.mxu0 %v2163
        %v2344 = vpop.f32.mrf.mxu0
        %v2345 = vadd.f32 0.0, %v2344
        %v2346 = vpop.f32.mrf.mxu0
        %v2347 = vadd.f32 0.0, %v2346
        %v2348 = vpop.f32.mrf.mxu0
        %v2349 = vadd.f32 0.0, %v2348
        %v2350 = vpop.f32.mrf.mxu0
        %v2351 = vadd.f32 0.0, %v2350
        %2352 = vmatprep.mubr.bf16.mxu0 0
        %2353 = vmatmul.mubr.bf16.gmra.mxu0 %v2164
        %v2354 = vpop.f32.mrf.mxu0
        %v2355 = vadd.f32 0.0, %v2354
        %v2356 = vpop.f32.mrf.mxu0
        %v2357 = vadd.f32 0.0, %v2356
        %v2358 = vpop.f32.mrf.mxu0
        %v2359 = vadd.f32 0.0, %v2358
        %v2360 = vpop.f32.mrf.mxu0
        %v2361 = vadd.f32 0.0, %v2360
        %2362 = vmatprep.mubr.bf16.mxu0 0
        %2363 = vmatmul.mubr.bf16.gmra.mxu0 %v2165
        %v2364 = vpop.f32.mrf.mxu0
        %v2365 = vadd.f32 0.0, %v2364
        %v2366 = vpop.f32.mrf.mxu0
        %v2367 = vadd.f32 0.0, %v2366
        %v2368 = vpop.f32.mrf.mxu0
        %v2369 = vadd.f32 0.0, %v2368
        %v2370 = vpop.f32.mrf.mxu0
        %v2371 = vadd.f32 0.0, %v2370
        %2372 = vmatprep.mubr.bf16.mxu0 0
        %2373 = vmatmul.mubr.bf16.gmra.mxu0 %v2166
        %v2374 = vpop.f32.mrf.mxu0
        %v2375 = vadd.f32 0.0, %v2374
        %v2376 = vpop.f32.mrf.mxu0
        %v2377 = vadd.f32 0.0, %v2376
        %v2378 = vpop.f32.mrf.mxu0
        %v2379 = vadd.f32 0.0, %v2378
        %v2380 = vpop.f32.mrf.mxu0
        %v2381 = vadd.f32 0.0, %v2380
        %2382 = vmatprep.mubr.bf16.mxu0 0
        %2383 = vmatmul.mubr.bf16.gmra.mxu0 %v2167
        %v2384 = vpop.f32.mrf.mxu0
        %v2385 = vadd.f32 0.0, %v2384
        %v2386 = vpop.f32.mrf.mxu0
        %v2387 = vadd.f32 0.0, %v2386
        %v2388 = vpop.f32.mrf.mxu0
        %v2389 = vadd.f32 0.0, %v2388
        %v2390 = vpop.f32.mrf.mxu0
        %v2391 = vadd.f32 0.0, %v2390
        %2392 = vmatprep.mubr.bf16.mxu0 0
        %2393 = vmatmul.mubr.bf16.gmra.mxu0 %v2168
        %v2394 = vpop.f32.mrf.mxu0
        %v2395 = vadd.f32 0.0, %v2394
        %v2396 = vpop.f32.mrf.mxu0
        %v2397 = vadd.f32 0.0, %v2396
        %v2398 = vpop.f32.mrf.mxu0
        %v2399 = vadd.f32 0.0, %v2398
        %v2400 = vpop.f32.mrf.mxu0
        %v2401 = vadd.f32 0.0, %v2400
        %2402 = vmatprep.mubr.bf16.mxu0 0
        %2403 = vmatmul.mubr.bf16.gmra.mxu0 %v2169
        %v2404 = vpop.f32.mrf.mxu0
        %v2405 = vadd.f32 0.0, %v2404
        %v2406 = vpop.f32.mrf.mxu0
        %v2407 = vadd.f32 0.0, %v2406
        %v2408 = vpop.f32.mrf.mxu0
        %v2409 = vadd.f32 0.0, %v2408
        %v2410 = vpop.f32.mrf.mxu0
        %v2411 = vadd.f32 0.0, %v2410
        %2412 = vmatprep.mubr.bf16.mxu0 0
        %2413 = vmatmul.mubr.bf16.gmra.mxu0 %v2170
        %v2414 = vpop.f32.mrf.mxu0
        %v2415 = vadd.f32 0.0, %v2414
        %v2416 = vpop.f32.mrf.mxu0
        %v2417 = vadd.f32 0.0, %v2416
        %v2418 = vpop.f32.mrf.mxu0
        %v2419 = vadd.f32 0.0, %v2418
        %v2420 = vpop.f32.mrf.mxu0
        %v2421 = vadd.f32 0.0, %v2420
        %2422 = vmatprep.mubr.bf16.mxu0 0
        %2423 = vmatmul.mubr.bf16.gmra.mxu0 %v2171
        %v2424 = vpop.f32.mrf.mxu0
        %v2425 = vadd.f32 0.0, %v2424
        %v2426 = vpop.f32.mrf.mxu0
        %v2427 = vadd.f32 0.0, %v2426
        %v2428 = vpop.f32.mrf.mxu0
        %v2429 = vadd.f32 0.0, %v2428
        %v2430 = vpop.f32.mrf.mxu0
        %v2431 = vadd.f32 0.0, %v2430
        %2432 = vmatprep.mubr.bf16.mxu0 0
        %2433 = vmatmul.mubr.bf16.gmra.mxu0 %v2172
        %v2434 = vpop.f32.mrf.mxu0
        %v2435 = vadd.f32 0.0, %v2434
        %v2436 = vpop.f32.mrf.mxu0
        %v2437 = vadd.f32 0.0, %v2436
        %v2438 = vpop.f32.mrf.mxu0
        %v2439 = vadd.f32 0.0, %v2438
        %v2440 = vpop.f32.mrf.mxu0
        %v2441 = vadd.f32 0.0, %v2440
        %2442 = vdwg.mxu0
        %v2443 = vadd.f32 %v1707, %v2305
        %v2444 = vadd.f32 %v1709, %v2307
        %v2445 = vadd.f32 %v1711, %v2309
        %v2446 = vadd.f32 %v1713, %v2311
        %v2447 = vadd.f32 %v1717, %v2315
        %v2448 = vadd.f32 %v1719, %v2317
        %v2449 = vadd.f32 %v1721, %v2319
        %v2450 = vadd.f32 %v1723, %v2321
        %v2451 = vadd.f32 %v1727, %v2325
        %v2452 = vadd.f32 %v1729, %v2327
        %v2453 = vadd.f32 %v1731, %v2329
        %v2454 = vadd.f32 %v1733, %v2331
        %v2455 = vadd.f32 %v1737, %v2335
        %v2456 = vadd.f32 %v1739, %v2337
        %v2457 = vadd.f32 %v1741, %v2339
        %v2458 = vadd.f32 %v1743, %v2341
        %v2459 = vadd.f32 %v1747, %v2345
        %v2460 = vadd.f32 %v1749, %v2347
        %v2461 = vadd.f32 %v1751, %v2349
        %v2462 = vadd.f32 %v1753, %v2351
        %v2463 = vadd.f32 %v1757, %v2355
        %v2464 = vadd.f32 %v1759, %v2357
        %v2465 = vadd.f32 %v1761, %v2359
        %v2466 = vadd.f32 %v1763, %v2361
        %v2467 = vadd.f32 %v1767, %v2365
        %v2468 = vadd.f32 %v1769, %v2367
        %v2469 = vadd.f32 %v1771, %v2369
        %v2470 = vadd.f32 %v1773, %v2371
        %v2471 = vadd.f32 %v1777, %v2375
        %v2472 = vadd.f32 %v1779, %v2377
        %v2473 = vadd.f32 %v1781, %v2379
        %v2474 = vadd.f32 %v1783, %v2381
        %v2475 = vadd.f32 %v1787, %v2385
        %v2476 = vadd.f32 %v1789, %v2387
        %v2477 = vadd.f32 %v1791, %v2389
        %v2478 = vadd.f32 %v1793, %v2391
        %v2479 = vadd.f32 %v1797, %v2395
        %v2480 = vadd.f32 %v1799, %v2397
        %v2481 = vadd.f32 %v1801, %v2399
        %v2482 = vadd.f32 %v1803, %v2401
        %v2483 = vadd.f32 %v1807, %v2405
        %v2484 = vadd.f32 %v1809, %v2407
        %v2485 = vadd.f32 %v1811, %v2409
        %v2486 = vadd.f32 %v1813, %v2411
        %v2487 = vadd.f32 %v1817, %v2415
        %v2488 = vadd.f32 %v1819, %v2417
        %v2489 = vadd.f32 %v1821, %v2419
        %v2490 = vadd.f32 %v1823, %v2421
        %v2491 = vadd.f32 %v1827, %v2425
        %v2492 = vadd.f32 %v1829, %v2427
        %v2493 = vadd.f32 %v1831, %v2429
        %v2494 = vadd.f32 %v1833, %v2431
        %v2495 = vadd.f32 %v1837, %v2435
        %v2496 = vadd.f32 %v1839, %v2437
        %v2497 = vadd.f32 %v1841, %v2439
        %v2498 = vadd.f32 %v1843, %v2441
        %s2499 = scalar_lea.vmem %s3, 672
        %v2500 = vld [vmem:[%s2499] sm:$0xff]
        %v2501 = vld [vmem:[%s2499 + $0x8] sm:$0xff]
        %v2502 = vld [vmem:[%s2499 + $0x10] sm:$0xff]
        %v2503 = vld [vmem:[%s2499 + $0x18] sm:$0xff]
        %v2504 = vld [vmem:[%s2499 + $0x20] sm:$0xff]
        %v2505 = vld [vmem:[%s2499 + $0x28] sm:$0xff]
        %v2506 = vld [vmem:[%s2499 + $0x30] sm:$0xff]
        %v2507 = vld [vmem:[%s2499 + $0x38] sm:$0xff]
        %v2508 = vld [vmem:[%s2499 + $0x40] sm:$0xff]
        %v2509 = vld [vmem:[%s2499 + $0x48] sm:$0xff]
        %v2510 = vld [vmem:[%s2499 + $0x50] sm:$0xff]
        %v2511 = vld [vmem:[%s2499 + $0x58] sm:$0xff]
        %v2512 = vld [vmem:[%s2499 + $0x60] sm:$0xff]
        %v2513 = vld [vmem:[%s2499 + $0x68] sm:$0xff]
        %v2514 = vld [vmem:[%s2499 + $0x70] sm:$0xff]
        %v2515 = vld [vmem:[%s2499 + $0x78] sm:$0xff]
        %v2516 = vld [vmem:[%s2499 + $0x80] sm:$0xff]
        %v2517 = vld [vmem:[%s2499 + $0x88] sm:$0xff]
        %v2518 = vld [vmem:[%s2499 + $0x90] sm:$0xff]
        %v2519 = vld [vmem:[%s2499 + $0x98] sm:$0xff]
        %v2520 = vld [vmem:[%s2499 + $0xa0] sm:$0xff]
        %v2521 = vld [vmem:[%s2499 + $0xa8] sm:$0xff]
        %v2522 = vld [vmem:[%s2499 + $0xb0] sm:$0xff]
        %v2523 = vld [vmem:[%s2499 + $0xb8] sm:$0xff]
        %v2524 = vld [vmem:[%s2499 + $0xc0] sm:$0xff]
        %v2525 = vld [vmem:[%s2499 + $0xc8] sm:$0xff]
        %v2526 = vld [vmem:[%s2499 + $0xd0] sm:$0xff]
        %v2527 = vld [vmem:[%s2499 + $0xd8] sm:$0xff]
        %v2556 = vunpack.c.l.b16 %v2500
        %v2557 = vunpack.c.h.b16 %v2500
        %v2558 = vunpack.c.l.b16 %v2501
        %v2559 = vunpack.c.h.b16 %v2501
        %v2560 = vunpack.c.l.b16 %v2502
        %v2561 = vunpack.c.h.b16 %v2502
        %v2562 = vunpack.c.l.b16 %v2503
        %v2563 = vunpack.c.h.b16 %v2503
        %v2564 = vunpack.c.l.b16 %v2504
        %v2565 = vunpack.c.h.b16 %v2504
        %v2566 = vunpack.c.l.b16 %v2505
        %v2567 = vunpack.c.h.b16 %v2505
        %v2568 = vunpack.c.l.b16 %v2506
        %v2569 = vunpack.c.h.b16 %v2506
        %v2570 = vunpack.c.l.b16 %v2507
        %v2571 = vunpack.c.h.b16 %v2507
        %v2572 = vunpack.c.l.b16 %v2508
        %v2573 = vunpack.c.h.b16 %v2508
        %v2574 = vunpack.c.l.b16 %v2509
        %v2575 = vunpack.c.h.b16 %v2509
        %v2576 = vunpack.c.l.b16 %v2510
        %v2577 = vunpack.c.h.b16 %v2510
        %v2578 = vunpack.c.l.b16 %v2511
        %v2579 = vunpack.c.h.b16 %v2511
        %v2580 = vunpack.c.l.b16 %v2512
        %v2581 = vunpack.c.h.b16 %v2512
        %v2582 = vunpack.c.l.b16 %v2513
        %v2583 = vunpack.c.h.b16 %v2513
        %v2584 = vunpack.c.l.b16 %v2514
        %v2585 = vunpack.c.h.b16 %v2514
        %v2586 = vunpack.c.l.b16 %v2515
        %v2587 = vunpack.c.h.b16 %v2515
        %v2588 = vunpack.c.l.b16 %v2516
        %v2589 = vunpack.c.h.b16 %v2516
        %v2590 = vunpack.c.l.b16 %v2517
        %v2591 = vunpack.c.h.b16 %v2517
        %v2592 = vunpack.c.l.b16 %v2518
        %v2593 = vunpack.c.h.b16 %v2518
        %v2594 = vunpack.c.l.b16 %v2519
        %v2595 = vunpack.c.h.b16 %v2519
        %v2596 = vunpack.c.l.b16 %v2520
        %v2597 = vunpack.c.h.b16 %v2520
        %v2598 = vunpack.c.l.b16 %v2521
        %v2599 = vunpack.c.h.b16 %v2521
        %v2600 = vunpack.c.l.b16 %v2522
        %v2601 = vunpack.c.h.b16 %v2522
        %v2602 = vunpack.c.l.b16 %v2523
        %v2603 = vunpack.c.h.b16 %v2523
        %v2604 = vunpack.c.l.b16 %v2524
        %v2605 = vunpack.c.h.b16 %v2524
        %v2606 = vunpack.c.l.b16 %v2525
        %v2607 = vunpack.c.h.b16 %v2525
        %v2608 = vunpack.c.l.b16 %v2526
        %v2609 = vunpack.c.h.b16 %v2526
        %v2610 = vunpack.c.l.b16 %v2527
        %v2611 = vunpack.c.h.b16 %v2527
        %v2612 = vpack.c.b16 %v2558, %v2556
        %v2613 = vpack.c.b16 %v2559, %v2557
        %v2614 = vpack.c.b16 %v2562, %v2560
        %v2615 = vpack.c.b16 %v2563, %v2561
        %v2616 = vpack.c.b16 %v2566, %v2564
        %v2617 = vpack.c.b16 %v2567, %v2565
        %v2618 = vpack.c.b16 %v2570, %v2568
        %v2619 = vpack.c.b16 %v2571, %v2569
        %v2620 = vpack.c.b16 %v2574, %v2572
        %v2621 = vpack.c.b16 %v2575, %v2573
        %v2622 = vpack.c.b16 %v2578, %v2576
        %v2623 = vpack.c.b16 %v2579, %v2577
        %v2624 = vpack.c.b16 %v2582, %v2580
        %v2625 = vpack.c.b16 %v2583, %v2581
        %v2626 = vpack.c.b16 %v2586, %v2584
        %v2627 = vpack.c.b16 %v2587, %v2585
        %v2628 = vpack.c.b16 %v2590, %v2588
        %v2629 = vpack.c.b16 %v2591, %v2589
        %v2630 = vpack.c.b16 %v2594, %v2592
        %v2631 = vpack.c.b16 %v2595, %v2593
        %v2632 = vpack.c.b16 %v2598, %v2596
        %v2633 = vpack.c.b16 %v2599, %v2597
        %v2634 = vpack.c.b16 %v2602, %v2600
        %v2635 = vpack.c.b16 %v2603, %v2601
        %v2636 = vpack.c.b16 %v2606, %v2604
        %v2637 = vpack.c.b16 %v2607, %v2605
        %v2638 = vpack.c.b16 %v2610, %v2608
        %v2639 = vpack.c.b16 %v2611, %v2609
        %2668 = vmatprep.subr.bf16.mxu0 0
        %2669 = vmatpush1.bf16.msra.mxu0 %v794
        %2670 = vmatprep.subr.bf16.mxu0 0
        %2671 = vmatpush1.bf16.msra.mxu0 %v793
        %2672 = vmatprep.subr.bf16.mxu0 0
        %2673 = vmatpush1.bf16.msra.mxu0 %v792
        %2674 = vmatprep.subr.bf16.mxu0 0
        %2675 = vmatpush1.bf16.msra.mxu0 %v791
        %2676 = vmatprep.subr.bf16.mxu0 0
        %2677 = vmatpush1.bf16.msra.mxu0 %v790
        %2678 = vmatprep.subr.bf16.mxu0 0
        %2679 = vmatpush1.bf16.msra.mxu0 %v789
        %2680 = vmatprep.subr.bf16.mxu0 0
        %2681 = vmatpush1.bf16.msra.mxu0 %v788
        %2682 = vmatprep.subr.bf16.mxu0 0
        %2683 = vmatpush1.bf16.msra.mxu0 %v787
        %2684 = vmatprep.subr.bf16.mxu0 0
        %2685 = vmatpush2.bf16.msra.mxu0 %v802
        %2686 = vmatprep.subr.bf16.mxu0 0
        %2687 = vmatpush2.bf16.msra.mxu0 %v801
        %2688 = vmatprep.subr.bf16.mxu0 0
        %2689 = vmatpush2.bf16.msra.mxu0 %v800
        %2690 = vmatprep.subr.bf16.mxu0 0
        %2691 = vmatpush2.bf16.msra.mxu0 %v799
        %2692 = vmatprep.subr.bf16.mxu0 0
        %2693 = vmatpush2.bf16.msra.mxu0 %v798
        %2694 = vmatprep.subr.bf16.mxu0 0
        %2695 = vmatpush2.bf16.msra.mxu0 %v797
        %2696 = vmatprep.subr.bf16.mxu0 0
        %2697 = vmatpush2.bf16.msra.mxu0 %v796
        %2698 = vmatprep.subr.bf16.mxu0 0
        %2699 = vmatpush2.bf16.msra.mxu0 %v795
        %2700 = vmatprep.mubr.bf16.mxu0 %v2613
        %2701 = vmatmul.mubr.bf16.gmra.mxu0 %v2612
        %v2702 = vpop.f32.mrf.mxu0
        %v2703 = vadd.f32 0.0, %v2702
        %v2704 = vpop.f32.mrf.mxu0
        %v2705 = vpop.f32.mrf.mxu0
        %v2706 = vadd.f32 0.0, %v2705
        %v2707 = vpop.f32.mrf.mxu0
        %2708 = vmatprep.mubr.bf16.mxu0 %v2615
        %2709 = vmatmul.mubr.bf16.gmra.mxu0 %v2614
        %v2710 = vpop.f32.mrf.mxu0
        %v2711 = vadd.f32 0.0, %v2710
        %v2712 = vpop.f32.mrf.mxu0
        %v2713 = vpop.f32.mrf.mxu0
        %v2714 = vadd.f32 0.0, %v2713
        %v2715 = vpop.f32.mrf.mxu0
        %2716 = vmatprep.mubr.bf16.mxu0 %v2617
        %2717 = vmatmul.mubr.bf16.gmra.mxu0 %v2616
        %v2718 = vpop.f32.mrf.mxu0
        %v2719 = vadd.f32 0.0, %v2718
        %v2720 = vpop.f32.mrf.mxu0
        %v2721 = vpop.f32.mrf.mxu0
        %v2722 = vadd.f32 0.0, %v2721
        %v2723 = vpop.f32.mrf.mxu0
        %2724 = vmatprep.mubr.bf16.mxu0 %v2619
        %2725 = vmatmul.mubr.bf16.gmra.mxu0 %v2618
        %v2726 = vpop.f32.mrf.mxu0
        %v2727 = vadd.f32 0.0, %v2726
        %v2728 = vpop.f32.mrf.mxu0
        %v2729 = vpop.f32.mrf.mxu0
        %v2730 = vadd.f32 0.0, %v2729
        %v2731 = vpop.f32.mrf.mxu0
        %2732 = vmatprep.mubr.bf16.mxu0 %v2621
        %2733 = vmatmul.mubr.bf16.gmra.mxu0 %v2620
        %v2734 = vpop.f32.mrf.mxu0
        %v2735 = vadd.f32 0.0, %v2734
        %v2736 = vpop.f32.mrf.mxu0
        %v2737 = vpop.f32.mrf.mxu0
        %v2738 = vadd.f32 0.0, %v2737
        %v2739 = vpop.f32.mrf.mxu0
        %2740 = vmatprep.mubr.bf16.mxu0 %v2623
        %2741 = vmatmul.mubr.bf16.gmra.mxu0 %v2622
        %v2742 = vpop.f32.mrf.mxu0
        %v2743 = vadd.f32 0.0, %v2742
        %v2744 = vpop.f32.mrf.mxu0
        %v2745 = vpop.f32.mrf.mxu0
        %v2746 = vadd.f32 0.0, %v2745
        %v2747 = vpop.f32.mrf.mxu0
        %2748 = vmatprep.mubr.bf16.mxu0 %v2625
        %2749 = vmatmul.mubr.bf16.gmra.mxu0 %v2624
        %v2750 = vpop.f32.mrf.mxu0
        %v2751 = vadd.f32 0.0, %v2750
        %v2752 = vpop.f32.mrf.mxu0
        %v2753 = vpop.f32.mrf.mxu0
        %v2754 = vadd.f32 0.0, %v2753
        %v2755 = vpop.f32.mrf.mxu0
        %2756 = vmatprep.mubr.bf16.mxu0 %v2627
        %2757 = vmatmul.mubr.bf16.gmra.mxu0 %v2626
        %v2758 = vpop.f32.mrf.mxu0
        %v2759 = vadd.f32 0.0, %v2758
        %v2760 = vpop.f32.mrf.mxu0
        %v2761 = vpop.f32.mrf.mxu0
        %v2762 = vadd.f32 0.0, %v2761
        %v2763 = vpop.f32.mrf.mxu0
        %2764 = vmatprep.mubr.bf16.mxu0 %v2629
        %2765 = vmatmul.mubr.bf16.gmra.mxu0 %v2628
        %v2766 = vpop.f32.mrf.mxu0
        %v2767 = vadd.f32 0.0, %v2766
        %v2768 = vpop.f32.mrf.mxu0
        %v2769 = vpop.f32.mrf.mxu0
        %v2770 = vadd.f32 0.0, %v2769
        %v2771 = vpop.f32.mrf.mxu0
        %2772 = vmatprep.mubr.bf16.mxu0 %v2631
        %2773 = vmatmul.mubr.bf16.gmra.mxu0 %v2630
        %v2774 = vpop.f32.mrf.mxu0
        %v2775 = vadd.f32 0.0, %v2774
        %v2776 = vpop.f32.mrf.mxu0
        %v2777 = vpop.f32.mrf.mxu0
        %v2778 = vadd.f32 0.0, %v2777
        %v2779 = vpop.f32.mrf.mxu0
        %2780 = vmatprep.mubr.bf16.mxu0 %v2633
        %2781 = vmatmul.mubr.bf16.gmra.mxu0 %v2632
        %v2782 = vpop.f32.mrf.mxu0
        %v2783 = vadd.f32 0.0, %v2782
        %v2784 = vpop.f32.mrf.mxu0
        %v2785 = vpop.f32.mrf.mxu0
        %v2786 = vadd.f32 0.0, %v2785
        %v2787 = vpop.f32.mrf.mxu0
        %2788 = vmatprep.mubr.bf16.mxu0 %v2635
        %2789 = vmatmul.mubr.bf16.gmra.mxu0 %v2634
        %v2790 = vpop.f32.mrf.mxu0
        %v2791 = vadd.f32 0.0, %v2790
        %v2792 = vpop.f32.mrf.mxu0
        %v2793 = vpop.f32.mrf.mxu0
        %v2794 = vadd.f32 0.0, %v2793
        %v2795 = vpop.f32.mrf.mxu0
        %2796 = vmatprep.mubr.bf16.mxu0 %v2637
        %2797 = vmatmul.mubr.bf16.gmra.mxu0 %v2636
        %v2798 = vpop.f32.mrf.mxu0
        %v2799 = vadd.f32 0.0, %v2798
        %v2800 = vpop.f32.mrf.mxu0
        %v2801 = vpop.f32.mrf.mxu0
        %v2802 = vadd.f32 0.0, %v2801
        %v2803 = vpop.f32.mrf.mxu0
        %2804 = vmatprep.mubr.bf16.mxu0 %v2639
        %2805 = vmatmul.mubr.bf16.gmra.mxu0 %v2638
        %v2806 = vpop.f32.mrf.mxu0
        %v2807 = vadd.f32 0.0, %v2806
        %v2808 = vpop.f32.mrf.mxu0
        %v2809 = vpop.f32.mrf.mxu0
        %v2810 = vadd.f32 0.0, %v2809
        %v2811 = vpop.f32.mrf.mxu0
        %2812 = vdwg.mxu0
        %v2813 = vpack.c.bf16 %v2706, %v2703
        %v2814 = vpack.c.bf16 %v2714, %v2711
        %v2815 = vpack.c.bf16 %v2722, %v2719
        %v2816 = vpack.c.bf16 %v2730, %v2727
        %v2817 = vpack.c.bf16 %v2738, %v2735
        %v2818 = vpack.c.bf16 %v2746, %v2743
        %v2819 = vpack.c.bf16 %v2754, %v2751
        %v2820 = vpack.c.bf16 %v2762, %v2759
        %v2821 = vpack.c.bf16 %v2770, %v2767
        %v2822 = vpack.c.bf16 %v2778, %v2775
        %v2823 = vpack.c.bf16 %v2786, %v2783
        %v2824 = vpack.c.bf16 %v2794, %v2791
        %v2825 = vpack.c.bf16 %v2802, %v2799
        %v2826 = vpack.c.bf16 %v2810, %v2807
        %s2827 = scalar_lea.vmem %s1, 384
        %v2828 = vld [vmem:[%s2827] sm:$0xff]
        %v2829 = vld [vmem:[%s2827 + $0x8] sm:$0xff]
        %v2830 = vld [vmem:[%s2827 + $0x10] sm:$0xff]
        %v2831 = vld [vmem:[%s2827 + $0x18] sm:$0xff]
        %v2832 = vld [vmem:[%s2827 + $0x20] sm:$0xff]
        %v2833 = vld [vmem:[%s2827 + $0x28] sm:$0xff]
        %v2834 = vld [vmem:[%s2827 + $0x30] sm:$0xff]
        %v2835 = vld [vmem:[%s2827 + $0x38] sm:$0xff]
        %v2836 = vld [vmem:[%s2827 + $0x40] sm:$0xff]
        %v2837 = vld [vmem:[%s2827 + $0x48] sm:$0xff]
        %v2838 = vld [vmem:[%s2827 + $0x50] sm:$0xff]
        %v2839 = vld [vmem:[%s2827 + $0x58] sm:$0xff]
        %v2840 = vld [vmem:[%s2827 + $0x60] sm:$0xff]
        %v2841 = vld [vmem:[%s2827 + $0x68] sm:$0xff]
        %v2842 = vld [vmem:[%s2827 + $0x70] sm:$0xff]
        %v2843 = vld [vmem:[%s2827 + $0x78] sm:$0xff]
        %v2860 = vunpack.c.l.b16 %v2828
        %v2861 = vunpack.c.h.b16 %v2828
        %v2862 = vunpack.c.l.b16 %v2829
        %v2863 = vunpack.c.h.b16 %v2829
        %v2864 = vunpack.c.l.b16 %v2830
        %v2865 = vunpack.c.h.b16 %v2830
        %v2866 = vunpack.c.l.b16 %v2831
        %v2867 = vunpack.c.h.b16 %v2831
        %v2868 = vunpack.c.l.b16 %v2832
        %v2869 = vunpack.c.h.b16 %v2832
        %v2870 = vunpack.c.l.b16 %v2833
        %v2871 = vunpack.c.h.b16 %v2833
        %v2872 = vunpack.c.l.b16 %v2834
        %v2873 = vunpack.c.h.b16 %v2834
        %v2874 = vunpack.c.l.b16 %v2835
        %v2875 = vunpack.c.h.b16 %v2835
        %v2876 = vunpack.c.l.b16 %v2836
        %v2877 = vunpack.c.h.b16 %v2836
        %v2878 = vunpack.c.l.b16 %v2837
        %v2879 = vunpack.c.h.b16 %v2837
        %v2880 = vunpack.c.l.b16 %v2838
        %v2881 = vunpack.c.h.b16 %v2838
        %v2882 = vunpack.c.l.b16 %v2839
        %v2883 = vunpack.c.h.b16 %v2839
        %v2884 = vunpack.c.l.b16 %v2840
        %v2885 = vunpack.c.h.b16 %v2840
        %v2886 = vunpack.c.l.b16 %v2841
        %v2887 = vunpack.c.h.b16 %v2841
        %v2888 = vunpack.c.l.b16 %v2842
        %v2889 = vunpack.c.h.b16 %v2842
        %v2890 = vunpack.c.l.b16 %v2843
        %v2891 = vunpack.c.h.b16 %v2843
        %v2892 = vpack.c.b16 %v2862, %v2860
        %v2893 = vpack.c.b16 %v2863, %v2861
        %v2894 = vpack.c.b16 %v2866, %v2864
        %v2895 = vpack.c.b16 %v2867, %v2865
        %v2896 = vpack.c.b16 %v2870, %v2868
        %v2897 = vpack.c.b16 %v2871, %v2869
        %v2898 = vpack.c.b16 %v2874, %v2872
        %v2899 = vpack.c.b16 %v2875, %v2873
        %v2900 = vpack.c.b16 %v2878, %v2876
        %v2901 = vpack.c.b16 %v2879, %v2877
        %v2902 = vpack.c.b16 %v2882, %v2880
        %v2903 = vpack.c.b16 %v2883, %v2881
        %v2904 = vpack.c.b16 %v2886, %v2884
        %v2905 = vpack.c.b16 %v2887, %v2885
        %v2906 = vpack.c.b16 %v2890, %v2888
        %v2907 = vpack.c.b16 %v2891, %v2889
        %2924 = vmatprep.subr.bf16.mxu0 %v2907
        %2925 = vmatpush1.bf16.msra.mxu0 %v2906
        %2926 = vmatprep.subr.bf16.mxu0 %v2905
        %2927 = vmatpush1.bf16.msra.mxu0 %v2904
        %2928 = vmatprep.subr.bf16.mxu0 %v2903
        %2929 = vmatpush1.bf16.msra.mxu0 %v2902
        %2930 = vmatprep.subr.bf16.mxu0 %v2901
        %2931 = vmatpush1.bf16.msra.mxu0 %v2900
        %2932 = vmatprep.subr.bf16.mxu0 %v2899
        %2933 = vmatpush1.bf16.msra.mxu0 %v2898
        %2934 = vmatprep.subr.bf16.mxu0 %v2897
        %2935 = vmatpush1.bf16.msra.mxu0 %v2896
        %2936 = vmatprep.subr.bf16.mxu0 %v2895
        %2937 = vmatpush1.bf16.msra.mxu0 %v2894
        %2938 = vmatprep.subr.bf16.mxu0 %v2893
        %2939 = vmatpush1.bf16.msra.mxu0 %v2892
        %2940 = vmatprep.subr.bf16.mxu0 0
        %2941 = vmatpush2.bf16.msra.mxu0 0
        %2942 = vmatprep.subr.bf16.mxu0 0
        %2943 = vmatpush2.bf16.msra.mxu0 0
        %2944 = vmatprep.subr.bf16.mxu0 0
        %2945 = vmatpush2.bf16.msra.mxu0 0
        %2946 = vmatprep.subr.bf16.mxu0 0
        %2947 = vmatpush2.bf16.msra.mxu0 0
        %2948 = vmatprep.subr.bf16.mxu0 0
        %2949 = vmatpush2.bf16.msra.mxu0 0
        %2950 = vmatprep.subr.bf16.mxu0 0
        %2951 = vmatpush2.bf16.msra.mxu0 0
        %2952 = vmatprep.subr.bf16.mxu0 0
        %2953 = vmatpush2.bf16.msra.mxu0 0
        %2954 = vmatprep.subr.bf16.mxu0 0
        %2955 = vmatpush2.bf16.msra.mxu0 0
        %2956 = vmatprep.mubr.bf16.mxu0 0
        %2957 = vmatmul.mubr.bf16.gmra.mxu0 %v2813
        %v2958 = vpop.f32.mrf.mxu0
        %v2959 = vadd.f32 0.0, %v2958
        %v2960 = vpop.f32.mrf.mxu0
        %v2961 = vadd.f32 0.0, %v2960
        %v2962 = vpop.f32.mrf.mxu0
        %v2963 = vadd.f32 0.0, %v2962
        %v2964 = vpop.f32.mrf.mxu0
        %v2965 = vadd.f32 0.0, %v2964
        %2966 = vmatprep.mubr.bf16.mxu0 0
        %2967 = vmatmul.mubr.bf16.gmra.mxu0 %v2814
        %v2968 = vpop.f32.mrf.mxu0
        %v2969 = vadd.f32 0.0, %v2968
        %v2970 = vpop.f32.mrf.mxu0
        %v2971 = vadd.f32 0.0, %v2970
        %v2972 = vpop.f32.mrf.mxu0
        %v2973 = vadd.f32 0.0, %v2972
        %v2974 = vpop.f32.mrf.mxu0
        %v2975 = vadd.f32 0.0, %v2974
        %2976 = vmatprep.mubr.bf16.mxu0 0
        %2977 = vmatmul.mubr.bf16.gmra.mxu0 %v2815
        %v2978 = vpop.f32.mrf.mxu0
        %v2979 = vadd.f32 0.0, %v2978
        %v2980 = vpop.f32.mrf.mxu0
        %v2981 = vadd.f32 0.0, %v2980
        %v2982 = vpop.f32.mrf.mxu0
        %v2983 = vadd.f32 0.0, %v2982
        %v2984 = vpop.f32.mrf.mxu0
        %v2985 = vadd.f32 0.0, %v2984
        %2986 = vmatprep.mubr.bf16.mxu0 0
        %2987 = vmatmul.mubr.bf16.gmra.mxu0 %v2816
        %v2988 = vpop.f32.mrf.mxu0
        %v2989 = vadd.f32 0.0, %v2988
        %v2990 = vpop.f32.mrf.mxu0
        %v2991 = vadd.f32 0.0, %v2990
        %v2992 = vpop.f32.mrf.mxu0
        %v2993 = vadd.f32 0.0, %v2992
        %v2994 = vpop.f32.mrf.mxu0
        %v2995 = vadd.f32 0.0, %v2994
        %2996 = vmatprep.mubr.bf16.mxu0 0
        %2997 = vmatmul.mubr.bf16.gmra.mxu0 %v2817
        %v2998 = vpop.f32.mrf.mxu0
        %v2999 = vadd.f32 0.0, %v2998
        %v3000 = vpop.f32.mrf.mxu0
        %v3001 = vadd.f32 0.0, %v3000
        %v3002 = vpop.f32.mrf.mxu0
        %v3003 = vadd.f32 0.0, %v3002
        %v3004 = vpop.f32.mrf.mxu0
        %v3005 = vadd.f32 0.0, %v3004
        %3006 = vmatprep.mubr.bf16.mxu0 0
        %3007 = vmatmul.mubr.bf16.gmra.mxu0 %v2818
        %v3008 = vpop.f32.mrf.mxu0
        %v3009 = vadd.f32 0.0, %v3008
        %v3010 = vpop.f32.mrf.mxu0
        %v3011 = vadd.f32 0.0, %v3010
        %v3012 = vpop.f32.mrf.mxu0
        %v3013 = vadd.f32 0.0, %v3012
        %v3014 = vpop.f32.mrf.mxu0
        %v3015 = vadd.f32 0.0, %v3014
        %3016 = vmatprep.mubr.bf16.mxu0 0
        %3017 = vmatmul.mubr.bf16.gmra.mxu0 %v2819
        %v3018 = vpop.f32.mrf.mxu0
        %v3019 = vadd.f32 0.0, %v3018
        %v3020 = vpop.f32.mrf.mxu0
        %v3021 = vadd.f32 0.0, %v3020
        %v3022 = vpop.f32.mrf.mxu0
        %v3023 = vadd.f32 0.0, %v3022
        %v3024 = vpop.f32.mrf.mxu0
        %v3025 = vadd.f32 0.0, %v3024
        %3026 = vmatprep.mubr.bf16.mxu0 0
        %3027 = vmatmul.mubr.bf16.gmra.mxu0 %v2820
        %v3028 = vpop.f32.mrf.mxu0
        %v3029 = vadd.f32 0.0, %v3028
        %v3030 = vpop.f32.mrf.mxu0
        %v3031 = vadd.f32 0.0, %v3030
        %v3032 = vpop.f32.mrf.mxu0
        %v3033 = vadd.f32 0.0, %v3032
        %v3034 = vpop.f32.mrf.mxu0
        %v3035 = vadd.f32 0.0, %v3034
        %3036 = vmatprep.mubr.bf16.mxu0 0
        %3037 = vmatmul.mubr.bf16.gmra.mxu0 %v2821
        %v3038 = vpop.f32.mrf.mxu0
        %v3039 = vadd.f32 0.0, %v3038
        %v3040 = vpop.f32.mrf.mxu0
        %v3041 = vadd.f32 0.0, %v3040
        %v3042 = vpop.f32.mrf.mxu0
        %v3043 = vadd.f32 0.0, %v3042
        %v3044 = vpop.f32.mrf.mxu0
        %v3045 = vadd.f32 0.0, %v3044
        %3046 = vmatprep.mubr.bf16.mxu0 0
        %3047 = vmatmul.mubr.bf16.gmra.mxu0 %v2822
        %v3048 = vpop.f32.mrf.mxu0
        %v3049 = vadd.f32 0.0, %v3048
        %v3050 = vpop.f32.mrf.mxu0
        %v3051 = vadd.f32 0.0, %v3050
        %v3052 = vpop.f32.mrf.mxu0
        %v3053 = vadd.f32 0.0, %v3052
        %v3054 = vpop.f32.mrf.mxu0
        %v3055 = vadd.f32 0.0, %v3054
        %3056 = vmatprep.mubr.bf16.mxu0 0
        %3057 = vmatmul.mubr.bf16.gmra.mxu0 %v2823
        %v3058 = vpop.f32.mrf.mxu0
        %v3059 = vadd.f32 0.0, %v3058
        %v3060 = vpop.f32.mrf.mxu0
        %v3061 = vadd.f32 0.0, %v3060
        %v3062 = vpop.f32.mrf.mxu0
        %v3063 = vadd.f32 0.0, %v3062
        %v3064 = vpop.f32.mrf.mxu0
        %v3065 = vadd.f32 0.0, %v3064
        %3066 = vmatprep.mubr.bf16.mxu0 0
        %3067 = vmatmul.mubr.bf16.gmra.mxu0 %v2824
        %v3068 = vpop.f32.mrf.mxu0
        %v3069 = vadd.f32 0.0, %v3068
        %v3070 = vpop.f32.mrf.mxu0
        %v3071 = vadd.f32 0.0, %v3070
        %v3072 = vpop.f32.mrf.mxu0
        %v3073 = vadd.f32 0.0, %v3072
        %v3074 = vpop.f32.mrf.mxu0
        %v3075 = vadd.f32 0.0, %v3074
        %3076 = vmatprep.mubr.bf16.mxu0 0
        %3077 = vmatmul.mubr.bf16.gmra.mxu0 %v2825
        %v3078 = vpop.f32.mrf.mxu0
        %v3079 = vadd.f32 0.0, %v3078
        %v3080 = vpop.f32.mrf.mxu0
        %v3081 = vadd.f32 0.0, %v3080
        %v3082 = vpop.f32.mrf.mxu0
        %v3083 = vadd.f32 0.0, %v3082
        %v3084 = vpop.f32.mrf.mxu0
        %v3085 = vadd.f32 0.0, %v3084
        %3086 = vmatprep.mubr.bf16.mxu0 0
        %3087 = vmatmul.mubr.bf16.gmra.mxu0 %v2826
        %v3088 = vpop.f32.mrf.mxu0
        %v3089 = vadd.f32 0.0, %v3088
        %v3090 = vpop.f32.mrf.mxu0
        %v3091 = vadd.f32 0.0, %v3090
        %v3092 = vpop.f32.mrf.mxu0
        %v3093 = vadd.f32 0.0, %v3092
        %v3094 = vpop.f32.mrf.mxu0
        %v3095 = vadd.f32 0.0, %v3094
        %3096 = vdwg.mxu0
        %v3097 = vadd.f32 %v2443, %v2959
        %v3098 = vadd.f32 %v2444, %v2961
        %v3099 = vadd.f32 %v2445, %v2963
        %v3100 = vadd.f32 %v2446, %v2965
        %v3101 = vadd.f32 %v2447, %v2969
        %v3102 = vadd.f32 %v2448, %v2971
        %v3103 = vadd.f32 %v2449, %v2973
        %v3104 = vadd.f32 %v2450, %v2975
        %v3105 = vadd.f32 %v2451, %v2979
        %v3106 = vadd.f32 %v2452, %v2981
        %v3107 = vadd.f32 %v2453, %v2983
        %v3108 = vadd.f32 %v2454, %v2985
        %v3109 = vadd.f32 %v2455, %v2989
        %v3110 = vadd.f32 %v2456, %v2991
        %v3111 = vadd.f32 %v2457, %v2993
        %v3112 = vadd.f32 %v2458, %v2995
        %v3113 = vadd.f32 %v2459, %v2999
        %v3114 = vadd.f32 %v2460, %v3001
        %v3115 = vadd.f32 %v2461, %v3003
        %v3116 = vadd.f32 %v2462, %v3005
        %v3117 = vadd.f32 %v2463, %v3009
        %v3118 = vadd.f32 %v2464, %v3011
        %v3119 = vadd.f32 %v2465, %v3013
        %v3120 = vadd.f32 %v2466, %v3015
        %v3121 = vadd.f32 %v2467, %v3019
        %v3122 = vadd.f32 %v2468, %v3021
        %v3123 = vadd.f32 %v2469, %v3023
        %v3124 = vadd.f32 %v2470, %v3025
        %v3125 = vadd.f32 %v2471, %v3029
        %v3126 = vadd.f32 %v2472, %v3031
        %v3127 = vadd.f32 %v2473, %v3033
        %v3128 = vadd.f32 %v2474, %v3035
        %v3129 = vadd.f32 %v2475, %v3039
        %v3130 = vadd.f32 %v2476, %v3041
        %v3131 = vadd.f32 %v2477, %v3043
        %v3132 = vadd.f32 %v2478, %v3045
        %v3133 = vadd.f32 %v2479, %v3049
        %v3134 = vadd.f32 %v2480, %v3051
        %v3135 = vadd.f32 %v2481, %v3053
        %v3136 = vadd.f32 %v2482, %v3055
        %v3137 = vadd.f32 %v2483, %v3059
        %v3138 = vadd.f32 %v2484, %v3061
        %v3139 = vadd.f32 %v2485, %v3063
        %v3140 = vadd.f32 %v2486, %v3065
        %v3141 = vadd.f32 %v2487, %v3069
        %v3142 = vadd.f32 %v2488, %v3071
        %v3143 = vadd.f32 %v2489, %v3073
        %v3144 = vadd.f32 %v2490, %v3075
        %v3145 = vadd.f32 %v2491, %v3079
        %v3146 = vadd.f32 %v2492, %v3081
        %v3147 = vadd.f32 %v2493, %v3083
        %v3148 = vadd.f32 %v2494, %v3085
        %v3149 = vadd.f32 %v2495, %v3089
        %v3150 = vadd.f32 %v2496, %v3091
        %v3151 = vadd.f32 %v2497, %v3093
        %v3152 = vadd.f32 %v2498, %v3095
        %s3153 = scalar_lea.vmem %s3, 896
        %v3154 = vld [vmem:[%s3153] sm:$0xff]
        %v3155 = vld [vmem:[%s3153 + $0x8] sm:$0xff]
        %v3156 = vld [vmem:[%s3153 + $0x10] sm:$0xff]
        %v3157 = vld [vmem:[%s3153 + $0x18] sm:$0xff]
        %v3158 = vld [vmem:[%s3153 + $0x20] sm:$0xff]
        %v3159 = vld [vmem:[%s3153 + $0x28] sm:$0xff]
        %v3160 = vld [vmem:[%s3153 + $0x30] sm:$0xff]
        %v3161 = vld [vmem:[%s3153 + $0x38] sm:$0xff]
        %v3162 = vld [vmem:[%s3153 + $0x40] sm:$0xff]
        %v3163 = vld [vmem:[%s3153 + $0x48] sm:$0xff]
        %v3164 = vld [vmem:[%s3153 + $0x50] sm:$0xff]
        %v3165 = vld [vmem:[%s3153 + $0x58] sm:$0xff]
        %v3166 = vld [vmem:[%s3153 + $0x60] sm:$0xff]
        %v3167 = vld [vmem:[%s3153 + $0x68] sm:$0xff]
        %v3168 = vld [vmem:[%s3153 + $0x70] sm:$0xff]
        %v3169 = vld [vmem:[%s3153 + $0x78] sm:$0xff]
        %v3170 = vld [vmem:[%s3153 + $0x80] sm:$0xff]
        %v3171 = vld [vmem:[%s3153 + $0x88] sm:$0xff]
        %v3172 = vld [vmem:[%s3153 + $0x90] sm:$0xff]
        %v3173 = vld [vmem:[%s3153 + $0x98] sm:$0xff]
        %v3174 = vld [vmem:[%s3153 + $0xa0] sm:$0xff]
        %v3175 = vld [vmem:[%s3153 + $0xa8] sm:$0xff]
        %v3176 = vld [vmem:[%s3153 + $0xb0] sm:$0xff]
        %v3177 = vld [vmem:[%s3153 + $0xb8] sm:$0xff]
        %v3178 = vld [vmem:[%s3153 + $0xc0] sm:$0xff]
        %v3179 = vld [vmem:[%s3153 + $0xc8] sm:$0xff]
        %v3180 = vld [vmem:[%s3153 + $0xd0] sm:$0xff]
        %v3181 = vld [vmem:[%s3153 + $0xd8] sm:$0xff]
        %v3210 = vunpack.c.l.b16 %v3154
        %v3211 = vunpack.c.h.b16 %v3154
        %v3212 = vunpack.c.l.b16 %v3155
        %v3213 = vunpack.c.h.b16 %v3155
        %v3214 = vunpack.c.l.b16 %v3156
        %v3215 = vunpack.c.h.b16 %v3156
        %v3216 = vunpack.c.l.b16 %v3157
        %v3217 = vunpack.c.h.b16 %v3157
        %v3218 = vunpack.c.l.b16 %v3158
        %v3219 = vunpack.c.h.b16 %v3158
        %v3220 = vunpack.c.l.b16 %v3159
        %v3221 = vunpack.c.h.b16 %v3159
        %v3222 = vunpack.c.l.b16 %v3160
        %v3223 = vunpack.c.h.b16 %v3160
        %v3224 = vunpack.c.l.b16 %v3161
        %v3225 = vunpack.c.h.b16 %v3161
        %v3226 = vunpack.c.l.b16 %v3162
        %v3227 = vunpack.c.h.b16 %v3162
        %v3228 = vunpack.c.l.b16 %v3163
        %v3229 = vunpack.c.h.b16 %v3163
        %v3230 = vunpack.c.l.b16 %v3164
        %v3231 = vunpack.c.h.b16 %v3164
        %v3232 = vunpack.c.l.b16 %v3165
        %v3233 = vunpack.c.h.b16 %v3165
        %v3234 = vunpack.c.l.b16 %v3166
        %v3235 = vunpack.c.h.b16 %v3166
        %v3236 = vunpack.c.l.b16 %v3167
        %v3237 = vunpack.c.h.b16 %v3167
        %v3238 = vunpack.c.l.b16 %v3168
        %v3239 = vunpack.c.h.b16 %v3168
        %v3240 = vunpack.c.l.b16 %v3169
        %v3241 = vunpack.c.h.b16 %v3169
        %v3242 = vunpack.c.l.b16 %v3170
        %v3243 = vunpack.c.h.b16 %v3170
        %v3244 = vunpack.c.l.b16 %v3171
        %v3245 = vunpack.c.h.b16 %v3171
        %v3246 = vunpack.c.l.b16 %v3172
        %v3247 = vunpack.c.h.b16 %v3172
        %v3248 = vunpack.c.l.b16 %v3173
        %v3249 = vunpack.c.h.b16 %v3173
        %v3250 = vunpack.c.l.b16 %v3174
        %v3251 = vunpack.c.h.b16 %v3174
        %v3252 = vunpack.c.l.b16 %v3175
        %v3253 = vunpack.c.h.b16 %v3175
        %v3254 = vunpack.c.l.b16 %v3176
        %v3255 = vunpack.c.h.b16 %v3176
        %v3256 = vunpack.c.l.b16 %v3177
        %v3257 = vunpack.c.h.b16 %v3177
        %v3258 = vunpack.c.l.b16 %v3178
        %v3259 = vunpack.c.h.b16 %v3178
        %v3260 = vunpack.c.l.b16 %v3179
        %v3261 = vunpack.c.h.b16 %v3179
        %v3262 = vunpack.c.l.b16 %v3180
        %v3263 = vunpack.c.h.b16 %v3180
        %v3264 = vunpack.c.l.b16 %v3181
        %v3265 = vunpack.c.h.b16 %v3181
        %v3266 = vpack.c.b16 %v3212, %v3210
        %v3267 = vpack.c.b16 %v3213, %v3211
        %v3268 = vpack.c.b16 %v3216, %v3214
        %v3269 = vpack.c.b16 %v3217, %v3215
        %v3270 = vpack.c.b16 %v3220, %v3218
        %v3271 = vpack.c.b16 %v3221, %v3219
        %v3272 = vpack.c.b16 %v3224, %v3222
        %v3273 = vpack.c.b16 %v3225, %v3223
        %v3274 = vpack.c.b16 %v3228, %v3226
        %v3275 = vpack.c.b16 %v3229, %v3227
        %v3276 = vpack.c.b16 %v3232, %v3230
        %v3277 = vpack.c.b16 %v3233, %v3231
        %v3278 = vpack.c.b16 %v3236, %v3234
        %v3279 = vpack.c.b16 %v3237, %v3235
        %v3280 = vpack.c.b16 %v3240, %v3238
        %v3281 = vpack.c.b16 %v3241, %v3239
        %v3282 = vpack.c.b16 %v3244, %v3242
        %v3283 = vpack.c.b16 %v3245, %v3243
        %v3284 = vpack.c.b16 %v3248, %v3246
        %v3285 = vpack.c.b16 %v3249, %v3247
        %v3286 = vpack.c.b16 %v3252, %v3250
        %v3287 = vpack.c.b16 %v3253, %v3251
        %v3288 = vpack.c.b16 %v3256, %v3254
        %v3289 = vpack.c.b16 %v3257, %v3255
        %v3290 = vpack.c.b16 %v3260, %v3258
        %v3291 = vpack.c.b16 %v3261, %v3259
        %v3292 = vpack.c.b16 %v3264, %v3262
        %v3293 = vpack.c.b16 %v3265, %v3263
        %3322 = vmatprep.subr.bf16.mxu0 0
        %3323 = vmatpush1.bf16.msra.mxu0 %v794
        %3324 = vmatprep.subr.bf16.mxu0 0
        %3325 = vmatpush1.bf16.msra.mxu0 %v793
        %3326 = vmatprep.subr.bf16.mxu0 0
        %3327 = vmatpush1.bf16.msra.mxu0 %v792
        %3328 = vmatprep.subr.bf16.mxu0 0
        %3329 = vmatpush1.bf16.msra.mxu0 %v791
        %3330 = vmatprep.subr.bf16.mxu0 0
        %3331 = vmatpush1.bf16.msra.mxu0 %v790
        %3332 = vmatprep.subr.bf16.mxu0 0
        %3333 = vmatpush1.bf16.msra.mxu0 %v789
        %3334 = vmatprep.subr.bf16.mxu0 0
        %3335 = vmatpush1.bf16.msra.mxu0 %v788
        %3336 = vmatprep.subr.bf16.mxu0 0
        %3337 = vmatpush1.bf16.msra.mxu0 %v787
        %3338 = vmatprep.subr.bf16.mxu0 0
        %3339 = vmatpush2.bf16.msra.mxu0 %v802
        %3340 = vmatprep.subr.bf16.mxu0 0
        %3341 = vmatpush2.bf16.msra.mxu0 %v801
        %3342 = vmatprep.subr.bf16.mxu0 0
        %3343 = vmatpush2.bf16.msra.mxu0 %v800
        %3344 = vmatprep.subr.bf16.mxu0 0
        %3345 = vmatpush2.bf16.msra.mxu0 %v799
        %3346 = vmatprep.subr.bf16.mxu0 0
        %3347 = vmatpush2.bf16.msra.mxu0 %v798
        %3348 = vmatprep.subr.bf16.mxu0 0
        %3349 = vmatpush2.bf16.msra.mxu0 %v797
        %3350 = vmatprep.subr.bf16.mxu0 0
        %3351 = vmatpush2.bf16.msra.mxu0 %v796
        %3352 = vmatprep.subr.bf16.mxu0 0
        %3353 = vmatpush2.bf16.msra.mxu0 %v795
        %3354 = vmatprep.mubr.bf16.mxu0 %v3267
        %3355 = vmatmul.mubr.bf16.gmra.mxu0 %v3266
        %v3356 = vpop.f32.mrf.mxu0
        %v3357 = vadd.f32 0.0, %v3356
        %v3358 = vpop.f32.mrf.mxu0
        %v3359 = vpop.f32.mrf.mxu0
        %v3360 = vadd.f32 0.0, %v3359
        %v3361 = vpop.f32.mrf.mxu0
        %3362 = vmatprep.mubr.bf16.mxu0 %v3269
        %3363 = vmatmul.mubr.bf16.gmra.mxu0 %v3268
        %v3364 = vpop.f32.mrf.mxu0
        %v3365 = vadd.f32 0.0, %v3364
        %v3366 = vpop.f32.mrf.mxu0
        %v3367 = vpop.f32.mrf.mxu0
        %v3368 = vadd.f32 0.0, %v3367
        %v3369 = vpop.f32.mrf.mxu0
        %3370 = vmatprep.mubr.bf16.mxu0 %v3271
        %3371 = vmatmul.mubr.bf16.gmra.mxu0 %v3270
        %v3372 = vpop.f32.mrf.mxu0
        %v3373 = vadd.f32 0.0, %v3372
        %v3374 = vpop.f32.mrf.mxu0
        %v3375 = vpop.f32.mrf.mxu0
        %v3376 = vadd.f32 0.0, %v3375
        %v3377 = vpop.f32.mrf.mxu0
        %3378 = vmatprep.mubr.bf16.mxu0 %v3273
        %3379 = vmatmul.mubr.bf16.gmra.mxu0 %v3272
        %v3380 = vpop.f32.mrf.mxu0
        %v3381 = vadd.f32 0.0, %v3380
        %v3382 = vpop.f32.mrf.mxu0
        %v3383 = vpop.f32.mrf.mxu0
        %v3384 = vadd.f32 0.0, %v3383
        %v3385 = vpop.f32.mrf.mxu0
        %3386 = vmatprep.mubr.bf16.mxu0 %v3275
        %3387 = vmatmul.mubr.bf16.gmra.mxu0 %v3274
        %v3388 = vpop.f32.mrf.mxu0
        %v3389 = vadd.f32 0.0, %v3388
        %v3390 = vpop.f32.mrf.mxu0
        %v3391 = vpop.f32.mrf.mxu0
        %v3392 = vadd.f32 0.0, %v3391
        %v3393 = vpop.f32.mrf.mxu0
        %3394 = vmatprep.mubr.bf16.mxu0 %v3277
        %3395 = vmatmul.mubr.bf16.gmra.mxu0 %v3276
        %v3396 = vpop.f32.mrf.mxu0
        %v3397 = vadd.f32 0.0, %v3396
        %v3398 = vpop.f32.mrf.mxu0
        %v3399 = vpop.f32.mrf.mxu0
        %v3400 = vadd.f32 0.0, %v3399
        %v3401 = vpop.f32.mrf.mxu0
        %3402 = vmatprep.mubr.bf16.mxu0 %v3279
        %3403 = vmatmul.mubr.bf16.gmra.mxu0 %v3278
        %v3404 = vpop.f32.mrf.mxu0
        %v3405 = vadd.f32 0.0, %v3404
        %v3406 = vpop.f32.mrf.mxu0
        %v3407 = vpop.f32.mrf.mxu0
        %v3408 = vadd.f32 0.0, %v3407
        %v3409 = vpop.f32.mrf.mxu0
        %3410 = vmatprep.mubr.bf16.mxu0 %v3281
        %3411 = vmatmul.mubr.bf16.gmra.mxu0 %v3280
        %v3412 = vpop.f32.mrf.mxu0
        %v3413 = vadd.f32 0.0, %v3412
        %v3414 = vpop.f32.mrf.mxu0
        %v3415 = vpop.f32.mrf.mxu0
        %v3416 = vadd.f32 0.0, %v3415
        %v3417 = vpop.f32.mrf.mxu0
        %3418 = vmatprep.mubr.bf16.mxu0 %v3283
        %3419 = vmatmul.mubr.bf16.gmra.mxu0 %v3282
        %v3420 = vpop.f32.mrf.mxu0
        %v3421 = vadd.f32 0.0, %v3420
        %v3422 = vpop.f32.mrf.mxu0
        %v3423 = vpop.f32.mrf.mxu0
        %v3424 = vadd.f32 0.0, %v3423
        %v3425 = vpop.f32.mrf.mxu0
        %3426 = vmatprep.mubr.bf16.mxu0 %v3285
        %3427 = vmatmul.mubr.bf16.gmra.mxu0 %v3284
        %v3428 = vpop.f32.mrf.mxu0
        %v3429 = vadd.f32 0.0, %v3428
        %v3430 = vpop.f32.mrf.mxu0
        %v3431 = vpop.f32.mrf.mxu0
        %v3432 = vadd.f32 0.0, %v3431
        %v3433 = vpop.f32.mrf.mxu0
        %3434 = vmatprep.mubr.bf16.mxu0 %v3287
        %3435 = vmatmul.mubr.bf16.gmra.mxu0 %v3286
        %v3436 = vpop.f32.mrf.mxu0
        %v3437 = vadd.f32 0.0, %v3436
        %v3438 = vpop.f32.mrf.mxu0
        %v3439 = vpop.f32.mrf.mxu0
        %v3440 = vadd.f32 0.0, %v3439
        %v3441 = vpop.f32.mrf.mxu0
        %3442 = vmatprep.mubr.bf16.mxu0 %v3289
        %3443 = vmatmul.mubr.bf16.gmra.mxu0 %v3288
        %v3444 = vpop.f32.mrf.mxu0
        %v3445 = vadd.f32 0.0, %v3444
        %v3446 = vpop.f32.mrf.mxu0
        %v3447 = vpop.f32.mrf.mxu0
        %v3448 = vadd.f32 0.0, %v3447
        %v3449 = vpop.f32.mrf.mxu0
        %3450 = vmatprep.mubr.bf16.mxu0 %v3291
        %3451 = vmatmul.mubr.bf16.gmra.mxu0 %v3290
        %v3452 = vpop.f32.mrf.mxu0
        %v3453 = vadd.f32 0.0, %v3452
        %v3454 = vpop.f32.mrf.mxu0
        %v3455 = vpop.f32.mrf.mxu0
        %v3456 = vadd.f32 0.0, %v3455
        %v3457 = vpop.f32.mrf.mxu0
        %3458 = vmatprep.mubr.bf16.mxu0 %v3293
        %3459 = vmatmul.mubr.bf16.gmra.mxu0 %v3292
        %v3460 = vpop.f32.mrf.mxu0
        %v3461 = vadd.f32 0.0, %v3460
        %v3462 = vpop.f32.mrf.mxu0
        %v3463 = vpop.f32.mrf.mxu0
        %v3464 = vadd.f32 0.0, %v3463
        %v3465 = vpop.f32.mrf.mxu0
        %3466 = vdwg.mxu0
        %v3467 = vpack.c.bf16 %v3360, %v3357
        %v3468 = vpack.c.bf16 %v3368, %v3365
        %v3469 = vpack.c.bf16 %v3376, %v3373
        %v3470 = vpack.c.bf16 %v3384, %v3381
        %v3471 = vpack.c.bf16 %v3392, %v3389
        %v3472 = vpack.c.bf16 %v3400, %v3397
        %v3473 = vpack.c.bf16 %v3408, %v3405
        %v3474 = vpack.c.bf16 %v3416, %v3413
        %v3475 = vpack.c.bf16 %v3424, %v3421
        %v3476 = vpack.c.bf16 %v3432, %v3429
        %v3477 = vpack.c.bf16 %v3440, %v3437
        %v3478 = vpack.c.bf16 %v3448, %v3445
        %v3479 = vpack.c.bf16 %v3456, %v3453
        %v3480 = vpack.c.bf16 %v3464, %v3461
        %s3481 = scalar_lea.vmem %s1, 512
        %v3482 = vld [vmem:[%s3481] sm:$0xff]
        %v3483 = vld [vmem:[%s3481 + $0x8] sm:$0xff]
        %v3484 = vld [vmem:[%s3481 + $0x10] sm:$0xff]
        %v3485 = vld [vmem:[%s3481 + $0x18] sm:$0xff]
        %v3486 = vld [vmem:[%s3481 + $0x20] sm:$0xff]
        %v3487 = vld [vmem:[%s3481 + $0x28] sm:$0xff]
        %v3488 = vld [vmem:[%s3481 + $0x30] sm:$0xff]
        %v3489 = vld [vmem:[%s3481 + $0x38] sm:$0xff]
        %v3490 = vld [vmem:[%s3481 + $0x40] sm:$0xff]
        %v3491 = vld [vmem:[%s3481 + $0x48] sm:$0xff]
        %v3492 = vld [vmem:[%s3481 + $0x50] sm:$0xff]
        %v3493 = vld [vmem:[%s3481 + $0x58] sm:$0xff]
        %v3494 = vld [vmem:[%s3481 + $0x60] sm:$0xff]
        %v3495 = vld [vmem:[%s3481 + $0x68] sm:$0xff]
        %v3496 = vld [vmem:[%s3481 + $0x70] sm:$0xff]
        %v3497 = vld [vmem:[%s3481 + $0x78] sm:$0xff]
        %v3514 = vunpack.c.l.b16 %v3482
        %v3515 = vunpack.c.h.b16 %v3482
        %v3516 = vunpack.c.l.b16 %v3483
        %v3517 = vunpack.c.h.b16 %v3483
        %v3518 = vunpack.c.l.b16 %v3484
        %v3519 = vunpack.c.h.b16 %v3484
        %v3520 = vunpack.c.l.b16 %v3485
        %v3521 = vunpack.c.h.b16 %v3485
        %v3522 = vunpack.c.l.b16 %v3486
        %v3523 = vunpack.c.h.b16 %v3486
        %v3524 = vunpack.c.l.b16 %v3487
        %v3525 = vunpack.c.h.b16 %v3487
        %v3526 = vunpack.c.l.b16 %v3488
        %v3527 = vunpack.c.h.b16 %v3488
        %v3528 = vunpack.c.l.b16 %v3489
        %v3529 = vunpack.c.h.b16 %v3489
        %v3530 = vunpack.c.l.b16 %v3490
        %v3531 = vunpack.c.h.b16 %v3490
        %v3532 = vunpack.c.l.b16 %v3491
        %v3533 = vunpack.c.h.b16 %v3491
        %v3534 = vunpack.c.l.b16 %v3492
        %v3535 = vunpack.c.h.b16 %v3492
        %v3536 = vunpack.c.l.b16 %v3493
        %v3537 = vunpack.c.h.b16 %v3493
        %v3538 = vunpack.c.l.b16 %v3494
        %v3539 = vunpack.c.h.b16 %v3494
        %v3540 = vunpack.c.l.b16 %v3495
        %v3541 = vunpack.c.h.b16 %v3495
        %v3542 = vunpack.c.l.b16 %v3496
        %v3543 = vunpack.c.h.b16 %v3496
        %v3544 = vunpack.c.l.b16 %v3497
        %v3545 = vunpack.c.h.b16 %v3497
        %v3546 = vpack.c.b16 %v3516, %v3514
        %v3547 = vpack.c.b16 %v3517, %v3515
        %v3548 = vpack.c.b16 %v3520, %v3518
        %v3549 = vpack.c.b16 %v3521, %v3519
        %v3550 = vpack.c.b16 %v3524, %v3522
        %v3551 = vpack.c.b16 %v3525, %v3523
        %v3552 = vpack.c.b16 %v3528, %v3526
        %v3553 = vpack.c.b16 %v3529, %v3527
        %v3554 = vpack.c.b16 %v3532, %v3530
        %v3555 = vpack.c.b16 %v3533, %v3531
        %v3556 = vpack.c.b16 %v3536, %v3534
        %v3557 = vpack.c.b16 %v3537, %v3535
        %v3558 = vpack.c.b16 %v3540, %v3538
        %v3559 = vpack.c.b16 %v3541, %v3539
        %v3560 = vpack.c.b16 %v3544, %v3542
        %v3561 = vpack.c.b16 %v3545, %v3543
        %3578 = vmatprep.subr.bf16.mxu0 %v3561
        %3579 = vmatpush1.bf16.msra.mxu0 %v3560
        %3580 = vmatprep.subr.bf16.mxu0 %v3559
        %3581 = vmatpush1.bf16.msra.mxu0 %v3558
        %3582 = vmatprep.subr.bf16.mxu0 %v3557
        %3583 = vmatpush1.bf16.msra.mxu0 %v3556
        %3584 = vmatprep.subr.bf16.mxu0 %v3555
        %3585 = vmatpush1.bf16.msra.mxu0 %v3554
        %3586 = vmatprep.subr.bf16.mxu0 %v3553
        %3587 = vmatpush1.bf16.msra.mxu0 %v3552
        %3588 = vmatprep.subr.bf16.mxu0 %v3551
        %3589 = vmatpush1.bf16.msra.mxu0 %v3550
        %3590 = vmatprep.subr.bf16.mxu0 %v3549
        %3591 = vmatpush1.bf16.msra.mxu0 %v3548
        %3592 = vmatprep.subr.bf16.mxu0 %v3547
        %3593 = vmatpush1.bf16.msra.mxu0 %v3546
        %3594 = vmatprep.subr.bf16.mxu0 0
        %3595 = vmatpush2.bf16.msra.mxu0 0
        %3596 = vmatprep.subr.bf16.mxu0 0
        %3597 = vmatpush2.bf16.msra.mxu0 0
        %3598 = vmatprep.subr.bf16.mxu0 0
        %3599 = vmatpush2.bf16.msra.mxu0 0
        %3600 = vmatprep.subr.bf16.mxu0 0
        %3601 = vmatpush2.bf16.msra.mxu0 0
        %3602 = vmatprep.subr.bf16.mxu0 0
        %3603 = vmatpush2.bf16.msra.mxu0 0
        %3604 = vmatprep.subr.bf16.mxu0 0
        %3605 = vmatpush2.bf16.msra.mxu0 0
        %3606 = vmatprep.subr.bf16.mxu0 0
        %3607 = vmatpush2.bf16.msra.mxu0 0
        %3608 = vmatprep.subr.bf16.mxu0 0
        %3609 = vmatpush2.bf16.msra.mxu0 0
        %3610 = vmatprep.mubr.bf16.mxu0 0
        %3611 = vmatmul.mubr.bf16.gmra.mxu0 %v3467
        %v3612 = vpop.f32.mrf.mxu0
        %v3613 = vadd.f32 0.0, %v3612
        %v3614 = vpop.f32.mrf.mxu0
        %v3615 = vadd.f32 0.0, %v3614
        %v3616 = vpop.f32.mrf.mxu0
        %v3617 = vadd.f32 0.0, %v3616
        %v3618 = vpop.f32.mrf.mxu0
        %v3619 = vadd.f32 0.0, %v3618
        %3620 = vmatprep.mubr.bf16.mxu0 0
        %3621 = vmatmul.mubr.bf16.gmra.mxu0 %v3468
        %v3622 = vpop.f32.mrf.mxu0
        %v3623 = vadd.f32 0.0, %v3622
        %v3624 = vpop.f32.mrf.mxu0
        %v3625 = vadd.f32 0.0, %v3624
        %v3626 = vpop.f32.mrf.mxu0
        %v3627 = vadd.f32 0.0, %v3626
        %v3628 = vpop.f32.mrf.mxu0
        %v3629 = vadd.f32 0.0, %v3628
        %3630 = vmatprep.mubr.bf16.mxu0 0
        %3631 = vmatmul.mubr.bf16.gmra.mxu0 %v3469
        %v3632 = vpop.f32.mrf.mxu0
        %v3633 = vadd.f32 0.0, %v3632
        %v3634 = vpop.f32.mrf.mxu0
        %v3635 = vadd.f32 0.0, %v3634
        %v3636 = vpop.f32.mrf.mxu0
        %v3637 = vadd.f32 0.0, %v3636
        %v3638 = vpop.f32.mrf.mxu0
        %v3639 = vadd.f32 0.0, %v3638
        %3640 = vmatprep.mubr.bf16.mxu0 0
        %3641 = vmatmul.mubr.bf16.gmra.mxu0 %v3470
        %v3642 = vpop.f32.mrf.mxu0
        %v3643 = vadd.f32 0.0, %v3642
        %v3644 = vpop.f32.mrf.mxu0
        %v3645 = vadd.f32 0.0, %v3644
        %v3646 = vpop.f32.mrf.mxu0
        %v3647 = vadd.f32 0.0, %v3646
        %v3648 = vpop.f32.mrf.mxu0
        %v3649 = vadd.f32 0.0, %v3648
        %3650 = vmatprep.mubr.bf16.mxu0 0
        %3651 = vmatmul.mubr.bf16.gmra.mxu0 %v3471
        %v3652 = vpop.f32.mrf.mxu0
        %v3653 = vadd.f32 0.0, %v3652
        %v3654 = vpop.f32.mrf.mxu0
        %v3655 = vadd.f32 0.0, %v3654
        %v3656 = vpop.f32.mrf.mxu0
        %v3657 = vadd.f32 0.0, %v3656
        %v3658 = vpop.f32.mrf.mxu0
        %v3659 = vadd.f32 0.0, %v3658
        %3660 = vmatprep.mubr.bf16.mxu0 0
        %3661 = vmatmul.mubr.bf16.gmra.mxu0 %v3472
        %v3662 = vpop.f32.mrf.mxu0
        %v3663 = vadd.f32 0.0, %v3662
        %v3664 = vpop.f32.mrf.mxu0
        %v3665 = vadd.f32 0.0, %v3664
        %v3666 = vpop.f32.mrf.mxu0
        %v3667 = vadd.f32 0.0, %v3666
        %v3668 = vpop.f32.mrf.mxu0
        %v3669 = vadd.f32 0.0, %v3668
        %3670 = vmatprep.mubr.bf16.mxu0 0
        %3671 = vmatmul.mubr.bf16.gmra.mxu0 %v3473
        %v3672 = vpop.f32.mrf.mxu0
        %v3673 = vadd.f32 0.0, %v3672
        %v3674 = vpop.f32.mrf.mxu0
        %v3675 = vadd.f32 0.0, %v3674
        %v3676 = vpop.f32.mrf.mxu0
        %v3677 = vadd.f32 0.0, %v3676
        %v3678 = vpop.f32.mrf.mxu0
        %v3679 = vadd.f32 0.0, %v3678
        %3680 = vmatprep.mubr.bf16.mxu0 0
        %3681 = vmatmul.mubr.bf16.gmra.mxu0 %v3474
        %v3682 = vpop.f32.mrf.mxu0
        %v3683 = vadd.f32 0.0, %v3682
        %v3684 = vpop.f32.mrf.mxu0
        %v3685 = vadd.f32 0.0, %v3684
        %v3686 = vpop.f32.mrf.mxu0
        %v3687 = vadd.f32 0.0, %v3686
        %v3688 = vpop.f32.mrf.mxu0
        %v3689 = vadd.f32 0.0, %v3688
        %3690 = vmatprep.mubr.bf16.mxu0 0
        %3691 = vmatmul.mubr.bf16.gmra.mxu0 %v3475
        %v3692 = vpop.f32.mrf.mxu0
        %v3693 = vadd.f32 0.0, %v3692
        %v3694 = vpop.f32.mrf.mxu0
        %v3695 = vadd.f32 0.0, %v3694
        %v3696 = vpop.f32.mrf.mxu0
        %v3697 = vadd.f32 0.0, %v3696
        %v3698 = vpop.f32.mrf.mxu0
        %v3699 = vadd.f32 0.0, %v3698
        %3700 = vmatprep.mubr.bf16.mxu0 0
        %3701 = vmatmul.mubr.bf16.gmra.mxu0 %v3476
        %v3702 = vpop.f32.mrf.mxu0
        %v3703 = vadd.f32 0.0, %v3702
        %v3704 = vpop.f32.mrf.mxu0
        %v3705 = vadd.f32 0.0, %v3704
        %v3706 = vpop.f32.mrf.mxu0
        %v3707 = vadd.f32 0.0, %v3706
        %v3708 = vpop.f32.mrf.mxu0
        %v3709 = vadd.f32 0.0, %v3708
        %3710 = vmatprep.mubr.bf16.mxu0 0
        %3711 = vmatmul.mubr.bf16.gmra.mxu0 %v3477
        %v3712 = vpop.f32.mrf.mxu0
        %v3713 = vadd.f32 0.0, %v3712
        %v3714 = vpop.f32.mrf.mxu0
        %v3715 = vadd.f32 0.0, %v3714
        %v3716 = vpop.f32.mrf.mxu0
        %v3717 = vadd.f32 0.0, %v3716
        %v3718 = vpop.f32.mrf.mxu0
        %v3719 = vadd.f32 0.0, %v3718
        %3720 = vmatprep.mubr.bf16.mxu0 0
        %3721 = vmatmul.mubr.bf16.gmra.mxu0 %v3478
        %v3722 = vpop.f32.mrf.mxu0
        %v3723 = vadd.f32 0.0, %v3722
        %v3724 = vpop.f32.mrf.mxu0
        %v3725 = vadd.f32 0.0, %v3724
        %v3726 = vpop.f32.mrf.mxu0
        %v3727 = vadd.f32 0.0, %v3726
        %v3728 = vpop.f32.mrf.mxu0
        %v3729 = vadd.f32 0.0, %v3728
        %3730 = vmatprep.mubr.bf16.mxu0 0
        %3731 = vmatmul.mubr.bf16.gmra.mxu0 %v3479
        %v3732 = vpop.f32.mrf.mxu0
        %v3733 = vadd.f32 0.0, %v3732
        %v3734 = vpop.f32.mrf.mxu0
        %v3735 = vadd.f32 0.0, %v3734
        %v3736 = vpop.f32.mrf.mxu0
        %v3737 = vadd.f32 0.0, %v3736
        %v3738 = vpop.f32.mrf.mxu0
        %v3739 = vadd.f32 0.0, %v3738
        %3740 = vmatprep.mubr.bf16.mxu0 0
        %3741 = vmatmul.mubr.bf16.gmra.mxu0 %v3480
        %v3742 = vpop.f32.mrf.mxu0
        %v3743 = vadd.f32 0.0, %v3742
        %v3744 = vpop.f32.mrf.mxu0
        %v3745 = vadd.f32 0.0, %v3744
        %v3746 = vpop.f32.mrf.mxu0
        %v3747 = vadd.f32 0.0, %v3746
        %v3748 = vpop.f32.mrf.mxu0
        %v3749 = vadd.f32 0.0, %v3748
        %3750 = vdwg.mxu0
        %v3751 = vadd.f32 %v3097, %v3613
        %v3752 = vadd.f32 %v3098, %v3615
        %v3753 = vadd.f32 %v3099, %v3617
        %v3754 = vadd.f32 %v3100, %v3619
        %v3755 = vadd.f32 %v3101, %v3623
        %v3756 = vadd.f32 %v3102, %v3625
        %v3757 = vadd.f32 %v3103, %v3627
        %v3758 = vadd.f32 %v3104, %v3629
        %v3759 = vadd.f32 %v3105, %v3633
        %v3760 = vadd.f32 %v3106, %v3635
        %v3761 = vadd.f32 %v3107, %v3637
        %v3762 = vadd.f32 %v3108, %v3639
        %v3763 = vadd.f32 %v3109, %v3643
        %v3764 = vadd.f32 %v3110, %v3645
        %v3765 = vadd.f32 %v3111, %v3647
        %v3766 = vadd.f32 %v3112, %v3649
        %v3767 = vadd.f32 %v3113, %v3653
        %v3768 = vadd.f32 %v3114, %v3655
        %v3769 = vadd.f32 %v3115, %v3657
        %v3770 = vadd.f32 %v3116, %v3659
        %v3771 = vadd.f32 %v3117, %v3663
        %v3772 = vadd.f32 %v3118, %v3665
        %v3773 = vadd.f32 %v3119, %v3667
        %v3774 = vadd.f32 %v3120, %v3669
        %v3775 = vadd.f32 %v3121, %v3673
        %v3776 = vadd.f32 %v3122, %v3675
        %v3777 = vadd.f32 %v3123, %v3677
        %v3778 = vadd.f32 %v3124, %v3679
        %v3779 = vadd.f32 %v3125, %v3683
        %v3780 = vadd.f32 %v3126, %v3685
        %v3781 = vadd.f32 %v3127, %v3687
        %v3782 = vadd.f32 %v3128, %v3689
        %v3783 = vadd.f32 %v3129, %v3693
        %v3784 = vadd.f32 %v3130, %v3695
        %v3785 = vadd.f32 %v3131, %v3697
        %v3786 = vadd.f32 %v3132, %v3699
        %v3787 = vadd.f32 %v3133, %v3703
        %v3788 = vadd.f32 %v3134, %v3705
        %v3789 = vadd.f32 %v3135, %v3707
        %v3790 = vadd.f32 %v3136, %v3709
        %v3791 = vadd.f32 %v3137, %v3713
        %v3792 = vadd.f32 %v3138, %v3715
        %v3793 = vadd.f32 %v3139, %v3717
        %v3794 = vadd.f32 %v3140, %v3719
        %v3795 = vadd.f32 %v3141, %v3723
        %v3796 = vadd.f32 %v3142, %v3725
        %v3797 = vadd.f32 %v3143, %v3727
        %v3798 = vadd.f32 %v3144, %v3729
        %v3799 = vadd.f32 %v3145, %v3733
        %v3800 = vadd.f32 %v3146, %v3735
        %v3801 = vadd.f32 %v3147, %v3737
        %v3802 = vadd.f32 %v3148, %v3739
        %v3803 = vadd.f32 %v3149, %v3743
        %v3804 = vadd.f32 %v3150, %v3745
        %v3805 = vadd.f32 %v3151, %v3747
        %v3806 = vadd.f32 %v3152, %v3749
        %v3807 = vld [vmem:[%s2] sm:$0x3]
        %v3809 = vlaneseq
        %v3810 = vshrl.u32 %v3809, 7
        %v3811 = vsub.s32 0, %v3810
        %v3812 = vrot.slane %v3807, %v3811
        %v3813 = vlaneseq
        %v3814 = vshrl.u32 %v3813, 7
        %v3815 = vsub.s32 1, %v3814
        %v3816 = vrot.slane %v3807, %v3815
        %v3819 = vadd.f32 %v3751, %v3812
        %v3820 = vadd.f32 %v3752, %v3816
        %v3821 = vadd.f32 %v3753, %v3812
        %v3822 = vadd.f32 %v3754, %v3816
        %v3823 = vadd.f32 %v3755, %v3812
        %v3824 = vadd.f32 %v3756, %v3816
        %v3825 = vadd.f32 %v3757, %v3812
        %v3826 = vadd.f32 %v3758, %v3816
        %v3827 = vadd.f32 %v3759, %v3812
        %v3828 = vadd.f32 %v3760, %v3816
        %v3829 = vadd.f32 %v3761, %v3812
        %v3830 = vadd.f32 %v3762, %v3816
        %v3831 = vadd.f32 %v3763, %v3812
        %v3832 = vadd.f32 %v3764, %v3816
        %v3833 = vadd.f32 %v3765, %v3812
        %v3834 = vadd.f32 %v3766, %v3816
        %v3835 = vadd.f32 %v3767, %v3812
        %v3836 = vadd.f32 %v3768, %v3816
        %v3837 = vadd.f32 %v3769, %v3812
        %v3838 = vadd.f32 %v3770, %v3816
        %v3839 = vadd.f32 %v3771, %v3812
        %v3840 = vadd.f32 %v3772, %v3816
        %v3841 = vadd.f32 %v3773, %v3812
        %v3842 = vadd.f32 %v3774, %v3816
        %v3843 = vadd.f32 %v3775, %v3812
        %v3844 = vadd.f32 %v3776, %v3816
        %v3845 = vadd.f32 %v3777, %v3812
        %v3846 = vadd.f32 %v3778, %v3816
        %v3847 = vadd.f32 %v3779, %v3812
        %v3848 = vadd.f32 %v3780, %v3816
        %v3849 = vadd.f32 %v3781, %v3812
        %v3850 = vadd.f32 %v3782, %v3816
        %v3851 = vadd.f32 %v3783, %v3812
        %v3852 = vadd.f32 %v3784, %v3816
        %v3853 = vadd.f32 %v3785, %v3812
        %v3854 = vadd.f32 %v3786, %v3816
        %v3855 = vadd.f32 %v3787, %v3812
        %v3856 = vadd.f32 %v3788, %v3816
        %v3857 = vadd.f32 %v3789, %v3812
        %v3858 = vadd.f32 %v3790, %v3816
        %v3859 = vadd.f32 %v3791, %v3812
        %v3860 = vadd.f32 %v3792, %v3816
        %v3861 = vadd.f32 %v3793, %v3812
        %v3862 = vadd.f32 %v3794, %v3816
        %v3863 = vadd.f32 %v3795, %v3812
        %v3864 = vadd.f32 %v3796, %v3816
        %v3865 = vadd.f32 %v3797, %v3812
        %v3866 = vadd.f32 %v3798, %v3816
        %v3867 = vadd.f32 %v3799, %v3812
        %v3868 = vadd.f32 %v3800, %v3816
        %v3869 = vadd.f32 %v3801, %v3812
        %v3870 = vadd.f32 %v3802, %v3816
        %v3871 = vadd.f32 %v3803, %v3812
        %v3872 = vadd.f32 %v3804, %v3816
        %v3873 = vadd.f32 %v3805, %v3812
        %v3874 = vadd.f32 %v3806, %v3816
        %v3875 = vmax.f32 %v3819, 0.0
        %v3876 = vmax.f32 %v3820, 0.0
        %v3877 = vmax.f32 %v3821, 0.0
        %v3878 = vmax.f32 %v3822, 0.0
        %v3879 = vmax.f32 %v3823, 0.0
        %v3880 = vmax.f32 %v3824, 0.0
        %v3881 = vmax.f32 %v3825, 0.0
        %v3882 = vmax.f32 %v3826, 0.0
        %v3883 = vmax.f32 %v3827, 0.0
        %v3884 = vmax.f32 %v3828, 0.0
        %v3885 = vmax.f32 %v3829, 0.0
        %v3886 = vmax.f32 %v3830, 0.0
        %v3887 = vmax.f32 %v3831, 0.0
        %v3888 = vmax.f32 %v3832, 0.0
        %v3889 = vmax.f32 %v3833, 0.0
        %v3890 = vmax.f32 %v3834, 0.0
        %v3891 = vmax.f32 %v3835, 0.0
        %v3892 = vmax.f32 %v3836, 0.0
        %v3893 = vmax.f32 %v3837, 0.0
        %v3894 = vmax.f32 %v3838, 0.0
        %v3895 = vmax.f32 %v3839, 0.0
        %v3896 = vmax.f32 %v3840, 0.0
        %v3897 = vmax.f32 %v3841, 0.0
        %v3898 = vmax.f32 %v3842, 0.0
        %v3899 = vmax.f32 %v3843, 0.0
        %v3900 = vmax.f32 %v3844, 0.0
        %v3901 = vmax.f32 %v3845, 0.0
        %v3902 = vmax.f32 %v3846, 0.0
        %v3903 = vmax.f32 %v3847, 0.0
        %v3904 = vmax.f32 %v3848, 0.0
        %v3905 = vmax.f32 %v3849, 0.0
        %v3906 = vmax.f32 %v3850, 0.0
        %v3907 = vmax.f32 %v3851, 0.0
        %v3908 = vmax.f32 %v3852, 0.0
        %v3909 = vmax.f32 %v3853, 0.0
        %v3910 = vmax.f32 %v3854, 0.0
        %v3911 = vmax.f32 %v3855, 0.0
        %v3912 = vmax.f32 %v3856, 0.0
        %v3913 = vmax.f32 %v3857, 0.0
        %v3914 = vmax.f32 %v3858, 0.0
        %v3915 = vmax.f32 %v3859, 0.0
        %v3916 = vmax.f32 %v3860, 0.0
        %v3917 = vmax.f32 %v3861, 0.0
        %v3918 = vmax.f32 %v3862, 0.0
        %v3919 = vmax.f32 %v3863, 0.0
        %v3920 = vmax.f32 %v3864, 0.0
        %v3921 = vmax.f32 %v3865, 0.0
        %v3922 = vmax.f32 %v3866, 0.0
        %v3923 = vmax.f32 %v3867, 0.0
        %v3924 = vmax.f32 %v3868, 0.0
        %v3925 = vmax.f32 %v3869, 0.0
        %v3926 = vmax.f32 %v3870, 0.0
        %v3927 = vmax.f32 %v3871, 0.0
        %v3928 = vmax.f32 %v3872, 0.0
        %v3929 = vmax.f32 %v3873, 0.0
        %v3930 = vmax.f32 %v3874, 0.0
        %3987 = vrot.lane.b32.xlu0 %v3875, 120
        %v3988 = vpop.permute.xlu0 %3987
        %3989 = vrot.lane.b32.xlu0 %v3876, 120
        %v3990 = vpop.permute.xlu0 %3989
        %3991 = vrot.lane.b32.xlu0 %v3877, 120
        %v3992 = vpop.permute.xlu0 %3991
        %3993 = vrot.lane.b32.xlu0 %v3878, 120
        %v3994 = vpop.permute.xlu0 %3993
        %3995 = vrot.lane.b32.xlu0 %v3879, 120
        %v3996 = vpop.permute.xlu0 %3995
        %3997 = vrot.lane.b32.xlu0 %v3880, 120
        %v3998 = vpop.permute.xlu0 %3997
        %3999 = vrot.lane.b32.xlu0 %v3881, 120
        %v4000 = vpop.permute.xlu0 %3999
        %4001 = vrot.lane.b32.xlu0 %v3882, 120
        %v4002 = vpop.permute.xlu0 %4001
        %4003 = vrot.lane.b32.xlu0 %v3883, 120
        %v4004 = vpop.permute.xlu0 %4003
        %4005 = vrot.lane.b32.xlu0 %v3884, 120
        %v4006 = vpop.permute.xlu0 %4005
        %4007 = vrot.lane.b32.xlu0 %v3885, 120
        %v4008 = vpop.permute.xlu0 %4007
        %4009 = vrot.lane.b32.xlu0 %v3886, 120
        %v4010 = vpop.permute.xlu0 %4009
        %4011 = vrot.lane.b32.xlu0 %v3887, 120
        %v4012 = vpop.permute.xlu0 %4011
        %4013 = vrot.lane.b32.xlu0 %v3888, 120
        %v4014 = vpop.permute.xlu0 %4013
        %4015 = vrot.lane.b32.xlu0 %v3889, 120
        %v4016 = vpop.permute.xlu0 %4015
        %4017 = vrot.lane.b32.xlu0 %v3890, 120
        %v4018 = vpop.permute.xlu0 %4017
        %4019 = vrot.lane.b32.xlu0 %v3891, 120
        %v4020 = vpop.permute.xlu0 %4019
        %4021 = vrot.lane.b32.xlu0 %v3892, 120
        %v4022 = vpop.permute.xlu0 %4021
        %4023 = vrot.lane.b32.xlu0 %v3893, 120
        %v4024 = vpop.permute.xlu0 %4023
        %4025 = vrot.lane.b32.xlu0 %v3894, 120
        %v4026 = vpop.permute.xlu0 %4025
        %4027 = vrot.lane.b32.xlu0 %v3895, 120
        %v4028 = vpop.permute.xlu0 %4027
        %4029 = vrot.lane.b32.xlu0 %v3896, 120
        %v4030 = vpop.permute.xlu0 %4029
        %4031 = vrot.lane.b32.xlu0 %v3897, 120
        %v4032 = vpop.permute.xlu0 %4031
        %4033 = vrot.lane.b32.xlu0 %v3898, 120
        %v4034 = vpop.permute.xlu0 %4033
        %4035 = vrot.lane.b32.xlu0 %v3899, 120
        %v4036 = vpop.permute.xlu0 %4035
        %4037 = vrot.lane.b32.xlu0 %v3900, 120
        %v4038 = vpop.permute.xlu0 %4037
        %4039 = vrot.lane.b32.xlu0 %v3901, 120
        %v4040 = vpop.permute.xlu0 %4039
        %4041 = vrot.lane.b32.xlu0 %v3902, 120
        %v4042 = vpop.permute.xlu0 %4041
        %4043 = vrot.lane.b32.xlu0 %v3903, 120
        %v4044 = vpop.permute.xlu0 %4043
        %4045 = vrot.lane.b32.xlu0 %v3904, 120
        %v4046 = vpop.permute.xlu0 %4045
        %4047 = vrot.lane.b32.xlu0 %v3905, 120
        %v4048 = vpop.permute.xlu0 %4047
        %4049 = vrot.lane.b32.xlu0 %v3906, 120
        %v4050 = vpop.permute.xlu0 %4049
        %4051 = vrot.lane.b32.xlu0 %v3907, 120
        %v4052 = vpop.permute.xlu0 %4051
        %4053 = vrot.lane.b32.xlu0 %v3908, 120
        %v4054 = vpop.permute.xlu0 %4053
        %4055 = vrot.lane.b32.xlu0 %v3909, 120
        %v4056 = vpop.permute.xlu0 %4055
        %4057 = vrot.lane.b32.xlu0 %v3910, 120
        %v4058 = vpop.permute.xlu0 %4057
        %4059 = vrot.lane.b32.xlu0 %v3911, 120
        %v4060 = vpop.permute.xlu0 %4059
        %4061 = vrot.lane.b32.xlu0 %v3912, 120
        %v4062 = vpop.permute.xlu0 %4061
        %4063 = vrot.lane.b32.xlu0 %v3913, 120
        %v4064 = vpop.permute.xlu0 %4063
        %4065 = vrot.lane.b32.xlu0 %v3914, 120
        %v4066 = vpop.permute.xlu0 %4065
        %4067 = vrot.lane.b32.xlu0 %v3915, 120
        %v4068 = vpop.permute.xlu0 %4067
        %4069 = vrot.lane.b32.xlu0 %v3916, 120
        %v4070 = vpop.permute.xlu0 %4069
        %4071 = vrot.lane.b32.xlu0 %v3917, 120
        %v4072 = vpop.permute.xlu0 %4071
        %4073 = vrot.lane.b32.xlu0 %v3918, 120
        %v4074 = vpop.permute.xlu0 %4073
        %4075 = vrot.lane.b32.xlu0 %v3919, 120
        %v4076 = vpop.permute.xlu0 %4075
        %4077 = vrot.lane.b32.xlu0 %v3920, 120
        %v4078 = vpop.permute.xlu0 %4077
        %4079 = vrot.lane.b32.xlu0 %v3921, 120
        %v4080 = vpop.permute.xlu0 %4079
        %4081 = vrot.lane.b32.xlu0 %v3922, 120
        %v4082 = vpop.permute.xlu0 %4081
        %4083 = vrot.lane.b32.xlu0 %v3923, 120
        %v4084 = vpop.permute.xlu0 %4083
        %4085 = vrot.lane.b32.xlu0 %v3924, 120
        %v4086 = vpop.permute.xlu0 %4085
        %4087 = vrot.lane.b32.xlu0 %v3925, 120
        %v4088 = vpop.permute.xlu0 %4087
        %4089 = vrot.lane.b32.xlu0 %v3926, 120
        %v4090 = vpop.permute.xlu0 %4089
        %4091 = vrot.lane.b32.xlu0 %v3927, 120
        %v4092 = vpop.permute.xlu0 %4091
        %4093 = vrot.lane.b32.xlu0 %v3928, 120
        %v4094 = vpop.permute.xlu0 %4093
        %4095 = vrot.lane.b32.xlu0 %v3929, 120
        %v4096 = vpop.permute.xlu0 %4095
        %4097 = vrot.lane.b32.xlu0 %v3930, 120
        %v4098 = vpop.permute.xlu0 %4097
        %vm4099 = vcmask 982016
        %v4100 = vsel %vm4099, %v3988, %v3990
        %v4101 = vsel %vm4099, %v3992, %v3994
        %v4102 = vsel %vm4099, %v3996, %v3998
        %v4103 = vsel %vm4099, %v4000, %v4002
        %v4104 = vsel %vm4099, %v4004, %v4006
        %v4105 = vsel %vm4099, %v4008, %v4010
        %v4106 = vsel %vm4099, %v4012, %v4014
        %v4107 = vsel %vm4099, %v4016, %v4018
        %v4108 = vsel %vm4099, %v4020, %v4022
        %v4109 = vsel %vm4099, %v4024, %v4026
        %v4110 = vsel %vm4099, %v4028, %v4030
        %v4111 = vsel %vm4099, %v4032, %v4034
        %v4112 = vsel %vm4099, %v4036, %v4038
        %v4113 = vsel %vm4099, %v4040, %v4042
        %v4114 = vsel %vm4099, %v4044, %v4046
        %v4115 = vsel %vm4099, %v4048, %v4050
        %v4116 = vsel %vm4099, %v4052, %v4054
        %v4117 = vsel %vm4099, %v4056, %v4058
        %v4118 = vsel %vm4099, %v4060, %v4062
        %v4119 = vsel %vm4099, %v4064, %v4066
        %v4120 = vsel %vm4099, %v4068, %v4070
        %v4121 = vsel %vm4099, %v4072, %v4074
        %v4122 = vsel %vm4099, %v4076, %v4078
        %v4123 = vsel %vm4099, %v4080, %v4082
        %v4124 = vsel %vm4099, %v4084, %v4086
        %v4125 = vsel %vm4099, %v4088, %v4090
        %v4126 = vsel %vm4099, %v4092, %v4094
        %v4127 = vsel %vm4099, %v4096, %v4098
        %v4184 = vmax.f32 %v3875, %v4100
        %v4185 = vmax.f32 %v3876, %v3990
        %v4186 = vmax.f32 %v3877, %v4101
        %v4187 = vmax.f32 %v3878, %v3994
        %v4188 = vmax.f32 %v3879, %v4102
        %v4189 = vmax.f32 %v3880, %v3998
        %v4190 = vmax.f32 %v3881, %v4103
        %v4191 = vmax.f32 %v3882, %v4002
        %v4192 = vmax.f32 %v3883, %v4104
        %v4193 = vmax.f32 %v3884, %v4006
        %v4194 = vmax.f32 %v3885, %v4105
        %v4195 = vmax.f32 %v3886, %v4010
        %v4196 = vmax.f32 %v3887, %v4106
        %v4197 = vmax.f32 %v3888, %v4014
        %v4198 = vmax.f32 %v3889, %v4107
        %v4199 = vmax.f32 %v3890, %v4018
        %v4200 = vmax.f32 %v3891, %v4108
        %v4201 = vmax.f32 %v3892, %v4022
        %v4202 = vmax.f32 %v3893, %v4109
        %v4203 = vmax.f32 %v3894, %v4026
        %v4204 = vmax.f32 %v3895, %v4110
        %v4205 = vmax.f32 %v3896, %v4030
        %v4206 = vmax.f32 %v3897, %v4111
        %v4207 = vmax.f32 %v3898, %v4034
        %v4208 = vmax.f32 %v3899, %v4112
        %v4209 = vmax.f32 %v3900, %v4038
        %v4210 = vmax.f32 %v3901, %v4113
        %v4211 = vmax.f32 %v3902, %v4042
        %v4212 = vmax.f32 %v3903, %v4114
        %v4213 = vmax.f32 %v3904, %v4046
        %v4214 = vmax.f32 %v3905, %v4115
        %v4215 = vmax.f32 %v3906, %v4050
        %v4216 = vmax.f32 %v3907, %v4116
        %v4217 = vmax.f32 %v3908, %v4054
        %v4218 = vmax.f32 %v3909, %v4117
        %v4219 = vmax.f32 %v3910, %v4058
        %v4220 = vmax.f32 %v3911, %v4118
        %v4221 = vmax.f32 %v3912, %v4062
        %v4222 = vmax.f32 %v3913, %v4119
        %v4223 = vmax.f32 %v3914, %v4066
        %v4224 = vmax.f32 %v3915, %v4120
        %v4225 = vmax.f32 %v3916, %v4070
        %v4226 = vmax.f32 %v3917, %v4121
        %v4227 = vmax.f32 %v3918, %v4074
        %v4228 = vmax.f32 %v3919, %v4122
        %v4229 = vmax.f32 %v3920, %v4078
        %v4230 = vmax.f32 %v3921, %v4123
        %v4231 = vmax.f32 %v3922, %v4082
        %v4232 = vmax.f32 %v3923, %v4124
        %v4233 = vmax.f32 %v3924, %v4086
        %v4234 = vmax.f32 %v3925, %v4125
        %v4235 = vmax.f32 %v3926, %v4090
        %v4236 = vmax.f32 %v3927, %v4126
        %v4237 = vmax.f32 %v3928, %v4094
        %v4238 = vmax.f32 %v3929, %v4127
        %v4239 = vmax.f32 %v3930, %v4098
        %v4240 = vpack.c.bf16 %v4186, %v4184
        %v4241 = vpack.c.bf16 %v4187, %v4185
        %v4242 = vpack.c.bf16 %v4190, %v4188
        %v4243 = vpack.c.bf16 %v4191, %v4189
        %v4244 = vpack.c.bf16 %v4194, %v4192
        %v4245 = vpack.c.bf16 %v4195, %v4193
        %v4246 = vpack.c.bf16 %v4198, %v4196
        %v4247 = vpack.c.bf16 %v4199, %v4197
        %v4248 = vpack.c.bf16 %v4202, %v4200
        %v4249 = vpack.c.bf16 %v4203, %v4201
        %v4250 = vpack.c.bf16 %v4206, %v4204
        %v4251 = vpack.c.bf16 %v4207, %v4205
        %v4252 = vpack.c.bf16 %v4210, %v4208
        %v4253 = vpack.c.bf16 %v4211, %v4209
        %v4254 = vpack.c.bf16 %v4214, %v4212
        %v4255 = vpack.c.bf16 %v4215, %v4213
        %v4256 = vpack.c.bf16 %v4218, %v4216
        %v4257 = vpack.c.bf16 %v4219, %v4217
        %v4258 = vpack.c.bf16 %v4222, %v4220
        %v4259 = vpack.c.bf16 %v4223, %v4221
        %v4260 = vpack.c.bf16 %v4226, %v4224
        %v4261 = vpack.c.bf16 %v4227, %v4225
        %v4262 = vpack.c.bf16 %v4230, %v4228
        %v4263 = vpack.c.bf16 %v4231, %v4229
        %v4264 = vpack.c.bf16 %v4234, %v4232
        %v4265 = vpack.c.bf16 %v4235, %v4233
        %v4266 = vpack.c.bf16 %v4238, %v4236
        %v4267 = vpack.c.bf16 %v4239, %v4237
        %v4268 = vld [vmem:[%s4] sm:$0xff]
        %v4269 = vld [vmem:[%s4 + $0x8] sm:$0xff]
        %v4270 = vld [vmem:[%s4 + $0x10] sm:$0xff]
        %v4271 = vld [vmem:[%s4 + $0x18] sm:$0xff]
        %v4272 = vld [vmem:[%s4 + $0x20] sm:$0xff]
        %v4273 = vld [vmem:[%s4 + $0x28] sm:$0xff]
        %v4274 = vld [vmem:[%s4 + $0x30] sm:$0xff]
        %v4275 = vld [vmem:[%s4 + $0x38] sm:$0xff]
        %v4276 = vld [vmem:[%s4 + $0x40] sm:$0xff]
        %v4277 = vld [vmem:[%s4 + $0x48] sm:$0xff]
        %v4278 = vld [vmem:[%s4 + $0x50] sm:$0xff]
        %v4279 = vld [vmem:[%s4 + $0x58] sm:$0xff]
        %v4280 = vld [vmem:[%s4 + $0x60] sm:$0xff]
        %v4281 = vld [vmem:[%s4 + $0x68] sm:$0xff]
        %v4296 = vunpack.c.l.b16 %v4268
        %v4297 = vunpack.c.h.b16 %v4268
        %v4298 = vunpack.c.l.b16 %v4269
        %v4299 = vunpack.c.h.b16 %v4269
        %v4300 = vunpack.c.l.b16 %v4270
        %v4301 = vunpack.c.h.b16 %v4270
        %v4302 = vunpack.c.l.b16 %v4271
        %v4303 = vunpack.c.h.b16 %v4271
        %v4304 = vunpack.c.l.b16 %v4272
        %v4305 = vunpack.c.h.b16 %v4272
        %v4306 = vunpack.c.l.b16 %v4273
        %v4307 = vunpack.c.h.b16 %v4273
        %v4308 = vunpack.c.l.b16 %v4274
        %v4309 = vunpack.c.h.b16 %v4274
        %v4310 = vunpack.c.l.b16 %v4275
        %v4311 = vunpack.c.h.b16 %v4275
        %v4312 = vunpack.c.l.b16 %v4276
        %v4313 = vunpack.c.h.b16 %v4276
        %v4314 = vunpack.c.l.b16 %v4277
        %v4315 = vunpack.c.h.b16 %v4277
        %v4316 = vunpack.c.l.b16 %v4278
        %v4317 = vunpack.c.h.b16 %v4278
        %v4318 = vunpack.c.l.b16 %v4279
        %v4319 = vunpack.c.h.b16 %v4279
        %v4320 = vunpack.c.l.b16 %v4280
        %v4321 = vunpack.c.h.b16 %v4280
        %v4322 = vunpack.c.l.b16 %v4281
        %v4323 = vunpack.c.h.b16 %v4281
        %v4324 = vpack.c.b16 %v4298, %v4296
        %v4325 = vpack.c.b16 %v4299, %v4297
        %v4326 = vpack.c.b16 %v4302, %v4300
        %v4327 = vpack.c.b16 %v4303, %v4301
        %v4328 = vpack.c.b16 %v4306, %v4304
        %v4329 = vpack.c.b16 %v4307, %v4305
        %v4330 = vpack.c.b16 %v4310, %v4308
        %v4331 = vpack.c.b16 %v4311, %v4309
        %v4332 = vpack.c.b16 %v4314, %v4312
        %v4333 = vpack.c.b16 %v4315, %v4313
        %v4334 = vpack.c.b16 %v4318, %v4316
        %v4335 = vpack.c.b16 %v4319, %v4317
        %v4336 = vpack.c.b16 %v4322, %v4320
        %v4337 = vpack.c.b16 %v4323, %v4321
        %vm4345 = vcmask 785408
        %v4347 = vsel %vm4345, %v4325, 0
        %v4350 = vsel %vm4345, %v4327, 0
        %v4353 = vsel %vm4345, %v4329, 0
        %v4356 = vsel %vm4345, %v4331, 0
        %v4359 = vsel %vm4345, %v4333, 0
        %v4362 = vsel %vm4345, %v4335, 0
        %v4365 = vsel %vm4345, %v4337, 0
        %4367 = vmatprep.subr.bf16.mxu0 %v4255
        %4368 = vmatpush1.bf16.msra.mxu0 %v4254
        %4369 = vmatprep.subr.bf16.mxu0 %v4253
        %4370 = vmatpush1.bf16.msra.mxu0 %v4252
        %4371 = vmatprep.subr.bf16.mxu0 %v4251
        %4372 = vmatpush1.bf16.msra.mxu0 %v4250
        %4373 = vmatprep.subr.bf16.mxu0 %v4249
        %4374 = vmatpush1.bf16.msra.mxu0 %v4248
        %4375 = vmatprep.subr.bf16.mxu0 %v4247
        %4376 = vmatpush1.bf16.msra.mxu0 %v4246
        %4377 = vmatprep.subr.bf16.mxu0 %v4245
        %4378 = vmatpush1.bf16.msra.mxu0 %v4244
        %4379 = vmatprep.subr.bf16.mxu0 %v4243
        %4380 = vmatpush1.bf16.msra.mxu0 %v4242
        %4381 = vmatprep.subr.bf16.mxu0 %v4241
        %4382 = vmatpush1.bf16.msra.mxu0 %v4240
        %4383 = vmatprep.subr.bf16.mxu0 0
        %4384 = vmatpush2.bf16.msra.mxu0 0
        %4385 = vmatprep.subr.bf16.mxu0 0
        %4386 = vmatpush2.bf16.msra.mxu0 0
        %4387 = vmatprep.subr.bf16.mxu0 %v4267
        %4388 = vmatpush2.bf16.msra.mxu0 %v4266
        %4389 = vmatprep.subr.bf16.mxu0 %v4265
        %4390 = vmatpush2.bf16.msra.mxu0 %v4264
        %4391 = vmatprep.subr.bf16.mxu0 %v4263
        %4392 = vmatpush2.bf16.msra.mxu0 %v4262
        %4393 = vmatprep.subr.bf16.mxu0 %v4261
        %4394 = vmatpush2.bf16.msra.mxu0 %v4260
        %4395 = vmatprep.subr.bf16.mxu0 %v4259
        %4396 = vmatpush2.bf16.msra.mxu0 %v4258
        %4397 = vmatprep.subr.bf16.mxu0 %v4257
        %4398 = vmatpush2.bf16.msra.mxu0 %v4256
        %4399 = vmatprep.mubr.bf16.mxu0 %v4347
        %4400 = vmatmul.mubr.bf16.gmra.mxu0 %v4324
        %v4401 = vpop.f32.mrf.mxu0
        %v4402 = vadd.f32 0.0, %v4401
        %v4403 = vpop.f32.mrf.mxu0
        %v4404 = vadd.f32 0.0, %v4403
        %v4405 = vpop.f32.mrf.mxu0
        %v4406 = vadd.f32 0.0, %v4405
        %v4407 = vpop.f32.mrf.mxu0
        %v4408 = vadd.f32 0.0, %v4407
        %4409 = vmatprep.mubr.bf16.mxu0 %v4350
        %4410 = vmatmul.mubr.bf16.gmra.mxu0 %v4326
        %v4411 = vpop.f32.mrf.mxu0
        %v4412 = vadd.f32 0.0, %v4411
        %v4413 = vpop.f32.mrf.mxu0
        %v4414 = vadd.f32 0.0, %v4413
        %v4415 = vpop.f32.mrf.mxu0
        %v4416 = vadd.f32 0.0, %v4415
        %v4417 = vpop.f32.mrf.mxu0
        %v4418 = vadd.f32 0.0, %v4417
        %4419 = vmatprep.mubr.bf16.mxu0 %v4353
        %4420 = vmatmul.mubr.bf16.gmra.mxu0 %v4328
        %v4421 = vpop.f32.mrf.mxu0
        %v4422 = vadd.f32 0.0, %v4421
        %v4423 = vpop.f32.mrf.mxu0
        %v4424 = vadd.f32 0.0, %v4423
        %v4425 = vpop.f32.mrf.mxu0
        %v4426 = vadd.f32 0.0, %v4425
        %v4427 = vpop.f32.mrf.mxu0
        %v4428 = vadd.f32 0.0, %v4427
        %4429 = vmatprep.mubr.bf16.mxu0 %v4356
        %4430 = vmatmul.mubr.bf16.gmra.mxu0 %v4330
        %v4431 = vpop.f32.mrf.mxu0
        %v4432 = vadd.f32 0.0, %v4431
        %v4433 = vpop.f32.mrf.mxu0
        %v4434 = vadd.f32 0.0, %v4433
        %v4435 = vpop.f32.mrf.mxu0
        %v4436 = vadd.f32 0.0, %v4435
        %v4437 = vpop.f32.mrf.mxu0
        %v4438 = vadd.f32 0.0, %v4437
        %4439 = vmatprep.mubr.bf16.mxu0 %v4359
        %4440 = vmatmul.mubr.bf16.gmra.mxu0 %v4332
        %v4441 = vpop.f32.mrf.mxu0
        %v4442 = vadd.f32 0.0, %v4441
        %v4443 = vpop.f32.mrf.mxu0
        %v4444 = vadd.f32 0.0, %v4443
        %v4445 = vpop.f32.mrf.mxu0
        %v4446 = vadd.f32 0.0, %v4445
        %v4447 = vpop.f32.mrf.mxu0
        %v4448 = vadd.f32 0.0, %v4447
        %4449 = vmatprep.mubr.bf16.mxu0 %v4362
        %4450 = vmatmul.mubr.bf16.gmra.mxu0 %v4334
        %v4451 = vpop.f32.mrf.mxu0
        %v4452 = vadd.f32 0.0, %v4451
        %v4453 = vpop.f32.mrf.mxu0
        %v4454 = vadd.f32 0.0, %v4453
        %v4455 = vpop.f32.mrf.mxu0
        %v4456 = vadd.f32 0.0, %v4455
        %v4457 = vpop.f32.mrf.mxu0
        %v4458 = vadd.f32 0.0, %v4457
        %4459 = vmatprep.mubr.bf16.mxu0 %v4365
        %4460 = vmatmul.mubr.bf16.gmra.mxu0 %v4336
        %v4461 = vpop.f32.mrf.mxu0
        %v4462 = vadd.f32 0.0, %v4461
        %v4463 = vpop.f32.mrf.mxu0
        %v4464 = vadd.f32 0.0, %v4463
        %v4465 = vpop.f32.mrf.mxu0
        %v4466 = vadd.f32 0.0, %v4465
        %v4467 = vpop.f32.mrf.mxu0
        %v4468 = vadd.f32 0.0, %v4467
        %4469 = vdwg.mxu0
        %s4470 = scalar_lea.vmem %s4, 112
        %v4471 = vld [vmem:[%s4470] sm:$0xff]
        %v4472 = vld [vmem:[%s4470 + $0x8] sm:$0xff]
        %v4473 = vld [vmem:[%s4470 + $0x10] sm:$0xff]
        %v4474 = vld [vmem:[%s4470 + $0x18] sm:$0xff]
        %v4475 = vld [vmem:[%s4470 + $0x20] sm:$0xff]
        %v4476 = vld [vmem:[%s4470 + $0x28] sm:$0xff]
        %v4477 = vld [vmem:[%s4470 + $0x30] sm:$0xff]
        %v4478 = vld [vmem:[%s4470 + $0x38] sm:$0xff]
        %v4479 = vld [vmem:[%s4470 + $0x40] sm:$0xff]
        %v4480 = vld [vmem:[%s4470 + $0x48] sm:$0xff]
        %v4481 = vld [vmem:[%s4470 + $0x50] sm:$0xff]
        %v4482 = vld [vmem:[%s4470 + $0x58] sm:$0xff]
        %v4483 = vld [vmem:[%s4470 + $0x60] sm:$0xff]
        %v4484 = vld [vmem:[%s4470 + $0x68] sm:$0xff]
        %v4499 = vunpack.c.l.b16 %v4471
        %v4500 = vunpack.c.h.b16 %v4471
        %v4501 = vunpack.c.l.b16 %v4472
        %v4502 = vunpack.c.h.b16 %v4472
        %v4503 = vunpack.c.l.b16 %v4473
        %v4504 = vunpack.c.h.b16 %v4473
        %v4505 = vunpack.c.l.b16 %v4474
        %v4506 = vunpack.c.h.b16 %v4474
        %v4507 = vunpack.c.l.b16 %v4475
        %v4508 = vunpack.c.h.b16 %v4475
        %v4509 = vunpack.c.l.b16 %v4476
        %v4510 = vunpack.c.h.b16 %v4476
        %v4511 = vunpack.c.l.b16 %v4477
        %v4512 = vunpack.c.h.b16 %v4477
        %v4513 = vunpack.c.l.b16 %v4478
        %v4514 = vunpack.c.h.b16 %v4478
        %v4515 = vunpack.c.l.b16 %v4479
        %v4516 = vunpack.c.h.b16 %v4479
        %v4517 = vunpack.c.l.b16 %v4480
        %v4518 = vunpack.c.h.b16 %v4480
        %v4519 = vunpack.c.l.b16 %v4481
        %v4520 = vunpack.c.h.b16 %v4481
        %v4521 = vunpack.c.l.b16 %v4482
        %v4522 = vunpack.c.h.b16 %v4482
        %v4523 = vunpack.c.l.b16 %v4483
        %v4524 = vunpack.c.h.b16 %v4483
        %v4525 = vunpack.c.l.b16 %v4484
        %v4526 = vunpack.c.h.b16 %v4484
        %v4527 = vpack.c.b16 %v4501, %v4499
        %v4528 = vpack.c.b16 %v4502, %v4500
        %v4529 = vpack.c.b16 %v4505, %v4503
        %v4530 = vpack.c.b16 %v4506, %v4504
        %v4531 = vpack.c.b16 %v4509, %v4507
        %v4532 = vpack.c.b16 %v4510, %v4508
        %v4533 = vpack.c.b16 %v4513, %v4511
        %v4534 = vpack.c.b16 %v4514, %v4512
        %v4535 = vpack.c.b16 %v4517, %v4515
        %v4536 = vpack.c.b16 %v4518, %v4516
        %v4537 = vpack.c.b16 %v4521, %v4519
        %v4538 = vpack.c.b16 %v4522, %v4520
        %v4539 = vpack.c.b16 %v4525, %v4523
        %v4540 = vpack.c.b16 %v4526, %v4524
        %v4549 = vsel %vm4345, %v4528, 0
        %v4552 = vsel %vm4345, %v4530, 0
        %v4555 = vsel %vm4345, %v4532, 0
        %v4558 = vsel %vm4345, %v4534, 0
        %v4561 = vsel %vm4345, %v4536, 0
        %v4564 = vsel %vm4345, %v4538, 0
        %v4567 = vsel %vm4345, %v4540, 0
        %4569 = vmatprep.subr.bf16.mxu0 %v4255
        %4570 = vmatpush1.bf16.msra.mxu0 %v4254
        %4571 = vmatprep.subr.bf16.mxu0 %v4253
        %4572 = vmatpush1.bf16.msra.mxu0 %v4252
        %4573 = vmatprep.subr.bf16.mxu0 %v4251
        %4574 = vmatpush1.bf16.msra.mxu0 %v4250
        %4575 = vmatprep.subr.bf16.mxu0 %v4249
        %4576 = vmatpush1.bf16.msra.mxu0 %v4248
        %4577 = vmatprep.subr.bf16.mxu0 %v4247
        %4578 = vmatpush1.bf16.msra.mxu0 %v4246
        %4579 = vmatprep.subr.bf16.mxu0 %v4245
        %4580 = vmatpush1.bf16.msra.mxu0 %v4244
        %4581 = vmatprep.subr.bf16.mxu0 %v4243
        %4582 = vmatpush1.bf16.msra.mxu0 %v4242
        %4583 = vmatprep.subr.bf16.mxu0 %v4241
        %4584 = vmatpush1.bf16.msra.mxu0 %v4240
        %4585 = vmatprep.subr.bf16.mxu0 0
        %4586 = vmatpush2.bf16.msra.mxu0 0
        %4587 = vmatprep.subr.bf16.mxu0 0
        %4588 = vmatpush2.bf16.msra.mxu0 0
        %4589 = vmatprep.subr.bf16.mxu0 %v4267
        %4590 = vmatpush2.bf16.msra.mxu0 %v4266
        %4591 = vmatprep.subr.bf16.mxu0 %v4265
        %4592 = vmatpush2.bf16.msra.mxu0 %v4264
        %4593 = vmatprep.subr.bf16.mxu0 %v4263
        %4594 = vmatpush2.bf16.msra.mxu0 %v4262
        %4595 = vmatprep.subr.bf16.mxu0 %v4261
        %4596 = vmatpush2.bf16.msra.mxu0 %v4260
        %4597 = vmatprep.subr.bf16.mxu0 %v4259
        %4598 = vmatpush2.bf16.msra.mxu0 %v4258
        %4599 = vmatprep.subr.bf16.mxu0 %v4257
        %4600 = vmatpush2.bf16.msra.mxu0 %v4256
        %4601 = vmatprep.mubr.bf16.mxu0 %v4549
        %4602 = vmatmul.mubr.bf16.gmra.mxu0 %v4527
        %v4603 = vpop.f32.mrf.mxu0
        %v4604 = vadd.f32 0.0, %v4603
        %v4605 = vpop.f32.mrf.mxu0
        %v4606 = vadd.f32 0.0, %v4605
        %v4607 = vpop.f32.mrf.mxu0
        %v4608 = vadd.f32 0.0, %v4607
        %v4609 = vpop.f32.mrf.mxu0
        %v4610 = vadd.f32 0.0, %v4609
        %4611 = vmatprep.mubr.bf16.mxu0 %v4552
        %4612 = vmatmul.mubr.bf16.gmra.mxu0 %v4529
        %v4613 = vpop.f32.mrf.mxu0
        %v4614 = vadd.f32 0.0, %v4613
        %v4615 = vpop.f32.mrf.mxu0
        %v4616 = vadd.f32 0.0, %v4615
        %v4617 = vpop.f32.mrf.mxu0
        %v4618 = vadd.f32 0.0, %v4617
        %v4619 = vpop.f32.mrf.mxu0
        %v4620 = vadd.f32 0.0, %v4619
        %4621 = vmatprep.mubr.bf16.mxu0 %v4555
        %4622 = vmatmul.mubr.bf16.gmra.mxu0 %v4531
        %v4623 = vpop.f32.mrf.mxu0
        %v4624 = vadd.f32 0.0, %v4623
        %v4625 = vpop.f32.mrf.mxu0
        %v4626 = vadd.f32 0.0, %v4625
        %v4627 = vpop.f32.mrf.mxu0
        %v4628 = vadd.f32 0.0, %v4627
        %v4629 = vpop.f32.mrf.mxu0
        %v4630 = vadd.f32 0.0, %v4629
        %4631 = vmatprep.mubr.bf16.mxu0 %v4558
        %4632 = vmatmul.mubr.bf16.gmra.mxu0 %v4533
        %v4633 = vpop.f32.mrf.mxu0
        %v4634 = vadd.f32 0.0, %v4633
        %v4635 = vpop.f32.mrf.mxu0
        %v4636 = vadd.f32 0.0, %v4635
        %v4637 = vpop.f32.mrf.mxu0
        %v4638 = vadd.f32 0.0, %v4637
        %v4639 = vpop.f32.mrf.mxu0
        %v4640 = vadd.f32 0.0, %v4639
        %4641 = vmatprep.mubr.bf16.mxu0 %v4561
        %4642 = vmatmul.mubr.bf16.gmra.mxu0 %v4535
        %v4643 = vpop.f32.mrf.mxu0
        %v4644 = vadd.f32 0.0, %v4643
        %v4645 = vpop.f32.mrf.mxu0
        %v4646 = vadd.f32 0.0, %v4645
        %v4647 = vpop.f32.mrf.mxu0
        %v4648 = vadd.f32 0.0, %v4647
        %v4649 = vpop.f32.mrf.mxu0
        %v4650 = vadd.f32 0.0, %v4649
        %4651 = vmatprep.mubr.bf16.mxu0 %v4564
        %4652 = vmatmul.mubr.bf16.gmra.mxu0 %v4537
        %v4653 = vpop.f32.mrf.mxu0
        %v4654 = vadd.f32 0.0, %v4653
        %v4655 = vpop.f32.mrf.mxu0
        %v4656 = vadd.f32 0.0, %v4655
        %v4657 = vpop.f32.mrf.mxu0
        %v4658 = vadd.f32 0.0, %v4657
        %v4659 = vpop.f32.mrf.mxu0
        %v4660 = vadd.f32 0.0, %v4659
        %4661 = vmatprep.mubr.bf16.mxu0 %v4567
        %4662 = vmatmul.mubr.bf16.gmra.mxu0 %v4539
        %v4663 = vpop.f32.mrf.mxu0
        %v4664 = vadd.f32 0.0, %v4663
        %v4665 = vpop.f32.mrf.mxu0
        %v4666 = vadd.f32 0.0, %v4665
        %v4667 = vpop.f32.mrf.mxu0
        %v4668 = vadd.f32 0.0, %v4667
        %v4669 = vpop.f32.mrf.mxu0
        %v4670 = vadd.f32 0.0, %v4669
        %4671 = vdwg.mxu0
        %v4672 = vmax.f32 %v4402, %v4604
        %v4673 = vmax.f32 %v4404, %v4606
        %v4674 = vmax.f32 %v4406, %v4608
        %v4675 = vmax.f32 %v4408, %v4610
        %v4676 = vmax.f32 %v4412, %v4614
        %v4677 = vmax.f32 %v4414, %v4616
        %v4678 = vmax.f32 %v4416, %v4618
        %v4679 = vmax.f32 %v4418, %v4620
        %v4680 = vmax.f32 %v4422, %v4624
        %v4681 = vmax.f32 %v4424, %v4626
        %v4682 = vmax.f32 %v4426, %v4628
        %v4683 = vmax.f32 %v4428, %v4630
        %v4684 = vmax.f32 %v4432, %v4634
        %v4685 = vmax.f32 %v4434, %v4636
        %v4686 = vmax.f32 %v4436, %v4638
        %v4687 = vmax.f32 %v4438, %v4640
        %v4688 = vmax.f32 %v4442, %v4644
        %v4689 = vmax.f32 %v4444, %v4646
        %v4690 = vmax.f32 %v4446, %v4648
        %v4691 = vmax.f32 %v4448, %v4650
        %v4692 = vmax.f32 %v4452, %v4654
        %v4693 = vmax.f32 %v4454, %v4656
        %v4694 = vmax.f32 %v4456, %v4658
        %v4695 = vmax.f32 %v4458, %v4660
        %v4696 = vmax.f32 %v4462, %v4664
        %v4697 = vmax.f32 %v4464, %v4666
        %v4698 = vmax.f32 %v4466, %v4668
        %v4699 = vmax.f32 %v4468, %v4670
        %v4700 = vpack.c.bf16 %v4674, %v4672
        %v4701 = vpack.c.bf16 %v4675, %v4673
        %v4702 = vpack.c.bf16 %v4678, %v4676
        %v4703 = vpack.c.bf16 %v4679, %v4677
        %v4704 = vpack.c.bf16 %v4682, %v4680
        %v4705 = vpack.c.bf16 %v4683, %v4681
        %v4706 = vpack.c.bf16 %v4686, %v4684
        %v4707 = vpack.c.bf16 %v4687, %v4685
        %v4708 = vpack.c.bf16 %v4690, %v4688
        %v4709 = vpack.c.bf16 %v4691, %v4689
        %v4710 = vpack.c.bf16 %v4694, %v4692
        %v4711 = vpack.c.bf16 %v4695, %v4693
        %v4712 = vpack.c.bf16 %v4698, %v4696
        %v4713 = vpack.c.bf16 %v4699, %v4697
        %v4714 = vld [vmem:[%s7] sm:$0xf]
        %v4715 = vld [vmem:[%s7 + $0x4] sm:$0xf]
        %v4716 = vld [vmem:[%s7 + $0x8] sm:$0xf]
        %v4717 = vld [vmem:[%s7 + $0xc] sm:$0xf]
        %v4718 = vld [vmem:[%s7 + $0x10] sm:$0xf]
        %v4719 = vld [vmem:[%s7 + $0x14] sm:$0xf]
        %v4720 = vld [vmem:[%s7 + $0x18] sm:$0xf]
        %v4721 = vld [vmem:[%s7 + $0x1c] sm:$0xf]
        %v4722 = vld [vmem:[%s7 + $0x20] sm:$0xf]
        %v4723 = vld [vmem:[%s7 + $0x24] sm:$0xf]
        %v4734 = vunpack.c.l.b16 %v4714
        %v4735 = vunpack.c.l.b16 %v4715
        %v4736 = vunpack.c.l.b16 %v4716
        %v4737 = vunpack.c.l.b16 %v4717
        %v4738 = vunpack.c.l.b16 %v4718
        %v4739 = vunpack.c.l.b16 %v4719
        %v4740 = vunpack.c.l.b16 %v4720
        %v4741 = vunpack.c.l.b16 %v4721
        %v4742 = vunpack.c.l.b16 %v4722
        %v4743 = vunpack.c.l.b16 %v4723
        %v4744 = vpack.c.b16 %v4735, %v4734
        %v4745 = vpack.c.b16 %v4737, %v4736
        %v4746 = vpack.c.b16 %v4739, %v4738
        %v4747 = vpack.c.b16 %v4741, %v4740
        %v4748 = vpack.c.b16 %v4743, %v4742
        %vm4749 = vcmask 916480
        %v4751 = vsel %vm4749, %v4744, 0
        %v4754 = vsel %vm4749, %v4745, 0
        %v4757 = vsel %vm4749, %v4746, 0
        %v4760 = vsel %vm4749, %v4747, 0
        %v4763 = vsel %vm4749, %v4748, 0
        %4765 = vmatprep.subr.bf16.mxu0 0
        %4766 = vmatpush1.bf16.msra.mxu0 0
        %4767 = vmatprep.subr.bf16.mxu0 %v4713
        %4768 = vmatpush1.bf16.msra.mxu0 %v4712
        %4769 = vmatprep.subr.bf16.mxu0 %v4711
        %4770 = vmatpush1.bf16.msra.mxu0 %v4710
        %4771 = vmatprep.subr.bf16.mxu0 %v4709
        %4772 = vmatpush1.bf16.msra.mxu0 %v4708
        %4773 = vmatprep.subr.bf16.mxu0 %v4707
        %4774 = vmatpush1.bf16.msra.mxu0 %v4706
        %4775 = vmatprep.subr.bf16.mxu0 %v4705
        %4776 = vmatpush1.bf16.msra.mxu0 %v4704
        %4777 = vmatprep.subr.bf16.mxu0 %v4703
        %4778 = vmatpush1.bf16.msra.mxu0 %v4702
        %4779 = vmatprep.subr.bf16.mxu0 %v4701
        %4780 = vmatpush1.bf16.msra.mxu0 %v4700
        %4781 = vmatprep.subr.bf16.mxu0 0
        %4782 = vmatpush2.bf16.msra.mxu0 0
        %4783 = vmatprep.subr.bf16.mxu0 0
        %4784 = vmatpush2.bf16.msra.mxu0 0
        %4785 = vmatprep.subr.bf16.mxu0 0
        %4786 = vmatpush2.bf16.msra.mxu0 0
        %4787 = vmatprep.subr.bf16.mxu0 0
        %4788 = vmatpush2.bf16.msra.mxu0 0
        %4789 = vmatprep.subr.bf16.mxu0 0
        %4790 = vmatpush2.bf16.msra.mxu0 0
        %4791 = vmatprep.subr.bf16.mxu0 0
        %4792 = vmatpush2.bf16.msra.mxu0 0
        %4793 = vmatprep.subr.bf16.mxu0 0
        %4794 = vmatpush2.bf16.msra.mxu0 0
        %4795 = vmatprep.subr.bf16.mxu0 0
        %4796 = vmatpush2.bf16.msra.mxu0 0
        %4797 = vmatprep.mubr.bf16.mxu0 0
        %4798 = vmatmul.mubr.bf16.gmra.mxu0 %v4751
        %v4799 = vpop.f32.mrf.mxu0
        %v4800 = vadd.f32 0.0, %v4799
        %v4801 = vpop.f32.mrf.mxu0
        %v4802 = vadd.f32 0.0, %v4801
        %v4803 = vpop.f32.mrf.mxu0
        %v4804 = vadd.f32 0.0, %v4803
        %v4805 = vpop.f32.mrf.mxu0
        %v4806 = vadd.f32 0.0, %v4805
        %4807 = vmatprep.mubr.bf16.mxu0 0
        %4808 = vmatmul.mubr.bf16.gmra.mxu0 %v4754
        %v4809 = vpop.f32.mrf.mxu0
        %v4810 = vadd.f32 0.0, %v4809
        %v4811 = vpop.f32.mrf.mxu0
        %v4812 = vadd.f32 0.0, %v4811
        %v4813 = vpop.f32.mrf.mxu0
        %v4814 = vadd.f32 0.0, %v4813
        %v4815 = vpop.f32.mrf.mxu0
        %v4816 = vadd.f32 0.0, %v4815
        %4817 = vmatprep.mubr.bf16.mxu0 0
        %4818 = vmatmul.mubr.bf16.gmra.mxu0 %v4757
        %v4819 = vpop.f32.mrf.mxu0
        %v4820 = vadd.f32 0.0, %v4819
        %v4821 = vpop.f32.mrf.mxu0
        %v4822 = vadd.f32 0.0, %v4821
        %v4823 = vpop.f32.mrf.mxu0
        %v4824 = vadd.f32 0.0, %v4823
        %v4825 = vpop.f32.mrf.mxu0
        %v4826 = vadd.f32 0.0, %v4825
        %4827 = vmatprep.mubr.bf16.mxu0 0
        %4828 = vmatmul.mubr.bf16.gmra.mxu0 %v4760
        %v4829 = vpop.f32.mrf.mxu0
        %v4830 = vadd.f32 0.0, %v4829
        %v4831 = vpop.f32.mrf.mxu0
        %v4832 = vadd.f32 0.0, %v4831
        %v4833 = vpop.f32.mrf.mxu0
        %v4834 = vadd.f32 0.0, %v4833
        %v4835 = vpop.f32.mrf.mxu0
        %v4836 = vadd.f32 0.0, %v4835
        %4837 = vmatprep.mubr.bf16.mxu0 0
        %4838 = vmatmul.mubr.bf16.gmra.mxu0 %v4763
        %v4839 = vpop.f32.mrf.mxu0
        %v4840 = vadd.f32 0.0, %v4839
        %v4841 = vpop.f32.mrf.mxu0
        %v4842 = vadd.f32 0.0, %v4841
        %v4843 = vpop.f32.mrf.mxu0
        %v4844 = vadd.f32 0.0, %v4843
        %v4845 = vpop.f32.mrf.mxu0
        %v4846 = vadd.f32 0.0, %v4845
        %4847 = vdwg.mxu0
        %v4848 = vpack.c.bf16 %v4804, %v4800
        %v4849 = vpack.c.bf16 %v4806, %v4802
        %v4850 = vpack.c.bf16 %v4814, %v4810
        %v4851 = vpack.c.bf16 %v4816, %v4812
        %v4852 = vpack.c.bf16 %v4824, %v4820
        %v4853 = vpack.c.bf16 %v4826, %v4822
        %v4854 = vpack.c.bf16 %v4834, %v4830
        %v4855 = vpack.c.bf16 %v4836, %v4832
        %v4856 = vpack.c.bf16 %v4844, %v4840
        %v4857 = vpack.c.bf16 %v4846, %v4842
        %v4858 = vld [vmem:[%s5] sm:$0xff]
        %v4859 = vld [vmem:[%s5 + $0x8] sm:$0xff]
        %v4860 = vld [vmem:[%s5 + $0x10] sm:$0xff]
        %v4861 = vld [vmem:[%s5 + $0x18] sm:$0xff]
        %v4862 = vld [vmem:[%s5 + $0x20] sm:$0xff]
        %v4863 = vld [vmem:[%s5 + $0x28] sm:$0xff]
        %v4864 = vld [vmem:[%s5 + $0x30] sm:$0xff]
        %v4865 = vld [vmem:[%s5 + $0x38] sm:$0xff]
        %v4866 = vld [vmem:[%s5 + $0x40] sm:$0xff]
        %v4867 = vld [vmem:[%s5 + $0x48] sm:$0xff]
        %v4868 = vld [vmem:[%s5 + $0x50] sm:$0xff]
        %v4869 = vld [vmem:[%s5 + $0x58] sm:$0xff]
        %v4870 = vld [vmem:[%s5 + $0x60] sm:$0xff]
        %v4871 = vld [vmem:[%s5 + $0x68] sm:$0xff]
        %v4872 = vld [vmem:[%s5 + $0x70] sm:$0xff]
        %v4873 = vld [vmem:[%s5 + $0x78] sm:$0xff]
        %v4874 = vld [vmem:[%s5 + $0x80] sm:$0xff]
        %v4875 = vld [vmem:[%s5 + $0x88] sm:$0xff]
        %v4876 = vld [vmem:[%s5 + $0x90] sm:$0xff]
        %v4877 = vld [vmem:[%s5 + $0x98] sm:$0xff]
        %v4878 = vld [vmem:[%s5 + $0xa0] sm:$0xff]
        %v4879 = vld [vmem:[%s5 + $0xa8] sm:$0xff]
        %v4880 = vld [vmem:[%s5 + $0xb0] sm:$0xff]
        %v4881 = vld [vmem:[%s5 + $0xb8] sm:$0xff]
        %v4882 = vld [vmem:[%s5 + $0xc0] sm:$0xff]
        %v4883 = vld [vmem:[%s5 + $0xc8] sm:$0xff]
        %v4884 = vld [vmem:[%s5 + $0xd0] sm:$0xff]
        %s4885 = scalar_lea.vmem %s7, 40
        %v4886 = vld [vmem:[%s4885] sm:$0xf]
        %v4887 = vld [vmem:[%s4885 + $0x4] sm:$0xf]
        %v4888 = vld [vmem:[%s4885 + $0x8] sm:$0xf]
        %v4889 = vld [vmem:[%s4885 + $0xc] sm:$0xf]
        %v4890 = vld [vmem:[%s4885 + $0x10] sm:$0xf]
        %v4891 = vld [vmem:[%s4885 + $0x14] sm:$0xf]
        %v4892 = vld [vmem:[%s4885 + $0x18] sm:$0xf]
        %v4893 = vld [vmem:[%s4885 + $0x1c] sm:$0xf]
        %v4894 = vld [vmem:[%s4885 + $0x20] sm:$0xf]
        %v4895 = vld [vmem:[%s4885 + $0x24] sm:$0xf]
        %v4906 = vunpack.c.l.b16 %v4886
        %v4907 = vunpack.c.l.b16 %v4887
        %v4908 = vunpack.c.l.b16 %v4888
        %v4909 = vunpack.c.l.b16 %v4889
        %v4910 = vunpack.c.l.b16 %v4890
        %v4911 = vunpack.c.l.b16 %v4891
        %v4912 = vunpack.c.l.b16 %v4892
        %v4913 = vunpack.c.l.b16 %v4893
        %v4914 = vunpack.c.l.b16 %v4894
        %v4915 = vunpack.c.l.b16 %v4895
        %v4916 = vpack.c.b16 %v4907, %v4906
        %v4917 = vpack.c.b16 %v4909, %v4908
        %v4918 = vpack.c.b16 %v4911, %v4910
        %v4919 = vpack.c.b16 %v4913, %v4912
        %v4920 = vpack.c.b16 %v4915, %v4914
        %v4922 = vsel %vm4749, %v4916, 0
        %v4925 = vsel %vm4749, %v4917, 0
        %v4928 = vsel %vm4749, %v4918, 0
        %v4931 = vsel %vm4749, %v4919, 0
        %v4934 = vsel %vm4749, %v4920, 0
        %4936 = vmatprep.subr.bf16.mxu0 0
        %4937 = vmatpush1.bf16.msra.mxu0 0
        %4938 = vmatprep.subr.bf16.mxu0 %v4713
        %4939 = vmatpush1.bf16.msra.mxu0 %v4712
        %4940 = vmatprep.subr.bf16.mxu0 %v4711
        %4941 = vmatpush1.bf16.msra.mxu0 %v4710
        %4942 = vmatprep.subr.bf16.mxu0 %v4709
        %4943 = vmatpush1.bf16.msra.mxu0 %v4708
        %4944 = vmatprep.subr.bf16.mxu0 %v4707
        %4945 = vmatpush1.bf16.msra.mxu0 %v4706
        %4946 = vmatprep.subr.bf16.mxu0 %v4705
        %4947 = vmatpush1.bf16.msra.mxu0 %v4704
        %4948 = vmatprep.subr.bf16.mxu0 %v4703
        %4949 = vmatpush1.bf16.msra.mxu0 %v4702
        %4950 = vmatprep.subr.bf16.mxu0 %v4701
        %4951 = vmatpush1.bf16.msra.mxu0 %v4700
        %4952 = vmatprep.subr.bf16.mxu0 0
        %4953 = vmatpush2.bf16.msra.mxu0 0
        %4954 = vmatprep.subr.bf16.mxu0 0
        %4955 = vmatpush2.bf16.msra.mxu0 0
        %4956 = vmatprep.subr.bf16.mxu0 0
        %4957 = vmatpush2.bf16.msra.mxu0 0
        %4958 = vmatprep.subr.bf16.mxu0 0
        %4959 = vmatpush2.bf16.msra.mxu0 0
        %4960 = vmatprep.subr.bf16.mxu0 0
        %4961 = vmatpush2.bf16.msra.mxu0 0
        %4962 = vmatprep.subr.bf16.mxu0 0
        %4963 = vmatpush2.bf16.msra.mxu0 0
        %4964 = vmatprep.subr.bf16.mxu0 0
        %4965 = vmatpush2.bf16.msra.mxu0 0
        %4966 = vmatprep.subr.bf16.mxu0 0
        %4967 = vmatpush2.bf16.msra.mxu0 0
        %4968 = vmatprep.mubr.bf16.mxu0 0
        %4969 = vmatmul.mubr.bf16.gmra.mxu0 %v4922
        %v4970 = vpop.f32.mrf.mxu0
        %v4971 = vadd.f32 0.0, %v4970
        %v4972 = vpop.f32.mrf.mxu0
        %v4973 = vadd.f32 0.0, %v4972
        %v4974 = vpop.f32.mrf.mxu0
        %v4975 = vadd.f32 0.0, %v4974
        %v4976 = vpop.f32.mrf.mxu0
        %v4977 = vadd.f32 0.0, %v4976
        %4978 = vmatprep.mubr.bf16.mxu0 0
        %4979 = vmatmul.mubr.bf16.gmra.mxu0 %v4925
        %v4980 = vpop.f32.mrf.mxu0
        %v4981 = vadd.f32 0.0, %v4980
        %v4982 = vpop.f32.mrf.mxu0
        %v4983 = vadd.f32 0.0, %v4982
        %v4984 = vpop.f32.mrf.mxu0
        %v4985 = vadd.f32 0.0, %v4984
        %v4986 = vpop.f32.mrf.mxu0
        %v4987 = vadd.f32 0.0, %v4986
        %4988 = vmatprep.mubr.bf16.mxu0 0
        %4989 = vmatmul.mubr.bf16.gmra.mxu0 %v4928
        %v4990 = vpop.f32.mrf.mxu0
        %v4991 = vadd.f32 0.0, %v4990
        %v4992 = vpop.f32.mrf.mxu0
        %v4993 = vadd.f32 0.0, %v4992
        %v4994 = vpop.f32.mrf.mxu0
        %v4995 = vadd.f32 0.0, %v4994
        %v4996 = vpop.f32.mrf.mxu0
        %v4997 = vadd.f32 0.0, %v4996
        %4998 = vmatprep.mubr.bf16.mxu0 0
        %4999 = vmatmul.mubr.bf16.gmra.mxu0 %v4931
        %v5000 = vpop.f32.mrf.mxu0
        %v5001 = vadd.f32 0.0, %v5000
        %v5002 = vpop.f32.mrf.mxu0
        %v5003 = vadd.f32 0.0, %v5002
        %v5004 = vpop.f32.mrf.mxu0
        %v5005 = vadd.f32 0.0, %v5004
        %v5006 = vpop.f32.mrf.mxu0
        %v5007 = vadd.f32 0.0, %v5006
        %5008 = vmatprep.mubr.bf16.mxu0 0
        %5009 = vmatmul.mubr.bf16.gmra.mxu0 %v4934
        %v5010 = vpop.f32.mrf.mxu0
        %v5011 = vadd.f32 0.0, %v5010
        %v5012 = vpop.f32.mrf.mxu0
        %v5013 = vadd.f32 0.0, %v5012
        %v5014 = vpop.f32.mrf.mxu0
        %v5015 = vadd.f32 0.0, %v5014
        %v5016 = vpop.f32.mrf.mxu0
        %v5017 = vadd.f32 0.0, %v5016
        %5018 = vdwg.mxu0
        %v5019 = vpack.c.bf16 %v4975, %v4971
        %v5020 = vpack.c.bf16 %v4977, %v4973
        %v5021 = vpack.c.bf16 %v4985, %v4981
        %v5022 = vpack.c.bf16 %v4987, %v4983
        %v5023 = vpack.c.bf16 %v4995, %v4991
        %v5024 = vpack.c.bf16 %v4997, %v4993
        %v5025 = vpack.c.bf16 %v5005, %v5001
        %v5026 = vpack.c.bf16 %v5007, %v5003
        %v5027 = vpack.c.bf16 %v5015, %v5011
        %v5028 = vpack.c.bf16 %v5017, %v5013
        %s5029 = scalar_lea.vmem %s5, 216
        %v5030 = vld [vmem:[%s5029] sm:$0xff]
        %v5031 = vld [vmem:[%s5029 + $0x8] sm:$0xff]
        %v5032 = vld [vmem:[%s5029 + $0x10] sm:$0xff]
        %v5033 = vld [vmem:[%s5029 + $0x18] sm:$0xff]
        %v5034 = vld [vmem:[%s5029 + $0x20] sm:$0xff]
        %v5035 = vld [vmem:[%s5029 + $0x28] sm:$0xff]
        %v5036 = vld [vmem:[%s5029 + $0x30] sm:$0xff]
        %v5037 = vld [vmem:[%s5029 + $0x38] sm:$0xff]
        %v5038 = vld [vmem:[%s5029 + $0x40] sm:$0xff]
        %v5039 = vld [vmem:[%s5029 + $0x48] sm:$0xff]
        %v5040 = vld [vmem:[%s5029 + $0x50] sm:$0xff]
        %v5041 = vld [vmem:[%s5029 + $0x58] sm:$0xff]
        %v5042 = vld [vmem:[%s5029 + $0x60] sm:$0xff]
        %v5043 = vld [vmem:[%s5029 + $0x68] sm:$0xff]
        %v5044 = vld [vmem:[%s5029 + $0x70] sm:$0xff]
        %v5045 = vld [vmem:[%s5029 + $0x78] sm:$0xff]
        %v5046 = vld [vmem:[%s5029 + $0x80] sm:$0xff]
        %v5047 = vld [vmem:[%s5029 + $0x88] sm:$0xff]
        %v5048 = vld [vmem:[%s5029 + $0x90] sm:$0xff]
        %v5049 = vld [vmem:[%s5029 + $0x98] sm:$0xff]
        %v5050 = vld [vmem:[%s5029 + $0xa0] sm:$0xff]
        %v5051 = vld [vmem:[%s5029 + $0xa8] sm:$0xff]
        %v5052 = vld [vmem:[%s5029 + $0xb0] sm:$0xff]
        %v5053 = vld [vmem:[%s5029 + $0xb8] sm:$0xff]
        %v5054 = vld [vmem:[%s5029 + $0xc0] sm:$0xff]
        %v5055 = vld [vmem:[%s5029 + $0xc8] sm:$0xff]
        %v5056 = vld [vmem:[%s5029 + $0xd0] sm:$0xff]
        %v5084 = vunpack.c.l.b16 %v5030
        %v5085 = vunpack.c.h.b16 %v5030
        %v5086 = vunpack.c.l.b16 %v5031
        %v5087 = vunpack.c.h.b16 %v5031
        %v5088 = vunpack.c.l.b16 %v5032
        %v5089 = vunpack.c.h.b16 %v5032
        %v5090 = vunpack.c.l.b16 %v5033
        %v5091 = vunpack.c.h.b16 %v5033
        %v5092 = vunpack.c.l.b16 %v5034
        %v5093 = vunpack.c.h.b16 %v5034
        %v5094 = vunpack.c.l.b16 %v5035
        %v5095 = vunpack.c.h.b16 %v5035
        %v5096 = vunpack.c.l.b16 %v5036
        %v5097 = vunpack.c.h.b16 %v5036
        %v5098 = vunpack.c.l.b16 %v5037
        %v5099 = vunpack.c.h.b16 %v5037
        %v5100 = vunpack.c.l.b16 %v5038
        %v5101 = vunpack.c.h.b16 %v5038
        %v5102 = vunpack.c.l.b16 %v5039
        %v5103 = vunpack.c.h.b16 %v5039
        %v5104 = vunpack.c.l.b16 %v5040
        %v5105 = vunpack.c.h.b16 %v5040
        %v5106 = vunpack.c.l.b16 %v5041
        %v5107 = vunpack.c.h.b16 %v5041
        %v5108 = vunpack.c.l.b16 %v5042
        %v5109 = vunpack.c.h.b16 %v5042
        %v5110 = vunpack.c.l.b16 %v5043
        %v5111 = vunpack.c.h.b16 %v5043
        %v5112 = vunpack.c.l.b16 %v5044
        %v5113 = vunpack.c.h.b16 %v5044
        %v5114 = vunpack.c.l.b16 %v5045
        %v5115 = vunpack.c.h.b16 %v5045
        %v5116 = vunpack.c.l.b16 %v5046
        %v5117 = vunpack.c.h.b16 %v5046
        %v5118 = vunpack.c.l.b16 %v5047
        %v5119 = vunpack.c.h.b16 %v5047
        %v5120 = vunpack.c.l.b16 %v5048
        %v5121 = vunpack.c.h.b16 %v5048
        %v5122 = vunpack.c.l.b16 %v5049
        %v5123 = vunpack.c.h.b16 %v5049
        %v5124 = vunpack.c.l.b16 %v5050
        %v5125 = vunpack.c.h.b16 %v5050
        %v5126 = vunpack.c.l.b16 %v5051
        %v5127 = vunpack.c.h.b16 %v5051
        %v5128 = vunpack.c.l.b16 %v5052
        %v5129 = vunpack.c.h.b16 %v5052
        %v5130 = vunpack.c.l.b16 %v5053
        %v5131 = vunpack.c.h.b16 %v5053
        %v5132 = vunpack.c.l.b16 %v5054
        %v5133 = vunpack.c.h.b16 %v5054
        %v5134 = vunpack.c.l.b16 %v5055
        %v5135 = vunpack.c.h.b16 %v5055
        %v5136 = vunpack.c.l.b16 %v5056
        %v5137 = vunpack.c.h.b16 %v5056
        %v5138 = vpack.c.b16 %v5086, %v5084
        %v5139 = vpack.c.b16 %v5087, %v5085
        %v5140 = vpack.c.b16 %v5090, %v5088
        %v5141 = vpack.c.b16 %v5091, %v5089
        %v5142 = vpack.c.b16 %v5094, %v5092
        %v5143 = vpack.c.b16 %v5095, %v5093
        %v5144 = vpack.c.b16 %v5098, %v5096
        %v5145 = vpack.c.b16 %v5099, %v5097
        %v5146 = vpack.c.b16 %v5102, %v5100
        %v5147 = vpack.c.b16 %v5103, %v5101
        %v5148 = vpack.c.b16 %v5106, %v5104
        %v5149 = vpack.c.b16 %v5107, %v5105
        %v5150 = vpack.c.b16 %v5110, %v5108
        %v5151 = vpack.c.b16 %v5111, %v5109
        %v5152 = vpack.c.b16 %v5114, %v5112
        %v5153 = vpack.c.b16 %v5115, %v5113
        %v5154 = vpack.c.b16 %v5118, %v5116
        %v5155 = vpack.c.b16 %v5119, %v5117
        %v5156 = vpack.c.b16 %v5122, %v5120
        %v5157 = vpack.c.b16 %v5123, %v5121
        %v5158 = vpack.c.b16 %v5126, %v5124
        %v5159 = vpack.c.b16 %v5127, %v5125
        %v5160 = vpack.c.b16 %v5130, %v5128
        %v5161 = vpack.c.b16 %v5131, %v5129
        %v5162 = vpack.c.b16 %v5134, %v5132
        %v5163 = vpack.c.b16 %v5135, %v5133
        %v5164 = vpack.c.b16 %v5136, %v5136
        %v5165 = vpack.c.b16 %v5137, %v5137
        %vm5192 = vcmask 719872
        %v5194 = vsel %vm5192, %v5020, 0
        %v5197 = vsel %vm5192, %v5022, 0
        %v5200 = vsel %vm5192, %v5024, 0
        %v5203 = vsel %vm5192, %v5026, 0
        %v5206 = vsel %vm5192, %v5028, 0
        %vm5208 = vcmask 1043456
        %v5210 = vsel %vm5208, %v5164, 0
        %v5213 = vsel %vm5208, %v5165, 0
        %5215 = vmatprep.subr.bf16.mxu0 %v5153
        %5216 = vmatpush1.bf16.msra.mxu0 %v5152
        %5217 = vmatprep.subr.bf16.mxu0 %v5151
        %5218 = vmatpush1.bf16.msra.mxu0 %v5150
        %5219 = vmatprep.subr.bf16.mxu0 %v5149
        %5220 = vmatpush1.bf16.msra.mxu0 %v5148
        %5221 = vmatprep.subr.bf16.mxu0 %v5147
        %5222 = vmatpush1.bf16.msra.mxu0 %v5146
        %5223 = vmatprep.subr.bf16.mxu0 %v5145
        %5224 = vmatpush1.bf16.msra.mxu0 %v5144
        %5225 = vmatprep.subr.bf16.mxu0 %v5143
        %5226 = vmatpush1.bf16.msra.mxu0 %v5142
        %5227 = vmatprep.subr.bf16.mxu0 %v5141
        %5228 = vmatpush1.bf16.msra.mxu0 %v5140
        %5229 = vmatprep.subr.bf16.mxu0 %v5139
        %5230 = vmatpush1.bf16.msra.mxu0 %v5138
        %5231 = vmatprep.subr.bf16.mxu0 0
        %5232 = vmatpush2.bf16.msra.mxu0 0
        %5233 = vmatprep.subr.bf16.mxu0 0
        %5234 = vmatpush2.bf16.msra.mxu0 0
        %5235 = vmatprep.subr.bf16.mxu0 %v5213
        %5236 = vmatpush2.bf16.msra.mxu0 %v5210
        %5237 = vmatprep.subr.bf16.mxu0 %v5163
        %5238 = vmatpush2.bf16.msra.mxu0 %v5162
        %5239 = vmatprep.subr.bf16.mxu0 %v5161
        %5240 = vmatpush2.bf16.msra.mxu0 %v5160
        %5241 = vmatprep.subr.bf16.mxu0 %v5159
        %5242 = vmatpush2.bf16.msra.mxu0 %v5158
        %5243 = vmatprep.subr.bf16.mxu0 %v5157
        %5244 = vmatpush2.bf16.msra.mxu0 %v5156
        %5245 = vmatprep.subr.bf16.mxu0 %v5155
        %5246 = vmatpush2.bf16.msra.mxu0 %v5154
        %5247 = vmatprep.mubr.bf16.mxu0 %v5194
        %5248 = vmatmul.mubr.bf16.gmra.mxu0 %v5019
        %v5249 = vpop.f32.mrf.mxu0
        %v5250 = vadd.f32 0.0, %v5249
        %v5251 = vpop.f32.mrf.mxu0
        %v5252 = vadd.f32 0.0, %v5251
        %v5253 = vpop.f32.mrf.mxu0
        %v5254 = vadd.f32 0.0, %v5253
        %v5255 = vpop.f32.mrf.mxu0
        %v5256 = vadd.f32 0.0, %v5255
        %5257 = vmatprep.mubr.bf16.mxu0 %v5197
        %5258 = vmatmul.mubr.bf16.gmra.mxu0 %v5021
        %v5259 = vpop.f32.mrf.mxu0
        %v5260 = vadd.f32 0.0, %v5259
        %v5261 = vpop.f32.mrf.mxu0
        %v5262 = vadd.f32 0.0, %v5261
        %v5263 = vpop.f32.mrf.mxu0
        %v5264 = vadd.f32 0.0, %v5263
        %v5265 = vpop.f32.mrf.mxu0
        %v5266 = vadd.f32 0.0, %v5265
        %5267 = vmatprep.mubr.bf16.mxu0 %v5200
        %5268 = vmatmul.mubr.bf16.gmra.mxu0 %v5023
        %v5269 = vpop.f32.mrf.mxu0
        %v5270 = vadd.f32 0.0, %v5269
        %v5271 = vpop.f32.mrf.mxu0
        %v5272 = vadd.f32 0.0, %v5271
        %v5273 = vpop.f32.mrf.mxu0
        %v5274 = vadd.f32 0.0, %v5273
        %v5275 = vpop.f32.mrf.mxu0
        %v5276 = vadd.f32 0.0, %v5275
        %5277 = vmatprep.mubr.bf16.mxu0 %v5203
        %5278 = vmatmul.mubr.bf16.gmra.mxu0 %v5025
        %v5279 = vpop.f32.mrf.mxu0
        %v5280 = vadd.f32 0.0, %v5279
        %v5281 = vpop.f32.mrf.mxu0
        %v5282 = vadd.f32 0.0, %v5281
        %v5283 = vpop.f32.mrf.mxu0
        %v5284 = vadd.f32 0.0, %v5283
        %v5285 = vpop.f32.mrf.mxu0
        %v5286 = vadd.f32 0.0, %v5285
        %5287 = vmatprep.mubr.bf16.mxu0 %v5206
        %5288 = vmatmul.mubr.bf16.gmra.mxu0 %v5027
        %v5289 = vpop.f32.mrf.mxu0
        %v5290 = vadd.f32 0.0, %v5289
        %v5291 = vpop.f32.mrf.mxu0
        %v5292 = vadd.f32 0.0, %v5291
        %v5293 = vpop.f32.mrf.mxu0
        %v5294 = vadd.f32 0.0, %v5293
        %v5295 = vpop.f32.mrf.mxu0
        %v5296 = vadd.f32 0.0, %v5295
        %5297 = vdwg.mxu0
        %v5325 = vunpack.c.l.b16 %v4858
        %v5326 = vunpack.c.h.b16 %v4858
        %v5327 = vunpack.c.l.b16 %v4859
        %v5328 = vunpack.c.h.b16 %v4859
        %v5329 = vunpack.c.l.b16 %v4860
        %v5330 = vunpack.c.h.b16 %v4860
        %v5331 = vunpack.c.l.b16 %v4861
        %v5332 = vunpack.c.h.b16 %v4861
        %v5333 = vunpack.c.l.b16 %v4862
        %v5334 = vunpack.c.h.b16 %v4862
        %v5335 = vunpack.c.l.b16 %v4863
        %v5336 = vunpack.c.h.b16 %v4863
        %v5337 = vunpack.c.l.b16 %v4864
        %v5338 = vunpack.c.h.b16 %v4864
        %v5339 = vunpack.c.l.b16 %v4865
        %v5340 = vunpack.c.h.b16 %v4865
        %v5341 = vunpack.c.l.b16 %v4866
        %v5342 = vunpack.c.h.b16 %v4866
        %v5343 = vunpack.c.l.b16 %v4867
        %v5344 = vunpack.c.h.b16 %v4867
        %v5345 = vunpack.c.l.b16 %v4868
        %v5346 = vunpack.c.h.b16 %v4868
        %v5347 = vunpack.c.l.b16 %v4869
        %v5348 = vunpack.c.h.b16 %v4869
        %v5349 = vunpack.c.l.b16 %v4870
        %v5350 = vunpack.c.h.b16 %v4870
        %v5351 = vunpack.c.l.b16 %v4871
        %v5352 = vunpack.c.h.b16 %v4871
        %v5353 = vunpack.c.l.b16 %v4872
        %v5354 = vunpack.c.h.b16 %v4872
        %v5355 = vunpack.c.l.b16 %v4873
        %v5356 = vunpack.c.h.b16 %v4873
        %v5357 = vunpack.c.l.b16 %v4874
        %v5358 = vunpack.c.h.b16 %v4874
        %v5359 = vunpack.c.l.b16 %v4875
        %v5360 = vunpack.c.h.b16 %v4875
        %v5361 = vunpack.c.l.b16 %v4876
        %v5362 = vunpack.c.h.b16 %v4876
        %v5363 = vunpack.c.l.b16 %v4877
        %v5364 = vunpack.c.h.b16 %v4877
        %v5365 = vunpack.c.l.b16 %v4878
        %v5366 = vunpack.c.h.b16 %v4878
        %v5367 = vunpack.c.l.b16 %v4879
        %v5368 = vunpack.c.h.b16 %v4879
        %v5369 = vunpack.c.l.b16 %v4880
        %v5370 = vunpack.c.h.b16 %v4880
        %v5371 = vunpack.c.l.b16 %v4881
        %v5372 = vunpack.c.h.b16 %v4881
        %v5373 = vunpack.c.l.b16 %v4882
        %v5374 = vunpack.c.h.b16 %v4882
        %v5375 = vunpack.c.l.b16 %v4883
        %v5376 = vunpack.c.h.b16 %v4883
        %v5377 = vunpack.c.l.b16 %v4884
        %v5378 = vunpack.c.h.b16 %v4884
        %v5379 = vpack.c.b16 %v5327, %v5325
        %v5380 = vpack.c.b16 %v5328, %v5326
        %v5381 = vpack.c.b16 %v5331, %v5329
        %v5382 = vpack.c.b16 %v5332, %v5330
        %v5383 = vpack.c.b16 %v5335, %v5333
        %v5384 = vpack.c.b16 %v5336, %v5334
        %v5385 = vpack.c.b16 %v5339, %v5337
        %v5386 = vpack.c.b16 %v5340, %v5338
        %v5387 = vpack.c.b16 %v5343, %v5341
        %v5388 = vpack.c.b16 %v5344, %v5342
        %v5389 = vpack.c.b16 %v5347, %v5345
        %v5390 = vpack.c.b16 %v5348, %v5346
        %v5391 = vpack.c.b16 %v5351, %v5349
        %v5392 = vpack.c.b16 %v5352, %v5350
        %v5393 = vpack.c.b16 %v5355, %v5353
        %v5394 = vpack.c.b16 %v5356, %v5354
        %v5395 = vpack.c.b16 %v5359, %v5357
        %v5396 = vpack.c.b16 %v5360, %v5358
        %v5397 = vpack.c.b16 %v5363, %v5361
        %v5398 = vpack.c.b16 %v5364, %v5362
        %v5399 = vpack.c.b16 %v5367, %v5365
        %v5400 = vpack.c.b16 %v5368, %v5366
        %v5401 = vpack.c.b16 %v5371, %v5369
        %v5402 = vpack.c.b16 %v5372, %v5370
        %v5403 = vpack.c.b16 %v5375, %v5373
        %v5404 = vpack.c.b16 %v5376, %v5374
        %v5405 = vpack.c.b16 %v5377, %v5377
        %v5406 = vpack.c.b16 %v5378, %v5378
        %v5434 = vsel %vm5192, %v4849, 0
        %v5437 = vsel %vm5192, %v4851, 0
        %v5440 = vsel %vm5192, %v4853, 0
        %v5443 = vsel %vm5192, %v4855, 0
        %v5446 = vsel %vm5192, %v4857, 0
        %v5449 = vsel %vm5208, %v5405, 0
        %v5452 = vsel %vm5208, %v5406, 0
        %5454 = vmatprep.subr.bf16.mxu0 %v5394
        %5455 = vmatpush1.bf16.msra.mxu0 %v5393
        %5456 = vmatprep.subr.bf16.mxu0 %v5392
        %5457 = vmatpush1.bf16.msra.mxu0 %v5391
        %5458 = vmatprep.subr.bf16.mxu0 %v5390
        %5459 = vmatpush1.bf16.msra.mxu0 %v5389
        %5460 = vmatprep.subr.bf16.mxu0 %v5388
        %5461 = vmatpush1.bf16.msra.mxu0 %v5387
        %5462 = vmatprep.subr.bf16.mxu0 %v5386
        %5463 = vmatpush1.bf16.msra.mxu0 %v5385
        %5464 = vmatprep.subr.bf16.mxu0 %v5384
        %5465 = vmatpush1.bf16.msra.mxu0 %v5383
        %5466 = vmatprep.subr.bf16.mxu0 %v5382
        %5467 = vmatpush1.bf16.msra.mxu0 %v5381
        %5468 = vmatprep.subr.bf16.mxu0 %v5380
        %5469 = vmatpush1.bf16.msra.mxu0 %v5379
        %5470 = vmatprep.subr.bf16.mxu0 0
        %5471 = vmatpush2.bf16.msra.mxu0 0
        %5472 = vmatprep.subr.bf16.mxu0 0
        %5473 = vmatpush2.bf16.msra.mxu0 0
        %5474 = vmatprep.subr.bf16.mxu0 %v5452
        %5475 = vmatpush2.bf16.msra.mxu0 %v5449
        %5476 = vmatprep.subr.bf16.mxu0 %v5404
        %5477 = vmatpush2.bf16.msra.mxu0 %v5403
        %5478 = vmatprep.subr.bf16.mxu0 %v5402
        %5479 = vmatpush2.bf16.msra.mxu0 %v5401
        %5480 = vmatprep.subr.bf16.mxu0 %v5400
        %5481 = vmatpush2.bf16.msra.mxu0 %v5399
        %5482 = vmatprep.subr.bf16.mxu0 %v5398
        %5483 = vmatpush2.bf16.msra.mxu0 %v5397
        %5484 = vmatprep.subr.bf16.mxu0 %v5396
        %5485 = vmatpush2.bf16.msra.mxu0 %v5395
        %5486 = vmatprep.mubr.bf16.mxu0 %v5434
        %5487 = vmatmul.mubr.bf16.gmra.mxu0 %v4848
        %v5488 = vpop.f32.mrf.mxu0
        %v5489 = vadd.f32 %v5250, %v5488
        %v5490 = vpop.f32.mrf.mxu0
        %v5491 = vadd.f32 %v5252, %v5490
        %v5492 = vpop.f32.mrf.mxu0
        %v5493 = vadd.f32 %v5254, %v5492
        %v5494 = vpop.f32.mrf.mxu0
        %v5495 = vadd.f32 %v5256, %v5494
        %5496 = vmatprep.mubr.bf16.mxu0 %v5437
        %5497 = vmatmul.mubr.bf16.gmra.mxu0 %v4850
        %v5498 = vpop.f32.mrf.mxu0
        %v5499 = vadd.f32 %v5260, %v5498
        %v5500 = vpop.f32.mrf.mxu0
        %v5501 = vadd.f32 %v5262, %v5500
        %v5502 = vpop.f32.mrf.mxu0
        %v5503 = vadd.f32 %v5264, %v5502
        %v5504 = vpop.f32.mrf.mxu0
        %v5505 = vadd.f32 %v5266, %v5504
        %5506 = vmatprep.mubr.bf16.mxu0 %v5440
        %5507 = vmatmul.mubr.bf16.gmra.mxu0 %v4852
        %v5508 = vpop.f32.mrf.mxu0
        %v5509 = vadd.f32 %v5270, %v5508
        %v5510 = vpop.f32.mrf.mxu0
        %v5511 = vadd.f32 %v5272, %v5510
        %v5512 = vpop.f32.mrf.mxu0
        %v5513 = vadd.f32 %v5274, %v5512
        %v5514 = vpop.f32.mrf.mxu0
        %v5515 = vadd.f32 %v5276, %v5514
        %5516 = vmatprep.mubr.bf16.mxu0 %v5443
        %5517 = vmatmul.mubr.bf16.gmra.mxu0 %v4854
        %v5518 = vpop.f32.mrf.mxu0
        %v5519 = vadd.f32 %v5280, %v5518
        %v5520 = vpop.f32.mrf.mxu0
        %v5521 = vadd.f32 %v5282, %v5520
        %v5522 = vpop.f32.mrf.mxu0
        %v5523 = vadd.f32 %v5284, %v5522
        %v5524 = vpop.f32.mrf.mxu0
        %v5525 = vadd.f32 %v5286, %v5524
        %5526 = vmatprep.mubr.bf16.mxu0 %v5446
        %5527 = vmatmul.mubr.bf16.gmra.mxu0 %v4856
        %v5528 = vpop.f32.mrf.mxu0
        %v5529 = vadd.f32 %v5290, %v5528
        %v5530 = vpop.f32.mrf.mxu0
        %v5531 = vadd.f32 %v5292, %v5530
        %v5532 = vpop.f32.mrf.mxu0
        %v5533 = vadd.f32 %v5294, %v5532
        %v5534 = vpop.f32.mrf.mxu0
        %v5535 = vadd.f32 %v5296, %v5534
        %5536 = vdwg.mxu0
        %s5537 = scalar_lea.vmem %s7, 80
        %v5538 = vld [vmem:[%s5537] sm:$0xf]
        %v5539 = vld [vmem:[%s5537 + $0x4] sm:$0xf]
        %v5540 = vld [vmem:[%s5537 + $0x8] sm:$0xf]
        %v5541 = vld [vmem:[%s5537 + $0xc] sm:$0xf]
        %v5542 = vld [vmem:[%s5537 + $0x10] sm:$0xf]
        %v5543 = vld [vmem:[%s5537 + $0x14] sm:$0xf]
        %v5544 = vld [vmem:[%s5537 + $0x18] sm:$0xf]
        %v5545 = vld [vmem:[%s5537 + $0x1c] sm:$0xf]
        %v5546 = vld [vmem:[%s5537 + $0x20] sm:$0xf]
        %v5547 = vld [vmem:[%s5537 + $0x24] sm:$0xf]
        %v5558 = vunpack.c.l.b16 %v5538
        %v5559 = vunpack.c.l.b16 %v5539
        %v5560 = vunpack.c.l.b16 %v5540
        %v5561 = vunpack.c.l.b16 %v5541
        %v5562 = vunpack.c.l.b16 %v5542
        %v5563 = vunpack.c.l.b16 %v5543
        %v5564 = vunpack.c.l.b16 %v5544
        %v5565 = vunpack.c.l.b16 %v5545
        %v5566 = vunpack.c.l.b16 %v5546
        %v5567 = vunpack.c.l.b16 %v5547
        %v5568 = vpack.c.b16 %v5559, %v5558
        %v5569 = vpack.c.b16 %v5561, %v5560
        %v5570 = vpack.c.b16 %v5563, %v5562
        %v5571 = vpack.c.b16 %v5565, %v5564
        %v5572 = vpack.c.b16 %v5567, %v5566
        %v5574 = vsel %vm4749, %v5568, 0
        %v5577 = vsel %vm4749, %v5569, 0
        %v5580 = vsel %vm4749, %v5570, 0
        %v5583 = vsel %vm4749, %v5571, 0
        %v5586 = vsel %vm4749, %v5572, 0
        %5588 = vmatprep.subr.bf16.mxu0 0
        %5589 = vmatpush1.bf16.msra.mxu0 0
        %5590 = vmatprep.subr.bf16.mxu0 %v4713
        %5591 = vmatpush1.bf16.msra.mxu0 %v4712
        %5592 = vmatprep.subr.bf16.mxu0 %v4711
        %5593 = vmatpush1.bf16.msra.mxu0 %v4710
        %5594 = vmatprep.subr.bf16.mxu0 %v4709
        %5595 = vmatpush1.bf16.msra.mxu0 %v4708
        %5596 = vmatprep.subr.bf16.mxu0 %v4707
        %5597 = vmatpush1.bf16.msra.mxu0 %v4706
        %5598 = vmatprep.subr.bf16.mxu0 %v4705
        %5599 = vmatpush1.bf16.msra.mxu0 %v4704
        %5600 = vmatprep.subr.bf16.mxu0 %v4703
        %5601 = vmatpush1.bf16.msra.mxu0 %v4702
        %5602 = vmatprep.subr.bf16.mxu0 %v4701
        %5603 = vmatpush1.bf16.msra.mxu0 %v4700
        %5604 = vmatprep.subr.bf16.mxu0 0
        %5605 = vmatpush2.bf16.msra.mxu0 0
        %5606 = vmatprep.subr.bf16.mxu0 0
        %5607 = vmatpush2.bf16.msra.mxu0 0
        %5608 = vmatprep.subr.bf16.mxu0 0
        %5609 = vmatpush2.bf16.msra.mxu0 0
        %5610 = vmatprep.subr.bf16.mxu0 0
        %5611 = vmatpush2.bf16.msra.mxu0 0
        %5612 = vmatprep.subr.bf16.mxu0 0
        %5613 = vmatpush2.bf16.msra.mxu0 0
        %5614 = vmatprep.subr.bf16.mxu0 0
        %5615 = vmatpush2.bf16.msra.mxu0 0
        %5616 = vmatprep.subr.bf16.mxu0 0
        %5617 = vmatpush2.bf16.msra.mxu0 0
        %5618 = vmatprep.subr.bf16.mxu0 0
        %5619 = vmatpush2.bf16.msra.mxu0 0
        %5620 = vmatprep.mubr.bf16.mxu0 0
        %5621 = vmatmul.mubr.bf16.gmra.mxu0 %v5574
        %v5622 = vpop.f32.mrf.mxu0
        %v5623 = vadd.f32 0.0, %v5622
        %v5624 = vpop.f32.mrf.mxu0
        %v5625 = vadd.f32 0.0, %v5624
        %v5626 = vpop.f32.mrf.mxu0
        %v5627 = vadd.f32 0.0, %v5626
        %v5628 = vpop.f32.mrf.mxu0
        %v5629 = vadd.f32 0.0, %v5628
        %5630 = vmatprep.mubr.bf16.mxu0 0
        %5631 = vmatmul.mubr.bf16.gmra.mxu0 %v5577
        %v5632 = vpop.f32.mrf.mxu0
        %v5633 = vadd.f32 0.0, %v5632
        %v5634 = vpop.f32.mrf.mxu0
        %v5635 = vadd.f32 0.0, %v5634
        %v5636 = vpop.f32.mrf.mxu0
        %v5637 = vadd.f32 0.0, %v5636
        %v5638 = vpop.f32.mrf.mxu0
        %v5639 = vadd.f32 0.0, %v5638
        %5640 = vmatprep.mubr.bf16.mxu0 0
        %5641 = vmatmul.mubr.bf16.gmra.mxu0 %v5580
        %v5642 = vpop.f32.mrf.mxu0
        %v5643 = vadd.f32 0.0, %v5642
        %v5644 = vpop.f32.mrf.mxu0
        %v5645 = vadd.f32 0.0, %v5644
        %v5646 = vpop.f32.mrf.mxu0
        %v5647 = vadd.f32 0.0, %v5646
        %v5648 = vpop.f32.mrf.mxu0
        %v5649 = vadd.f32 0.0, %v5648
        %5650 = vmatprep.mubr.bf16.mxu0 0
        %5651 = vmatmul.mubr.bf16.gmra.mxu0 %v5583
        %v5652 = vpop.f32.mrf.mxu0
        %v5653 = vadd.f32 0.0, %v5652
        %v5654 = vpop.f32.mrf.mxu0
        %v5655 = vadd.f32 0.0, %v5654
        %v5656 = vpop.f32.mrf.mxu0
        %v5657 = vadd.f32 0.0, %v5656
        %v5658 = vpop.f32.mrf.mxu0
        %v5659 = vadd.f32 0.0, %v5658
        %5660 = vmatprep.mubr.bf16.mxu0 0
        %5661 = vmatmul.mubr.bf16.gmra.mxu0 %v5586
        %v5662 = vpop.f32.mrf.mxu0
        %v5663 = vadd.f32 0.0, %v5662
        %v5664 = vpop.f32.mrf.mxu0
        %v5665 = vadd.f32 0.0, %v5664
        %v5666 = vpop.f32.mrf.mxu0
        %v5667 = vadd.f32 0.0, %v5666
        %v5668 = vpop.f32.mrf.mxu0
        %v5669 = vadd.f32 0.0, %v5668
        %5670 = vdwg.mxu0
        %v5671 = vpack.c.bf16 %v5627, %v5623
        %v5672 = vpack.c.bf16 %v5629, %v5625
        %v5673 = vpack.c.bf16 %v5637, %v5633
        %v5674 = vpack.c.bf16 %v5639, %v5635
        %v5675 = vpack.c.bf16 %v5647, %v5643
        %v5676 = vpack.c.bf16 %v5649, %v5645
        %v5677 = vpack.c.bf16 %v5657, %v5653
        %v5678 = vpack.c.bf16 %v5659, %v5655
        %v5679 = vpack.c.bf16 %v5667, %v5663
        %v5680 = vpack.c.bf16 %v5669, %v5665
        %s5681 = scalar_lea.vmem %s5, 432
        %v5682 = vld [vmem:[%s5681] sm:$0xff]
        %v5683 = vld [vmem:[%s5681 + $0x8] sm:$0xff]
        %v5684 = vld [vmem:[%s5681 + $0x10] sm:$0xff]
        %v5685 = vld [vmem:[%s5681 + $0x18] sm:$0xff]
        %v5686 = vld [vmem:[%s5681 + $0x20] sm:$0xff]
        %v5687 = vld [vmem:[%s5681 + $0x28] sm:$0xff]
        %v5688 = vld [vmem:[%s5681 + $0x30] sm:$0xff]
        %v5689 = vld [vmem:[%s5681 + $0x38] sm:$0xff]
        %v5690 = vld [vmem:[%s5681 + $0x40] sm:$0xff]
        %v5691 = vld [vmem:[%s5681 + $0x48] sm:$0xff]
        %v5692 = vld [vmem:[%s5681 + $0x50] sm:$0xff]
        %v5693 = vld [vmem:[%s5681 + $0x58] sm:$0xff]
        %v5694 = vld [vmem:[%s5681 + $0x60] sm:$0xff]
        %v5695 = vld [vmem:[%s5681 + $0x68] sm:$0xff]
        %v5696 = vld [vmem:[%s5681 + $0x70] sm:$0xff]
        %v5697 = vld [vmem:[%s5681 + $0x78] sm:$0xff]
        %v5698 = vld [vmem:[%s5681 + $0x80] sm:$0xff]
        %v5699 = vld [vmem:[%s5681 + $0x88] sm:$0xff]
        %v5700 = vld [vmem:[%s5681 + $0x90] sm:$0xff]
        %v5701 = vld [vmem:[%s5681 + $0x98] sm:$0xff]
        %v5702 = vld [vmem:[%s5681 + $0xa0] sm:$0xff]
        %v5703 = vld [vmem:[%s5681 + $0xa8] sm:$0xff]
        %v5704 = vld [vmem:[%s5681 + $0xb0] sm:$0xff]
        %v5705 = vld [vmem:[%s5681 + $0xb8] sm:$0xff]
        %v5706 = vld [vmem:[%s5681 + $0xc0] sm:$0xff]
        %v5707 = vld [vmem:[%s5681 + $0xc8] sm:$0xff]
        %v5708 = vld [vmem:[%s5681 + $0xd0] sm:$0xff]
        %v5736 = vunpack.c.l.b16 %v5682
        %v5737 = vunpack.c.h.b16 %v5682
        %v5738 = vunpack.c.l.b16 %v5683
        %v5739 = vunpack.c.h.b16 %v5683
        %v5740 = vunpack.c.l.b16 %v5684
        %v5741 = vunpack.c.h.b16 %v5684
        %v5742 = vunpack.c.l.b16 %v5685
        %v5743 = vunpack.c.h.b16 %v5685
        %v5744 = vunpack.c.l.b16 %v5686
        %v5745 = vunpack.c.h.b16 %v5686
        %v5746 = vunpack.c.l.b16 %v5687
        %v5747 = vunpack.c.h.b16 %v5687
        %v5748 = vunpack.c.l.b16 %v5688
        %v5749 = vunpack.c.h.b16 %v5688
        %v5750 = vunpack.c.l.b16 %v5689
        %v5751 = vunpack.c.h.b16 %v5689
        %v5752 = vunpack.c.l.b16 %v5690
        %v5753 = vunpack.c.h.b16 %v5690
        %v5754 = vunpack.c.l.b16 %v5691
        %v5755 = vunpack.c.h.b16 %v5691
        %v5756 = vunpack.c.l.b16 %v5692
        %v5757 = vunpack.c.h.b16 %v5692
        %v5758 = vunpack.c.l.b16 %v5693
        %v5759 = vunpack.c.h.b16 %v5693
        %v5760 = vunpack.c.l.b16 %v5694
        %v5761 = vunpack.c.h.b16 %v5694
        %v5762 = vunpack.c.l.b16 %v5695
        %v5763 = vunpack.c.h.b16 %v5695
        %v5764 = vunpack.c.l.b16 %v5696
        %v5765 = vunpack.c.h.b16 %v5696
        %v5766 = vunpack.c.l.b16 %v5697
        %v5767 = vunpack.c.h.b16 %v5697
        %v5768 = vunpack.c.l.b16 %v5698
        %v5769 = vunpack.c.h.b16 %v5698
        %v5770 = vunpack.c.l.b16 %v5699
        %v5771 = vunpack.c.h.b16 %v5699
        %v5772 = vunpack.c.l.b16 %v5700
        %v5773 = vunpack.c.h.b16 %v5700
        %v5774 = vunpack.c.l.b16 %v5701
        %v5775 = vunpack.c.h.b16 %v5701
        %v5776 = vunpack.c.l.b16 %v5702
        %v5777 = vunpack.c.h.b16 %v5702
        %v5778 = vunpack.c.l.b16 %v5703
        %v5779 = vunpack.c.h.b16 %v5703
        %v5780 = vunpack.c.l.b16 %v5704
        %v5781 = vunpack.c.h.b16 %v5704
        %v5782 = vunpack.c.l.b16 %v5705
        %v5783 = vunpack.c.h.b16 %v5705
        %v5784 = vunpack.c.l.b16 %v5706
        %v5785 = vunpack.c.h.b16 %v5706
        %v5786 = vunpack.c.l.b16 %v5707
        %v5787 = vunpack.c.h.b16 %v5707
        %v5788 = vunpack.c.l.b16 %v5708
        %v5789 = vunpack.c.h.b16 %v5708
        %v5790 = vpack.c.b16 %v5738, %v5736
        %v5791 = vpack.c.b16 %v5739, %v5737
        %v5792 = vpack.c.b16 %v5742, %v5740
        %v5793 = vpack.c.b16 %v5743, %v5741
        %v5794 = vpack.c.b16 %v5746, %v5744
        %v5795 = vpack.c.b16 %v5747, %v5745
        %v5796 = vpack.c.b16 %v5750, %v5748
        %v5797 = vpack.c.b16 %v5751, %v5749
        %v5798 = vpack.c.b16 %v5754, %v5752
        %v5799 = vpack.c.b16 %v5755, %v5753
        %v5800 = vpack.c.b16 %v5758, %v5756
        %v5801 = vpack.c.b16 %v5759, %v5757
        %v5802 = vpack.c.b16 %v5762, %v5760
        %v5803 = vpack.c.b16 %v5763, %v5761
        %v5804 = vpack.c.b16 %v5766, %v5764
        %v5805 = vpack.c.b16 %v5767, %v5765
        %v5806 = vpack.c.b16 %v5770, %v5768
        %v5807 = vpack.c.b16 %v5771, %v5769
        %v5808 = vpack.c.b16 %v5774, %v5772
        %v5809 = vpack.c.b16 %v5775, %v5773
        %v5810 = vpack.c.b16 %v5778, %v5776
        %v5811 = vpack.c.b16 %v5779, %v5777
        %v5812 = vpack.c.b16 %v5782, %v5780
        %v5813 = vpack.c.b16 %v5783, %v5781
        %v5814 = vpack.c.b16 %v5786, %v5784
        %v5815 = vpack.c.b16 %v5787, %v5785
        %v5816 = vpack.c.b16 %v5788, %v5788
        %v5817 = vpack.c.b16 %v5789, %v5789
        %v5845 = vsel %vm5192, %v5672, 0
        %v5848 = vsel %vm5192, %v5674, 0
        %v5851 = vsel %vm5192, %v5676, 0
        %v5854 = vsel %vm5192, %v5678, 0
        %v5857 = vsel %vm5192, %v5680, 0
        %v5860 = vsel %vm5208, %v5816, 0
        %v5863 = vsel %vm5208, %v5817, 0
        %5865 = vmatprep.subr.bf16.mxu0 %v5805
        %5866 = vmatpush1.bf16.msra.mxu0 %v5804
        %5867 = vmatprep.subr.bf16.mxu0 %v5803
        %5868 = vmatpush1.bf16.msra.mxu0 %v5802
        %5869 = vmatprep.subr.bf16.mxu0 %v5801
        %5870 = vmatpush1.bf16.msra.mxu0 %v5800
        %5871 = vmatprep.subr.bf16.mxu0 %v5799
        %5872 = vmatpush1.bf16.msra.mxu0 %v5798
        %5873 = vmatprep.subr.bf16.mxu0 %v5797
        %5874 = vmatpush1.bf16.msra.mxu0 %v5796
        %5875 = vmatprep.subr.bf16.mxu0 %v5795
        %5876 = vmatpush1.bf16.msra.mxu0 %v5794
        %5877 = vmatprep.subr.bf16.mxu0 %v5793
        %5878 = vmatpush1.bf16.msra.mxu0 %v5792
        %5879 = vmatprep.subr.bf16.mxu0 %v5791
        %5880 = vmatpush1.bf16.msra.mxu0 %v5790
        %5881 = vmatprep.subr.bf16.mxu0 0
        %5882 = vmatpush2.bf16.msra.mxu0 0
        %5883 = vmatprep.subr.bf16.mxu0 0
        %5884 = vmatpush2.bf16.msra.mxu0 0
        %5885 = vmatprep.subr.bf16.mxu0 %v5863
        %5886 = vmatpush2.bf16.msra.mxu0 %v5860
        %5887 = vmatprep.subr.bf16.mxu0 %v5815
        %5888 = vmatpush2.bf16.msra.mxu0 %v5814
        %5889 = vmatprep.subr.bf16.mxu0 %v5813
        %5890 = vmatpush2.bf16.msra.mxu0 %v5812
        %5891 = vmatprep.subr.bf16.mxu0 %v5811
        %5892 = vmatpush2.bf16.msra.mxu0 %v5810
        %5893 = vmatprep.subr.bf16.mxu0 %v5809
        %5894 = vmatpush2.bf16.msra.mxu0 %v5808
        %5895 = vmatprep.subr.bf16.mxu0 %v5807
        %5896 = vmatpush2.bf16.msra.mxu0 %v5806
        %5897 = vmatprep.mubr.bf16.mxu0 %v5845
        %5898 = vmatmul.mubr.bf16.gmra.mxu0 %v5671
        %v5899 = vpop.f32.mrf.mxu0
        %v5900 = vadd.f32 0.0, %v5899
        %v5901 = vpop.f32.mrf.mxu0
        %v5902 = vadd.f32 0.0, %v5901
        %v5903 = vpop.f32.mrf.mxu0
        %v5904 = vadd.f32 0.0, %v5903
        %v5905 = vpop.f32.mrf.mxu0
        %v5906 = vadd.f32 0.0, %v5905
        %5907 = vmatprep.mubr.bf16.mxu0 %v5848
        %5908 = vmatmul.mubr.bf16.gmra.mxu0 %v5673
        %v5909 = vpop.f32.mrf.mxu0
        %v5910 = vadd.f32 0.0, %v5909
        %v5911 = vpop.f32.mrf.mxu0
        %v5912 = vadd.f32 0.0, %v5911
        %v5913 = vpop.f32.mrf.mxu0
        %v5914 = vadd.f32 0.0, %v5913
        %v5915 = vpop.f32.mrf.mxu0
        %v5916 = vadd.f32 0.0, %v5915
        %5917 = vmatprep.mubr.bf16.mxu0 %v5851
        %5918 = vmatmul.mubr.bf16.gmra.mxu0 %v5675
        %v5919 = vpop.f32.mrf.mxu0
        %v5920 = vadd.f32 0.0, %v5919
        %v5921 = vpop.f32.mrf.mxu0
        %v5922 = vadd.f32 0.0, %v5921
        %v5923 = vpop.f32.mrf.mxu0
        %v5924 = vadd.f32 0.0, %v5923
        %v5925 = vpop.f32.mrf.mxu0
        %v5926 = vadd.f32 0.0, %v5925
        %5927 = vmatprep.mubr.bf16.mxu0 %v5854
        %5928 = vmatmul.mubr.bf16.gmra.mxu0 %v5677
        %v5929 = vpop.f32.mrf.mxu0
        %v5930 = vadd.f32 0.0, %v5929
        %v5931 = vpop.f32.mrf.mxu0
        %v5932 = vadd.f32 0.0, %v5931
        %v5933 = vpop.f32.mrf.mxu0
        %v5934 = vadd.f32 0.0, %v5933
        %v5935 = vpop.f32.mrf.mxu0
        %v5936 = vadd.f32 0.0, %v5935
        %5937 = vmatprep.mubr.bf16.mxu0 %v5857
        %5938 = vmatmul.mubr.bf16.gmra.mxu0 %v5679
        %v5939 = vpop.f32.mrf.mxu0
        %v5940 = vadd.f32 0.0, %v5939
        %v5941 = vpop.f32.mrf.mxu0
        %v5942 = vadd.f32 0.0, %v5941
        %v5943 = vpop.f32.mrf.mxu0
        %v5944 = vadd.f32 0.0, %v5943
        %v5945 = vpop.f32.mrf.mxu0
        %v5946 = vadd.f32 0.0, %v5945
        %5947 = vdwg.mxu0
        %v5948 = vadd.f32 %v5489, %v5900
        %v5949 = vadd.f32 %v5491, %v5902
        %v5950 = vadd.f32 %v5493, %v5904
        %v5951 = vadd.f32 %v5495, %v5906
        %v5952 = vadd.f32 %v5499, %v5910
        %v5953 = vadd.f32 %v5501, %v5912
        %v5954 = vadd.f32 %v5503, %v5914
        %v5955 = vadd.f32 %v5505, %v5916
        %v5956 = vadd.f32 %v5509, %v5920
        %v5957 = vadd.f32 %v5511, %v5922
        %v5958 = vadd.f32 %v5513, %v5924
        %v5959 = vadd.f32 %v5515, %v5926
        %v5960 = vadd.f32 %v5519, %v5930
        %v5961 = vadd.f32 %v5521, %v5932
        %v5962 = vadd.f32 %v5523, %v5934
        %v5963 = vadd.f32 %v5525, %v5936
        %v5964 = vadd.f32 %v5529, %v5940
        %v5965 = vadd.f32 %v5531, %v5942
        %v5966 = vadd.f32 %v5533, %v5944
        %v5967 = vadd.f32 %v5535, %v5946
        %s5968 = scalar_lea.vmem %s7, 120
        %v5969 = vld [vmem:[%s5968] sm:$0xf]
        %v5970 = vld [vmem:[%s5968 + $0x4] sm:$0xf]
        %v5971 = vld [vmem:[%s5968 + $0x8] sm:$0xf]
        %v5972 = vld [vmem:[%s5968 + $0xc] sm:$0xf]
        %v5973 = vld [vmem:[%s5968 + $0x10] sm:$0xf]
        %v5974 = vld [vmem:[%s5968 + $0x14] sm:$0xf]
        %v5975 = vld [vmem:[%s5968 + $0x18] sm:$0xf]
        %v5976 = vld [vmem:[%s5968 + $0x1c] sm:$0xf]
        %v5977 = vld [vmem:[%s5968 + $0x20] sm:$0xf]
        %v5978 = vld [vmem:[%s5968 + $0x24] sm:$0xf]
        %v5989 = vunpack.c.l.b16 %v5969
        %v5990 = vunpack.c.l.b16 %v5970
        %v5991 = vunpack.c.l.b16 %v5971
        %v5992 = vunpack.c.l.b16 %v5972
        %v5993 = vunpack.c.l.b16 %v5973
        %v5994 = vunpack.c.l.b16 %v5974
        %v5995 = vunpack.c.l.b16 %v5975
        %v5996 = vunpack.c.l.b16 %v5976
        %v5997 = vunpack.c.l.b16 %v5977
        %v5998 = vunpack.c.l.b16 %v5978
        %v5999 = vpack.c.b16 %v5990, %v5989
        %v6000 = vpack.c.b16 %v5992, %v5991
        %v6001 = vpack.c.b16 %v5994, %v5993
        %v6002 = vpack.c.b16 %v5996, %v5995
        %v6003 = vpack.c.b16 %v5998, %v5997
        %v6005 = vsel %vm4749, %v5999, 0
        %v6008 = vsel %vm4749, %v6000, 0
        %v6011 = vsel %vm4749, %v6001, 0
        %v6014 = vsel %vm4749, %v6002, 0
        %v6017 = vsel %vm4749, %v6003, 0
        %6019 = vmatprep.subr.bf16.mxu0 0
        %6020 = vmatpush1.bf16.msra.mxu0 0
        %6021 = vmatprep.subr.bf16.mxu0 %v4713
        %6022 = vmatpush1.bf16.msra.mxu0 %v4712
        %6023 = vmatprep.subr.bf16.mxu0 %v4711
        %6024 = vmatpush1.bf16.msra.mxu0 %v4710
        %6025 = vmatprep.subr.bf16.mxu0 %v4709
        %6026 = vmatpush1.bf16.msra.mxu0 %v4708
        %6027 = vmatprep.subr.bf16.mxu0 %v4707
        %6028 = vmatpush1.bf16.msra.mxu0 %v4706
        %6029 = vmatprep.subr.bf16.mxu0 %v4705
        %6030 = vmatpush1.bf16.msra.mxu0 %v4704
        %6031 = vmatprep.subr.bf16.mxu0 %v4703
        %6032 = vmatpush1.bf16.msra.mxu0 %v4702
        %6033 = vmatprep.subr.bf16.mxu0 %v4701
        %6034 = vmatpush1.bf16.msra.mxu0 %v4700
        %6035 = vmatprep.subr.bf16.mxu0 0
        %6036 = vmatpush2.bf16.msra.mxu0 0
        %6037 = vmatprep.subr.bf16.mxu0 0
        %6038 = vmatpush2.bf16.msra.mxu0 0
        %6039 = vmatprep.subr.bf16.mxu0 0
        %6040 = vmatpush2.bf16.msra.mxu0 0
        %6041 = vmatprep.subr.bf16.mxu0 0
        %6042 = vmatpush2.bf16.msra.mxu0 0
        %6043 = vmatprep.subr.bf16.mxu0 0
        %6044 = vmatpush2.bf16.msra.mxu0 0
        %6045 = vmatprep.subr.bf16.mxu0 0
        %6046 = vmatpush2.bf16.msra.mxu0 0
        %6047 = vmatprep.subr.bf16.mxu0 0
        %6048 = vmatpush2.bf16.msra.mxu0 0
        %6049 = vmatprep.subr.bf16.mxu0 0
        %6050 = vmatpush2.bf16.msra.mxu0 0
        %6051 = vmatprep.mubr.bf16.mxu0 0
        %6052 = vmatmul.mubr.bf16.gmra.mxu0 %v6005
        %v6053 = vpop.f32.mrf.mxu0
        %v6054 = vadd.f32 0.0, %v6053
        %v6055 = vpop.f32.mrf.mxu0
        %v6056 = vadd.f32 0.0, %v6055
        %v6057 = vpop.f32.mrf.mxu0
        %v6058 = vadd.f32 0.0, %v6057
        %v6059 = vpop.f32.mrf.mxu0
        %v6060 = vadd.f32 0.0, %v6059
        %6061 = vmatprep.mubr.bf16.mxu0 0
        %6062 = vmatmul.mubr.bf16.gmra.mxu0 %v6008
        %v6063 = vpop.f32.mrf.mxu0
        %v6064 = vadd.f32 0.0, %v6063
        %v6065 = vpop.f32.mrf.mxu0
        %v6066 = vadd.f32 0.0, %v6065
        %v6067 = vpop.f32.mrf.mxu0
        %v6068 = vadd.f32 0.0, %v6067
        %v6069 = vpop.f32.mrf.mxu0
        %v6070 = vadd.f32 0.0, %v6069
        %6071 = vmatprep.mubr.bf16.mxu0 0
        %6072 = vmatmul.mubr.bf16.gmra.mxu0 %v6011
        %v6073 = vpop.f32.mrf.mxu0
        %v6074 = vadd.f32 0.0, %v6073
        %v6075 = vpop.f32.mrf.mxu0
        %v6076 = vadd.f32 0.0, %v6075
        %v6077 = vpop.f32.mrf.mxu0
        %v6078 = vadd.f32 0.0, %v6077
        %v6079 = vpop.f32.mrf.mxu0
        %v6080 = vadd.f32 0.0, %v6079
        %6081 = vmatprep.mubr.bf16.mxu0 0
        %6082 = vmatmul.mubr.bf16.gmra.mxu0 %v6014
        %v6083 = vpop.f32.mrf.mxu0
        %v6084 = vadd.f32 0.0, %v6083
        %v6085 = vpop.f32.mrf.mxu0
        %v6086 = vadd.f32 0.0, %v6085
        %v6087 = vpop.f32.mrf.mxu0
        %v6088 = vadd.f32 0.0, %v6087
        %v6089 = vpop.f32.mrf.mxu0
        %v6090 = vadd.f32 0.0, %v6089
        %6091 = vmatprep.mubr.bf16.mxu0 0
        %6092 = vmatmul.mubr.bf16.gmra.mxu0 %v6017
        %v6093 = vpop.f32.mrf.mxu0
        %v6094 = vadd.f32 0.0, %v6093
        %v6095 = vpop.f32.mrf.mxu0
        %v6096 = vadd.f32 0.0, %v6095
        %v6097 = vpop.f32.mrf.mxu0
        %v6098 = vadd.f32 0.0, %v6097
        %v6099 = vpop.f32.mrf.mxu0
        %v6100 = vadd.f32 0.0, %v6099
        %6101 = vdwg.mxu0
        %v6102 = vpack.c.bf16 %v6058, %v6054
        %v6103 = vpack.c.bf16 %v6060, %v6056
        %v6104 = vpack.c.bf16 %v6068, %v6064
        %v6105 = vpack.c.bf16 %v6070, %v6066
        %v6106 = vpack.c.bf16 %v6078, %v6074
        %v6107 = vpack.c.bf16 %v6080, %v6076
        %v6108 = vpack.c.bf16 %v6088, %v6084
        %v6109 = vpack.c.bf16 %v6090, %v6086
        %v6110 = vpack.c.bf16 %v6098, %v6094
        %v6111 = vpack.c.bf16 %v6100, %v6096
        %s6112 = scalar_lea.vmem %s5, 648
        %v6113 = vld [vmem:[%s6112] sm:$0xff]
        %v6114 = vld [vmem:[%s6112 + $0x8] sm:$0xff]
        %v6115 = vld [vmem:[%s6112 + $0x10] sm:$0xff]
        %v6116 = vld [vmem:[%s6112 + $0x18] sm:$0xff]
        %v6117 = vld [vmem:[%s6112 + $0x20] sm:$0xff]
        %v6118 = vld [vmem:[%s6112 + $0x28] sm:$0xff]
        %v6119 = vld [vmem:[%s6112 + $0x30] sm:$0xff]
        %v6120 = vld [vmem:[%s6112 + $0x38] sm:$0xff]
        %v6121 = vld [vmem:[%s6112 + $0x40] sm:$0xff]
        %v6122 = vld [vmem:[%s6112 + $0x48] sm:$0xff]
        %v6123 = vld [vmem:[%s6112 + $0x50] sm:$0xff]
        %v6124 = vld [vmem:[%s6112 + $0x58] sm:$0xff]
        %v6125 = vld [vmem:[%s6112 + $0x60] sm:$0xff]
        %v6126 = vld [vmem:[%s6112 + $0x68] sm:$0xff]
        %v6127 = vld [vmem:[%s6112 + $0x70] sm:$0xff]
        %v6128 = vld [vmem:[%s6112 + $0x78] sm:$0xff]
        %v6129 = vld [vmem:[%s6112 + $0x80] sm:$0xff]
        %v6130 = vld [vmem:[%s6112 + $0x88] sm:$0xff]
        %v6131 = vld [vmem:[%s6112 + $0x90] sm:$0xff]
        %v6132 = vld [vmem:[%s6112 + $0x98] sm:$0xff]
        %v6133 = vld [vmem:[%s6112 + $0xa0] sm:$0xff]
        %v6134 = vld [vmem:[%s6112 + $0xa8] sm:$0xff]
        %v6135 = vld [vmem:[%s6112 + $0xb0] sm:$0xff]
        %v6136 = vld [vmem:[%s6112 + $0xb8] sm:$0xff]
        %v6137 = vld [vmem:[%s6112 + $0xc0] sm:$0xff]
        %v6138 = vld [vmem:[%s6112 + $0xc8] sm:$0xff]
        %v6139 = vld [vmem:[%s6112 + $0xd0] sm:$0xff]
        %v6167 = vunpack.c.l.b16 %v6113
        %v6168 = vunpack.c.h.b16 %v6113
        %v6169 = vunpack.c.l.b16 %v6114
        %v6170 = vunpack.c.h.b16 %v6114
        %v6171 = vunpack.c.l.b16 %v6115
        %v6172 = vunpack.c.h.b16 %v6115
        %v6173 = vunpack.c.l.b16 %v6116
        %v6174 = vunpack.c.h.b16 %v6116
        %v6175 = vunpack.c.l.b16 %v6117
        %v6176 = vunpack.c.h.b16 %v6117
        %v6177 = vunpack.c.l.b16 %v6118
        %v6178 = vunpack.c.h.b16 %v6118
        %v6179 = vunpack.c.l.b16 %v6119
        %v6180 = vunpack.c.h.b16 %v6119
        %v6181 = vunpack.c.l.b16 %v6120
        %v6182 = vunpack.c.h.b16 %v6120
        %v6183 = vunpack.c.l.b16 %v6121
        %v6184 = vunpack.c.h.b16 %v6121
        %v6185 = vunpack.c.l.b16 %v6122
        %v6186 = vunpack.c.h.b16 %v6122
        %v6187 = vunpack.c.l.b16 %v6123
        %v6188 = vunpack.c.h.b16 %v6123
        %v6189 = vunpack.c.l.b16 %v6124
        %v6190 = vunpack.c.h.b16 %v6124
        %v6191 = vunpack.c.l.b16 %v6125
        %v6192 = vunpack.c.h.b16 %v6125
        %v6193 = vunpack.c.l.b16 %v6126
        %v6194 = vunpack.c.h.b16 %v6126
        %v6195 = vunpack.c.l.b16 %v6127
        %v6196 = vunpack.c.h.b16 %v6127
        %v6197 = vunpack.c.l.b16 %v6128
        %v6198 = vunpack.c.h.b16 %v6128
        %v6199 = vunpack.c.l.b16 %v6129
        %v6200 = vunpack.c.h.b16 %v6129
        %v6201 = vunpack.c.l.b16 %v6130
        %v6202 = vunpack.c.h.b16 %v6130
        %v6203 = vunpack.c.l.b16 %v6131
        %v6204 = vunpack.c.h.b16 %v6131
        %v6205 = vunpack.c.l.b16 %v6132
        %v6206 = vunpack.c.h.b16 %v6132
        %v6207 = vunpack.c.l.b16 %v6133
        %v6208 = vunpack.c.h.b16 %v6133
        %v6209 = vunpack.c.l.b16 %v6134
        %v6210 = vunpack.c.h.b16 %v6134
        %v6211 = vunpack.c.l.b16 %v6135
        %v6212 = vunpack.c.h.b16 %v6135
        %v6213 = vunpack.c.l.b16 %v6136
        %v6214 = vunpack.c.h.b16 %v6136
        %v6215 = vunpack.c.l.b16 %v6137
        %v6216 = vunpack.c.h.b16 %v6137
        %v6217 = vunpack.c.l.b16 %v6138
        %v6218 = vunpack.c.h.b16 %v6138
        %v6219 = vunpack.c.l.b16 %v6139
        %v6220 = vunpack.c.h.b16 %v6139
        %v6221 = vpack.c.b16 %v6169, %v6167
        %v6222 = vpack.c.b16 %v6170, %v6168
        %v6223 = vpack.c.b16 %v6173, %v6171
        %v6224 = vpack.c.b16 %v6174, %v6172
        %v6225 = vpack.c.b16 %v6177, %v6175
        %v6226 = vpack.c.b16 %v6178, %v6176
        %v6227 = vpack.c.b16 %v6181, %v6179
        %v6228 = vpack.c.b16 %v6182, %v6180
        %v6229 = vpack.c.b16 %v6185, %v6183
        %v6230 = vpack.c.b16 %v6186, %v6184
        %v6231 = vpack.c.b16 %v6189, %v6187
        %v6232 = vpack.c.b16 %v6190, %v6188
        %v6233 = vpack.c.b16 %v6193, %v6191
        %v6234 = vpack.c.b16 %v6194, %v6192
        %v6235 = vpack.c.b16 %v6197, %v6195
        %v6236 = vpack.c.b16 %v6198, %v6196
        %v6237 = vpack.c.b16 %v6201, %v6199
        %v6238 = vpack.c.b16 %v6202, %v6200
        %v6239 = vpack.c.b16 %v6205, %v6203
        %v6240 = vpack.c.b16 %v6206, %v6204
        %v6241 = vpack.c.b16 %v6209, %v6207
        %v6242 = vpack.c.b16 %v6210, %v6208
        %v6243 = vpack.c.b16 %v6213, %v6211
        %v6244 = vpack.c.b16 %v6214, %v6212
        %v6245 = vpack.c.b16 %v6217, %v6215
        %v6246 = vpack.c.b16 %v6218, %v6216
        %v6247 = vpack.c.b16 %v6219, %v6219
        %v6248 = vpack.c.b16 %v6220, %v6220
        %v6276 = vsel %vm5192, %v6103, 0
        %v6279 = vsel %vm5192, %v6105, 0
        %v6282 = vsel %vm5192, %v6107, 0
        %v6285 = vsel %vm5192, %v6109, 0
        %v6288 = vsel %vm5192, %v6111, 0
        %v6291 = vsel %vm5208, %v6247, 0
        %v6294 = vsel %vm5208, %v6248, 0
        %6296 = vmatprep.subr.bf16.mxu0 %v6236
        %6297 = vmatpush1.bf16.msra.mxu0 %v6235
        %6298 = vmatprep.subr.bf16.mxu0 %v6234
        %6299 = vmatpush1.bf16.msra.mxu0 %v6233
        %6300 = vmatprep.subr.bf16.mxu0 %v6232
        %6301 = vmatpush1.bf16.msra.mxu0 %v6231
        %6302 = vmatprep.subr.bf16.mxu0 %v6230
        %6303 = vmatpush1.bf16.msra.mxu0 %v6229
        %6304 = vmatprep.subr.bf16.mxu0 %v6228
        %6305 = vmatpush1.bf16.msra.mxu0 %v6227
        %6306 = vmatprep.subr.bf16.mxu0 %v6226
        %6307 = vmatpush1.bf16.msra.mxu0 %v6225
        %6308 = vmatprep.subr.bf16.mxu0 %v6224
        %6309 = vmatpush1.bf16.msra.mxu0 %v6223
        %6310 = vmatprep.subr.bf16.mxu0 %v6222
        %6311 = vmatpush1.bf16.msra.mxu0 %v6221
        %6312 = vmatprep.subr.bf16.mxu0 0
        %6313 = vmatpush2.bf16.msra.mxu0 0
        %6314 = vmatprep.subr.bf16.mxu0 0
        %6315 = vmatpush2.bf16.msra.mxu0 0
        %6316 = vmatprep.subr.bf16.mxu0 %v6294
        %6317 = vmatpush2.bf16.msra.mxu0 %v6291
        %6318 = vmatprep.subr.bf16.mxu0 %v6246
        %6319 = vmatpush2.bf16.msra.mxu0 %v6245
        %6320 = vmatprep.subr.bf16.mxu0 %v6244
        %6321 = vmatpush2.bf16.msra.mxu0 %v6243
        %6322 = vmatprep.subr.bf16.mxu0 %v6242
        %6323 = vmatpush2.bf16.msra.mxu0 %v6241
        %6324 = vmatprep.subr.bf16.mxu0 %v6240
        %6325 = vmatpush2.bf16.msra.mxu0 %v6239
        %6326 = vmatprep.subr.bf16.mxu0 %v6238
        %6327 = vmatpush2.bf16.msra.mxu0 %v6237
        %6328 = vmatprep.mubr.bf16.mxu0 %v6276
        %6329 = vmatmul.mubr.bf16.gmra.mxu0 %v6102
        %v6330 = vpop.f32.mrf.mxu0
        %v6331 = vadd.f32 0.0, %v6330
        %v6332 = vpop.f32.mrf.mxu0
        %v6333 = vadd.f32 0.0, %v6332
        %v6334 = vpop.f32.mrf.mxu0
        %v6335 = vadd.f32 0.0, %v6334
        %v6336 = vpop.f32.mrf.mxu0
        %v6337 = vadd.f32 0.0, %v6336
        %6338 = vmatprep.mubr.bf16.mxu0 %v6279
        %6339 = vmatmul.mubr.bf16.gmra.mxu0 %v6104
        %v6340 = vpop.f32.mrf.mxu0
        %v6341 = vadd.f32 0.0, %v6340
        %v6342 = vpop.f32.mrf.mxu0
        %v6343 = vadd.f32 0.0, %v6342
        %v6344 = vpop.f32.mrf.mxu0
        %v6345 = vadd.f32 0.0, %v6344
        %v6346 = vpop.f32.mrf.mxu0
        %v6347 = vadd.f32 0.0, %v6346
        %6348 = vmatprep.mubr.bf16.mxu0 %v6282
        %6349 = vmatmul.mubr.bf16.gmra.mxu0 %v6106
        %v6350 = vpop.f32.mrf.mxu0
        %v6351 = vadd.f32 0.0, %v6350
        %v6352 = vpop.f32.mrf.mxu0
        %v6353 = vadd.f32 0.0, %v6352
        %v6354 = vpop.f32.mrf.mxu0
        %v6355 = vadd.f32 0.0, %v6354
        %v6356 = vpop.f32.mrf.mxu0
        %v6357 = vadd.f32 0.0, %v6356
        %6358 = vmatprep.mubr.bf16.mxu0 %v6285
        %6359 = vmatmul.mubr.bf16.gmra.mxu0 %v6108
        %v6360 = vpop.f32.mrf.mxu0
        %v6361 = vadd.f32 0.0, %v6360
        %v6362 = vpop.f32.mrf.mxu0
        %v6363 = vadd.f32 0.0, %v6362
        %v6364 = vpop.f32.mrf.mxu0
        %v6365 = vadd.f32 0.0, %v6364
        %v6366 = vpop.f32.mrf.mxu0
        %v6367 = vadd.f32 0.0, %v6366
        %6368 = vmatprep.mubr.bf16.mxu0 %v6288
        %6369 = vmatmul.mubr.bf16.gmra.mxu0 %v6110
        %v6370 = vpop.f32.mrf.mxu0
        %v6371 = vadd.f32 0.0, %v6370
        %v6372 = vpop.f32.mrf.mxu0
        %v6373 = vadd.f32 0.0, %v6372
        %v6374 = vpop.f32.mrf.mxu0
        %v6375 = vadd.f32 0.0, %v6374
        %v6376 = vpop.f32.mrf.mxu0
        %v6377 = vadd.f32 0.0, %v6376
        %6378 = vdwg.mxu0
        %v6379 = vadd.f32 %v5948, %v6331
        %v6380 = vadd.f32 %v5949, %v6333
        %v6381 = vadd.f32 %v5950, %v6335
        %v6382 = vadd.f32 %v5951, %v6337
        %v6383 = vadd.f32 %v5952, %v6341
        %v6384 = vadd.f32 %v5953, %v6343
        %v6385 = vadd.f32 %v5954, %v6345
        %v6386 = vadd.f32 %v5955, %v6347
        %v6387 = vadd.f32 %v5956, %v6351
        %v6388 = vadd.f32 %v5957, %v6353
        %v6389 = vadd.f32 %v5958, %v6355
        %v6390 = vadd.f32 %v5959, %v6357
        %v6391 = vadd.f32 %v5960, %v6361
        %v6392 = vadd.f32 %v5961, %v6363
        %v6393 = vadd.f32 %v5962, %v6365
        %v6394 = vadd.f32 %v5963, %v6367
        %v6395 = vadd.f32 %v5964, %v6371
        %v6396 = vadd.f32 %v5965, %v6373
        %v6397 = vadd.f32 %v5966, %v6375
        %v6398 = vadd.f32 %v5967, %v6377
        %s6399 = scalar_lea.vmem %s7, 160
        %v6400 = vld [vmem:[%s6399] sm:$0xf]
        %v6401 = vld [vmem:[%s6399 + $0x4] sm:$0xf]
        %v6402 = vld [vmem:[%s6399 + $0x8] sm:$0xf]
        %v6403 = vld [vmem:[%s6399 + $0xc] sm:$0xf]
        %v6404 = vld [vmem:[%s6399 + $0x10] sm:$0xf]
        %v6405 = vld [vmem:[%s6399 + $0x14] sm:$0xf]
        %v6406 = vld [vmem:[%s6399 + $0x18] sm:$0xf]
        %v6407 = vld [vmem:[%s6399 + $0x1c] sm:$0xf]
        %v6408 = vld [vmem:[%s6399 + $0x20] sm:$0xf]
        %v6409 = vld [vmem:[%s6399 + $0x24] sm:$0xf]
        %v6420 = vunpack.c.l.b16 %v6400
        %v6421 = vunpack.c.l.b16 %v6401
        %v6422 = vunpack.c.l.b16 %v6402
        %v6423 = vunpack.c.l.b16 %v6403
        %v6424 = vunpack.c.l.b16 %v6404
        %v6425 = vunpack.c.l.b16 %v6405
        %v6426 = vunpack.c.l.b16 %v6406
        %v6427 = vunpack.c.l.b16 %v6407
        %v6428 = vunpack.c.l.b16 %v6408
        %v6429 = vunpack.c.l.b16 %v6409
        %v6430 = vpack.c.b16 %v6421, %v6420
        %v6431 = vpack.c.b16 %v6423, %v6422
        %v6432 = vpack.c.b16 %v6425, %v6424
        %v6433 = vpack.c.b16 %v6427, %v6426
        %v6434 = vpack.c.b16 %v6429, %v6428
        %v6436 = vsel %vm4749, %v6430, 0
        %v6439 = vsel %vm4749, %v6431, 0
        %v6442 = vsel %vm4749, %v6432, 0
        %v6445 = vsel %vm4749, %v6433, 0
        %v6448 = vsel %vm4749, %v6434, 0
        %6450 = vmatprep.subr.bf16.mxu0 0
        %6451 = vmatpush1.bf16.msra.mxu0 0
        %6452 = vmatprep.subr.bf16.mxu0 %v4713
        %6453 = vmatpush1.bf16.msra.mxu0 %v4712
        %6454 = vmatprep.subr.bf16.mxu0 %v4711
        %6455 = vmatpush1.bf16.msra.mxu0 %v4710
        %6456 = vmatprep.subr.bf16.mxu0 %v4709
        %6457 = vmatpush1.bf16.msra.mxu0 %v4708
        %6458 = vmatprep.subr.bf16.mxu0 %v4707
        %6459 = vmatpush1.bf16.msra.mxu0 %v4706
        %6460 = vmatprep.subr.bf16.mxu0 %v4705
        %6461 = vmatpush1.bf16.msra.mxu0 %v4704
        %6462 = vmatprep.subr.bf16.mxu0 %v4703
        %6463 = vmatpush1.bf16.msra.mxu0 %v4702
        %6464 = vmatprep.subr.bf16.mxu0 %v4701
        %6465 = vmatpush1.bf16.msra.mxu0 %v4700
        %6466 = vmatprep.subr.bf16.mxu0 0
        %6467 = vmatpush2.bf16.msra.mxu0 0
        %6468 = vmatprep.subr.bf16.mxu0 0
        %6469 = vmatpush2.bf16.msra.mxu0 0
        %6470 = vmatprep.subr.bf16.mxu0 0
        %6471 = vmatpush2.bf16.msra.mxu0 0
        %6472 = vmatprep.subr.bf16.mxu0 0
        %6473 = vmatpush2.bf16.msra.mxu0 0
        %6474 = vmatprep.subr.bf16.mxu0 0
        %6475 = vmatpush2.bf16.msra.mxu0 0
        %6476 = vmatprep.subr.bf16.mxu0 0
        %6477 = vmatpush2.bf16.msra.mxu0 0
        %6478 = vmatprep.subr.bf16.mxu0 0
        %6479 = vmatpush2.bf16.msra.mxu0 0
        %6480 = vmatprep.subr.bf16.mxu0 0
        %6481 = vmatpush2.bf16.msra.mxu0 0
        %6482 = vmatprep.mubr.bf16.mxu0 0
        %6483 = vmatmul.mubr.bf16.gmra.mxu0 %v6436
        %v6484 = vpop.f32.mrf.mxu0
        %v6485 = vadd.f32 0.0, %v6484
        %v6486 = vpop.f32.mrf.mxu0
        %v6487 = vadd.f32 0.0, %v6486
        %v6488 = vpop.f32.mrf.mxu0
        %v6489 = vadd.f32 0.0, %v6488
        %v6490 = vpop.f32.mrf.mxu0
        %v6491 = vadd.f32 0.0, %v6490
        %6492 = vmatprep.mubr.bf16.mxu0 0
        %6493 = vmatmul.mubr.bf16.gmra.mxu0 %v6439
        %v6494 = vpop.f32.mrf.mxu0
        %v6495 = vadd.f32 0.0, %v6494
        %v6496 = vpop.f32.mrf.mxu0
        %v6497 = vadd.f32 0.0, %v6496
        %v6498 = vpop.f32.mrf.mxu0
        %v6499 = vadd.f32 0.0, %v6498
        %v6500 = vpop.f32.mrf.mxu0
        %v6501 = vadd.f32 0.0, %v6500
        %6502 = vmatprep.mubr.bf16.mxu0 0
        %6503 = vmatmul.mubr.bf16.gmra.mxu0 %v6442
        %v6504 = vpop.f32.mrf.mxu0
        %v6505 = vadd.f32 0.0, %v6504
        %v6506 = vpop.f32.mrf.mxu0
        %v6507 = vadd.f32 0.0, %v6506
        %v6508 = vpop.f32.mrf.mxu0
        %v6509 = vadd.f32 0.0, %v6508
        %v6510 = vpop.f32.mrf.mxu0
        %v6511 = vadd.f32 0.0, %v6510
        %6512 = vmatprep.mubr.bf16.mxu0 0
        %6513 = vmatmul.mubr.bf16.gmra.mxu0 %v6445
        %v6514 = vpop.f32.mrf.mxu0
        %v6515 = vadd.f32 0.0, %v6514
        %v6516 = vpop.f32.mrf.mxu0
        %v6517 = vadd.f32 0.0, %v6516
        %v6518 = vpop.f32.mrf.mxu0
        %v6519 = vadd.f32 0.0, %v6518
        %v6520 = vpop.f32.mrf.mxu0
        %v6521 = vadd.f32 0.0, %v6520
        %6522 = vmatprep.mubr.bf16.mxu0 0
        %6523 = vmatmul.mubr.bf16.gmra.mxu0 %v6448
        %v6524 = vpop.f32.mrf.mxu0
        %v6525 = vadd.f32 0.0, %v6524
        %v6526 = vpop.f32.mrf.mxu0
        %v6527 = vadd.f32 0.0, %v6526
        %v6528 = vpop.f32.mrf.mxu0
        %v6529 = vadd.f32 0.0, %v6528
        %v6530 = vpop.f32.mrf.mxu0
        %v6531 = vadd.f32 0.0, %v6530
        %6532 = vdwg.mxu0
        %v6533 = vpack.c.bf16 %v6489, %v6485
        %v6534 = vpack.c.bf16 %v6491, %v6487
        %v6535 = vpack.c.bf16 %v6499, %v6495
        %v6536 = vpack.c.bf16 %v6501, %v6497
        %v6537 = vpack.c.bf16 %v6509, %v6505
        %v6538 = vpack.c.bf16 %v6511, %v6507
        %v6539 = vpack.c.bf16 %v6519, %v6515
        %v6540 = vpack.c.bf16 %v6521, %v6517
        %v6541 = vpack.c.bf16 %v6529, %v6525
        %v6542 = vpack.c.bf16 %v6531, %v6527
        %s6543 = scalar_lea.vmem %s5, 864
        %v6544 = vld [vmem:[%s6543] sm:$0xff]
        %v6545 = vld [vmem:[%s6543 + $0x8] sm:$0xff]
        %v6546 = vld [vmem:[%s6543 + $0x10] sm:$0xff]
        %v6547 = vld [vmem:[%s6543 + $0x18] sm:$0xff]
        %v6548 = vld [vmem:[%s6543 + $0x20] sm:$0xff]
        %v6549 = vld [vmem:[%s6543 + $0x28] sm:$0xff]
        %v6550 = vld [vmem:[%s6543 + $0x30] sm:$0xff]
        %v6551 = vld [vmem:[%s6543 + $0x38] sm:$0xff]
        %v6552 = vld [vmem:[%s6543 + $0x40] sm:$0xff]
        %v6553 = vld [vmem:[%s6543 + $0x48] sm:$0xff]
        %v6554 = vld [vmem:[%s6543 + $0x50] sm:$0xff]
        %v6555 = vld [vmem:[%s6543 + $0x58] sm:$0xff]
        %v6556 = vld [vmem:[%s6543 + $0x60] sm:$0xff]
        %v6557 = vld [vmem:[%s6543 + $0x68] sm:$0xff]
        %v6558 = vld [vmem:[%s6543 + $0x70] sm:$0xff]
        %v6559 = vld [vmem:[%s6543 + $0x78] sm:$0xff]
        %v6560 = vld [vmem:[%s6543 + $0x80] sm:$0xff]
        %v6561 = vld [vmem:[%s6543 + $0x88] sm:$0xff]
        %v6562 = vld [vmem:[%s6543 + $0x90] sm:$0xff]
        %v6563 = vld [vmem:[%s6543 + $0x98] sm:$0xff]
        %v6564 = vld [vmem:[%s6543 + $0xa0] sm:$0xff]
        %v6565 = vld [vmem:[%s6543 + $0xa8] sm:$0xff]
        %v6566 = vld [vmem:[%s6543 + $0xb0] sm:$0xff]
        %v6567 = vld [vmem:[%s6543 + $0xb8] sm:$0xff]
        %v6568 = vld [vmem:[%s6543 + $0xc0] sm:$0xff]
        %v6569 = vld [vmem:[%s6543 + $0xc8] sm:$0xff]
        %v6570 = vld [vmem:[%s6543 + $0xd0] sm:$0xff]
        %v6598 = vunpack.c.l.b16 %v6544
        %v6599 = vunpack.c.h.b16 %v6544
        %v6600 = vunpack.c.l.b16 %v6545
        %v6601 = vunpack.c.h.b16 %v6545
        %v6602 = vunpack.c.l.b16 %v6546
        %v6603 = vunpack.c.h.b16 %v6546
        %v6604 = vunpack.c.l.b16 %v6547
        %v6605 = vunpack.c.h.b16 %v6547
        %v6606 = vunpack.c.l.b16 %v6548
        %v6607 = vunpack.c.h.b16 %v6548
        %v6608 = vunpack.c.l.b16 %v6549
        %v6609 = vunpack.c.h.b16 %v6549
        %v6610 = vunpack.c.l.b16 %v6550
        %v6611 = vunpack.c.h.b16 %v6550
        %v6612 = vunpack.c.l.b16 %v6551
        %v6613 = vunpack.c.h.b16 %v6551
        %v6614 = vunpack.c.l.b16 %v6552
        %v6615 = vunpack.c.h.b16 %v6552
        %v6616 = vunpack.c.l.b16 %v6553
        %v6617 = vunpack.c.h.b16 %v6553
        %v6618 = vunpack.c.l.b16 %v6554
        %v6619 = vunpack.c.h.b16 %v6554
        %v6620 = vunpack.c.l.b16 %v6555
        %v6621 = vunpack.c.h.b16 %v6555
        %v6622 = vunpack.c.l.b16 %v6556
        %v6623 = vunpack.c.h.b16 %v6556
        %v6624 = vunpack.c.l.b16 %v6557
        %v6625 = vunpack.c.h.b16 %v6557
        %v6626 = vunpack.c.l.b16 %v6558
        %v6627 = vunpack.c.h.b16 %v6558
        %v6628 = vunpack.c.l.b16 %v6559
        %v6629 = vunpack.c.h.b16 %v6559
        %v6630 = vunpack.c.l.b16 %v6560
        %v6631 = vunpack.c.h.b16 %v6560
        %v6632 = vunpack.c.l.b16 %v6561
        %v6633 = vunpack.c.h.b16 %v6561
        %v6634 = vunpack.c.l.b16 %v6562
        %v6635 = vunpack.c.h.b16 %v6562
        %v6636 = vunpack.c.l.b16 %v6563
        %v6637 = vunpack.c.h.b16 %v6563
        %v6638 = vunpack.c.l.b16 %v6564
        %v6639 = vunpack.c.h.b16 %v6564
        %v6640 = vunpack.c.l.b16 %v6565
        %v6641 = vunpack.c.h.b16 %v6565
        %v6642 = vunpack.c.l.b16 %v6566
        %v6643 = vunpack.c.h.b16 %v6566
        %v6644 = vunpack.c.l.b16 %v6567
        %v6645 = vunpack.c.h.b16 %v6567
        %v6646 = vunpack.c.l.b16 %v6568
        %v6647 = vunpack.c.h.b16 %v6568
        %v6648 = vunpack.c.l.b16 %v6569
        %v6649 = vunpack.c.h.b16 %v6569
        %v6650 = vunpack.c.l.b16 %v6570
        %v6651 = vunpack.c.h.b16 %v6570
        %v6652 = vpack.c.b16 %v6600, %v6598
        %v6653 = vpack.c.b16 %v6601, %v6599
        %v6654 = vpack.c.b16 %v6604, %v6602
        %v6655 = vpack.c.b16 %v6605, %v6603
        %v6656 = vpack.c.b16 %v6608, %v6606
        %v6657 = vpack.c.b16 %v6609, %v6607
        %v6658 = vpack.c.b16 %v6612, %v6610
        %v6659 = vpack.c.b16 %v6613, %v6611
        %v6660 = vpack.c.b16 %v6616, %v6614
        %v6661 = vpack.c.b16 %v6617, %v6615
        %v6662 = vpack.c.b16 %v6620, %v6618
        %v6663 = vpack.c.b16 %v6621, %v6619
        %v6664 = vpack.c.b16 %v6624, %v6622
        %v6665 = vpack.c.b16 %v6625, %v6623
        %v6666 = vpack.c.b16 %v6628, %v6626
        %v6667 = vpack.c.b16 %v6629, %v6627
        %v6668 = vpack.c.b16 %v6632, %v6630
        %v6669 = vpack.c.b16 %v6633, %v6631
        %v6670 = vpack.c.b16 %v6636, %v6634
        %v6671 = vpack.c.b16 %v6637, %v6635
        %v6672 = vpack.c.b16 %v6640, %v6638
        %v6673 = vpack.c.b16 %v6641, %v6639
        %v6674 = vpack.c.b16 %v6644, %v6642
        %v6675 = vpack.c.b16 %v6645, %v6643
        %v6676 = vpack.c.b16 %v6648, %v6646
        %v6677 = vpack.c.b16 %v6649, %v6647
        %v6678 = vpack.c.b16 %v6650, %v6650
        %v6679 = vpack.c.b16 %v6651, %v6651
        %v6707 = vsel %vm5192, %v6534, 0
        %v6710 = vsel %vm5192, %v6536, 0
        %v6713 = vsel %vm5192, %v6538, 0
        %v6716 = vsel %vm5192, %v6540, 0
        %v6719 = vsel %vm5192, %v6542, 0
        %v6722 = vsel %vm5208, %v6678, 0
        %v6725 = vsel %vm5208, %v6679, 0
        %6727 = vmatprep.subr.bf16.mxu0 %v6667
        %6728 = vmatpush1.bf16.msra.mxu0 %v6666
        %6729 = vmatprep.subr.bf16.mxu0 %v6665
        %6730 = vmatpush1.bf16.msra.mxu0 %v6664
        %6731 = vmatprep.subr.bf16.mxu0 %v6663
        %6732 = vmatpush1.bf16.msra.mxu0 %v6662
        %6733 = vmatprep.subr.bf16.mxu0 %v6661
        %6734 = vmatpush1.bf16.msra.mxu0 %v6660
        %6735 = vmatprep.subr.bf16.mxu0 %v6659
        %6736 = vmatpush1.bf16.msra.mxu0 %v6658
        %6737 = vmatprep.subr.bf16.mxu0 %v6657
        %6738 = vmatpush1.bf16.msra.mxu0 %v6656
        %6739 = vmatprep.subr.bf16.mxu0 %v6655
        %6740 = vmatpush1.bf16.msra.mxu0 %v6654
        %6741 = vmatprep.subr.bf16.mxu0 %v6653
        %6742 = vmatpush1.bf16.msra.mxu0 %v6652
        %6743 = vmatprep.subr.bf16.mxu0 0
        %6744 = vmatpush2.bf16.msra.mxu0 0
        %6745 = vmatprep.subr.bf16.mxu0 0
        %6746 = vmatpush2.bf16.msra.mxu0 0
        %6747 = vmatprep.subr.bf16.mxu0 %v6725
        %6748 = vmatpush2.bf16.msra.mxu0 %v6722
        %6749 = vmatprep.subr.bf16.mxu0 %v6677
        %6750 = vmatpush2.bf16.msra.mxu0 %v6676
        %6751 = vmatprep.subr.bf16.mxu0 %v6675
        %6752 = vmatpush2.bf16.msra.mxu0 %v6674
        %6753 = vmatprep.subr.bf16.mxu0 %v6673
        %6754 = vmatpush2.bf16.msra.mxu0 %v6672
        %6755 = vmatprep.subr.bf16.mxu0 %v6671
        %6756 = vmatpush2.bf16.msra.mxu0 %v6670
        %6757 = vmatprep.subr.bf16.mxu0 %v6669
        %6758 = vmatpush2.bf16.msra.mxu0 %v6668
        %6759 = vmatprep.mubr.bf16.mxu0 %v6707
        %6760 = vmatmul.mubr.bf16.gmra.mxu0 %v6533
        %v6761 = vpop.f32.mrf.mxu0
        %v6762 = vadd.f32 0.0, %v6761
        %v6763 = vpop.f32.mrf.mxu0
        %v6764 = vadd.f32 0.0, %v6763
        %v6765 = vpop.f32.mrf.mxu0
        %v6766 = vadd.f32 0.0, %v6765
        %v6767 = vpop.f32.mrf.mxu0
        %v6768 = vadd.f32 0.0, %v6767
        %6769 = vmatprep.mubr.bf16.mxu0 %v6710
        %6770 = vmatmul.mubr.bf16.gmra.mxu0 %v6535
        %v6771 = vpop.f32.mrf.mxu0
        %v6772 = vadd.f32 0.0, %v6771
        %v6773 = vpop.f32.mrf.mxu0
        %v6774 = vadd.f32 0.0, %v6773
        %v6775 = vpop.f32.mrf.mxu0
        %v6776 = vadd.f32 0.0, %v6775
        %v6777 = vpop.f32.mrf.mxu0
        %v6778 = vadd.f32 0.0, %v6777
        %6779 = vmatprep.mubr.bf16.mxu0 %v6713
        %6780 = vmatmul.mubr.bf16.gmra.mxu0 %v6537
        %v6781 = vpop.f32.mrf.mxu0
        %v6782 = vadd.f32 0.0, %v6781
        %v6783 = vpop.f32.mrf.mxu0
        %v6784 = vadd.f32 0.0, %v6783
        %v6785 = vpop.f32.mrf.mxu0
        %v6786 = vadd.f32 0.0, %v6785
        %v6787 = vpop.f32.mrf.mxu0
        %v6788 = vadd.f32 0.0, %v6787
        %6789 = vmatprep.mubr.bf16.mxu0 %v6716
        %6790 = vmatmul.mubr.bf16.gmra.mxu0 %v6539
        %v6791 = vpop.f32.mrf.mxu0
        %v6792 = vadd.f32 0.0, %v6791
        %v6793 = vpop.f32.mrf.mxu0
        %v6794 = vadd.f32 0.0, %v6793
        %v6795 = vpop.f32.mrf.mxu0
        %v6796 = vadd.f32 0.0, %v6795
        %v6797 = vpop.f32.mrf.mxu0
        %v6798 = vadd.f32 0.0, %v6797
        %6799 = vmatprep.mubr.bf16.mxu0 %v6719
        %6800 = vmatmul.mubr.bf16.gmra.mxu0 %v6541
        %v6801 = vpop.f32.mrf.mxu0
        %v6802 = vadd.f32 0.0, %v6801
        %v6803 = vpop.f32.mrf.mxu0
        %v6804 = vadd.f32 0.0, %v6803
        %v6805 = vpop.f32.mrf.mxu0
        %v6806 = vadd.f32 0.0, %v6805
        %v6807 = vpop.f32.mrf.mxu0
        %v6808 = vadd.f32 0.0, %v6807
        %6809 = vdwg.mxu0
        %v6810 = vadd.f32 %v6379, %v6762
        %v6811 = vadd.f32 %v6380, %v6764
        %v6812 = vadd.f32 %v6381, %v6766
        %v6813 = vadd.f32 %v6382, %v6768
        %v6814 = vadd.f32 %v6383, %v6772
        %v6815 = vadd.f32 %v6384, %v6774
        %v6816 = vadd.f32 %v6385, %v6776
        %v6817 = vadd.f32 %v6386, %v6778
        %v6818 = vadd.f32 %v6387, %v6782
        %v6819 = vadd.f32 %v6388, %v6784
        %v6820 = vadd.f32 %v6389, %v6786
        %v6821 = vadd.f32 %v6390, %v6788
        %v6822 = vadd.f32 %v6391, %v6792
        %v6823 = vadd.f32 %v6392, %v6794
        %v6824 = vadd.f32 %v6393, %v6796
        %v6825 = vadd.f32 %v6394, %v6798
        %v6826 = vadd.f32 %v6395, %v6802
        %v6827 = vadd.f32 %v6396, %v6804
        %v6828 = vadd.f32 %v6397, %v6806
        %v6829 = vadd.f32 %v6398, %v6808
        %v6830 = vld [vmem:[%s6] sm:$0x3]
        %v6832 = vlaneseq
        %v6833 = vshrl.u32 %v6832, 7
        %v6834 = vsub.s32 0, %v6833
        %v6835 = vrot.slane %v6830, %v6834
        %v6836 = vlaneseq
        %v6837 = vshrl.u32 %v6836, 7
        %v6838 = vsub.s32 1, %v6837
        %v6839 = vrot.slane %v6830, %v6838
        %v6842 = vadd.f32 %v6810, %v6835
        %v6843 = vadd.f32 %v6811, %v6839
        %v6844 = vadd.f32 %v6812, %v6835
        %v6845 = vadd.f32 %v6813, %v6839
        %v6846 = vadd.f32 %v6814, %v6835
        %v6847 = vadd.f32 %v6815, %v6839
        %v6848 = vadd.f32 %v6816, %v6835
        %v6849 = vadd.f32 %v6817, %v6839
        %v6850 = vadd.f32 %v6818, %v6835
        %v6851 = vadd.f32 %v6819, %v6839
        %v6852 = vadd.f32 %v6820, %v6835
        %v6853 = vadd.f32 %v6821, %v6839
        %v6854 = vadd.f32 %v6822, %v6835
        %v6855 = vadd.f32 %v6823, %v6839
        %v6856 = vadd.f32 %v6824, %v6835
        %v6857 = vadd.f32 %v6825, %v6839
        %v6858 = vadd.f32 %v6826, %v6835
        %v6859 = vadd.f32 %v6827, %v6839
        %v6860 = vadd.f32 %v6828, %v6835
        %v6861 = vadd.f32 %v6829, %v6839
        %v6862 = vmax.f32 %v6842, 0.0
        %v6863 = vmax.f32 %v6843, 0.0
        %v6864 = vmax.f32 %v6844, 0.0
        %v6865 = vmax.f32 %v6845, 0.0
        %v6866 = vmax.f32 %v6846, 0.0
        %v6867 = vmax.f32 %v6847, 0.0
        %v6868 = vmax.f32 %v6848, 0.0
        %v6869 = vmax.f32 %v6849, 0.0
        %v6870 = vmax.f32 %v6850, 0.0
        %v6871 = vmax.f32 %v6851, 0.0
        %v6872 = vmax.f32 %v6852, 0.0
        %v6873 = vmax.f32 %v6853, 0.0
        %v6874 = vmax.f32 %v6854, 0.0
        %v6875 = vmax.f32 %v6855, 0.0
        %v6876 = vmax.f32 %v6856, 0.0
        %v6877 = vmax.f32 %v6857, 0.0
        %v6878 = vmax.f32 %v6858, 0.0
        %v6879 = vmax.f32 %v6859, 0.0
        %v6880 = vmax.f32 %v6860, 0.0
        %v6881 = vmax.f32 %v6861, 0.0
        %6902 = vrot.lane.b32.xlu0 %v6862, 112
        %v6903 = vpop.permute.xlu0 %6902
        %6904 = vrot.lane.b32.xlu0 %v6863, 112
        %v6905 = vpop.permute.xlu0 %6904
        %6906 = vrot.lane.b32.xlu0 %v6864, 112
        %v6907 = vpop.permute.xlu0 %6906
        %6908 = vrot.lane.b32.xlu0 %v6865, 112
        %v6909 = vpop.permute.xlu0 %6908
        %6910 = vrot.lane.b32.xlu0 %v6866, 112
        %v6911 = vpop.permute.xlu0 %6910
        %6912 = vrot.lane.b32.xlu0 %v6867, 112
        %v6913 = vpop.permute.xlu0 %6912
        %6914 = vrot.lane.b32.xlu0 %v6868, 112
        %v6915 = vpop.permute.xlu0 %6914
        %6916 = vrot.lane.b32.xlu0 %v6869, 112
        %v6917 = vpop.permute.xlu0 %6916
        %6918 = vrot.lane.b32.xlu0 %v6870, 112
        %v6919 = vpop.permute.xlu0 %6918
        %6920 = vrot.lane.b32.xlu0 %v6871, 112
        %v6921 = vpop.permute.xlu0 %6920
        %6922 = vrot.lane.b32.xlu0 %v6872, 112
        %v6923 = vpop.permute.xlu0 %6922
        %6924 = vrot.lane.b32.xlu0 %v6873, 112
        %v6925 = vpop.permute.xlu0 %6924
        %6926 = vrot.lane.b32.xlu0 %v6874, 112
        %v6927 = vpop.permute.xlu0 %6926
        %6928 = vrot.lane.b32.xlu0 %v6875, 112
        %v6929 = vpop.permute.xlu0 %6928
        %6930 = vrot.lane.b32.xlu0 %v6876, 112
        %v6931 = vpop.permute.xlu0 %6930
        %6932 = vrot.lane.b32.xlu0 %v6877, 112
        %v6933 = vpop.permute.xlu0 %6932
        %6934 = vrot.lane.b32.xlu0 %v6878, 112
        %v6935 = vpop.permute.xlu0 %6934
        %6936 = vrot.lane.b32.xlu0 %v6879, 112
        %v6937 = vpop.permute.xlu0 %6936
        %6938 = vrot.lane.b32.xlu0 %v6880, 112
        %v6939 = vpop.permute.xlu0 %6938
        %6940 = vrot.lane.b32.xlu0 %v6881, 112
        %v6941 = vpop.permute.xlu0 %6940
        %v6942 = vsel %vm4749, %v6903, %v6905
        %v6943 = vsel %vm4749, %v6907, %v6909
        %v6944 = vsel %vm4749, %v6911, %v6913
        %v6945 = vsel %vm4749, %v6915, %v6917
        %v6946 = vsel %vm4749, %v6919, %v6921
        %v6947 = vsel %vm4749, %v6923, %v6925
        %v6948 = vsel %vm4749, %v6927, %v6929
        %v6949 = vsel %vm4749, %v6931, %v6933
        %v6950 = vsel %vm4749, %v6935, %v6937
        %v6951 = vsel %vm4749, %v6939, %v6941
        %v6972 = vmax.f32 %v6862, %v6942
        %v6973 = vmax.f32 %v6863, %v6905
        %v6974 = vmax.f32 %v6864, %v6943
        %v6975 = vmax.f32 %v6865, %v6909
        %v6976 = vmax.f32 %v6866, %v6944
        %v6977 = vmax.f32 %v6867, %v6913
        %v6978 = vmax.f32 %v6868, %v6945
        %v6979 = vmax.f32 %v6869, %v6917
        %v6980 = vmax.f32 %v6870, %v6946
        %v6981 = vmax.f32 %v6871, %v6921
        %v6982 = vmax.f32 %v6872, %v6947
        %v6983 = vmax.f32 %v6873, %v6925
        %v6984 = vmax.f32 %v6874, %v6948
        %v6985 = vmax.f32 %v6875, %v6929
        %v6986 = vmax.f32 %v6876, %v6949
        %v6987 = vmax.f32 %v6877, %v6933
        %v6988 = vmax.f32 %v6878, %v6950
        %v6989 = vmax.f32 %v6879, %v6937
        %v6990 = vmax.f32 %v6880, %v6951
        %v6991 = vmax.f32 %v6881, %v6941
        %v6992 = vpack.c.bf16 %v6974, %v6972
        %v6993 = vpack.c.bf16 %v6975, %v6973
        %v6994 = vpack.c.bf16 %v6978, %v6976
        %v6995 = vpack.c.bf16 %v6979, %v6977
        %v6996 = vpack.c.bf16 %v6982, %v6980
        %v6997 = vpack.c.bf16 %v6983, %v6981
        %v6998 = vpack.c.bf16 %v6986, %v6984
        %v6999 = vpack.c.bf16 %v6987, %v6985
        %v7000 = vpack.c.bf16 %v6990, %v6988
        %v7001 = vpack.c.bf16 %v6991, %v6989
        %v7002 = vld [vmem:[%s8] sm:$0xf]
        %v7003 = vld [vmem:[%s8 + $0x4] sm:$0xf]
        %v7004 = vld [vmem:[%s8 + $0x8] sm:$0xf]
        %v7005 = vld [vmem:[%s8 + $0xc] sm:$0xf]
        %v7006 = vld [vmem:[%s8 + $0x10] sm:$0xf]
        %v7012 = vunpack.c.l.b16 %v7002
        %v7013 = vunpack.c.l.b16 %v7003
        %v7014 = vunpack.c.l.b16 %v7004
        %v7015 = vunpack.c.l.b16 %v7005
        %v7016 = vunpack.c.l.b16 %v7006
        %v7017 = vpack.c.b16 %v7013, %v7012
        %v7018 = vpack.c.b16 %v7015, %v7014
        %v7019 = vpack.c.b16 %v7016, %v7016
        %vm7020 = vcmask 654336
        %v7022 = vsel %vm7020, %v7017, 0
        %v7025 = vsel %vm7020, %v7018, 0
        %v7028 = vsel %vm7020, %v7019, 0
        %7030 = vmatprep.subr.bf16.mxu0 0
        %7031 = vmatpush1.bf16.msra.mxu0 0
        %7032 = vmatprep.subr.bf16.mxu0 0
        %7033 = vmatpush1.bf16.msra.mxu0 0
        %7034 = vmatprep.subr.bf16.mxu0 0
        %7035 = vmatpush1.bf16.msra.mxu0 0
        %7036 = vmatprep.subr.bf16.mxu0 %v7001
        %7037 = vmatpush1.bf16.msra.mxu0 %v7000
        %7038 = vmatprep.subr.bf16.mxu0 %v6999
        %7039 = vmatpush1.bf16.msra.mxu0 %v6998
        %7040 = vmatprep.subr.bf16.mxu0 %v6997
        %7041 = vmatpush1.bf16.msra.mxu0 %v6996
        %7042 = vmatprep.subr.bf16.mxu0 %v6995
        %7043 = vmatpush1.bf16.msra.mxu0 %v6994
        %7044 = vmatprep.subr.bf16.mxu0 %v6993
        %7045 = vmatpush1.bf16.msra.mxu0 %v6992
        %7046 = vmatprep.subr.bf16.mxu0 0
        %7047 = vmatpush2.bf16.msra.mxu0 0
        %7048 = vmatprep.subr.bf16.mxu0 0
        %7049 = vmatpush2.bf16.msra.mxu0 0
        %7050 = vmatprep.subr.bf16.mxu0 0
        %7051 = vmatpush2.bf16.msra.mxu0 0
        %7052 = vmatprep.subr.bf16.mxu0 0
        %7053 = vmatpush2.bf16.msra.mxu0 0
        %7054 = vmatprep.subr.bf16.mxu0 0
        %7055 = vmatpush2.bf16.msra.mxu0 0
        %7056 = vmatprep.subr.bf16.mxu0 0
        %7057 = vmatpush2.bf16.msra.mxu0 0
        %7058 = vmatprep.subr.bf16.mxu0 0
        %7059 = vmatpush2.bf16.msra.mxu0 0
        %7060 = vmatprep.subr.bf16.mxu0 0
        %7061 = vmatpush2.bf16.msra.mxu0 0
        %7062 = vmatprep.mubr.bf16.mxu0 0
        %7063 = vmatmul.mubr.bf16.gmra.mxu0 %v7022
        %v7064 = vpop.f32.mrf.mxu0
        %v7065 = vadd.f32 0.0, %v7064
        %v7066 = vpop.f32.mrf.mxu0
        %v7067 = vadd.f32 0.0, %v7066
        %v7068 = vpop.f32.mrf.mxu0
        %v7069 = vadd.f32 0.0, %v7068
        %v7070 = vpop.f32.mrf.mxu0
        %v7071 = vadd.f32 0.0, %v7070
        %7072 = vmatprep.mubr.bf16.mxu0 0
        %7073 = vmatmul.mubr.bf16.gmra.mxu0 %v7025
        %v7074 = vpop.f32.mrf.mxu0
        %v7075 = vadd.f32 0.0, %v7074
        %v7076 = vpop.f32.mrf.mxu0
        %v7077 = vadd.f32 0.0, %v7076
        %v7078 = vpop.f32.mrf.mxu0
        %v7079 = vadd.f32 0.0, %v7078
        %v7080 = vpop.f32.mrf.mxu0
        %v7081 = vadd.f32 0.0, %v7080
        %7082 = vmatprep.mubr.bf16.mxu0 0
        %7083 = vmatmul.mubr.bf16.gmra.mxu0 %v7028
        %v7084 = vpop.f32.mrf.mxu0
        %v7085 = vadd.f32 0.0, %v7084
        %v7086 = vpop.f32.mrf.mxu0
        %v7087 = vadd.f32 0.0, %v7086
        %v7088 = vpop.f32.mrf.mxu0
        %v7089 = vpop.f32.mrf.mxu0
        %7090 = vdwg.mxu0
        %s7091 = scalar_lea.vmem %s8, 20
        %v7092 = vld [vmem:[%s7091] sm:$0xf]
        %v7093 = vld [vmem:[%s7091 + $0x4] sm:$0xf]
        %v7094 = vld [vmem:[%s7091 + $0x8] sm:$0xf]
        %v7095 = vld [vmem:[%s7091 + $0xc] sm:$0xf]
        %v7096 = vld [vmem:[%s7091 + $0x10] sm:$0xf]
        %v7102 = vunpack.c.l.b16 %v7092
        %v7103 = vunpack.c.l.b16 %v7093
        %v7104 = vunpack.c.l.b16 %v7094
        %v7105 = vunpack.c.l.b16 %v7095
        %v7106 = vunpack.c.l.b16 %v7096
        %v7107 = vpack.c.b16 %v7103, %v7102
        %v7108 = vpack.c.b16 %v7105, %v7104
        %v7109 = vpack.c.b16 %v7106, %v7106
        %v7111 = vsel %vm7020, %v7107, 0
        %v7114 = vsel %vm7020, %v7108, 0
        %v7117 = vsel %vm7020, %v7109, 0
        %7119 = vmatprep.subr.bf16.mxu0 0
        %7120 = vmatpush1.bf16.msra.mxu0 0
        %7121 = vmatprep.subr.bf16.mxu0 0
        %7122 = vmatpush1.bf16.msra.mxu0 0
        %7123 = vmatprep.subr.bf16.mxu0 0
        %7124 = vmatpush1.bf16.msra.mxu0 0
        %7125 = vmatprep.subr.bf16.mxu0 %v7001
        %7126 = vmatpush1.bf16.msra.mxu0 %v7000
        %7127 = vmatprep.subr.bf16.mxu0 %v6999
        %7128 = vmatpush1.bf16.msra.mxu0 %v6998
        %7129 = vmatprep.subr.bf16.mxu0 %v6997
        %7130 = vmatpush1.bf16.msra.mxu0 %v6996
        %7131 = vmatprep.subr.bf16.mxu0 %v6995
        %7132 = vmatpush1.bf16.msra.mxu0 %v6994
        %7133 = vmatprep.subr.bf16.mxu0 %v6993
        %7134 = vmatpush1.bf16.msra.mxu0 %v6992
        %7135 = vmatprep.subr.bf16.mxu0 0
        %7136 = vmatpush2.bf16.msra.mxu0 0
        %7137 = vmatprep.subr.bf16.mxu0 0
        %7138 = vmatpush2.bf16.msra.mxu0 0
        %7139 = vmatprep.subr.bf16.mxu0 0
        %7140 = vmatpush2.bf16.msra.mxu0 0
        %7141 = vmatprep.subr.bf16.mxu0 0
        %7142 = vmatpush2.bf16.msra.mxu0 0
        %7143 = vmatprep.subr.bf16.mxu0 0
        %7144 = vmatpush2.bf16.msra.mxu0 0
        %7145 = vmatprep.subr.bf16.mxu0 0
        %7146 = vmatpush2.bf16.msra.mxu0 0
        %7147 = vmatprep.subr.bf16.mxu0 0
        %7148 = vmatpush2.bf16.msra.mxu0 0
        %7149 = vmatprep.subr.bf16.mxu0 0
        %7150 = vmatpush2.bf16.msra.mxu0 0
        %7151 = vmatprep.mubr.bf16.mxu0 0
        %7152 = vmatmul.mubr.bf16.gmra.mxu0 %v7111
        %v7153 = vpop.f32.mrf.mxu0
        %v7154 = vadd.f32 0.0, %v7153
        %v7155 = vpop.f32.mrf.mxu0
        %v7156 = vadd.f32 0.0, %v7155
        %v7157 = vpop.f32.mrf.mxu0
        %v7158 = vadd.f32 0.0, %v7157
        %v7159 = vpop.f32.mrf.mxu0
        %v7160 = vadd.f32 0.0, %v7159
        %7161 = vmatprep.mubr.bf16.mxu0 0
        %7162 = vmatmul.mubr.bf16.gmra.mxu0 %v7114
        %v7163 = vpop.f32.mrf.mxu0
        %v7164 = vadd.f32 0.0, %v7163
        %v7165 = vpop.f32.mrf.mxu0
        %v7166 = vadd.f32 0.0, %v7165
        %v7167 = vpop.f32.mrf.mxu0
        %v7168 = vadd.f32 0.0, %v7167
        %v7169 = vpop.f32.mrf.mxu0
        %v7170 = vadd.f32 0.0, %v7169
        %7171 = vmatprep.mubr.bf16.mxu0 0
        %7172 = vmatmul.mubr.bf16.gmra.mxu0 %v7117
        %v7173 = vpop.f32.mrf.mxu0
        %v7174 = vadd.f32 0.0, %v7173
        %v7175 = vpop.f32.mrf.mxu0
        %v7176 = vadd.f32 0.0, %v7175
        %v7177 = vpop.f32.mrf.mxu0
        %v7178 = vpop.f32.mrf.mxu0
        %7179 = vdwg.mxu0
        %v7180 = vmax.f32 %v7065, %v7154
        %v7181 = vmax.f32 %v7067, %v7156
        %v7182 = vmax.f32 %v7069, %v7158
        %v7183 = vmax.f32 %v7071, %v7160
        %v7184 = vmax.f32 %v7075, %v7164
        %v7185 = vmax.f32 %v7077, %v7166
        %v7186 = vmax.f32 %v7079, %v7168
        %v7187 = vmax.f32 %v7081, %v7170
        %v7188 = vmax.f32 %v7085, %v7174
        %v7189 = vmax.f32 %v7087, %v7176
        %v7190 = vpack.c.bf16 %v7182, %v7180
        %v7191 = vpack.c.bf16 %v7183, %v7181
        %v7192 = vpack.c.bf16 %v7186, %v7184
        %v7193 = vpack.c.bf16 %v7187, %v7185
        %v7194 = vpack.c.bf16 %v7188, %v7188
        %v7195 = vpack.c.bf16 %v7189, %v7189
        %v7196 = vld [vmem:[%s11] sm:$0xf]
        %vm7197 = vcmask 326656
        %v7199 = vsel %vm7197, %v7196, 0
        %v7202 = vsel %vm5208, %v7194, 0
        %v7205 = vsel %vm5208, %v7195, 0
        %7207 = vmatprep.subr.bf16.mxu0 0
        %7208 = vmatpush1.bf16.msra.mxu0 0
        %7209 = vmatprep.subr.bf16.mxu0 0
        %7210 = vmatpush1.bf16.msra.mxu0 0
        %7211 = vmatprep.subr.bf16.mxu0 0
        %7212 = vmatpush1.bf16.msra.mxu0 0
        %7213 = vmatprep.subr.bf16.mxu0 0
        %7214 = vmatpush1.bf16.msra.mxu0 0
        %7215 = vmatprep.subr.bf16.mxu0 0
        %7216 = vmatpush1.bf16.msra.mxu0 0
        %7217 = vmatprep.subr.bf16.mxu0 %v7205
        %7218 = vmatpush1.bf16.msra.mxu0 %v7202
        %7219 = vmatprep.subr.bf16.mxu0 %v7193
        %7220 = vmatpush1.bf16.msra.mxu0 %v7192
        %7221 = vmatprep.subr.bf16.mxu0 %v7191
        %7222 = vmatpush1.bf16.msra.mxu0 %v7190
        %7223 = vmatprep.subr.bf16.mxu0 0
        %7224 = vmatpush2.bf16.msra.mxu0 0
        %7225 = vmatprep.subr.bf16.mxu0 0
        %7226 = vmatpush2.bf16.msra.mxu0 0
        %7227 = vmatprep.subr.bf16.mxu0 0
        %7228 = vmatpush2.bf16.msra.mxu0 0
        %7229 = vmatprep.subr.bf16.mxu0 0
        %7230 = vmatpush2.bf16.msra.mxu0 0
        %7231 = vmatprep.subr.bf16.mxu0 0
        %7232 = vmatpush2.bf16.msra.mxu0 0
        %7233 = vmatprep.subr.bf16.mxu0 0
        %7234 = vmatpush2.bf16.msra.mxu0 0
        %7235 = vmatprep.subr.bf16.mxu0 0
        %7236 = vmatpush2.bf16.msra.mxu0 0
        %7237 = vmatprep.subr.bf16.mxu0 0
        %7238 = vmatpush2.bf16.msra.mxu0 0
        %7239 = vmatprep.mubr.bf16.mxu0 0
        %7240 = vmatmul.mubr.bf16.gmra.mxu0 %v7199
        %v7241 = vpop.f32.mrf.mxu0
        %v7242 = vadd.f32 0.0, %v7241
        %v7243 = vpop.f32.mrf.mxu0
        %v7244 = vadd.f32 0.0, %v7243
        %v7245 = vpop.f32.mrf.mxu0
        %v7246 = vpop.f32.mrf.mxu0
        %7247 = vdwg.mxu0
        %v7248 = vpack.c.bf16 %v7242, %v7242
        %v7249 = vpack.c.bf16 %v7244, %v7244
        %v7250 = vld [vmem:[%s9] sm:$0xf]
        %v7251 = vld [vmem:[%s9 + $0x4] sm:$0xf]
        %v7252 = vld [vmem:[%s9 + $0x8] sm:$0xf]
        %v7253 = vld [vmem:[%s9 + $0xc] sm:$0xf]
        %v7254 = vld [vmem:[%s9 + $0x10] sm:$0xf]
        %v7255 = vld [vmem:[%s9 + $0x14] sm:$0xf]
        %v7256 = vld [vmem:[%s9 + $0x18] sm:$0xf]
        %v7257 = vld [vmem:[%s9 + $0x1c] sm:$0xf]
        %v7258 = vld [vmem:[%s9 + $0x20] sm:$0xf]
        %v7259 = vld [vmem:[%s9 + $0x24] sm:$0xf]
        %v7260 = vld [vmem:[%s9 + $0x28] sm:$0xf]
        %v7261 = vld [vmem:[%s9 + $0x2c] sm:$0xf]
        %v7262 = vld [vmem:[%s9 + $0x30] sm:$0xf]
        %v7263 = vld [vmem:[%s9 + $0x34] sm:$0xf]
        %v7264 = vld [vmem:[%s9 + $0x38] sm:$0xf]
        %v7265 = vld [vmem:[%s9 + $0x3c] sm:$0xf]
        %v7266 = vld [vmem:[%s9 + $0x40] sm:$0xf]
        %v7267 = vld [vmem:[%s9 + $0x44] sm:$0xf]
        %s7268 = scalar_lea.vmem %s11, 4
        %v7269 = vld [vmem:[%s7268] sm:$0xf]
        %v7271 = vsel %vm7197, %v7269, 0
        %7273 = vmatprep.subr.bf16.mxu0 0
        %7274 = vmatpush1.bf16.msra.mxu0 0
        %7275 = vmatprep.subr.bf16.mxu0 0
        %7276 = vmatpush1.bf16.msra.mxu0 0
        %7277 = vmatprep.subr.bf16.mxu0 0
        %7278 = vmatpush1.bf16.msra.mxu0 0
        %7279 = vmatprep.subr.bf16.mxu0 0
        %7280 = vmatpush1.bf16.msra.mxu0 0
        %7281 = vmatprep.subr.bf16.mxu0 0
        %7282 = vmatpush1.bf16.msra.mxu0 0
        %7283 = vmatprep.subr.bf16.mxu0 %v7205
        %7284 = vmatpush1.bf16.msra.mxu0 %v7202
        %7285 = vmatprep.subr.bf16.mxu0 %v7193
        %7286 = vmatpush1.bf16.msra.mxu0 %v7192
        %7287 = vmatprep.subr.bf16.mxu0 %v7191
        %7288 = vmatpush1.bf16.msra.mxu0 %v7190
        %7289 = vmatprep.subr.bf16.mxu0 0
        %7290 = vmatpush2.bf16.msra.mxu0 0
        %7291 = vmatprep.subr.bf16.mxu0 0
        %7292 = vmatpush2.bf16.msra.mxu0 0
        %7293 = vmatprep.subr.bf16.mxu0 0
        %7294 = vmatpush2.bf16.msra.mxu0 0
        %7295 = vmatprep.subr.bf16.mxu0 0
        %7296 = vmatpush2.bf16.msra.mxu0 0
        %7297 = vmatprep.subr.bf16.mxu0 0
        %7298 = vmatpush2.bf16.msra.mxu0 0
        %7299 = vmatprep.subr.bf16.mxu0 0
        %7300 = vmatpush2.bf16.msra.mxu0 0
        %7301 = vmatprep.subr.bf16.mxu0 0
        %7302 = vmatpush2.bf16.msra.mxu0 0
        %7303 = vmatprep.subr.bf16.mxu0 0
        %7304 = vmatpush2.bf16.msra.mxu0 0
        %7305 = vmatprep.mubr.bf16.mxu0 0
        %7306 = vmatmul.mubr.bf16.gmra.mxu0 %v7271
        %v7307 = vpop.f32.mrf.mxu0
        %v7308 = vadd.f32 0.0, %v7307
        %v7309 = vpop.f32.mrf.mxu0
        %v7310 = vadd.f32 0.0, %v7309
        %v7311 = vpop.f32.mrf.mxu0
        %v7312 = vpop.f32.mrf.mxu0
        %7313 = vdwg.mxu0
        %v7314 = vpack.c.bf16 %v7308, %v7308
        %v7315 = vpack.c.bf16 %v7310, %v7310
        %s7316 = scalar_lea.vmem %s9, 72
        %v7317 = vld [vmem:[%s7316] sm:$0xf]
        %v7318 = vld [vmem:[%s7316 + $0x4] sm:$0xf]
        %v7319 = vld [vmem:[%s7316 + $0x8] sm:$0xf]
        %v7320 = vld [vmem:[%s7316 + $0xc] sm:$0xf]
        %v7321 = vld [vmem:[%s7316 + $0x10] sm:$0xf]
        %v7322 = vld [vmem:[%s7316 + $0x14] sm:$0xf]
        %v7323 = vld [vmem:[%s7316 + $0x18] sm:$0xf]
        %v7324 = vld [vmem:[%s7316 + $0x1c] sm:$0xf]
        %v7325 = vld [vmem:[%s7316 + $0x20] sm:$0xf]
        %v7326 = vld [vmem:[%s7316 + $0x24] sm:$0xf]
        %v7327 = vld [vmem:[%s7316 + $0x28] sm:$0xf]
        %v7328 = vld [vmem:[%s7316 + $0x2c] sm:$0xf]
        %v7329 = vld [vmem:[%s7316 + $0x30] sm:$0xf]
        %v7330 = vld [vmem:[%s7316 + $0x34] sm:$0xf]
        %v7331 = vld [vmem:[%s7316 + $0x38] sm:$0xf]
        %v7332 = vld [vmem:[%s7316 + $0x3c] sm:$0xf]
        %v7333 = vld [vmem:[%s7316 + $0x40] sm:$0xf]
        %v7334 = vld [vmem:[%s7316 + $0x44] sm:$0xf]
        %v7353 = vunpack.c.l.b16 %v7317
        %v7354 = vunpack.c.l.b16 %v7318
        %v7355 = vunpack.c.l.b16 %v7319
        %v7356 = vunpack.c.l.b16 %v7320
        %v7357 = vunpack.c.l.b16 %v7321
        %v7358 = vunpack.c.l.b16 %v7322
        %v7359 = vunpack.c.l.b16 %v7323
        %v7360 = vunpack.c.l.b16 %v7324
        %v7361 = vunpack.c.l.b16 %v7325
        %v7362 = vunpack.c.l.b16 %v7326
        %v7363 = vunpack.c.l.b16 %v7327
        %v7364 = vunpack.c.l.b16 %v7328
        %v7365 = vunpack.c.l.b16 %v7329
        %v7366 = vunpack.c.l.b16 %v7330
        %v7367 = vunpack.c.l.b16 %v7331
        %v7368 = vunpack.c.l.b16 %v7332
        %v7369 = vunpack.c.l.b16 %v7333
        %v7370 = vunpack.c.l.b16 %v7334
        %v7371 = vpack.c.b16 %v7354, %v7353
        %v7372 = vpack.c.b16 %v7356, %v7355
        %v7373 = vpack.c.b16 %v7358, %v7357
        %v7374 = vpack.c.b16 %v7360, %v7359
        %v7375 = vpack.c.b16 %v7362, %v7361
        %v7376 = vpack.c.b16 %v7364, %v7363
        %v7377 = vpack.c.b16 %v7366, %v7365
        %v7378 = vpack.c.b16 %v7368, %v7367
        %v7379 = vpack.c.b16 %v7370, %v7369
        %vm7389 = vcmask 130048
        %v7391 = vsel %vm7389, %v7315, 0
        %7393 = vmatprep.subr.bf16.mxu0 0
        %7394 = vmatpush1.bf16.msra.mxu0 %v7378
        %7395 = vmatprep.subr.bf16.mxu0 0
        %7396 = vmatpush1.bf16.msra.mxu0 %v7377
        %7397 = vmatprep.subr.bf16.mxu0 0
        %7398 = vmatpush1.bf16.msra.mxu0 %v7376
        %7399 = vmatprep.subr.bf16.mxu0 0
        %7400 = vmatpush1.bf16.msra.mxu0 %v7375
        %7401 = vmatprep.subr.bf16.mxu0 0
        %7402 = vmatpush1.bf16.msra.mxu0 %v7374
        %7403 = vmatprep.subr.bf16.mxu0 0
        %7404 = vmatpush1.bf16.msra.mxu0 %v7373
        %7405 = vmatprep.subr.bf16.mxu0 0
        %7406 = vmatpush1.bf16.msra.mxu0 %v7372
        %7407 = vmatprep.subr.bf16.mxu0 0
        %7408 = vmatpush1.bf16.msra.mxu0 %v7371
        %7409 = vmatprep.subr.bf16.mxu0 0
        %7410 = vmatpush2.bf16.msra.mxu0 0
        %7411 = vmatprep.subr.bf16.mxu0 0
        %7412 = vmatpush2.bf16.msra.mxu0 0
        %7413 = vmatprep.subr.bf16.mxu0 0
        %7414 = vmatpush2.bf16.msra.mxu0 0
        %7415 = vmatprep.subr.bf16.mxu0 0
        %7416 = vmatpush2.bf16.msra.mxu0 0
        %7417 = vmatprep.subr.bf16.mxu0 0
        %7418 = vmatpush2.bf16.msra.mxu0 0
        %7419 = vmatprep.subr.bf16.mxu0 0
        %7420 = vmatpush2.bf16.msra.mxu0 0
        %7421 = vmatprep.subr.bf16.mxu0 0
        %7422 = vmatpush2.bf16.msra.mxu0 0
        %7423 = vmatprep.subr.bf16.mxu0 0
        %7424 = vmatpush2.bf16.msra.mxu0 %v7379
        %7425 = vmatprep.mubr.bf16.mxu0 %v7391
        %7426 = vmatmul.mubr.bf16.gmra.mxu0 %v7314
        %v7427 = vpop.f32.mrf.mxu0
        %v7428 = vadd.f32 0.0, %v7427
        %v7429 = vpop.f32.mrf.mxu0
        %v7430 = vpop.f32.mrf.mxu0
        %v7431 = vpop.f32.mrf.mxu0
        %7432 = vdwg.mxu0
        %v7451 = vunpack.c.l.b16 %v7250
        %v7452 = vunpack.c.l.b16 %v7251
        %v7453 = vunpack.c.l.b16 %v7252
        %v7454 = vunpack.c.l.b16 %v7253
        %v7455 = vunpack.c.l.b16 %v7254
        %v7456 = vunpack.c.l.b16 %v7255
        %v7457 = vunpack.c.l.b16 %v7256
        %v7458 = vunpack.c.l.b16 %v7257
        %v7459 = vunpack.c.l.b16 %v7258
        %v7460 = vunpack.c.l.b16 %v7259
        %v7461 = vunpack.c.l.b16 %v7260
        %v7462 = vunpack.c.l.b16 %v7261
        %v7463 = vunpack.c.l.b16 %v7262
        %v7464 = vunpack.c.l.b16 %v7263
        %v7465 = vunpack.c.l.b16 %v7264
        %v7466 = vunpack.c.l.b16 %v7265
        %v7467 = vunpack.c.l.b16 %v7266
        %v7468 = vunpack.c.l.b16 %v7267
        %v7469 = vpack.c.b16 %v7452, %v7451
        %v7470 = vpack.c.b16 %v7454, %v7453
        %v7471 = vpack.c.b16 %v7456, %v7455
        %v7472 = vpack.c.b16 %v7458, %v7457
        %v7473 = vpack.c.b16 %v7460, %v7459
        %v7474 = vpack.c.b16 %v7462, %v7461
        %v7475 = vpack.c.b16 %v7464, %v7463
        %v7476 = vpack.c.b16 %v7466, %v7465
        %v7477 = vpack.c.b16 %v7468, %v7467
        %v7488 = vsel %vm7389, %v7249, 0
        %7490 = vmatprep.subr.bf16.mxu0 0
        %7491 = vmatpush1.bf16.msra.mxu0 %v7476
        %7492 = vmatprep.subr.bf16.mxu0 0
        %7493 = vmatpush1.bf16.msra.mxu0 %v7475
        %7494 = vmatprep.subr.bf16.mxu0 0
        %7495 = vmatpush1.bf16.msra.mxu0 %v7474
        %7496 = vmatprep.subr.bf16.mxu0 0
        %7497 = vmatpush1.bf16.msra.mxu0 %v7473
        %7498 = vmatprep.subr.bf16.mxu0 0
        %7499 = vmatpush1.bf16.msra.mxu0 %v7472
        %7500 = vmatprep.subr.bf16.mxu0 0
        %7501 = vmatpush1.bf16.msra.mxu0 %v7471
        %7502 = vmatprep.subr.bf16.mxu0 0
        %7503 = vmatpush1.bf16.msra.mxu0 %v7470
        %7504 = vmatprep.subr.bf16.mxu0 0
        %7505 = vmatpush1.bf16.msra.mxu0 %v7469
        %7506 = vmatprep.subr.bf16.mxu0 0
        %7507 = vmatpush2.bf16.msra.mxu0 0
        %7508 = vmatprep.subr.bf16.mxu0 0
        %7509 = vmatpush2.bf16.msra.mxu0 0
        %7510 = vmatprep.subr.bf16.mxu0 0
        %7511 = vmatpush2.bf16.msra.mxu0 0
        %7512 = vmatprep.subr.bf16.mxu0 0
        %7513 = vmatpush2.bf16.msra.mxu0 0
        %7514 = vmatprep.subr.bf16.mxu0 0
        %7515 = vmatpush2.bf16.msra.mxu0 0
        %7516 = vmatprep.subr.bf16.mxu0 0
        %7517 = vmatpush2.bf16.msra.mxu0 0
        %7518 = vmatprep.subr.bf16.mxu0 0
        %7519 = vmatpush2.bf16.msra.mxu0 0
        %7520 = vmatprep.subr.bf16.mxu0 0
        %7521 = vmatpush2.bf16.msra.mxu0 %v7477
        %7522 = vmatprep.mubr.bf16.mxu0 %v7488
        %7523 = vmatmul.mubr.bf16.gmra.mxu0 %v7248
        %v7524 = vpop.f32.mrf.mxu0
        %v7525 = vadd.f32 %v7428, %v7524
        %v7526 = vpop.f32.mrf.mxu0
        %v7527 = vpop.f32.mrf.mxu0
        %v7528 = vpop.f32.mrf.mxu0
        %7529 = vdwg.mxu0
        %s7530 = scalar_lea.vmem %s11, 8
        %v7531 = vld [vmem:[%s7530] sm:$0xf]
        %v7533 = vsel %vm7197, %v7531, 0
        %7535 = vmatprep.subr.bf16.mxu0 0
        %7536 = vmatpush1.bf16.msra.mxu0 0
        %7537 = vmatprep.subr.bf16.mxu0 0
        %7538 = vmatpush1.bf16.msra.mxu0 0
        %7539 = vmatprep.subr.bf16.mxu0 0
        %7540 = vmatpush1.bf16.msra.mxu0 0
        %7541 = vmatprep.subr.bf16.mxu0 0
        %7542 = vmatpush1.bf16.msra.mxu0 0
        %7543 = vmatprep.subr.bf16.mxu0 0
        %7544 = vmatpush1.bf16.msra.mxu0 0
        %7545 = vmatprep.subr.bf16.mxu0 %v7205
        %7546 = vmatpush1.bf16.msra.mxu0 %v7202
        %7547 = vmatprep.subr.bf16.mxu0 %v7193
        %7548 = vmatpush1.bf16.msra.mxu0 %v7192
        %7549 = vmatprep.subr.bf16.mxu0 %v7191
        %7550 = vmatpush1.bf16.msra.mxu0 %v7190
        %7551 = vmatprep.subr.bf16.mxu0 0
        %7552 = vmatpush2.bf16.msra.mxu0 0
        %7553 = vmatprep.subr.bf16.mxu0 0
        %7554 = vmatpush2.bf16.msra.mxu0 0
        %7555 = vmatprep.subr.bf16.mxu0 0
        %7556 = vmatpush2.bf16.msra.mxu0 0
        %7557 = vmatprep.subr.bf16.mxu0 0
        %7558 = vmatpush2.bf16.msra.mxu0 0
        %7559 = vmatprep.subr.bf16.mxu0 0
        %7560 = vmatpush2.bf16.msra.mxu0 0
        %7561 = vmatprep.subr.bf16.mxu0 0
        %7562 = vmatpush2.bf16.msra.mxu0 0
        %7563 = vmatprep.subr.bf16.mxu0 0
        %7564 = vmatpush2.bf16.msra.mxu0 0
        %7565 = vmatprep.subr.bf16.mxu0 0
        %7566 = vmatpush2.bf16.msra.mxu0 0
        %7567 = vmatprep.mubr.bf16.mxu0 0
        %7568 = vmatmul.mubr.bf16.gmra.mxu0 %v7533
        %v7569 = vpop.f32.mrf.mxu0
        %v7570 = vadd.f32 0.0, %v7569
        %v7571 = vpop.f32.mrf.mxu0
        %v7572 = vadd.f32 0.0, %v7571
        %v7573 = vpop.f32.mrf.mxu0
        %v7574 = vpop.f32.mrf.mxu0
        %7575 = vdwg.mxu0
        %v7576 = vpack.c.bf16 %v7570, %v7570
        %v7577 = vpack.c.bf16 %v7572, %v7572
        %s7578 = scalar_lea.vmem %s9, 144
        %v7579 = vld [vmem:[%s7578] sm:$0xf]
        %v7580 = vld [vmem:[%s7578 + $0x4] sm:$0xf]
        %v7581 = vld [vmem:[%s7578 + $0x8] sm:$0xf]
        %v7582 = vld [vmem:[%s7578 + $0xc] sm:$0xf]
        %v7583 = vld [vmem:[%s7578 + $0x10] sm:$0xf]
        %v7584 = vld [vmem:[%s7578 + $0x14] sm:$0xf]
        %v7585 = vld [vmem:[%s7578 + $0x18] sm:$0xf]
        %v7586 = vld [vmem:[%s7578 + $0x1c] sm:$0xf]
        %v7587 = vld [vmem:[%s7578 + $0x20] sm:$0xf]
        %v7588 = vld [vmem:[%s7578 + $0x24] sm:$0xf]
        %v7589 = vld [vmem:[%s7578 + $0x28] sm:$0xf]
        %v7590 = vld [vmem:[%s7578 + $0x2c] sm:$0xf]
        %v7591 = vld [vmem:[%s7578 + $0x30] sm:$0xf]
        %v7592 = vld [vmem:[%s7578 + $0x34] sm:$0xf]
        %v7593 = vld [vmem:[%s7578 + $0x38] sm:$0xf]
        %v7594 = vld [vmem:[%s7578 + $0x3c] sm:$0xf]
        %v7595 = vld [vmem:[%s7578 + $0x40] sm:$0xf]
        %v7596 = vld [vmem:[%s7578 + $0x44] sm:$0xf]
        %v7615 = vunpack.c.l.b16 %v7579
        %v7616 = vunpack.c.l.b16 %v7580
        %v7617 = vunpack.c.l.b16 %v7581
        %v7618 = vunpack.c.l.b16 %v7582
        %v7619 = vunpack.c.l.b16 %v7583
        %v7620 = vunpack.c.l.b16 %v7584
        %v7621 = vunpack.c.l.b16 %v7585
        %v7622 = vunpack.c.l.b16 %v7586
        %v7623 = vunpack.c.l.b16 %v7587
        %v7624 = vunpack.c.l.b16 %v7588
        %v7625 = vunpack.c.l.b16 %v7589
        %v7626 = vunpack.c.l.b16 %v7590
        %v7627 = vunpack.c.l.b16 %v7591
        %v7628 = vunpack.c.l.b16 %v7592
        %v7629 = vunpack.c.l.b16 %v7593
        %v7630 = vunpack.c.l.b16 %v7594
        %v7631 = vunpack.c.l.b16 %v7595
        %v7632 = vunpack.c.l.b16 %v7596
        %v7633 = vpack.c.b16 %v7616, %v7615
        %v7634 = vpack.c.b16 %v7618, %v7617
        %v7635 = vpack.c.b16 %v7620, %v7619
        %v7636 = vpack.c.b16 %v7622, %v7621
        %v7637 = vpack.c.b16 %v7624, %v7623
        %v7638 = vpack.c.b16 %v7626, %v7625
        %v7639 = vpack.c.b16 %v7628, %v7627
        %v7640 = vpack.c.b16 %v7630, %v7629
        %v7641 = vpack.c.b16 %v7632, %v7631
        %v7652 = vsel %vm7389, %v7577, 0
        %7654 = vmatprep.subr.bf16.mxu0 0
        %7655 = vmatpush1.bf16.msra.mxu0 %v7640
        %7656 = vmatprep.subr.bf16.mxu0 0
        %7657 = vmatpush1.bf16.msra.mxu0 %v7639
        %7658 = vmatprep.subr.bf16.mxu0 0
        %7659 = vmatpush1.bf16.msra.mxu0 %v7638
        %7660 = vmatprep.subr.bf16.mxu0 0
        %7661 = vmatpush1.bf16.msra.mxu0 %v7637
        %7662 = vmatprep.subr.bf16.mxu0 0
        %7663 = vmatpush1.bf16.msra.mxu0 %v7636
        %7664 = vmatprep.subr.bf16.mxu0 0
        %7665 = vmatpush1.bf16.msra.mxu0 %v7635
        %7666 = vmatprep.subr.bf16.mxu0 0
        %7667 = vmatpush1.bf16.msra.mxu0 %v7634
        %7668 = vmatprep.subr.bf16.mxu0 0
        %7669 = vmatpush1.bf16.msra.mxu0 %v7633
        %7670 = vmatprep.subr.bf16.mxu0 0
        %7671 = vmatpush2.bf16.msra.mxu0 0
        %7672 = vmatprep.subr.bf16.mxu0 0
        %7673 = vmatpush2.bf16.msra.mxu0 0
        %7674 = vmatprep.subr.bf16.mxu0 0
        %7675 = vmatpush2.bf16.msra.mxu0 0
        %7676 = vmatprep.subr.bf16.mxu0 0
        %7677 = vmatpush2.bf16.msra.mxu0 0
        %7678 = vmatprep.subr.bf16.mxu0 0
        %7679 = vmatpush2.bf16.msra.mxu0 0
        %7680 = vmatprep.subr.bf16.mxu0 0
        %7681 = vmatpush2.bf16.msra.mxu0 0
        %7682 = vmatprep.subr.bf16.mxu0 0
        %7683 = vmatpush2.bf16.msra.mxu0 0
        %7684 = vmatprep.subr.bf16.mxu0 0
        %7685 = vmatpush2.bf16.msra.mxu0 %v7641
        %7686 = vmatprep.mubr.bf16.mxu0 %v7652
        %7687 = vmatmul.mubr.bf16.gmra.mxu0 %v7576
        %v7688 = vpop.f32.mrf.mxu0
        %v7689 = vadd.f32 0.0, %v7688
        %v7690 = vpop.f32.mrf.mxu0
        %v7691 = vpop.f32.mrf.mxu0
        %v7692 = vpop.f32.mrf.mxu0
        %7693 = vdwg.mxu0
        %v7694 = vadd.f32 %v7525, %v7689
        %s7695 = scalar_lea.vmem %s11, 12
        %v7696 = vld [vmem:[%s7695] sm:$0xf]
        %v7698 = vsel %vm7197, %v7696, 0
        %7700 = vmatprep.subr.bf16.mxu0 0
        %7701 = vmatpush1.bf16.msra.mxu0 0
        %7702 = vmatprep.subr.bf16.mxu0 0
        %7703 = vmatpush1.bf16.msra.mxu0 0
        %7704 = vmatprep.subr.bf16.mxu0 0
        %7705 = vmatpush1.bf16.msra.mxu0 0
        %7706 = vmatprep.subr.bf16.mxu0 0
        %7707 = vmatpush1.bf16.msra.mxu0 0
        %7708 = vmatprep.subr.bf16.mxu0 0
        %7709 = vmatpush1.bf16.msra.mxu0 0
        %7710 = vmatprep.subr.bf16.mxu0 %v7205
        %7711 = vmatpush1.bf16.msra.mxu0 %v7202
        %7712 = vmatprep.subr.bf16.mxu0 %v7193
        %7713 = vmatpush1.bf16.msra.mxu0 %v7192
        %7714 = vmatprep.subr.bf16.mxu0 %v7191
        %7715 = vmatpush1.bf16.msra.mxu0 %v7190
        %7716 = vmatprep.subr.bf16.mxu0 0
        %7717 = vmatpush2.bf16.msra.mxu0 0
        %7718 = vmatprep.subr.bf16.mxu0 0
        %7719 = vmatpush2.bf16.msra.mxu0 0
        %7720 = vmatprep.subr.bf16.mxu0 0
        %7721 = vmatpush2.bf16.msra.mxu0 0
        %7722 = vmatprep.subr.bf16.mxu0 0
        %7723 = vmatpush2.bf16.msra.mxu0 0
        %7724 = vmatprep.subr.bf16.mxu0 0
        %7725 = vmatpush2.bf16.msra.mxu0 0
        %7726 = vmatprep.subr.bf16.mxu0 0
        %7727 = vmatpush2.bf16.msra.mxu0 0
        %7728 = vmatprep.subr.bf16.mxu0 0
        %7729 = vmatpush2.bf16.msra.mxu0 0
        %7730 = vmatprep.subr.bf16.mxu0 0
        %7731 = vmatpush2.bf16.msra.mxu0 0
        %7732 = vmatprep.mubr.bf16.mxu0 0
        %7733 = vmatmul.mubr.bf16.gmra.mxu0 %v7698
        %v7734 = vpop.f32.mrf.mxu0
        %v7735 = vadd.f32 0.0, %v7734
        %v7736 = vpop.f32.mrf.mxu0
        %v7737 = vadd.f32 0.0, %v7736
        %v7738 = vpop.f32.mrf.mxu0
        %v7739 = vpop.f32.mrf.mxu0
        %7740 = vdwg.mxu0
        %v7741 = vpack.c.bf16 %v7735, %v7735
        %v7742 = vpack.c.bf16 %v7737, %v7737
        %s7743 = scalar_lea.vmem %s9, 216
        %v7744 = vld [vmem:[%s7743] sm:$0xf]
        %v7745 = vld [vmem:[%s7743 + $0x4] sm:$0xf]
        %v7746 = vld [vmem:[%s7743 + $0x8] sm:$0xf]
        %v7747 = vld [vmem:[%s7743 + $0xc] sm:$0xf]
        %v7748 = vld [vmem:[%s7743 + $0x10] sm:$0xf]
        %v7749 = vld [vmem:[%s7743 + $0x14] sm:$0xf]
        %v7750 = vld [vmem:[%s7743 + $0x18] sm:$0xf]
        %v7751 = vld [vmem:[%s7743 + $0x1c] sm:$0xf]
        %v7752 = vld [vmem:[%s7743 + $0x20] sm:$0xf]
        %v7753 = vld [vmem:[%s7743 + $0x24] sm:$0xf]
        %v7754 = vld [vmem:[%s7743 + $0x28] sm:$0xf]
        %v7755 = vld [vmem:[%s7743 + $0x2c] sm:$0xf]
        %v7756 = vld [vmem:[%s7743 + $0x30] sm:$0xf]
        %v7757 = vld [vmem:[%s7743 + $0x34] sm:$0xf]
        %v7758 = vld [vmem:[%s7743 + $0x38] sm:$0xf]
        %v7759 = vld [vmem:[%s7743 + $0x3c] sm:$0xf]
        %v7760 = vld [vmem:[%s7743 + $0x40] sm:$0xf]
        %v7761 = vld [vmem:[%s7743 + $0x44] sm:$0xf]
        %v7780 = vunpack.c.l.b16 %v7744
        %v7781 = vunpack.c.l.b16 %v7745
        %v7782 = vunpack.c.l.b16 %v7746
        %v7783 = vunpack.c.l.b16 %v7747
        %v7784 = vunpack.c.l.b16 %v7748
        %v7785 = vunpack.c.l.b16 %v7749
        %v7786 = vunpack.c.l.b16 %v7750
        %v7787 = vunpack.c.l.b16 %v7751
        %v7788 = vunpack.c.l.b16 %v7752
        %v7789 = vunpack.c.l.b16 %v7753
        %v7790 = vunpack.c.l.b16 %v7754
        %v7791 = vunpack.c.l.b16 %v7755
        %v7792 = vunpack.c.l.b16 %v7756
        %v7793 = vunpack.c.l.b16 %v7757
        %v7794 = vunpack.c.l.b16 %v7758
        %v7795 = vunpack.c.l.b16 %v7759
        %v7796 = vunpack.c.l.b16 %v7760
        %v7797 = vunpack.c.l.b16 %v7761
        %v7798 = vpack.c.b16 %v7781, %v7780
        %v7799 = vpack.c.b16 %v7783, %v7782
        %v7800 = vpack.c.b16 %v7785, %v7784
        %v7801 = vpack.c.b16 %v7787, %v7786
        %v7802 = vpack.c.b16 %v7789, %v7788
        %v7803 = vpack.c.b16 %v7791, %v7790
        %v7804 = vpack.c.b16 %v7793, %v7792
        %v7805 = vpack.c.b16 %v7795, %v7794
        %v7806 = vpack.c.b16 %v7797, %v7796
        %v7817 = vsel %vm7389, %v7742, 0
        %7819 = vmatprep.subr.bf16.mxu0 0
        %7820 = vmatpush1.bf16.msra.mxu0 %v7805
        %7821 = vmatprep.subr.bf16.mxu0 0
        %7822 = vmatpush1.bf16.msra.mxu0 %v7804
        %7823 = vmatprep.subr.bf16.mxu0 0
        %7824 = vmatpush1.bf16.msra.mxu0 %v7803
        %7825 = vmatprep.subr.bf16.mxu0 0
        %7826 = vmatpush1.bf16.msra.mxu0 %v7802
        %7827 = vmatprep.subr.bf16.mxu0 0
        %7828 = vmatpush1.bf16.msra.mxu0 %v7801
        %7829 = vmatprep.subr.bf16.mxu0 0
        %7830 = vmatpush1.bf16.msra.mxu0 %v7800
        %7831 = vmatprep.subr.bf16.mxu0 0
        %7832 = vmatpush1.bf16.msra.mxu0 %v7799
        %7833 = vmatprep.subr.bf16.mxu0 0
        %7834 = vmatpush1.bf16.msra.mxu0 %v7798
        %7835 = vmatprep.subr.bf16.mxu0 0
        %7836 = vmatpush2.bf16.msra.mxu0 0
        %7837 = vmatprep.subr.bf16.mxu0 0
        %7838 = vmatpush2.bf16.msra.mxu0 0
        %7839 = vmatprep.subr.bf16.mxu0 0
        %7840 = vmatpush2.bf16.msra.mxu0 0
        %7841 = vmatprep.subr.bf16.mxu0 0
        %7842 = vmatpush2.bf16.msra.mxu0 0
        %7843 = vmatprep.subr.bf16.mxu0 0
        %7844 = vmatpush2.bf16.msra.mxu0 0
        %7845 = vmatprep.subr.bf16.mxu0 0
        %7846 = vmatpush2.bf16.msra.mxu0 0
        %7847 = vmatprep.subr.bf16.mxu0 0
        %7848 = vmatpush2.bf16.msra.mxu0 0
        %7849 = vmatprep.subr.bf16.mxu0 0
        %7850 = vmatpush2.bf16.msra.mxu0 %v7806
        %7851 = vmatprep.mubr.bf16.mxu0 %v7817
        %7852 = vmatmul.mubr.bf16.gmra.mxu0 %v7741
        %v7853 = vpop.f32.mrf.mxu0
        %v7854 = vadd.f32 0.0, %v7853
        %v7855 = vpop.f32.mrf.mxu0
        %v7856 = vpop.f32.mrf.mxu0
        %v7857 = vpop.f32.mrf.mxu0
        %7858 = vdwg.mxu0
        %v7859 = vadd.f32 %v7694, %v7854
        %s7860 = scalar_lea.vmem %s11, 16
        %v7861 = vld [vmem:[%s7860] sm:$0xf]
        %v7863 = vsel %vm7197, %v7861, 0
        %7865 = vmatprep.subr.bf16.mxu0 0
        %7866 = vmatpush1.bf16.msra.mxu0 0
        %7867 = vmatprep.subr.bf16.mxu0 0
        %7868 = vmatpush1.bf16.msra.mxu0 0
        %7869 = vmatprep.subr.bf16.mxu0 0
        %7870 = vmatpush1.bf16.msra.mxu0 0
        %7871 = vmatprep.subr.bf16.mxu0 0
        %7872 = vmatpush1.bf16.msra.mxu0 0
        %7873 = vmatprep.subr.bf16.mxu0 0
        %7874 = vmatpush1.bf16.msra.mxu0 0
        %7875 = vmatprep.subr.bf16.mxu0 %v7205
        %7876 = vmatpush1.bf16.msra.mxu0 %v7202
        %7877 = vmatprep.subr.bf16.mxu0 %v7193
        %7878 = vmatpush1.bf16.msra.mxu0 %v7192
        %7879 = vmatprep.subr.bf16.mxu0 %v7191
        %7880 = vmatpush1.bf16.msra.mxu0 %v7190
        %7881 = vmatprep.subr.bf16.mxu0 0
        %7882 = vmatpush2.bf16.msra.mxu0 0
        %7883 = vmatprep.subr.bf16.mxu0 0
        %7884 = vmatpush2.bf16.msra.mxu0 0
        %7885 = vmatprep.subr.bf16.mxu0 0
        %7886 = vmatpush2.bf16.msra.mxu0 0
        %7887 = vmatprep.subr.bf16.mxu0 0
        %7888 = vmatpush2.bf16.msra.mxu0 0
        %7889 = vmatprep.subr.bf16.mxu0 0
        %7890 = vmatpush2.bf16.msra.mxu0 0
        %7891 = vmatprep.subr.bf16.mxu0 0
        %7892 = vmatpush2.bf16.msra.mxu0 0
        %7893 = vmatprep.subr.bf16.mxu0 0
        %7894 = vmatpush2.bf16.msra.mxu0 0
        %7895 = vmatprep.subr.bf16.mxu0 0
        %7896 = vmatpush2.bf16.msra.mxu0 0
        %7897 = vmatprep.mubr.bf16.mxu0 0
        %7898 = vmatmul.mubr.bf16.gmra.mxu0 %v7863
        %v7899 = vpop.f32.mrf.mxu0
        %v7900 = vadd.f32 0.0, %v7899
        %v7901 = vpop.f32.mrf.mxu0
        %v7902 = vadd.f32 0.0, %v7901
        %v7903 = vpop.f32.mrf.mxu0
        %v7904 = vpop.f32.mrf.mxu0
        %7905 = vdwg.mxu0
        %v7906 = vpack.c.bf16 %v7900, %v7900
        %v7907 = vpack.c.bf16 %v7902, %v7902
        %s7908 = scalar_lea.vmem %s9, 288
        %v7909 = vld [vmem:[%s7908] sm:$0xf]
        %v7910 = vld [vmem:[%s7908 + $0x4] sm:$0xf]
        %v7911 = vld [vmem:[%s7908 + $0x8] sm:$0xf]
        %v7912 = vld [vmem:[%s7908 + $0xc] sm:$0xf]
        %v7913 = vld [vmem:[%s7908 + $0x10] sm:$0xf]
        %v7914 = vld [vmem:[%s7908 + $0x14] sm:$0xf]
        %v7915 = vld [vmem:[%s7908 + $0x18] sm:$0xf]
        %v7916 = vld [vmem:[%s7908 + $0x1c] sm:$0xf]
        %v7917 = vld [vmem:[%s7908 + $0x20] sm:$0xf]
        %v7918 = vld [vmem:[%s7908 + $0x24] sm:$0xf]
        %v7919 = vld [vmem:[%s7908 + $0x28] sm:$0xf]
        %v7920 = vld [vmem:[%s7908 + $0x2c] sm:$0xf]
        %v7921 = vld [vmem:[%s7908 + $0x30] sm:$0xf]
        %v7922 = vld [vmem:[%s7908 + $0x34] sm:$0xf]
        %v7923 = vld [vmem:[%s7908 + $0x38] sm:$0xf]
        %v7924 = vld [vmem:[%s7908 + $0x3c] sm:$0xf]
        %v7925 = vld [vmem:[%s7908 + $0x40] sm:$0xf]
        %v7926 = vld [vmem:[%s7908 + $0x44] sm:$0xf]
        %v7945 = vunpack.c.l.b16 %v7909
        %v7946 = vunpack.c.l.b16 %v7910
        %v7947 = vunpack.c.l.b16 %v7911
        %v7948 = vunpack.c.l.b16 %v7912
        %v7949 = vunpack.c.l.b16 %v7913
        %v7950 = vunpack.c.l.b16 %v7914
        %v7951 = vunpack.c.l.b16 %v7915
        %v7952 = vunpack.c.l.b16 %v7916
        %v7953 = vunpack.c.l.b16 %v7917
        %v7954 = vunpack.c.l.b16 %v7918
        %v7955 = vunpack.c.l.b16 %v7919
        %v7956 = vunpack.c.l.b16 %v7920
        %v7957 = vunpack.c.l.b16 %v7921
        %v7958 = vunpack.c.l.b16 %v7922
        %v7959 = vunpack.c.l.b16 %v7923
        %v7960 = vunpack.c.l.b16 %v7924
        %v7961 = vunpack.c.l.b16 %v7925
        %v7962 = vunpack.c.l.b16 %v7926
        %v7963 = vpack.c.b16 %v7946, %v7945
        %v7964 = vpack.c.b16 %v7948, %v7947
        %v7965 = vpack.c.b16 %v7950, %v7949
        %v7966 = vpack.c.b16 %v7952, %v7951
        %v7967 = vpack.c.b16 %v7954, %v7953
        %v7968 = vpack.c.b16 %v7956, %v7955
        %v7969 = vpack.c.b16 %v7958, %v7957
        %v7970 = vpack.c.b16 %v7960, %v7959
        %v7971 = vpack.c.b16 %v7962, %v7961
        %v7982 = vsel %vm7389, %v7907, 0
        %7984 = vmatprep.subr.bf16.mxu0 0
        %7985 = vmatpush1.bf16.msra.mxu0 %v7970
        %7986 = vmatprep.subr.bf16.mxu0 0
        %7987 = vmatpush1.bf16.msra.mxu0 %v7969
        %7988 = vmatprep.subr.bf16.mxu0 0
        %7989 = vmatpush1.bf16.msra.mxu0 %v7968
        %7990 = vmatprep.subr.bf16.mxu0 0
        %7991 = vmatpush1.bf16.msra.mxu0 %v7967
        %7992 = vmatprep.subr.bf16.mxu0 0
        %7993 = vmatpush1.bf16.msra.mxu0 %v7966
        %7994 = vmatprep.subr.bf16.mxu0 0
        %7995 = vmatpush1.bf16.msra.mxu0 %v7965
        %7996 = vmatprep.subr.bf16.mxu0 0
        %7997 = vmatpush1.bf16.msra.mxu0 %v7964
        %7998 = vmatprep.subr.bf16.mxu0 0
        %7999 = vmatpush1.bf16.msra.mxu0 %v7963
        %8000 = vmatprep.subr.bf16.mxu0 0
        %8001 = vmatpush2.bf16.msra.mxu0 0
        %8002 = vmatprep.subr.bf16.mxu0 0
        %8003 = vmatpush2.bf16.msra.mxu0 0
        %8004 = vmatprep.subr.bf16.mxu0 0
        %8005 = vmatpush2.bf16.msra.mxu0 0
        %8006 = vmatprep.subr.bf16.mxu0 0
        %8007 = vmatpush2.bf16.msra.mxu0 0
        %8008 = vmatprep.subr.bf16.mxu0 0
        %8009 = vmatpush2.bf16.msra.mxu0 0
        %8010 = vmatprep.subr.bf16.mxu0 0
        %8011 = vmatpush2.bf16.msra.mxu0 0
        %8012 = vmatprep.subr.bf16.mxu0 0
        %8013 = vmatpush2.bf16.msra.mxu0 0
        %8014 = vmatprep.subr.bf16.mxu0 0
        %8015 = vmatpush2.bf16.msra.mxu0 %v7971
        %8016 = vmatprep.mubr.bf16.mxu0 %v7982
        %8017 = vmatmul.mubr.bf16.gmra.mxu0 %v7906
        %v8018 = vpop.f32.mrf.mxu0
        %v8019 = vadd.f32 0.0, %v8018
        %v8020 = vpop.f32.mrf.mxu0
        %v8021 = vpop.f32.mrf.mxu0
        %v8022 = vpop.f32.mrf.mxu0
        %8023 = vdwg.mxu0
        %v8024 = vadd.f32 %v7859, %v8019
        %v8025 = vld [vmem:[%s10] sm:$0x1]
        %v8027 = vlaneseq
        %v8028 = vshrl.u32 %v8027, 7
        %v8029 = vsub.s32 0, %v8028
        %v8030 = vrot.slane %v8025, %v8029
        %v8032 = vadd.f32 %v8024, %v8030
        %v8033 = vmax.f32 %v8032, 0.0
        %v8034 = vpack.c.bf16 %v8033, %v8033
        %v8035 = vld [vmem:[%s12] sm:$0xf]
        %v8036 = vld [vmem:[%s12 + $0x4] sm:$0xf]
        %v8037 = vld [vmem:[%s12 + $0x8] sm:$0xf]
        %v8038 = vld [vmem:[%s12 + $0xc] sm:$0xf]
        %v8039 = vld [vmem:[%s12 + $0x10] sm:$0xf]
        %v8040 = vld [vmem:[%s12 + $0x14] sm:$0xf]
        %v8041 = vld [vmem:[%s12 + $0x18] sm:$0xf]
        %v8042 = vld [vmem:[%s12 + $0x1c] sm:$0xf]
        %v8043 = vld [vmem:[%s12 + $0x20] sm:$0xf]
        %v8044 = vld [vmem:[%s12 + $0x24] sm:$0xf]
        %v8045 = vld [vmem:[%s12 + $0x28] sm:$0xf]
        %v8046 = vld [vmem:[%s12 + $0x2c] sm:$0xf]
        %v8047 = vld [vmem:[%s12 + $0x30] sm:$0xf]
        %v8048 = vld [vmem:[%s12 + $0x34] sm:$0xf]
        %v8049 = vld [vmem:[%s12 + $0x38] sm:$0xf]
        %v8050 = vld [vmem:[%s12 + $0x3c] sm:$0xf]
        %v8051 = vld [vmem:[%s13] sm:$0x1]
        %v8053 = vlaneseq
        %v8054 = vshrl.u32 %v8053, 7
        %v8055 = vsub.s32 0, %v8054
        %v8056 = vrot.slane %v8051, %v8055
        %v8074 = vunpack.c.l.b16 %v8035
        %v8075 = vunpack.c.l.b16 %v8036
        %v8076 = vunpack.c.l.b16 %v8037
        %v8077 = vunpack.c.l.b16 %v8038
        %v8078 = vunpack.c.l.b16 %v8039
        %v8079 = vunpack.c.l.b16 %v8040
        %v8080 = vunpack.c.l.b16 %v8041
        %v8081 = vunpack.c.l.b16 %v8042
        %v8082 = vunpack.c.l.b16 %v8043
        %v8083 = vunpack.c.l.b16 %v8044
        %v8084 = vunpack.c.l.b16 %v8045
        %v8085 = vunpack.c.l.b16 %v8046
        %v8086 = vunpack.c.l.b16 %v8047
        %v8087 = vunpack.c.l.b16 %v8048
        %v8088 = vunpack.c.l.b16 %v8049
        %v8089 = vunpack.c.l.b16 %v8050
        %v8090 = vpack.c.b16 %v8075, %v8074
        %v8091 = vpack.c.b16 %v8077, %v8076
        %v8092 = vpack.c.b16 %v8079, %v8078
        %v8093 = vpack.c.b16 %v8081, %v8080
        %v8094 = vpack.c.b16 %v8083, %v8082
        %v8095 = vpack.c.b16 %v8085, %v8084
        %v8096 = vpack.c.b16 %v8087, %v8086
        %v8097 = vpack.c.b16 %v8089, %v8088
        %8106 = vmatprep.subr.bf16.mxu0 0
        %8107 = vmatpush1.bf16.msra.mxu0 %v8097
        %8108 = vmatprep.subr.bf16.mxu0 0
        %8109 = vmatpush1.bf16.msra.mxu0 %v8096
        %8110 = vmatprep.subr.bf16.mxu0 0
        %8111 = vmatpush1.bf16.msra.mxu0 %v8095
        %8112 = vmatprep.subr.bf16.mxu0 0
        %8113 = vmatpush1.bf16.msra.mxu0 %v8094
        %8114 = vmatprep.subr.bf16.mxu0 0
        %8115 = vmatpush1.bf16.msra.mxu0 %v8093
        %8116 = vmatprep.subr.bf16.mxu0 0
        %8117 = vmatpush1.bf16.msra.mxu0 %v8092
        %8118 = vmatprep.subr.bf16.mxu0 0
        %8119 = vmatpush1.bf16.msra.mxu0 %v8091
        %8120 = vmatprep.subr.bf16.mxu0 0
        %8121 = vmatpush1.bf16.msra.mxu0 %v8090
        %8122 = vmatprep.subr.bf16.mxu0 0
        %8123 = vmatpush2.bf16.msra.mxu0 0
        %8124 = vmatprep.subr.bf16.mxu0 0
        %8125 = vmatpush2.bf16.msra.mxu0 0
        %8126 = vmatprep.subr.bf16.mxu0 0
        %8127 = vmatpush2.bf16.msra.mxu0 0
        %8128 = vmatprep.subr.bf16.mxu0 0
        %8129 = vmatpush2.bf16.msra.mxu0 0
        %8130 = vmatprep.subr.bf16.mxu0 0
        %8131 = vmatpush2.bf16.msra.mxu0 0
        %8132 = vmatprep.subr.bf16.mxu0 0
        %8133 = vmatpush2.bf16.msra.mxu0 0
        %8134 = vmatprep.subr.bf16.mxu0 0
        %8135 = vmatpush2.bf16.msra.mxu0 0
        %8136 = vmatprep.subr.bf16.mxu0 0
        %8137 = vmatpush2.bf16.msra.mxu0 0
        %8138 = vmatprep.mubr.bf16.mxu0 0
        %8139 = vmatmul.mubr.bf16.gmra.mxu0 %v8034
        %v8140 = vpop.f32.mrf.mxu0
        %v8141 = vadd.f32 %v8056, %v8140
        %v8142 = vpop.f32.mrf.mxu0
        %v8143 = vpop.f32.mrf.mxu0
        %v8144 = vpop.f32.mrf.mxu0
        %8145 = vdwg.mxu0
        %v8146 = vmax.f32 %v8141, 0.0
        %v8147 = vpack.c.bf16 %v8146, %v8146
        %v8148 = vld [vmem:[%s14] sm:$0xf]
        %v8149 = vld [vmem:[%s14 + $0x4] sm:$0xf]
        %v8150 = vld [vmem:[%s14 + $0x8] sm:$0xf]
        %v8151 = vld [vmem:[%s14 + $0xc] sm:$0xf]
        %v8152 = vld [vmem:[%s14 + $0x10] sm:$0xf]
        %v8153 = vld [vmem:[%s14 + $0x14] sm:$0xf]
        %v8154 = vld [vmem:[%s14 + $0x18] sm:$0xf]
        %v8155 = vld [vmem:[%s14 + $0x1c] sm:$0xf]
        %v8156 = vld [vmem:[%s14 + $0x20] sm:$0xf]
        %v8157 = vld [vmem:[%s14 + $0x24] sm:$0xf]
        %v8158 = vld [vmem:[%s14 + $0x28] sm:$0xf]
        %v8159 = vld [vmem:[%s14 + $0x2c] sm:$0xf]
        %v8160 = vld [vmem:[%s14 + $0x30] sm:$0xf]
        %v8161 = vld [vmem:[%s14 + $0x34] sm:$0xf]
        %v8162 = vld [vmem:[%s14 + $0x38] sm:$0xf]
        %v8163 = vld [vmem:[%s14 + $0x3c] sm:$0xf]
        %v8164 = vld [vmem:[%s15] sm:$0x1]
        %v8166 = vlaneseq
        %v8167 = vshrl.u32 %v8166, 7
        %v8168 = vsub.s32 0, %v8167
        %v8169 = vrot.slane %v8164, %v8168
        %v8187 = vunpack.c.l.b16 %v8148
        %v8188 = vunpack.c.l.b16 %v8149
        %v8189 = vunpack.c.l.b16 %v8150
        %v8190 = vunpack.c.l.b16 %v8151
        %v8191 = vunpack.c.l.b16 %v8152
        %v8192 = vunpack.c.l.b16 %v8153
        %v8193 = vunpack.c.l.b16 %v8154
        %v8194 = vunpack.c.l.b16 %v8155
        %v8195 = vunpack.c.l.b16 %v8156
        %v8196 = vunpack.c.l.b16 %v8157
        %v8197 = vunpack.c.l.b16 %v8158
        %v8198 = vunpack.c.l.b16 %v8159
        %v8199 = vunpack.c.l.b16 %v8160
        %v8200 = vunpack.c.l.b16 %v8161
        %v8201 = vunpack.c.l.b16 %v8162
        %v8202 = vunpack.c.l.b16 %v8163
        %v8203 = vpack.c.b16 %v8188, %v8187
        %v8204 = vpack.c.b16 %v8190, %v8189
        %v8205 = vpack.c.b16 %v8192, %v8191
        %v8206 = vpack.c.b16 %v8194, %v8193
        %v8207 = vpack.c.b16 %v8196, %v8195
        %v8208 = vpack.c.b16 %v8198, %v8197
        %v8209 = vpack.c.b16 %v8200, %v8199
        %v8210 = vpack.c.b16 %v8202, %v8201
        %8219 = vmatprep.subr.bf16.mxu0 0
        %8220 = vmatpush1.bf16.msra.mxu0 %v8210
        %8221 = vmatprep.subr.bf16.mxu0 0
        %8222 = vmatpush1.bf16.msra.mxu0 %v8209
        %8223 = vmatprep.subr.bf16.mxu0 0
        %8224 = vmatpush1.bf16.msra.mxu0 %v8208
        %8225 = vmatprep.subr.bf16.mxu0 0
        %8226 = vmatpush1.bf16.msra.mxu0 %v8207
        %8227 = vmatprep.subr.bf16.mxu0 0
        %8228 = vmatpush1.bf16.msra.mxu0 %v8206
        %8229 = vmatprep.subr.bf16.mxu0 0
        %8230 = vmatpush1.bf16.msra.mxu0 %v8205
        %8231 = vmatprep.subr.bf16.mxu0 0
        %8232 = vmatpush1.bf16.msra.mxu0 %v8204
        %8233 = vmatprep.subr.bf16.mxu0 0
        %8234 = vmatpush1.bf16.msra.mxu0 %v8203
        %8235 = vmatprep.subr.bf16.mxu0 0
        %8236 = vmatpush2.bf16.msra.mxu0 0
        %8237 = vmatprep.subr.bf16.mxu0 0
        %8238 = vmatpush2.bf16.msra.mxu0 0
        %8239 = vmatprep.subr.bf16.mxu0 0
        %8240 = vmatpush2.bf16.msra.mxu0 0
        %8241 = vmatprep.subr.bf16.mxu0 0
        %8242 = vmatpush2.bf16.msra.mxu0 0
        %8243 = vmatprep.subr.bf16.mxu0 0
        %8244 = vmatpush2.bf16.msra.mxu0 0
        %8245 = vmatprep.subr.bf16.mxu0 0
        %8246 = vmatpush2.bf16.msra.mxu0 0
        %8247 = vmatprep.subr.bf16.mxu0 0
        %8248 = vmatpush2.bf16.msra.mxu0 0
        %8249 = vmatprep.subr.bf16.mxu0 0
        %8250 = vmatpush2.bf16.msra.mxu0 0
        %8251 = vmatprep.mubr.bf16.mxu0 0
        %8252 = vmatmul.mubr.bf16.gmra.mxu0 %v8147
        %v8253 = vpop.f32.mrf.mxu0
        %v8254 = vadd.f32 %v8169, %v8253
        %v8255 = vpop.f32.mrf.mxu0
        %v8256 = vpop.f32.mrf.mxu0
        %v8257 = vpop.f32.mrf.mxu0
        %8258 = vdwg.mxu0
        %8259 = vst [vmem:[%s515] sm:$0xff] %v8254
        %s8260 = sand.u32 %s379, 1
        %s8261 = scalar_lea.sflag [#allocation3], %s8260
        %s8262 = sand.u32 %s379, 1
        %s8263 = smul.addr %s8262, 8
        %s8264 = scalar_lea.vmem [#allocation2], %s8263
        // Predicated region
        $region85: #{net_forward.1} parent=83 // pred_check
          %p8265 = pneg %p389
        $region86: #{net_forward.1} parent=83 // pred_check_branch
          %8267 = sbr.rel (%p8265) target = $region88
        $region87: #{net_forward.1} parent=83 // pred_region
          %s8269 = ssub.s32 128, 128
          %8270 = vsyncadd %s8261, %s8269
          %s8271 = smul.addr %s30, 128
          %s8272 = scalar_lea.hbm %s16, %s8271
          %s8274 = sshll.u32 %s8264, 4
          %s8275 = int_to_ptr.vmem [resolvable:$true] %s8274
          %8277 = dma.vmem_to_hbm [thread:$0]  %s8275, 128, %s8272, %s8261
        $region88: #{net_forward.1} parent=83 // pred_fallthru
          _
      $region84: #{net_forward.1} parent=5 // pred_fallthru
        _
      %p8278 = scmp.le.s32.totalorder 2, %s25
      // Predicated region
      $region89: #{net_forward.1} parent=5 // pred_check
        %p8279 = pneg %p8278
      $region90: #{net_forward.1} parent=5 // pred_check_branch
        %8281 = sbr.rel (%p8279) target = $region92
      $region91: #{net_forward.1} parent=5 // pred_region
        %s8282 = ssub.s32 %s25, 2
        // Predicated region
        $region93: #{net_forward.1} parent=91 // pred_check
          %p8283 = pneg %p395
        $region94: #{net_forward.1} parent=91 // pred_check_branch
          %8285 = sbr.rel (%p8283) target = $region96
        $region95: #{net_forward.1} parent=91 // pred_region
          %s8286 = sand.u32 %s380, 1
          %s8287 = scalar_lea.sflag [#allocation3], %s8286
          %s8288 = sand.u32 %s380, 1
          %s8289 = smul.addr %s8288, 8
          %s8290 = scalar_lea.vmem [#allocation2], %s8289
          %8291 = dma.done %s8287, 128
        $region96: #{net_forward.1} parent=91 // pred_fallthru
          _
      $region92: #{net_forward.1} parent=5 // pred_fallthru
        _
    $region6: #{net_forward.1} parent=1 // loop_footer
      %s29 = sadd.s32 1, %s25
    $region7: #{net_forward.1} parent=1 // loop_footer_branch
      %24 = sbr.rel target = $region3
    $region8: #{net_forward.1} parent=1 // loop_exit
      _
    %8292 = vsyncpa [#allocation3], 1
    %s8293 = scalar_lea.sflag [#allocation3], 1
    %8294 = vsyncpa %s8293, 1

</llo_original>
